<compile_context>
chip_gen: v7x
topology: tpu7x:2x2x1
jax: 0.10.0
libtpu: 0.0.40
codegen_flags: <defaults>
</compile_context>

<pallas_src>
import jax
import jax.numpy as jnp
import numpy as np
from jax.experimental import pallas as pl
from jax.experimental.pallas import tpu as pltpu

KH, KW = 7, 7      # kernel size
PAD = 3            # "same" padding
ROW_STRIP = 7      # output rows accumulated at a time (14 = 2 * 7)


def dwconv_kernel(x_ref, w_ref, b_ref, o_ref, xpad_ref):
    """Depthwise 7x7 conv on one (batch, channel-tile) block.

    x_ref    : (H, W, CT)              unpadded NHWC input tile (VMEM)
    w_ref    : (KH, KW, CT)            per-channel filter taps
    b_ref    : (1, CT)                 per-channel bias
    o_ref    : (H, W, CT)              output tile
    xpad_ref : (H+2*PAD, W+2*PAD, CT)  VMEM scratch holding the padded input
    """
    H, W, CT = o_ref.shape

    # ---- fused zero padding: build the padded tile in VMEM scratch ----
    xpad_ref[...] = jnp.zeros(xpad_ref.shape, xpad_ref.dtype)
    xpad_ref[PAD:PAD + H, PAD:PAD + W, :] = x_ref[...]

    bias = b_ref[0, :].astype(jnp.float32)           # (CT,), broadcasts on lanes

    # ---- 49-tap multiply-accumulate over row strips (bounds vreg pressure) ----
    for r0 in range(0, H, ROW_STRIP):
        rs = min(ROW_STRIP, H - r0)
        # accumulator initialized with bias -> no extra bias pass at the end
        acc = jnp.broadcast_to(bias, (rs, W, CT))
        for kh in range(KH):
            for kw in range(KW):
                patch = xpad_ref[r0 + kh:r0 + kh + rs, kw:kw + W, :].astype(jnp.float32)
                tap = w_ref[kh, kw, :].astype(jnp.float32)   # (CT,)
                acc = acc + patch * tap
        o_ref[r0:r0 + rs, :, :] = acc.astype(o_ref.dtype)


def depthwise_conv2d_nhwc(x_nhwc, w_hwc, bias, *, channel_tile=128):
    """Pure Pallas path. x_nhwc: (N,H,W,C); w_hwc: (KH,KW,C); bias: (C,) -> NHWC."""
    N, H, W, C = x_nhwc.shape
    assert C % channel_tile == 0, (C, channel_tile)
    b2 = bias.reshape(1, C)

    esize = np.dtype(x_nhwc.dtype).itemsize
    cost = pl.CostEstimate(
        flops=2 * KH * KW * N * H * W * C,
        transcendentals=0,
        bytes_accessed=(2 * N * H * W * C + KH * KW * C + C) * esize,
    )

    return pl.pallas_call(
        dwconv_kernel,
        out_shape=jax.ShapeDtypeStruct((N, H, W, C), x_nhwc.dtype),
        grid_spec=pltpu.PrefetchScalarGridSpec(
            num_scalar_prefetch=0,
            grid=(N, C // channel_tile),
            in_specs=[
                # unpadded spatial tile, one 128-wide channel tile per step
                pl.BlockSpec((pl.Squeezed(), H, W, channel_tile),
                             lambda n, c: (n, 0, 0, c)),
                pl.BlockSpec((KH, KW, channel_tile),
                             lambda n, c: (0, 0, c)),
                pl.BlockSpec((1, channel_tile),
                             lambda n, c: (0, c)),
            ],
            out_specs=pl.BlockSpec((pl.Squeezed(), H, W, channel_tile),
                                   lambda n, c: (n, 0, 0, c)),
            scratch_shapes=[
                pltpu.VMEM((H + 2 * PAD, W + 2 * PAD, channel_tile),
                           x_nhwc.dtype),
            ],
        ),
        compiler_params=pltpu.CompilerParams(
            dimension_semantics=("parallel", "parallel")),
        cost_estimate=cost,
    )(x_nhwc, w_hwc, b2)


def depthwise_conv2d_nchw(x_nchw, weight, bias, *, channel_tile=128):
    """NCHW adapter matching PyTorch Conv2d(C, C, 7, padding=3, groups=C).

    The transposes here exist only for the NCHW module interface; in an NHWC
    end-to-end model call depthwise_conv2d_nhwc directly (zero layout ops).
    """
    w_hwc = jnp.transpose(weight[:, 0, :, :], (1, 2, 0))       # (KH, KW, C)
    x_nhwc = jnp.transpose(x_nchw, (0, 2, 3, 1))
    y = depthwise_conv2d_nhwc(x_nhwc, w_hwc, bias, channel_tile=channel_tile)
    return jnp.transpose(y, (0, 3, 1, 2))


if __name__ == "__main__":
    # Shapes taken directly from the module: x161 = randn([1, 768, 14, 14])
    N, C, H, W = 1, 768, 14, 14

    key = jax.random.PRNGKey(0)
    kx, kw, kb = jax.random.split(key, 3)

    x = jax.random.normal(kx, (N, C, H, W), dtype=jnp.float32)
    # deterministic synthetic params (shapes match Conv2d(768,768,7,groups=768))
    fan_in = 1 * KH * KW
    bound = 1.0 / np.sqrt(fan_in)
    weight = jax.random.uniform(kw, (C, 1, KH, KW), minval=-bound, maxval=bound,
                                dtype=jnp.float32)
    bias = jax.random.uniform(kb, (C,), minval=-bound, maxval=bound,
                              dtype=jnp.float32)

    fwd = jax.jit(depthwise_conv2d_nchw)
    y = jax.block_until_ready(fwd(x, weight, bias))

    # Reference: XLA grouped convolution (same semantics as the PyTorch module)
    ref = jax.lax.conv_general_dilated(
        x, weight, window_strides=(1, 1), padding=((PAD, PAD), (PAD, PAD)),
        dimension_numbers=("NCHW", "OIHW", "NCHW"),
        feature_group_count=C) + bias.reshape(1, C, 1, 1)
    ref = jax.block_until_ready(ref)

    assert y.shape == (N, C, H, W), y.shape
    np.testing.assert_allclose(np.asarray(y), np.asarray(ref),
                               rtol=1e-4, atol=1e-4)
    print("KERNEL_OK")
</pallas_src>

<mosaic_0001>
module attributes {stable_mosaic.version = 11 : i64} {
  func.func @dwconv_kernel(%arg0: i32, %arg1: i32, %arg2: memref<1x14x14x128xf32, #tpu.memory_space<vmem>>, %arg3: memref<7x7x128xf32, #tpu.memory_space<vmem>>, %arg4: memref<1x128xf32, #tpu.memory_space<vmem>>, %arg5: memref<1x14x14x128xf32, #tpu.memory_space<vmem>>, %arg6: memref<20x20x128xf32, #tpu.memory_space<vmem>>) attributes {dimension_semantics = [#tpu.dimension_semantics<parallel>, #tpu.dimension_semantics<parallel>], iteration_bounds = array<i64: 1, 6>, scalar_prefetch = 0 : i64, scratch_operands = 1 : i64, tpu.core_type = #tpu.core_type<tc>, window_params = [{transform_indices = @transform_0, window_bounds = array<i64: 1, 14, 14, 128>}, {transform_indices = @transform_1, window_bounds = array<i64: 7, 7, 128>}, {transform_indices = @transform_2, window_bounds = array<i64: 1, 128>}, {transform_indices = @transform_3, window_bounds = array<i64: 1, 14, 14, 128>}]} {
    %cst = arith.constant 0.000000e+00 : f32
    %0 = vector.broadcast %cst : f32 to vector<20x20x128xf32>
    %c0 = arith.constant 0 : index
    %c0_0 = arith.constant 0 : index
    %c0_1 = arith.constant 0 : index
    %1 = vector.load %arg6[%c0, %c0_0, %c0_1] : memref<20x20x128xf32, #tpu.memory_space<vmem>>, vector<20x20x128xf32>
    tpu.vector_store %arg6[%c0, %c0_0, %c0_1], %0 {strides = array<i32>} : memref<20x20x128xf32, #tpu.memory_space<vmem>>, vector<20x20x128xf32>,
    %c0_2 = arith.constant 0 : index
    %c0_3 = arith.constant 0 : index
    %c0_4 = arith.constant 0 : index
    %c0_5 = arith.constant 0 : index
    %2 = vector.load %arg2[%c0_2, %c0_3, %c0_4, %c0_5] : memref<1x14x14x128xf32, #tpu.memory_space<vmem>>, vector<1x14x14x128xf32>
    %3 = vector.shape_cast %2 : vector<1x14x14x128xf32> to vector<14x14x128xf32>
    %c3 = arith.constant 3 : index
    %c3_6 = arith.constant 3 : index
    %c0_7 = arith.constant 0 : index
    %4 = vector.load %arg6[%c3, %c3_6, %c0_7] : memref<20x20x128xf32, #tpu.memory_space<vmem>>, vector<14x14x128xf32>
    tpu.vector_store %arg6[%c3, %c3_6, %c0_7], %3 {strides = array<i32>} : memref<20x20x128xf32, #tpu.memory_space<vmem>>, vector<14x14x128xf32>,
    %c0_8 = arith.constant 0 : index
    %c0_9 = arith.constant 0 : index
    %5 = vector.load %arg4[%c0_8, %c0_9] : memref<1x128xf32, #tpu.memory_space<vmem>>, vector<1x128xf32>
    %6 = vector.shape_cast %5 : vector<1x128xf32> to vector<128xf32>
    %7 = vector.shape_cast %6 : vector<128xf32> to vector<1x1x128xf32>
    %8 = vector.broadcast %7 : vector<1x1x128xf32> to vector<7x14x128xf32>
    %c0_10 = arith.constant 0 : index
    %c0_11 = arith.constant 0 : index
    %c0_12 = arith.constant 0 : index
    %9 = vector.load %arg6[%c0_10, %c0_11, %c0_12] : memref<20x20x128xf32, #tpu.memory_space<vmem>>, vector<7x14x128xf32>
    %c0_13 = arith.constant 0 : index
    %c0_14 = arith.constant 0 : index
    %c0_15 = arith.constant 0 : index
    %10 = vector.load %arg3[%c0_13, %c0_14, %c0_15] : memref<7x7x128xf32, #tpu.memory_space<vmem>>, vector<1x1x128xf32>
    %11 = vector.shape_cast %10 : vector<1x1x128xf32> to vector<128xf32>
    %12 = vector.shape_cast %11 : vector<128xf32> to vector<1x1x128xf32>
    %13 = vector.broadcast %12 : vector<1x1x128xf32> to vector<7x14x128xf32>
    %14 = arith.mulf %9, %13 : vector<7x14x128xf32>
    %15 = arith.addf %8, %14 : vector<7x14x128xf32>
    %c0_16 = arith.constant 0 : index
    %c1 = arith.constant 1 : index
    %c0_17 = arith.constant 0 : index
    %16 = vector.load %arg6[%c0_16, %c1, %c0_17] : memref<20x20x128xf32, #tpu.memory_space<vmem>>, vector<7x14x128xf32>
    %c0_18 = arith.constant 0 : index
    %c1_19 = arith.constant 1 : index
    %c0_20 = arith.constant 0 : index
    %17 = vector.load %arg3[%c0_18, %c1_19, %c0_20] : memref<7x7x128xf32, #tpu.memory_space<vmem>>, vector<1x1x128xf32>
    %18 = vector.shape_cast %17 : vector<1x1x128xf32> to vector<128xf32>
    %19 = vector.shape_cast %18 : vector<128xf32> to vector<1x1x128xf32>
    %20 = vector.broadcast %19 : vector<1x1x128xf32> to vector<7x14x128xf32>
    %21 = arith.mulf %16, %20 : vector<7x14x128xf32>
    %22 = arith.addf %15, %21 : vector<7x14x128xf32>
    %c0_21 = arith.constant 0 : index
    %c2 = arith.constant 2 : index
    %c0_22 = arith.constant 0 : index
    %23 = vector.load %arg6[%c0_21, %c2, %c0_22] : memref<20x20x128xf32, #tpu.memory_space<vmem>>, vector<7x14x128xf32>
    %c0_23 = arith.constant 0 : index
    %c2_24 = arith.constant 2 : index
    %c0_25 = arith.constant 0 : index
    %24 = vector.load %arg3[%c0_23, %c2_24, %c0_25] : memref<7x7x128xf32, #tpu.memory_space<vmem>>, vector<1x1x128xf32>
    %25 = vector.shape_cast %24 : vector<1x1x128xf32> to vector<128xf32>
    %26 = vector.shape_cast %25 : vector<128xf32> to vector<1x1x128xf32>
    %27 = vector.broadcast %26 : vector<1x1x128xf32> to vector<7x14x128xf32>
    %28 = arith.mulf %23, %27 : vector<7x14x128xf32>
    %29 = arith.addf %22, %28 : vector<7x14x128xf32>
    %c0_26 = arith.constant 0 : index
    %c3_27 = arith.constant 3 : index
    %c0_28 = arith.constant 0 : index
    %30 = vector.load %arg6[%c0_26, %c3_27, %c0_28] : memref<20x20x128xf32, #tpu.memory_space<vmem>>, vector<7x14x128xf32>
    %c0_29 = arith.constant 0 : index
    %c3_30 = arith.constant 3 : index
    %c0_31 = arith.constant 0 : index
    %31 = vector.load %arg3[%c0_29, %c3_30, %c0_31] : memref<7x7x128xf32, #tpu.memory_space<vmem>>, vector<1x1x128xf32>
    %32 = vector.shape_cast %31 : vector<1x1x128xf32> to vector<128xf32>
    %33 = vector.shape_cast %32 : vector<128xf32> to vector<1x1x128xf32>
    %34 = vector.broadcast %33 : vector<1x1x128xf32> to vector<7x14x128xf32>
    %35 = arith.mulf %30, %34 : vector<7x14x128xf32>
    %36 = arith.addf %29, %35 : vector<7x14x128xf32>
    %c0_32 = arith.constant 0 : index
    %c4 = arith.constant 4 : index
    %c0_33 = arith.constant 0 : index
    %37 = vector.load %arg6[%c0_32, %c4, %c0_33] : memref<20x20x128xf32, #tpu.memory_space<vmem>>, vector<7x14x128xf32>
    %c0_34 = arith.constant 0 : index
    %c4_35 = arith.constant 4 : index
    %c0_36 = arith.constant 0 : index
    %38 = vector.load %arg3[%c0_34, %c4_35, %c0_36] : memref<7x7x128xf32, #tpu.memory_space<vmem>>, vector<1x1x128xf32>
    %39 = vector.shape_cast %38 : vector<1x1x128xf32> to vector<128xf32>
    %40 = vector.shape_cast %39 : vector<128xf32> to vector<1x1x128xf32>
    %41 = vector.broadcast %40 : vector<1x1x128xf32> to vector<7x14x128xf32>
    %42 = arith.mulf %37, %41 : vector<7x14x128xf32>
    %43 = arith.addf %36, %42 : vector<7x14x128xf32>
    %c0_37 = arith.constant 0 : index
    %c5 = arith.constant 5 : index
    %c0_38 = arith.constant 0 : index
    %44 = vector.load %arg6[%c0_37, %c5, %c0_38] : memref<20x20x128xf32, #tpu.memory_space<vmem>>, vector<7x14x128xf32>
    %c0_39 = arith.constant 0 : index
    %c5_40 = arith.constant 5 : index
    %c0_41 = arith.constant 0 : index
    %45 = vector.load %arg3[%c0_39, %c5_40, %c0_41] : memref<7x7x128xf32, #tpu.memory_space<vmem>>, vector<1x1x128xf32>
    %46 = vector.shape_cast %45 : vector<1x1x128xf32> to vector<128xf32>
    %47 = vector.shape_cast %46 : vector<128xf32> to vector<1x1x128xf32>
    %48 = vector.broadcast %47 : vector<1x1x128xf32> to vector<7x14x128xf32>
    %49 = arith.mulf %44, %48 : vector<7x14x128xf32>
    %50 = arith.addf %43, %49 : vector<7x14x128xf32>
    %c0_42 = arith.constant 0 : index
    %c6 = arith.constant 6 : index
    %c0_43 = arith.constant 0 : index
    %51 = vector.load %arg6[%c0_42, %c6, %c0_43] : memref<20x20x128xf32, #tpu.memory_space<vmem>>, vector<7x14x128xf32>
    %c0_44 = arith.constant 0 : index
    %c6_45 = arith.constant 6 : index
    %c0_46 = arith.constant 0 : index
    %52 = vector.load %arg3[%c0_44, %c6_45, %c0_46] : memref<7x7x128xf32, #tpu.memory_space<vmem>>, vector<1x1x128xf32>
    %53 = vector.shape_cast %52 : vector<1x1x128xf32> to vector<128xf32>
    %54 = vector.shape_cast %53 : vector<128xf32> to vector<1x1x128xf32>
    %55 = vector.broadcast %54 : vector<1x1x128xf32> to vector<7x14x128xf32>
    %56 = arith.mulf %51, %55 : vector<7x14x128xf32>
    %57 = arith.addf %50, %56 : vector<7x14x128xf32>
    %c1_47 = arith.constant 1 : index
    %c0_48 = arith.constant 0 : index
    %c0_49 = arith.constant 0 : index
    %58 = vector.load %arg6[%c1_47, %c0_48, %c0_49] : memref<20x20x128xf32, #tpu.memory_space<vmem>>, vector<7x14x128xf32>
    %c1_50 = arith.constant 1 : index
    %c0_51 = arith.constant 0 : index
    %c0_52 = arith.constant 0 : index
    %59 = vector.load %arg3[%c1_50, %c0_51, %c0_52] : memref<7x7x128xf32, #tpu.memory_space<vmem>>, vector<1x1x128xf32>
    %60 = vector.shape_cast %59 : vector<1x1x128xf32> to vector<128xf32>
    %61 = vector.shape_cast %60 : vector<128xf32> to vector<1x1x128xf32>
    %62 = vector.broadcast %61 : vector<1x1x128xf32> to vector<7x14x128xf32>
    %63 = arith.mulf %58, %62 : vector<7x14x128xf32>
    %64 = arith.addf %57, %63 : vector<7x14x128xf32>
    %c1_53 = arith.constant 1 : index
    %c1_54 = arith.constant 1 : index
    %c0_55 = arith.constant 0 : index
    %65 = vector.load %arg6[%c1_53, %c1_54, %c0_55] : memref<20x20x128xf32, #tpu.memory_space<vmem>>, vector<7x14x128xf32>
    %c1_56 = arith.constant 1 : index
    %c1_57 = arith.constant 1 : index
    %c0_58 = arith.constant 0 : index
    %66 = vector.load %arg3[%c1_56, %c1_57, %c0_58] : memref<7x7x128xf32, #tpu.memory_space<vmem>>, vector<1x1x128xf32>
    %67 = vector.shape_cast %66 : vector<1x1x128xf32> to vector<128xf32>
    %68 = vector.shape_cast %67 : vector<128xf32> to vector<1x1x128xf32>
    %69 = vector.broadcast %68 : vector<1x1x128xf32> to vector<7x14x128xf32>
    %70 = arith.mulf %65, %69 : vector<7x14x128xf32>
    %71 = arith.addf %64, %70 : vector<7x14x128xf32>
    %c1_59 = arith.constant 1 : index
    %c2_60 = arith.constant 2 : index
    %c0_61 = arith.constant 0 : index
    %72 = vector.load %arg6[%c1_59, %c2_60, %c0_61] : memref<20x20x128xf32, #tpu.memory_space<vmem>>, vector<7x14x128xf32>
    %c1_62 = arith.constant 1 : index
    %c2_63 = arith.constant 2 : index
    %c0_64 = arith.constant 0 : index
    %73 = vector.load %arg3[%c1_62, %c2_63, %c0_64] : memref<7x7x128xf32, #tpu.memory_space<vmem>>, vector<1x1x128xf32>
    %74 = vector.shape_cast %73 : vector<1x1x128xf32> to vector<128xf32>
    %75 = vector.shape_cast %74 : vector<128xf32> to vector<1x1x128xf32>
    %76 = vector.broadcast %75 : vector<1x1x128xf32> to vector<7x14x128xf32>
    %77 = arith.mulf %72, %76 : vector<7x14x128xf32>
    %78 = arith.addf %71, %77 : vector<7x14x128xf32>
    %c1_65 = arith.constant 1 : index
    %c3_66 = arith.constant 3 : index
    %c0_67 = arith.constant 0 : index
    %79 = vector.load %arg6[%c1_65, %c3_66, %c0_67] : memref<20x20x128xf32, #tpu.memory_space<vmem>>, vector<7x14x128xf32>
    %c1_68 = arith.constant 1 : index
    %c3_69 = arith.constant 3 : index
    %c0_70 = arith.constant 0 : index
    %80 = vector.load %arg3[%c1_68, %c3_69, %c0_70] : memref<7x7x128xf32, #tpu.memory_space<vmem>>, vector<1x1x128xf32>
    %81 = vector.shape_cast %80 : vector<1x1x128xf32> to vector<128xf32>
    %82 = vector.shape_cast %81 : vector<128xf32> to vector<1x1x128xf32>
    %83 = vector.broadcast %82 : vector<1x1x128xf32> to vector<7x14x128xf32>
    %84 = arith.mulf %79, %83 : vector<7x14x128xf32>
    %85 = arith.addf %78, %84 : vector<7x14x128xf32>
    %c1_71 = arith.constant 1 : index
    %c4_72 = arith.constant 4 : index
    %c0_73 = arith.constant 0 : index
    %86 = vector.load %arg6[%c1_71, %c4_72, %c0_73] : memref<20x20x128xf32, #tpu.memory_space<vmem>>, vector<7x14x128xf32>
    %c1_74 = arith.constant 1 : index
    %c4_75 = arith.constant 4 : index
    %c0_76 = arith.constant 0 : index
    %87 = vector.load %arg3[%c1_74, %c4_75, %c0_76] : memref<7x7x128xf32, #tpu.memory_space<vmem>>, vector<1x1x128xf32>
    %88 = vector.shape_cast %87 : vector<1x1x128xf32> to vector<128xf32>
    %89 = vector.shape_cast %88 : vector<128xf32> to vector<1x1x128xf32>
    %90 = vector.broadcast %89 : vector<1x1x128xf32> to vector<7x14x128xf32>
    %91 = arith.mulf %86, %90 : vector<7x14x128xf32>
    %92 = arith.addf %85, %91 : vector<7x14x128xf32>
    %c1_77 = arith.constant 1 : index
    %c5_78 = arith.constant 5 : index
    %c0_79 = arith.constant 0 : index
    %93 = vector.load %arg6[%c1_77, %c5_78, %c0_79] : memref<20x20x128xf32, #tpu.memory_space<vmem>>, vector<7x14x128xf32>
    %c1_80 = arith.constant 1 : index
    %c5_81 = arith.constant 5 : index
    %c0_82 = arith.constant 0 : index
    %94 = vector.load %arg3[%c1_80, %c5_81, %c0_82] : memref<7x7x128xf32, #tpu.memory_space<vmem>>, vector<1x1x128xf32>
    %95 = vector.shape_cast %94 : vector<1x1x128xf32> to vector<128xf32>
    %96 = vector.shape_cast %95 : vector<128xf32> to vector<1x1x128xf32>
    %97 = vector.broadcast %96 : vector<1x1x128xf32> to vector<7x14x128xf32>
    %98 = arith.mulf %93, %97 : vector<7x14x128xf32>
    %99 = arith.addf %92, %98 : vector<7x14x128xf32>
    %c1_83 = arith.constant 1 : index
    %c6_84 = arith.constant 6 : index
    %c0_85 = arith.constant 0 : index
    %100 = vector.load %arg6[%c1_83, %c6_84, %c0_85] : memref<20x20x128xf32, #tpu.memory_space<vmem>>, vector<7x14x128xf32>
    %c1_86 = arith.constant 1 : index
    %c6_87 = arith.constant 6 : index
    %c0_88 = arith.constant 0 : index
    %101 = vector.load %arg3[%c1_86, %c6_87, %c0_88] : memref<7x7x128xf32, #tpu.memory_space<vmem>>, vector<1x1x128xf32>
    %102 = vector.shape_cast %101 : vector<1x1x128xf32> to vector<128xf32>
    %103 = vector.shape_cast %102 : vector<128xf32> to vector<1x1x128xf32>
    %104 = vector.broadcast %103 : vector<1x1x128xf32> to vector<7x14x128xf32>
    %105 = arith.mulf %100, %104 : vector<7x14x128xf32>
    %106 = arith.addf %99, %105 : vector<7x14x128xf32>
    %c2_89 = arith.constant 2 : index
    %c0_90 = arith.constant 0 : index
    %c0_91 = arith.constant 0 : index
    %107 = vector.load %arg6[%c2_89, %c0_90, %c0_91] : memref<20x20x128xf32, #tpu.memory_space<vmem>>, vector<7x14x128xf32>
    %c2_92 = arith.constant 2 : index
    %c0_93 = arith.constant 0 : index
    %c0_94 = arith.constant 0 : index
    %108 = vector.load %arg3[%c2_92, %c0_93, %c0_94] : memref<7x7x128xf32, #tpu.memory_space<vmem>>, vector<1x1x128xf32>
    %109 = vector.shape_cast %108 : vector<1x1x128xf32> to vector<128xf32>
    %110 = vector.shape_cast %109 : vector<128xf32> to vector<1x1x128xf32>
    %111 = vector.broadcast %110 : vector<1x1x128xf32> to vector<7x14x128xf32>
    %112 = arith.mulf %107, %111 : vector<7x14x128xf32>
    %113 = arith.addf %106, %112 : vector<7x14x128xf32>
    %c2_95 = arith.constant 2 : index
    %c1_96 = arith.constant 1 : index
    %c0_97 = arith.constant 0 : index
    %114 = vector.load %arg6[%c2_95, %c1_96, %c0_97] : memref<20x20x128xf32, #tpu.memory_space<vmem>>, vector<7x14x128xf32>
    %c2_98 = arith.constant 2 : index
    %c1_99 = arith.constant 1 : index
    %c0_100 = arith.constant 0 : index
    %115 = vector.load %arg3[%c2_98, %c1_99, %c0_100] : memref<7x7x128xf32, #tpu.memory_space<vmem>>, vector<1x1x128xf32>
    %116 = vector.shape_cast %115 : vector<1x1x128xf32> to vector<128xf32>
    %117 = vector.shape_cast %116 : vector<128xf32> to vector<1x1x128xf32>
    %118 = vector.broadcast %117 : vector<1x1x128xf32> to vector<7x14x128xf32>
    %119 = arith.mulf %114, %118 : vector<7x14x128xf32>
    %120 = arith.addf %113, %119 : vector<7x14x128xf32>
    %c2_101 = arith.constant 2 : index
    %c2_102 = arith.constant 2 : index
    %c0_103 = arith.constant 0 : index
    %121 = vector.load %arg6[%c2_101, %c2_102, %c0_103] : memref<20x20x128xf32, #tpu.memory_space<vmem>>, vector<7x14x128xf32>
    %c2_104 = arith.constant 2 : index
    %c2_105 = arith.constant 2 : index
    %c0_106 = arith.constant 0 : index
    %122 = vector.load %arg3[%c2_104, %c2_105, %c0_106] : memref<7x7x128xf32, #tpu.memory_space<vmem>>, vector<1x1x128xf32>
    %123 = vector.shape_cast %122 : vector<1x1x128xf32> to vector<128xf32>
    %124 = vector.shape_cast %123 : vector<128xf32> to vector<1x1x128xf32>
    %125 = vector.broadcast %124 : vector<1x1x128xf32> to vector<7x14x128xf32>
    %126 = arith.mulf %121, %125 : vector<7x14x128xf32>
    %127 = arith.addf %120, %126 : vector<7x14x128xf32>
    %c2_107 = arith.constant 2 : index
    %c3_108 = arith.constant 3 : index
    %c0_109 = arith.constant 0 : index
    %128 = vector.load %arg6[%c2_107, %c3_108, %c0_109] : memref<20x20x128xf32, #tpu.memory_space<vmem>>, vector<7x14x128xf32>
    %c2_110 = arith.constant 2 : index
    %c3_111 = arith.constant 3 : index
    %c0_112 = arith.constant 0 : index
    %129 = vector.load %arg3[%c2_110, %c3_111, %c0_112] : memref<7x7x128xf32, #tpu.memory_space<vmem>>, vector<1x1x128xf32>
    %130 = vector.shape_cast %129 : vector<1x1x128xf32> to vector<128xf32>
    %131 = vector.shape_cast %130 : vector<128xf32> to vector<1x1x128xf32>
    %132 = vector.broadcast %131 : vector<1x1x128xf32> to vector<7x14x128xf32>
    %133 = arith.mulf %128, %132 : vector<7x14x128xf32>
    %134 = arith.addf %127, %133 : vector<7x14x128xf32>
    %c2_113 = arith.constant 2 : index
    %c4_114 = arith.constant 4 : index
    %c0_115 = arith.constant 0 : index
    %135 = vector.load %arg6[%c2_113, %c4_114, %c0_115] : memref<20x20x128xf32, #tpu.memory_space<vmem>>, vector<7x14x128xf32>
    %c2_116 = arith.constant 2 : index
    %c4_117 = arith.constant 4 : index
    %c0_118 = arith.constant 0 : index
    %136 = vector.load %arg3[%c2_116, %c4_117, %c0_118] : memref<7x7x128xf32, #tpu.memory_space<vmem>>, vector<1x1x128xf32>
    %137 = vector.shape_cast %136 : vector<1x1x128xf32> to vector<128xf32>
    %138 = vector.shape_cast %137 : vector<128xf32> to vector<1x1x128xf32>
    %139 = vector.broadcast %138 : vector<1x1x128xf32> to vector<7x14x128xf32>
    %140 = arith.mulf %135, %139 : vector<7x14x128xf32>
    %141 = arith.addf %134, %140 : vector<7x14x128xf32>
    %c2_119 = arith.constant 2 : index
    %c5_120 = arith.constant 5 : index
    %c0_121 = arith.constant 0 : index
    %142 = vector.load %arg6[%c2_119, %c5_120, %c0_121] : memref<20x20x128xf32, #tpu.memory_space<vmem>>, vector<7x14x128xf32>
    %c2_122 = arith.constant 2 : index
    %c5_123 = arith.constant 5 : index
    %c0_124 = arith.constant 0 : index
    %143 = vector.load %arg3[%c2_122, %c5_123, %c0_124] : memref<7x7x128xf32, #tpu.memory_space<vmem>>, vector<1x1x128xf32>
    %144 = vector.shape_cast %143 : vector<1x1x128xf32> to vector<128xf32>
    %145 = vector.shape_cast %144 : vector<128xf32> to vector<1x1x128xf32>
    %146 = vector.broadcast %145 : vector<1x1x128xf32> to vector<7x14x128xf32>
    %147 = arith.mulf %142, %146 : vector<7x14x128xf32>
    %148 = arith.addf %141, %147 : vector<7x14x128xf32>
    %c2_125 = arith.constant 2 : index
    %c6_126 = arith.constant 6 : index
    %c0_127 = arith.constant 0 : index
    %149 = vector.load %arg6[%c2_125, %c6_126, %c0_127] : memref<20x20x128xf32, #tpu.memory_space<vmem>>, vector<7x14x128xf32>
    %c2_128 = arith.constant 2 : index
    %c6_129 = arith.constant 6 : index
    %c0_130 = arith.constant 0 : index
    %150 = vector.load %arg3[%c2_128, %c6_129, %c0_130] : memref<7x7x128xf32, #tpu.memory_space<vmem>>, vector<1x1x128xf32>
    %151 = vector.shape_cast %150 : vector<1x1x128xf32> to vector<128xf32>
    %152 = vector.shape_cast %151 : vector<128xf32> to vector<1x1x128xf32>
    %153 = vector.broadcast %152 : vector<1x1x128xf32> to vector<7x14x128xf32>
    %154 = arith.mulf %149, %153 : vector<7x14x128xf32>
    %155 = arith.addf %148, %154 : vector<7x14x128xf32>
    %c3_131 = arith.constant 3 : index
    %c0_132 = arith.constant 0 : index
    %c0_133 = arith.constant 0 : index
    %156 = vector.load %arg6[%c3_131, %c0_132, %c0_133] : memref<20x20x128xf32, #tpu.memory_space<vmem>>, vector<7x14x128xf32>
    %c3_134 = arith.constant 3 : index
    %c0_135 = arith.constant 0 : index
    %c0_136 = arith.constant 0 : index
    %157 = vector.load %arg3[%c3_134, %c0_135, %c0_136] : memref<7x7x128xf32, #tpu.memory_space<vmem>>, vector<1x1x128xf32>
    %158 = vector.shape_cast %157 : vector<1x1x128xf32> to vector<128xf32>
    %159 = vector.shape_cast %158 : vector<128xf32> to vector<1x1x128xf32>
    %160 = vector.broadcast %159 : vector<1x1x128xf32> to vector<7x14x128xf32>
    %161 = arith.mulf %156, %160 : vector<7x14x128xf32>
    %162 = arith.addf %155, %161 : vector<7x14x128xf32>
    %c3_137 = arith.constant 3 : index
    %c1_138 = arith.constant 1 : index
    %c0_139 = arith.constant 0 : index
    %163 = vector.load %arg6[%c3_137, %c1_138, %c0_139] : memref<20x20x128xf32, #tpu.memory_space<vmem>>, vector<7x14x128xf32>
    %c3_140 = arith.constant 3 : index
    %c1_141 = arith.constant 1 : index
    %c0_142 = arith.constant 0 : index
    %164 = vector.load %arg3[%c3_140, %c1_141, %c0_142] : memref<7x7x128xf32, #tpu.memory_space<vmem>>, vector<1x1x128xf32>
    %165 = vector.shape_cast %164 : vector<1x1x128xf32> to vector<128xf32>
    %166 = vector.shape_cast %165 : vector<128xf32> to vector<1x1x128xf32>
    %167 = vector.broadcast %166 : vector<1x1x128xf32> to vector<7x14x128xf32>
    %168 = arith.mulf %163, %167 : vector<7x14x128xf32>
    %169 = arith.addf %162, %168 : vector<7x14x128xf32>
    %c3_143 = arith.constant 3 : index
    %c2_144 = arith.constant 2 : index
    %c0_145 = arith.constant 0 : index
    %170 = vector.load %arg6[%c3_143, %c2_144, %c0_145] : memref<20x20x128xf32, #tpu.memory_space<vmem>>, vector<7x14x128xf32>
    %c3_146 = arith.constant 3 : index
    %c2_147 = arith.constant 2 : index
    %c0_148 = arith.constant 0 : index
    %171 = vector.load %arg3[%c3_146, %c2_147, %c0_148] : memref<7x7x128xf32, #tpu.memory_space<vmem>>, vector<1x1x128xf32>
    %172 = vector.shape_cast %171 : vector<1x1x128xf32> to vector<128xf32>
    %173 = vector.shape_cast %172 : vector<128xf32> to vector<1x1x128xf32>
    %174 = vector.broadcast %173 : vector<1x1x128xf32> to vector<7x14x128xf32>
    %175 = arith.mulf %170, %174 : vector<7x14x128xf32>
    %176 = arith.addf %169, %175 : vector<7x14x128xf32>
    %c3_149 = arith.constant 3 : index
    %c3_150 = arith.constant 3 : index
    %c0_151 = arith.constant 0 : index
    %177 = vector.load %arg6[%c3_149, %c3_150, %c0_151] : memref<20x20x128xf32, #tpu.memory_space<vmem>>, vector<7x14x128xf32>
    %c3_152 = arith.constant 3 : index
    %c3_153 = arith.constant 3 : index
    %c0_154 = arith.constant 0 : index
    %178 = vector.load %arg3[%c3_152, %c3_153, %c0_154] : memref<7x7x128xf32, #tpu.memory_space<vmem>>, vector<1x1x128xf32>
    %179 = vector.shape_cast %178 : vector<1x1x128xf32> to vector<128xf32>
    %180 = vector.shape_cast %179 : vector<128xf32> to vector<1x1x128xf32>
    %181 = vector.broadcast %180 : vector<1x1x128xf32> to vector<7x14x128xf32>
    %182 = arith.mulf %177, %181 : vector<7x14x128xf32>
    %183 = arith.addf %176, %182 : vector<7x14x128xf32>
    %c3_155 = arith.constant 3 : index
    %c4_156 = arith.constant 4 : index
    %c0_157 = arith.constant 0 : index
    %184 = vector.load %arg6[%c3_155, %c4_156, %c0_157] : memref<20x20x128xf32, #tpu.memory_space<vmem>>, vector<7x14x128xf32>
    %c3_158 = arith.constant 3 : index
    %c4_159 = arith.constant 4 : index
    %c0_160 = arith.constant 0 : index
    %185 = vector.load %arg3[%c3_158, %c4_159, %c0_160] : memref<7x7x128xf32, #tpu.memory_space<vmem>>, vector<1x1x128xf32>
    %186 = vector.shape_cast %185 : vector<1x1x128xf32> to vector<128xf32>
    %187 = vector.shape_cast %186 : vector<128xf32> to vector<1x1x128xf32>
    %188 = vector.broadcast %187 : vector<1x1x128xf32> to vector<7x14x128xf32>
    %189 = arith.mulf %184, %188 : vector<7x14x128xf32>
    %190 = arith.addf %183, %189 : vector<7x14x128xf32>
    %c3_161 = arith.constant 3 : index
    %c5_162 = arith.constant 5 : index
    %c0_163 = arith.constant 0 : index
    %191 = vector.load %arg6[%c3_161, %c5_162, %c0_163] : memref<20x20x128xf32, #tpu.memory_space<vmem>>, vector<7x14x128xf32>
    %c3_164 = arith.constant 3 : index
    %c5_165 = arith.constant 5 : index
    %c0_166 = arith.constant 0 : index
    %192 = vector.load %arg3[%c3_164, %c5_165, %c0_166] : memref<7x7x128xf32, #tpu.memory_space<vmem>>, vector<1x1x128xf32>
    %193 = vector.shape_cast %192 : vector<1x1x128xf32> to vector<128xf32>
    %194 = vector.shape_cast %193 : vector<128xf32> to vector<1x1x128xf32>
    %195 = vector.broadcast %194 : vector<1x1x128xf32> to vector<7x14x128xf32>
    %196 = arith.mulf %191, %195 : vector<7x14x128xf32>
    %197 = arith.addf %190, %196 : vector<7x14x128xf32>
    %c3_167 = arith.constant 3 : index
    %c6_168 = arith.constant 6 : index
    %c0_169 = arith.constant 0 : index
    %198 = vector.load %arg6[%c3_167, %c6_168, %c0_169] : memref<20x20x128xf32, #tpu.memory_space<vmem>>, vector<7x14x128xf32>
    %c3_170 = arith.constant 3 : index
    %c6_171 = arith.constant 6 : index
    %c0_172 = arith.constant 0 : index
    %199 = vector.load %arg3[%c3_170, %c6_171, %c0_172] : memref<7x7x128xf32, #tpu.memory_space<vmem>>, vector<1x1x128xf32>
    %200 = vector.shape_cast %199 : vector<1x1x128xf32> to vector<128xf32>
    %201 = vector.shape_cast %200 : vector<128xf32> to vector<1x1x128xf32>
    %202 = vector.broadcast %201 : vector<1x1x128xf32> to vector<7x14x128xf32>
    %203 = arith.mulf %198, %202 : vector<7x14x128xf32>
    %204 = arith.addf %197, %203 : vector<7x14x128xf32>
    %c4_173 = arith.constant 4 : index
    %c0_174 = arith.constant 0 : index
    %c0_175 = arith.constant 0 : index
    %205 = vector.load %arg6[%c4_173, %c0_174, %c0_175] : memref<20x20x128xf32, #tpu.memory_space<vmem>>, vector<7x14x128xf32>
    %c4_176 = arith.constant 4 : index
    %c0_177 = arith.constant 0 : index
    %c0_178 = arith.constant 0 : index
    %206 = vector.load %arg3[%c4_176, %c0_177, %c0_178] : memref<7x7x128xf32, #tpu.memory_space<vmem>>, vector<1x1x128xf32>
    %207 = vector.shape_cast %206 : vector<1x1x128xf32> to vector<128xf32>
    %208 = vector.shape_cast %207 : vector<128xf32> to vector<1x1x128xf32>
    %209 = vector.broadcast %208 : vector<1x1x128xf32> to vector<7x14x128xf32>
    %210 = arith.mulf %205, %209 : vector<7x14x128xf32>
    %211 = arith.addf %204, %210 : vector<7x14x128xf32>
    %c4_179 = arith.constant 4 : index
    %c1_180 = arith.constant 1 : index
    %c0_181 = arith.constant 0 : index
    %212 = vector.load %arg6[%c4_179, %c1_180, %c0_181] : memref<20x20x128xf32, #tpu.memory_space<vmem>>, vector<7x14x128xf32>
    %c4_182 = arith.constant 4 : index
    %c1_183 = arith.constant 1 : index
    %c0_184 = arith.constant 0 : index
    %213 = vector.load %arg3[%c4_182, %c1_183, %c0_184] : memref<7x7x128xf32, #tpu.memory_space<vmem>>, vector<1x1x128xf32>
    %214 = vector.shape_cast %213 : vector<1x1x128xf32> to vector<128xf32>
    %215 = vector.shape_cast %214 : vector<128xf32> to vector<1x1x128xf32>
    %216 = vector.broadcast %215 : vector<1x1x128xf32> to vector<7x14x128xf32>
    %217 = arith.mulf %212, %216 : vector<7x14x128xf32>
    %218 = arith.addf %211, %217 : vector<7x14x128xf32>
    %c4_185 = arith.constant 4 : index
    %c2_186 = arith.constant 2 : index
    %c0_187 = arith.constant 0 : index
    %219 = vector.load %arg6[%c4_185, %c2_186, %c0_187] : memref<20x20x128xf32, #tpu.memory_space<vmem>>, vector<7x14x128xf32>
    %c4_188 = arith.constant 4 : index
    %c2_189 = arith.constant 2 : index
    %c0_190 = arith.constant 0 : index
    %220 = vector.load %arg3[%c4_188, %c2_189, %c0_190] : memref<7x7x128xf32, #tpu.memory_space<vmem>>, vector<1x1x128xf32>
    %221 = vector.shape_cast %220 : vector<1x1x128xf32> to vector<128xf32>
    %222 = vector.shape_cast %221 : vector<128xf32> to vector<1x1x128xf32>
    %223 = vector.broadcast %222 : vector<1x1x128xf32> to vector<7x14x128xf32>
    %224 = arith.mulf %219, %223 : vector<7x14x128xf32>
    %225 = arith.addf %218, %224 : vector<7x14x128xf32>
    %c4_191 = arith.constant 4 : index
    %c3_192 = arith.constant 3 : index
    %c0_193 = arith.constant 0 : index
    %226 = vector.load %arg6[%c4_191, %c3_192, %c0_193] : memref<20x20x128xf32, #tpu.memory_space<vmem>>, vector<7x14x128xf32>
    %c4_194 = arith.constant 4 : index
    %c3_195 = arith.constant 3 : index
    %c0_196 = arith.constant 0 : index
    %227 = vector.load %arg3[%c4_194, %c3_195, %c0_196] : memref<7x7x128xf32, #tpu.memory_space<vmem>>, vector<1x1x128xf32>
    %228 = vector.shape_cast %227 : vector<1x1x128xf32> to vector<128xf32>
    %229 = vector.shape_cast %228 : vector<128xf32> to vector<1x1x128xf32>
    %230 = vector.broadcast %229 : vector<1x1x128xf32> to vector<7x14x128xf32>
    %231 = arith.mulf %226, %230 : vector<7x14x128xf32>
    %232 = arith.addf %225, %231 : vector<7x14x128xf32>
    %c4_197 = arith.constant 4 : index
    %c4_198 = arith.constant 4 : index
    %c0_199 = arith.constant 0 : index
    %233 = vector.load %arg6[%c4_197, %c4_198, %c0_199] : memref<20x20x128xf32, #tpu.memory_space<vmem>>, vector<7x14x128xf32>
    %c4_200 = arith.constant 4 : index
    %c4_201 = arith.constant 4 : index
    %c0_202 = arith.constant 0 : index
    %234 = vector.load %arg3[%c4_200, %c4_201, %c0_202] : memref<7x7x128xf32, #tpu.memory_space<vmem>>, vector<1x1x128xf32>
    %235 = vector.shape_cast %234 : vector<1x1x128xf32> to vector<128xf32>
    %236 = vector.shape_cast %235 : vector<128xf32> to vector<1x1x128xf32>
    %237 = vector.broadcast %236 : vector<1x1x128xf32> to vector<7x14x128xf32>
    %238 = arith.mulf %233, %237 : vector<7x14x128xf32>
    %239 = arith.addf %232, %238 : vector<7x14x128xf32>
    %c4_203 = arith.constant 4 : index
    %c5_204 = arith.constant 5 : index
    %c0_205 = arith.constant 0 : index
    %240 = vector.load %arg6[%c4_203, %c5_204, %c0_205] : memref<20x20x128xf32, #tpu.memory_space<vmem>>, vector<7x14x128xf32>
    %c4_206 = arith.constant 4 : index
    %c5_207 = arith.constant 5 : index
    %c0_208 = arith.constant 0 : index
    %241 = vector.load %arg3[%c4_206, %c5_207, %c0_208] : memref<7x7x128xf32, #tpu.memory_space<vmem>>, vector<1x1x128xf32>
    %242 = vector.shape_cast %241 : vector<1x1x128xf32> to vector<128xf32>
    %243 = vector.shape_cast %242 : vector<128xf32> to vector<1x1x128xf32>
    %244 = vector.broadcast %243 : vector<1x1x128xf32> to vector<7x14x128xf32>
    %245 = arith.mulf %240, %244 : vector<7x14x128xf32>
    %246 = arith.addf %239, %245 : vector<7x14x128xf32>
    %c4_209 = arith.constant 4 : index
    %c6_210 = arith.constant 6 : index
    %c0_211 = arith.constant 0 : index
    %247 = vector.load %arg6[%c4_209, %c6_210, %c0_211] : memref<20x20x128xf32, #tpu.memory_space<vmem>>, vector<7x14x128xf32>
    %c4_212 = arith.constant 4 : index
    %c6_213 = arith.constant 6 : index
    %c0_214 = arith.constant 0 : index
    %248 = vector.load %arg3[%c4_212, %c6_213, %c0_214] : memref<7x7x128xf32, #tpu.memory_space<vmem>>, vector<1x1x128xf32>
    %249 = vector.shape_cast %248 : vector<1x1x128xf32> to vector<128xf32>
    %250 = vector.shape_cast %249 : vector<128xf32> to vector<1x1x128xf32>
    %251 = vector.broadcast %250 : vector<1x1x128xf32> to vector<7x14x128xf32>
    %252 = arith.mulf %247, %251 : vector<7x14x128xf32>
    %253 = arith.addf %246, %252 : vector<7x14x128xf32>
    %c5_215 = arith.constant 5 : index
    %c0_216 = arith.constant 0 : index
    %c0_217 = arith.constant 0 : index
    %254 = vector.load %arg6[%c5_215, %c0_216, %c0_217] : memref<20x20x128xf32, #tpu.memory_space<vmem>>, vector<7x14x128xf32>
    %c5_218 = arith.constant 5 : index
    %c0_219 = arith.constant 0 : index
    %c0_220 = arith.constant 0 : index
    %255 = vector.load %arg3[%c5_218, %c0_219, %c0_220] : memref<7x7x128xf32, #tpu.memory_space<vmem>>, vector<1x1x128xf32>
    %256 = vector.shape_cast %255 : vector<1x1x128xf32> to vector<128xf32>
    %257 = vector.shape_cast %256 : vector<128xf32> to vector<1x1x128xf32>
    %258 = vector.broadcast %257 : vector<1x1x128xf32> to vector<7x14x128xf32>
    %259 = arith.mulf %254, %258 : vector<7x14x128xf32>
    %260 = arith.addf %253, %259 : vector<7x14x128xf32>
    %c5_221 = arith.constant 5 : index
    %c1_222 = arith.constant 1 : index
    %c0_223 = arith.constant 0 : index
    %261 = vector.load %arg6[%c5_221, %c1_222, %c0_223] : memref<20x20x128xf32, #tpu.memory_space<vmem>>, vector<7x14x128xf32>
    %c5_224 = arith.constant 5 : index
    %c1_225 = arith.constant 1 : index
    %c0_226 = arith.constant 0 : index
    %262 = vector.load %arg3[%c5_224, %c1_225, %c0_226] : memref<7x7x128xf32, #tpu.memory_space<vmem>>, vector<1x1x128xf32>
    %263 = vector.shape_cast %262 : vector<1x1x128xf32> to vector<128xf32>
    %264 = vector.shape_cast %263 : vector<128xf32> to vector<1x1x128xf32>
    %265 = vector.broadcast %264 : vector<1x1x128xf32> to vector<7x14x128xf32>
    %266 = arith.mulf %261, %265 : vector<7x14x128xf32>
    %267 = arith.addf %260, %266 : vector<7x14x128xf32>
    %c5_227 = arith.constant 5 : index
    %c2_228 = arith.constant 2 : index
    %c0_229 = arith.constant 0 : index
    %268 = vector.load %arg6[%c5_227, %c2_228, %c0_229] : memref<20x20x128xf32, #tpu.memory_space<vmem>>, vector<7x14x128xf32>
    %c5_230 = arith.constant 5 : index
    %c2_231 = arith.constant 2 : index
    %c0_232 = arith.constant 0 : index
    %269 = vector.load %arg3[%c5_230, %c2_231, %c0_232] : memref<7x7x128xf32, #tpu.memory_space<vmem>>, vector<1x1x128xf32>
    %270 = vector.shape_cast %269 : vector<1x1x128xf32> to vector<128xf32>
    %271 = vector.shape_cast %270 : vector<128xf32> to vector<1x1x128xf32>
    %272 = vector.broadcast %271 : vector<1x1x128xf32> to vector<7x14x128xf32>
    %273 = arith.mulf %268, %272 : vector<7x14x128xf32>
    %274 = arith.addf %267, %273 : vector<7x14x128xf32>
    %c5_233 = arith.constant 5 : index
    %c3_234 = arith.constant 3 : index
    %c0_235 = arith.constant 0 : index
    %275 = vector.load %arg6[%c5_233, %c3_234, %c0_235] : memref<20x20x128xf32, #tpu.memory_space<vmem>>, vector<7x14x128xf32>
    %c5_236 = arith.constant 5 : index
    %c3_237 = arith.constant 3 : index
    %c0_238 = arith.constant 0 : index
    %276 = vector.load %arg3[%c5_236, %c3_237, %c0_238] : memref<7x7x128xf32, #tpu.memory_space<vmem>>, vector<1x1x128xf32>
    %277 = vector.shape_cast %276 : vector<1x1x128xf32> to vector<128xf32>
    %278 = vector.shape_cast %277 : vector<128xf32> to vector<1x1x128xf32>
    %279 = vector.broadcast %278 : vector<1x1x128xf32> to vector<7x14x128xf32>
    %280 = arith.mulf %275, %279 : vector<7x14x128xf32>
    %281 = arith.addf %274, %280 : vector<7x14x128xf32>
    %c5_239 = arith.constant 5 : index
    %c4_240 = arith.constant 4 : index
    %c0_241 = arith.constant 0 : index
    %282 = vector.load %arg6[%c5_239, %c4_240, %c0_241] : memref<20x20x128xf32, #tpu.memory_space<vmem>>, vector<7x14x128xf32>
    %c5_242 = arith.constant 5 : index
    %c4_243 = arith.constant 4 : index
    %c0_244 = arith.constant 0 : index
    %283 = vector.load %arg3[%c5_242, %c4_243, %c0_244] : memref<7x7x128xf32, #tpu.memory_space<vmem>>, vector<1x1x128xf32>
    %284 = vector.shape_cast %283 : vector<1x1x128xf32> to vector<128xf32>
    %285 = vector.shape_cast %284 : vector<128xf32> to vector<1x1x128xf32>
    %286 = vector.broadcast %285 : vector<1x1x128xf32> to vector<7x14x128xf32>
    %287 = arith.mulf %282, %286 : vector<7x14x128xf32>
    %288 = arith.addf %281, %287 : vector<7x14x128xf32>
    %c5_245 = arith.constant 5 : index
    %c5_246 = arith.constant 5 : index
    %c0_247 = arith.constant 0 : index
    %289 = vector.load %arg6[%c5_245, %c5_246, %c0_247] : memref<20x20x128xf32, #tpu.memory_space<vmem>>, vector<7x14x128xf32>
    %c5_248 = arith.constant 5 : index
    %c5_249 = arith.constant 5 : index
    %c0_250 = arith.constant 0 : index
    %290 = vector.load %arg3[%c5_248, %c5_249, %c0_250] : memref<7x7x128xf32, #tpu.memory_space<vmem>>, vector<1x1x128xf32>
    %291 = vector.shape_cast %290 : vector<1x1x128xf32> to vector<128xf32>
    %292 = vector.shape_cast %291 : vector<128xf32> to vector<1x1x128xf32>
    %293 = vector.broadcast %292 : vector<1x1x128xf32> to vector<7x14x128xf32>
    %294 = arith.mulf %289, %293 : vector<7x14x128xf32>
    %295 = arith.addf %288, %294 : vector<7x14x128xf32>
    %c5_251 = arith.constant 5 : index
    %c6_252 = arith.constant 6 : index
    %c0_253 = arith.constant 0 : index
    %296 = vector.load %arg6[%c5_251, %c6_252, %c0_253] : memref<20x20x128xf32, #tpu.memory_space<vmem>>, vector<7x14x128xf32>
    %c5_254 = arith.constant 5 : index
    %c6_255 = arith.constant 6 : index
    %c0_256 = arith.constant 0 : index
    %297 = vector.load %arg3[%c5_254, %c6_255, %c0_256] : memref<7x7x128xf32, #tpu.memory_space<vmem>>, vector<1x1x128xf32>
    %298 = vector.shape_cast %297 : vector<1x1x128xf32> to vector<128xf32>
    %299 = vector.shape_cast %298 : vector<128xf32> to vector<1x1x128xf32>
    %300 = vector.broadcast %299 : vector<1x1x128xf32> to vector<7x14x128xf32>
    %301 = arith.mulf %296, %300 : vector<7x14x128xf32>
    %302 = arith.addf %295, %301 : vector<7x14x128xf32>
    %c6_257 = arith.constant 6 : index
    %c0_258 = arith.constant 0 : index
    %c0_259 = arith.constant 0 : index
    %303 = vector.load %arg6[%c6_257, %c0_258, %c0_259] : memref<20x20x128xf32, #tpu.memory_space<vmem>>, vector<7x14x128xf32>
    %c6_260 = arith.constant 6 : index
    %c0_261 = arith.constant 0 : index
    %c0_262 = arith.constant 0 : index
    %304 = vector.load %arg3[%c6_260, %c0_261, %c0_262] : memref<7x7x128xf32, #tpu.memory_space<vmem>>, vector<1x1x128xf32>
    %305 = vector.shape_cast %304 : vector<1x1x128xf32> to vector<128xf32>
    %306 = vector.shape_cast %305 : vector<128xf32> to vector<1x1x128xf32>
    %307 = vector.broadcast %306 : vector<1x1x128xf32> to vector<7x14x128xf32>
    %308 = arith.mulf %303, %307 : vector<7x14x128xf32>
    %309 = arith.addf %302, %308 : vector<7x14x128xf32>
    %c6_263 = arith.constant 6 : index
    %c1_264 = arith.constant 1 : index
    %c0_265 = arith.constant 0 : index
    %310 = vector.load %arg6[%c6_263, %c1_264, %c0_265] : memref<20x20x128xf32, #tpu.memory_space<vmem>>, vector<7x14x128xf32>
    %c6_266 = arith.constant 6 : index
    %c1_267 = arith.constant 1 : index
    %c0_268 = arith.constant 0 : index
    %311 = vector.load %arg3[%c6_266, %c1_267, %c0_268] : memref<7x7x128xf32, #tpu.memory_space<vmem>>, vector<1x1x128xf32>
    %312 = vector.shape_cast %311 : vector<1x1x128xf32> to vector<128xf32>
    %313 = vector.shape_cast %312 : vector<128xf32> to vector<1x1x128xf32>
    %314 = vector.broadcast %313 : vector<1x1x128xf32> to vector<7x14x128xf32>
    %315 = arith.mulf %310, %314 : vector<7x14x128xf32>
    %316 = arith.addf %309, %315 : vector<7x14x128xf32>
    %c6_269 = arith.constant 6 : index
    %c2_270 = arith.constant 2 : index
    %c0_271 = arith.constant 0 : index
    %317 = vector.load %arg6[%c6_269, %c2_270, %c0_271] : memref<20x20x128xf32, #tpu.memory_space<vmem>>, vector<7x14x128xf32>
    %c6_272 = arith.constant 6 : index
    %c2_273 = arith.constant 2 : index
    %c0_274 = arith.constant 0 : index
    %318 = vector.load %arg3[%c6_272, %c2_273, %c0_274] : memref<7x7x128xf32, #tpu.memory_space<vmem>>, vector<1x1x128xf32>
    %319 = vector.shape_cast %318 : vector<1x1x128xf32> to vector<128xf32>
    %320 = vector.shape_cast %319 : vector<128xf32> to vector<1x1x128xf32>
    %321 = vector.broadcast %320 : vector<1x1x128xf32> to vector<7x14x128xf32>
    %322 = arith.mulf %317, %321 : vector<7x14x128xf32>
    %323 = arith.addf %316, %322 : vector<7x14x128xf32>
    %c6_275 = arith.constant 6 : index
    %c3_276 = arith.constant 3 : index
    %c0_277 = arith.constant 0 : index
    %324 = vector.load %arg6[%c6_275, %c3_276, %c0_277] : memref<20x20x128xf32, #tpu.memory_space<vmem>>, vector<7x14x128xf32>
    %c6_278 = arith.constant 6 : index
    %c3_279 = arith.constant 3 : index
    %c0_280 = arith.constant 0 : index
    %325 = vector.load %arg3[%c6_278, %c3_279, %c0_280] : memref<7x7x128xf32, #tpu.memory_space<vmem>>, vector<1x1x128xf32>
    %326 = vector.shape_cast %325 : vector<1x1x128xf32> to vector<128xf32>
    %327 = vector.shape_cast %326 : vector<128xf32> to vector<1x1x128xf32>
    %328 = vector.broadcast %327 : vector<1x1x128xf32> to vector<7x14x128xf32>
    %329 = arith.mulf %324, %328 : vector<7x14x128xf32>
    %330 = arith.addf %323, %329 : vector<7x14x128xf32>
    %c6_281 = arith.constant 6 : index
    %c4_282 = arith.constant 4 : index
    %c0_283 = arith.constant 0 : index
    %331 = vector.load %arg6[%c6_281, %c4_282, %c0_283] : memref<20x20x128xf32, #tpu.memory_space<vmem>>, vector<7x14x128xf32>
    %c6_284 = arith.constant 6 : index
    %c4_285 = arith.constant 4 : index
    %c0_286 = arith.constant 0 : index
    %332 = vector.load %arg3[%c6_284, %c4_285, %c0_286] : memref<7x7x128xf32, #tpu.memory_space<vmem>>, vector<1x1x128xf32>
    %333 = vector.shape_cast %332 : vector<1x1x128xf32> to vector<128xf32>
    %334 = vector.shape_cast %333 : vector<128xf32> to vector<1x1x128xf32>
    %335 = vector.broadcast %334 : vector<1x1x128xf32> to vector<7x14x128xf32>
    %336 = arith.mulf %331, %335 : vector<7x14x128xf32>
    %337 = arith.addf %330, %336 : vector<7x14x128xf32>
    %c6_287 = arith.constant 6 : index
    %c5_288 = arith.constant 5 : index
    %c0_289 = arith.constant 0 : index
    %338 = vector.load %arg6[%c6_287, %c5_288, %c0_289] : memref<20x20x128xf32, #tpu.memory_space<vmem>>, vector<7x14x128xf32>
    %c6_290 = arith.constant 6 : index
    %c5_291 = arith.constant 5 : index
    %c0_292 = arith.constant 0 : index
    %339 = vector.load %arg3[%c6_290, %c5_291, %c0_292] : memref<7x7x128xf32, #tpu.memory_space<vmem>>, vector<1x1x128xf32>
    %340 = vector.shape_cast %339 : vector<1x1x128xf32> to vector<128xf32>
    %341 = vector.shape_cast %340 : vector<128xf32> to vector<1x1x128xf32>
    %342 = vector.broadcast %341 : vector<1x1x128xf32> to vector<7x14x128xf32>
    %343 = arith.mulf %338, %342 : vector<7x14x128xf32>
    %344 = arith.addf %337, %343 : vector<7x14x128xf32>
    %c6_293 = arith.constant 6 : index
    %c6_294 = arith.constant 6 : index
    %c0_295 = arith.constant 0 : index
    %345 = vector.load %arg6[%c6_293, %c6_294, %c0_295] : memref<20x20x128xf32, #tpu.memory_space<vmem>>, vector<7x14x128xf32>
    %c6_296 = arith.constant 6 : index
    %c6_297 = arith.constant 6 : index
    %c0_298 = arith.constant 0 : index
    %346 = vector.load %arg3[%c6_296, %c6_297, %c0_298] : memref<7x7x128xf32, #tpu.memory_space<vmem>>, vector<1x1x128xf32>
    %347 = vector.shape_cast %346 : vector<1x1x128xf32> to vector<128xf32>
    %348 = vector.shape_cast %347 : vector<128xf32> to vector<1x1x128xf32>
    %349 = vector.broadcast %348 : vector<1x1x128xf32> to vector<7x14x128xf32>
    %350 = arith.mulf %345, %349 : vector<7x14x128xf32>
    %351 = arith.addf %344, %350 : vector<7x14x128xf32>
    %c0_299 = arith.constant 0 : index
    %c0_300 = arith.constant 0 : index
    %c0_301 = arith.constant 0 : index
    %c0_302 = arith.constant 0 : index
    %352 = vector.load %arg5[%c0_299, %c0_300, %c0_301, %c0_302] : memref<1x14x14x128xf32, #tpu.memory_space<vmem>>, vector<1x7x14x128xf32>
    %353 = vector.shape_cast %352 : vector<1x7x14x128xf32> to vector<7x14x128xf32>
    %354 = vector.shape_cast %351 : vector<7x14x128xf32> to vector<1x7x14x128xf32>
    tpu.vector_store %arg5[%c0_299, %c0_300, %c0_301, %c0_302], %354 {strides = array<i32>} : memref<1x14x14x128xf32, #tpu.memory_space<vmem>>, vector<1x7x14x128xf32>,
    %355 = vector.shape_cast %6 : vector<128xf32> to vector<1x1x128xf32>
    %356 = vector.broadcast %355 : vector<1x1x128xf32> to vector<7x14x128xf32>
    %c7 = arith.constant 7 : index
    %c0_303 = arith.constant 0 : index
    %c0_304 = arith.constant 0 : index
    %357 = vector.load %arg6[%c7, %c0_303, %c0_304] : memref<20x20x128xf32, #tpu.memory_space<vmem>>, vector<7x14x128xf32>
    %c0_305 = arith.constant 0 : index
    %c0_306 = arith.constant 0 : index
    %c0_307 = arith.constant 0 : index
    %358 = vector.load %arg3[%c0_305, %c0_306, %c0_307] : memref<7x7x128xf32, #tpu.memory_space<vmem>>, vector<1x1x128xf32>
    %359 = vector.shape_cast %358 : vector<1x1x128xf32> to vector<128xf32>
    %360 = vector.shape_cast %359 : vector<128xf32> to vector<1x1x128xf32>
    %361 = vector.broadcast %360 : vector<1x1x128xf32> to vector<7x14x128xf32>
    %362 = arith.mulf %357, %361 : vector<7x14x128xf32>
    %363 = arith.addf %356, %362 : vector<7x14x128xf32>
    %c7_308 = arith.constant 7 : index
    %c1_309 = arith.constant 1 : index
    %c0_310 = arith.constant 0 : index
    %364 = vector.load %arg6[%c7_308, %c1_309, %c0_310] : memref<20x20x128xf32, #tpu.memory_space<vmem>>, vector<7x14x128xf32>
    %c0_311 = arith.constant 0 : index
    %c1_312 = arith.constant 1 : index
    %c0_313 = arith.constant 0 : index
    %365 = vector.load %arg3[%c0_311, %c1_312, %c0_313] : memref<7x7x128xf32, #tpu.memory_space<vmem>>, vector<1x1x128xf32>
    %366 = vector.shape_cast %365 : vector<1x1x128xf32> to vector<128xf32>
    %367 = vector.shape_cast %366 : vector<128xf32> to vector<1x1x128xf32>
    %368 = vector.broadcast %367 : vector<1x1x128xf32> to vector<7x14x128xf32>
    %369 = arith.mulf %364, %368 : vector<7x14x128xf32>
    %370 = arith.addf %363, %369 : vector<7x14x128xf32>
    %c7_314 = arith.constant 7 : index
    %c2_315 = arith.constant 2 : index
    %c0_316 = arith.constant 0 : index
    %371 = vector.load %arg6[%c7_314, %c2_315, %c0_316] : memref<20x20x128xf32, #tpu.memory_space<vmem>>, vector<7x14x128xf32>
    %c0_317 = arith.constant 0 : index
    %c2_318 = arith.constant 2 : index
    %c0_319 = arith.constant 0 : index
    %372 = vector.load %arg3[%c0_317, %c2_318, %c0_319] : memref<7x7x128xf32, #tpu.memory_space<vmem>>, vector<1x1x128xf32>
    %373 = vector.shape_cast %372 : vector<1x1x128xf32> to vector<128xf32>
    %374 = vector.shape_cast %373 : vector<128xf32> to vector<1x1x128xf32>
    %375 = vector.broadcast %374 : vector<1x1x128xf32> to vector<7x14x128xf32>
    %376 = arith.mulf %371, %375 : vector<7x14x128xf32>
    %377 = arith.addf %370, %376 : vector<7x14x128xf32>
    %c7_320 = arith.constant 7 : index
    %c3_321 = arith.constant 3 : index
    %c0_322 = arith.constant 0 : index
    %378 = vector.load %arg6[%c7_320, %c3_321, %c0_322] : memref<20x20x128xf32, #tpu.memory_space<vmem>>, vector<7x14x128xf32>
    %c0_323 = arith.constant 0 : index
    %c3_324 = arith.constant 3 : index
    %c0_325 = arith.constant 0 : index
    %379 = vector.load %arg3[%c0_323, %c3_324, %c0_325] : memref<7x7x128xf32, #tpu.memory_space<vmem>>, vector<1x1x128xf32>
    %380 = vector.shape_cast %379 : vector<1x1x128xf32> to vector<128xf32>
    %381 = vector.shape_cast %380 : vector<128xf32> to vector<1x1x128xf32>
    %382 = vector.broadcast %381 : vector<1x1x128xf32> to vector<7x14x128xf32>
    %383 = arith.mulf %378, %382 : vector<7x14x128xf32>
    %384 = arith.addf %377, %383 : vector<7x14x128xf32>
    %c7_326 = arith.constant 7 : index
    %c4_327 = arith.constant 4 : index
    %c0_328 = arith.constant 0 : index
    %385 = vector.load %arg6[%c7_326, %c4_327, %c0_328] : memref<20x20x128xf32, #tpu.memory_space<vmem>>, vector<7x14x128xf32>
    %c0_329 = arith.constant 0 : index
    %c4_330 = arith.constant 4 : index
    %c0_331 = arith.constant 0 : index
    %386 = vector.load %arg3[%c0_329, %c4_330, %c0_331] : memref<7x7x128xf32, #tpu.memory_space<vmem>>, vector<1x1x128xf32>
    %387 = vector.shape_cast %386 : vector<1x1x128xf32> to vector<128xf32>
    %388 = vector.shape_cast %387 : vector<128xf32> to vector<1x1x128xf32>
    %389 = vector.broadcast %388 : vector<1x1x128xf32> to vector<7x14x128xf32>
    %390 = arith.mulf %385, %389 : vector<7x14x128xf32>
    %391 = arith.addf %384, %390 : vector<7x14x128xf32>
    %c7_332 = arith.constant 7 : index
    %c5_333 = arith.constant 5 : index
    %c0_334 = arith.constant 0 : index
    %392 = vector.load %arg6[%c7_332, %c5_333, %c0_334] : memref<20x20x128xf32, #tpu.memory_space<vmem>>, vector<7x14x128xf32>
    %c0_335 = arith.constant 0 : index
    %c5_336 = arith.constant 5 : index
    %c0_337 = arith.constant 0 : index
    %393 = vector.load %arg3[%c0_335, %c5_336, %c0_337] : memref<7x7x128xf32, #tpu.memory_space<vmem>>, vector<1x1x128xf32>
    %394 = vector.shape_cast %393 : vector<1x1x128xf32> to vector<128xf32>
    %395 = vector.shape_cast %394 : vector<128xf32> to vector<1x1x128xf32>
    %396 = vector.broadcast %395 : vector<1x1x128xf32> to vector<7x14x128xf32>
    %397 = arith.mulf %392, %396 : vector<7x14x128xf32>
    %398 = arith.addf %391, %397 : vector<7x14x128xf32>
    %c7_338 = arith.constant 7 : index
    %c6_339 = arith.constant 6 : index
    %c0_340 = arith.constant 0 : index
    %399 = vector.load %arg6[%c7_338, %c6_339, %c0_340] : memref<20x20x128xf32, #tpu.memory_space<vmem>>, vector<7x14x128xf32>
    %c0_341 = arith.constant 0 : index
    %c6_342 = arith.constant 6 : index
    %c0_343 = arith.constant 0 : index
    %400 = vector.load %arg3[%c0_341, %c6_342, %c0_343] : memref<7x7x128xf32, #tpu.memory_space<vmem>>, vector<1x1x128xf32>
    %401 = vector.shape_cast %400 : vector<1x1x128xf32> to vector<128xf32>
    %402 = vector.shape_cast %401 : vector<128xf32> to vector<1x1x128xf32>
    %403 = vector.broadcast %402 : vector<1x1x128xf32> to vector<7x14x128xf32>
    %404 = arith.mulf %399, %403 : vector<7x14x128xf32>
    %405 = arith.addf %398, %404 : vector<7x14x128xf32>
    %c8 = arith.constant 8 : index
    %c0_344 = arith.constant 0 : index
    %c0_345 = arith.constant 0 : index
    %406 = vector.load %arg6[%c8, %c0_344, %c0_345] : memref<20x20x128xf32, #tpu.memory_space<vmem>>, vector<7x14x128xf32>
    %c1_346 = arith.constant 1 : index
    %c0_347 = arith.constant 0 : index
    %c0_348 = arith.constant 0 : index
    %407 = vector.load %arg3[%c1_346, %c0_347, %c0_348] : memref<7x7x128xf32, #tpu.memory_space<vmem>>, vector<1x1x128xf32>
    %408 = vector.shape_cast %407 : vector<1x1x128xf32> to vector<128xf32>
    %409 = vector.shape_cast %408 : vector<128xf32> to vector<1x1x128xf32>
    %410 = vector.broadcast %409 : vector<1x1x128xf32> to vector<7x14x128xf32>
    %411 = arith.mulf %406, %410 : vector<7x14x128xf32>
    %412 = arith.addf %405, %411 : vector<7x14x128xf32>
    %c8_349 = arith.constant 8 : index
    %c1_350 = arith.constant 1 : index
    %c0_351 = arith.constant 0 : index
    %413 = vector.load %arg6[%c8_349, %c1_350, %c0_351] : memref<20x20x128xf32, #tpu.memory_space<vmem>>, vector<7x14x128xf32>
    %c1_352 = arith.constant 1 : index
    %c1_353 = arith.constant 1 : index
    %c0_354 = arith.constant 0 : index
    %414 = vector.load %arg3[%c1_352, %c1_353, %c0_354] : memref<7x7x128xf32, #tpu.memory_space<vmem>>, vector<1x1x128xf32>
    %415 = vector.shape_cast %414 : vector<1x1x128xf32> to vector<128xf32>
    %416 = vector.shape_cast %415 : vector<128xf32> to vector<1x1x128xf32>
    %417 = vector.broadcast %416 : vector<1x1x128xf32> to vector<7x14x128xf32>
    %418 = arith.mulf %413, %417 : vector<7x14x128xf32>
    %419 = arith.addf %412, %418 : vector<7x14x128xf32>
    %c8_355 = arith.constant 8 : index
    %c2_356 = arith.constant 2 : index
    %c0_357 = arith.constant 0 : index
    %420 = vector.load %arg6[%c8_355, %c2_356, %c0_357] : memref<20x20x128xf32, #tpu.memory_space<vmem>>, vector<7x14x128xf32>
    %c1_358 = arith.constant 1 : index
    %c2_359 = arith.constant 2 : index
    %c0_360 = arith.constant 0 : index
    %421 = vector.load %arg3[%c1_358, %c2_359, %c0_360] : memref<7x7x128xf32, #tpu.memory_space<vmem>>, vector<1x1x128xf32>
    %422 = vector.shape_cast %421 : vector<1x1x128xf32> to vector<128xf32>
    %423 = vector.shape_cast %422 : vector<128xf32> to vector<1x1x128xf32>
    %424 = vector.broadcast %423 : vector<1x1x128xf32> to vector<7x14x128xf32>
    %425 = arith.mulf %420, %424 : vector<7x14x128xf32>
    %426 = arith.addf %419, %425 : vector<7x14x128xf32>
    %c8_361 = arith.constant 8 : index
    %c3_362 = arith.constant 3 : index
    %c0_363 = arith.constant 0 : index
    %427 = vector.load %arg6[%c8_361, %c3_362, %c0_363] : memref<20x20x128xf32, #tpu.memory_space<vmem>>, vector<7x14x128xf32>
    %c1_364 = arith.constant 1 : index
    %c3_365 = arith.constant 3 : index
    %c0_366 = arith.constant 0 : index
    %428 = vector.load %arg3[%c1_364, %c3_365, %c0_366] : memref<7x7x128xf32, #tpu.memory_space<vmem>>, vector<1x1x128xf32>
    %429 = vector.shape_cast %428 : vector<1x1x128xf32> to vector<128xf32>
    %430 = vector.shape_cast %429 : vector<128xf32> to vector<1x1x128xf32>
    %431 = vector.broadcast %430 : vector<1x1x128xf32> to vector<7x14x128xf32>
    %432 = arith.mulf %427, %431 : vector<7x14x128xf32>
    %433 = arith.addf %426, %432 : vector<7x14x128xf32>
    %c8_367 = arith.constant 8 : index
    %c4_368 = arith.constant 4 : index
    %c0_369 = arith.constant 0 : index
    %434 = vector.load %arg6[%c8_367, %c4_368, %c0_369] : memref<20x20x128xf32, #tpu.memory_space<vmem>>, vector<7x14x128xf32>
    %c1_370 = arith.constant 1 : index
    %c4_371 = arith.constant 4 : index
    %c0_372 = arith.constant 0 : index
    %435 = vector.load %arg3[%c1_370, %c4_371, %c0_372] : memref<7x7x128xf32, #tpu.memory_space<vmem>>, vector<1x1x128xf32>
    %436 = vector.shape_cast %435 : vector<1x1x128xf32> to vector<128xf32>
    %437 = vector.shape_cast %436 : vector<128xf32> to vector<1x1x128xf32>
    %438 = vector.broadcast %437 : vector<1x1x128xf32> to vector<7x14x128xf32>
    %439 = arith.mulf %434, %438 : vector<7x14x128xf32>
    %440 = arith.addf %433, %439 : vector<7x14x128xf32>
    %c8_373 = arith.constant 8 : index
    %c5_374 = arith.constant 5 : index
    %c0_375 = arith.constant 0 : index
    %441 = vector.load %arg6[%c8_373, %c5_374, %c0_375] : memref<20x20x128xf32, #tpu.memory_space<vmem>>, vector<7x14x128xf32>
    %c1_376 = arith.constant 1 : index
    %c5_377 = arith.constant 5 : index
    %c0_378 = arith.constant 0 : index
    %442 = vector.load %arg3[%c1_376, %c5_377, %c0_378] : memref<7x7x128xf32, #tpu.memory_space<vmem>>, vector<1x1x128xf32>
    %443 = vector.shape_cast %442 : vector<1x1x128xf32> to vector<128xf32>
    %444 = vector.shape_cast %443 : vector<128xf32> to vector<1x1x128xf32>
    %445 = vector.broadcast %444 : vector<1x1x128xf32> to vector<7x14x128xf32>
    %446 = arith.mulf %441, %445 : vector<7x14x128xf32>
    %447 = arith.addf %440, %446 : vector<7x14x128xf32>
    %c8_379 = arith.constant 8 : index
    %c6_380 = arith.constant 6 : index
    %c0_381 = arith.constant 0 : index
    %448 = vector.load %arg6[%c8_379, %c6_380, %c0_381] : memref<20x20x128xf32, #tpu.memory_space<vmem>>, vector<7x14x128xf32>
    %c1_382 = arith.constant 1 : index
    %c6_383 = arith.constant 6 : index
    %c0_384 = arith.constant 0 : index
    %449 = vector.load %arg3[%c1_382, %c6_383, %c0_384] : memref<7x7x128xf32, #tpu.memory_space<vmem>>, vector<1x1x128xf32>
    %450 = vector.shape_cast %449 : vector<1x1x128xf32> to vector<128xf32>
    %451 = vector.shape_cast %450 : vector<128xf32> to vector<1x1x128xf32>
    %452 = vector.broadcast %451 : vector<1x1x128xf32> to vector<7x14x128xf32>
    %453 = arith.mulf %448, %452 : vector<7x14x128xf32>
    %454 = arith.addf %447, %453 : vector<7x14x128xf32>
    %c9 = arith.constant 9 : index
    %c0_385 = arith.constant 0 : index
    %c0_386 = arith.constant 0 : index
    %455 = vector.load %arg6[%c9, %c0_385, %c0_386] : memref<20x20x128xf32, #tpu.memory_space<vmem>>, vector<7x14x128xf32>
    %c2_387 = arith.constant 2 : index
    %c0_388 = arith.constant 0 : index
    %c0_389 = arith.constant 0 : index
    %456 = vector.load %arg3[%c2_387, %c0_388, %c0_389] : memref<7x7x128xf32, #tpu.memory_space<vmem>>, vector<1x1x128xf32>
    %457 = vector.shape_cast %456 : vector<1x1x128xf32> to vector<128xf32>
    %458 = vector.shape_cast %457 : vector<128xf32> to vector<1x1x128xf32>
    %459 = vector.broadcast %458 : vector<1x1x128xf32> to vector<7x14x128xf32>
    %460 = arith.mulf %455, %459 : vector<7x14x128xf32>
    %461 = arith.addf %454, %460 : vector<7x14x128xf32>
    %c9_390 = arith.constant 9 : index
    %c1_391 = arith.constant 1 : index
    %c0_392 = arith.constant 0 : index
    %462 = vector.load %arg6[%c9_390, %c1_391, %c0_392] : memref<20x20x128xf32, #tpu.memory_space<vmem>>, vector<7x14x128xf32>
    %c2_393 = arith.constant 2 : index
    %c1_394 = arith.constant 1 : index
    %c0_395 = arith.constant 0 : index
    %463 = vector.load %arg3[%c2_393, %c1_394, %c0_395] : memref<7x7x128xf32, #tpu.memory_space<vmem>>, vector<1x1x128xf32>
    %464 = vector.shape_cast %463 : vector<1x1x128xf32> to vector<128xf32>
    %465 = vector.shape_cast %464 : vector<128xf32> to vector<1x1x128xf32>
    %466 = vector.broadcast %465 : vector<1x1x128xf32> to vector<7x14x128xf32>
    %467 = arith.mulf %462, %466 : vector<7x14x128xf32>
    %468 = arith.addf %461, %467 : vector<7x14x128xf32>
    %c9_396 = arith.constant 9 : index
    %c2_397 = arith.constant 2 : index
    %c0_398 = arith.constant 0 : index
    %469 = vector.load %arg6[%c9_396, %c2_397, %c0_398] : memref<20x20x128xf32, #tpu.memory_space<vmem>>, vector<7x14x128xf32>
    %c2_399 = arith.constant 2 : index
    %c2_400 = arith.constant 2 : index
    %c0_401 = arith.constant 0 : index
    %470 = vector.load %arg3[%c2_399, %c2_400, %c0_401] : memref<7x7x128xf32, #tpu.memory_space<vmem>>, vector<1x1x128xf32>
    %471 = vector.shape_cast %470 : vector<1x1x128xf32> to vector<128xf32>
    %472 = vector.shape_cast %471 : vector<128xf32> to vector<1x1x128xf32>
    %473 = vector.broadcast %472 : vector<1x1x128xf32> to vector<7x14x128xf32>
    %474 = arith.mulf %469, %473 : vector<7x14x128xf32>
    %475 = arith.addf %468, %474 : vector<7x14x128xf32>
    %c9_402 = arith.constant 9 : index
    %c3_403 = arith.constant 3 : index
    %c0_404 = arith.constant 0 : index
    %476 = vector.load %arg6[%c9_402, %c3_403, %c0_404] : memref<20x20x128xf32, #tpu.memory_space<vmem>>, vector<7x14x128xf32>
    %c2_405 = arith.constant 2 : index
    %c3_406 = arith.constant 3 : index
    %c0_407 = arith.constant 0 : index
    %477 = vector.load %arg3[%c2_405, %c3_406, %c0_407] : memref<7x7x128xf32, #tpu.memory_space<vmem>>, vector<1x1x128xf32>
    %478 = vector.shape_cast %477 : vector<1x1x128xf32> to vector<128xf32>
    %479 = vector.shape_cast %478 : vector<128xf32> to vector<1x1x128xf32>
    %480 = vector.broadcast %479 : vector<1x1x128xf32> to vector<7x14x128xf32>
    %481 = arith.mulf %476, %480 : vector<7x14x128xf32>
    %482 = arith.addf %475, %481 : vector<7x14x128xf32>
    %c9_408 = arith.constant 9 : index
    %c4_409 = arith.constant 4 : index
    %c0_410 = arith.constant 0 : index
    %483 = vector.load %arg6[%c9_408, %c4_409, %c0_410] : memref<20x20x128xf32, #tpu.memory_space<vmem>>, vector<7x14x128xf32>
    %c2_411 = arith.constant 2 : index
    %c4_412 = arith.constant 4 : index
    %c0_413 = arith.constant 0 : index
    %484 = vector.load %arg3[%c2_411, %c4_412, %c0_413] : memref<7x7x128xf32, #tpu.memory_space<vmem>>, vector<1x1x128xf32>
    %485 = vector.shape_cast %484 : vector<1x1x128xf32> to vector<128xf32>
    %486 = vector.shape_cast %485 : vector<128xf32> to vector<1x1x128xf32>
    %487 = vector.broadcast %486 : vector<1x1x128xf32> to vector<7x14x128xf32>
    %488 = arith.mulf %483, %487 : vector<7x14x128xf32>
    %489 = arith.addf %482, %488 : vector<7x14x128xf32>
    %c9_414 = arith.constant 9 : index
    %c5_415 = arith.constant 5 : index
    %c0_416 = arith.constant 0 : index
    %490 = vector.load %arg6[%c9_414, %c5_415, %c0_416] : memref<20x20x128xf32, #tpu.memory_space<vmem>>, vector<7x14x128xf32>
    %c2_417 = arith.constant 2 : index
    %c5_418 = arith.constant 5 : index
    %c0_419 = arith.constant 0 : index
    %491 = vector.load %arg3[%c2_417, %c5_418, %c0_419] : memref<7x7x128xf32, #tpu.memory_space<vmem>>, vector<1x1x128xf32>
    %492 = vector.shape_cast %491 : vector<1x1x128xf32> to vector<128xf32>
    %493 = vector.shape_cast %492 : vector<128xf32> to vector<1x1x128xf32>
    %494 = vector.broadcast %493 : vector<1x1x128xf32> to vector<7x14x128xf32>
    %495 = arith.mulf %490, %494 : vector<7x14x128xf32>
    %496 = arith.addf %489, %495 : vector<7x14x128xf32>
    %c9_420 = arith.constant 9 : index
    %c6_421 = arith.constant 6 : index
    %c0_422 = arith.constant 0 : index
    %497 = vector.load %arg6[%c9_420, %c6_421, %c0_422] : memref<20x20x128xf32, #tpu.memory_space<vmem>>, vector<7x14x128xf32>
    %c2_423 = arith.constant 2 : index
    %c6_424 = arith.constant 6 : index
    %c0_425 = arith.constant 0 : index
    %498 = vector.load %arg3[%c2_423, %c6_424, %c0_425] : memref<7x7x128xf32, #tpu.memory_space<vmem>>, vector<1x1x128xf32>
    %499 = vector.shape_cast %498 : vector<1x1x128xf32> to vector<128xf32>
    %500 = vector.shape_cast %499 : vector<128xf32> to vector<1x1x128xf32>
    %501 = vector.broadcast %500 : vector<1x1x128xf32> to vector<7x14x128xf32>
    %502 = arith.mulf %497, %501 : vector<7x14x128xf32>
    %503 = arith.addf %496, %502 : vector<7x14x128xf32>
    %c10 = arith.constant 10 : index
    %c0_426 = arith.constant 0 : index
    %c0_427 = arith.constant 0 : index
    %504 = vector.load %arg6[%c10, %c0_426, %c0_427] : memref<20x20x128xf32, #tpu.memory_space<vmem>>, vector<7x14x128xf32>
    %c3_428 = arith.constant 3 : index
    %c0_429 = arith.constant 0 : index
    %c0_430 = arith.constant 0 : index
    %505 = vector.load %arg3[%c3_428, %c0_429, %c0_430] : memref<7x7x128xf32, #tpu.memory_space<vmem>>, vector<1x1x128xf32>
    %506 = vector.shape_cast %505 : vector<1x1x128xf32> to vector<128xf32>
    %507 = vector.shape_cast %506 : vector<128xf32> to vector<1x1x128xf32>
    %508 = vector.broadcast %507 : vector<1x1x128xf32> to vector<7x14x128xf32>
    %509 = arith.mulf %504, %508 : vector<7x14x128xf32>
    %510 = arith.addf %503, %509 : vector<7x14x128xf32>
    %c10_431 = arith.constant 10 : index
    %c1_432 = arith.constant 1 : index
    %c0_433 = arith.constant 0 : index
    %511 = vector.load %arg6[%c10_431, %c1_432, %c0_433] : memref<20x20x128xf32, #tpu.memory_space<vmem>>, vector<7x14x128xf32>
    %c3_434 = arith.constant 3 : index
    %c1_435 = arith.constant 1 : index
    %c0_436 = arith.constant 0 : index
    %512 = vector.load %arg3[%c3_434, %c1_435, %c0_436] : memref<7x7x128xf32, #tpu.memory_space<vmem>>, vector<1x1x128xf32>
    %513 = vector.shape_cast %512 : vector<1x1x128xf32> to vector<128xf32>
    %514 = vector.shape_cast %513 : vector<128xf32> to vector<1x1x128xf32>
    %515 = vector.broadcast %514 : vector<1x1x128xf32> to vector<7x14x128xf32>
    %516 = arith.mulf %511, %515 : vector<7x14x128xf32>
    %517 = arith.addf %510, %516 : vector<7x14x128xf32>
    %c10_437 = arith.constant 10 : index
    %c2_438 = arith.constant 2 : index
    %c0_439 = arith.constant 0 : index
    %518 = vector.load %arg6[%c10_437, %c2_438, %c0_439] : memref<20x20x128xf32, #tpu.memory_space<vmem>>, vector<7x14x128xf32>
    %c3_440 = arith.constant 3 : index
    %c2_441 = arith.constant 2 : index
    %c0_442 = arith.constant 0 : index
    %519 = vector.load %arg3[%c3_440, %c2_441, %c0_442] : memref<7x7x128xf32, #tpu.memory_space<vmem>>, vector<1x1x128xf32>
    %520 = vector.shape_cast %519 : vector<1x1x128xf32> to vector<128xf32>
    %521 = vector.shape_cast %520 : vector<128xf32> to vector<1x1x128xf32>
    %522 = vector.broadcast %521 : vector<1x1x128xf32> to vector<7x14x128xf32>
    %523 = arith.mulf %518, %522 : vector<7x14x128xf32>
    %524 = arith.addf %517, %523 : vector<7x14x128xf32>
    %c10_443 = arith.constant 10 : index
    %c3_444 = arith.constant 3 : index
    %c0_445 = arith.constant 0 : index
    %525 = vector.load %arg6[%c10_443, %c3_444, %c0_445] : memref<20x20x128xf32, #tpu.memory_space<vmem>>, vector<7x14x128xf32>
    %c3_446 = arith.constant 3 : index
    %c3_447 = arith.constant 3 : index
    %c0_448 = arith.constant 0 : index
    %526 = vector.load %arg3[%c3_446, %c3_447, %c0_448] : memref<7x7x128xf32, #tpu.memory_space<vmem>>, vector<1x1x128xf32>
    %527 = vector.shape_cast %526 : vector<1x1x128xf32> to vector<128xf32>
    %528 = vector.shape_cast %527 : vector<128xf32> to vector<1x1x128xf32>
    %529 = vector.broadcast %528 : vector<1x1x128xf32> to vector<7x14x128xf32>
    %530 = arith.mulf %525, %529 : vector<7x14x128xf32>
    %531 = arith.addf %524, %530 : vector<7x14x128xf32>
    %c10_449 = arith.constant 10 : index
    %c4_450 = arith.constant 4 : index
    %c0_451 = arith.constant 0 : index
    %532 = vector.load %arg6[%c10_449, %c4_450, %c0_451] : memref<20x20x128xf32, #tpu.memory_space<vmem>>, vector<7x14x128xf32>
    %c3_452 = arith.constant 3 : index
    %c4_453 = arith.constant 4 : index
    %c0_454 = arith.constant 0 : index
    %533 = vector.load %arg3[%c3_452, %c4_453, %c0_454] : memref<7x7x128xf32, #tpu.memory_space<vmem>>, vector<1x1x128xf32>
    %534 = vector.shape_cast %533 : vector<1x1x128xf32> to vector<128xf32>
    %535 = vector.shape_cast %534 : vector<128xf32> to vector<1x1x128xf32>
    %536 = vector.broadcast %535 : vector<1x1x128xf32> to vector<7x14x128xf32>
    %537 = arith.mulf %532, %536 : vector<7x14x128xf32>
    %538 = arith.addf %531, %537 : vector<7x14x128xf32>
    %c10_455 = arith.constant 10 : index
    %c5_456 = arith.constant 5 : index
    %c0_457 = arith.constant 0 : index
    %539 = vector.load %arg6[%c10_455, %c5_456, %c0_457] : memref<20x20x128xf32, #tpu.memory_space<vmem>>, vector<7x14x128xf32>
    %c3_458 = arith.constant 3 : index
    %c5_459 = arith.constant 5 : index
    %c0_460 = arith.constant 0 : index
    %540 = vector.load %arg3[%c3_458, %c5_459, %c0_460] : memref<7x7x128xf32, #tpu.memory_space<vmem>>, vector<1x1x128xf32>
    %541 = vector.shape_cast %540 : vector<1x1x128xf32> to vector<128xf32>
    %542 = vector.shape_cast %541 : vector<128xf32> to vector<1x1x128xf32>
    %543 = vector.broadcast %542 : vector<1x1x128xf32> to vector<7x14x128xf32>
    %544 = arith.mulf %539, %543 : vector<7x14x128xf32>
    %545 = arith.addf %538, %544 : vector<7x14x128xf32>
    %c10_461 = arith.constant 10 : index
    %c6_462 = arith.constant 6 : index
    %c0_463 = arith.constant 0 : index
    %546 = vector.load %arg6[%c10_461, %c6_462, %c0_463] : memref<20x20x128xf32, #tpu.memory_space<vmem>>, vector<7x14x128xf32>
    %c3_464 = arith.constant 3 : index
    %c6_465 = arith.constant 6 : index
    %c0_466 = arith.constant 0 : index
    %547 = vector.load %arg3[%c3_464, %c6_465, %c0_466] : memref<7x7x128xf32, #tpu.memory_space<vmem>>, vector<1x1x128xf32>
    %548 = vector.shape_cast %547 : vector<1x1x128xf32> to vector<128xf32>
    %549 = vector.shape_cast %548 : vector<128xf32> to vector<1x1x128xf32>
    %550 = vector.broadcast %549 : vector<1x1x128xf32> to vector<7x14x128xf32>
    %551 = arith.mulf %546, %550 : vector<7x14x128xf32>
    %552 = arith.addf %545, %551 : vector<7x14x128xf32>
    %c11 = arith.constant 11 : index
    %c0_467 = arith.constant 0 : index
    %c0_468 = arith.constant 0 : index
    %553 = vector.load %arg6[%c11, %c0_467, %c0_468] : memref<20x20x128xf32, #tpu.memory_space<vmem>>, vector<7x14x128xf32>
    %c4_469 = arith.constant 4 : index
    %c0_470 = arith.constant 0 : index
    %c0_471 = arith.constant 0 : index
    %554 = vector.load %arg3[%c4_469, %c0_470, %c0_471] : memref<7x7x128xf32, #tpu.memory_space<vmem>>, vector<1x1x128xf32>
    %555 = vector.shape_cast %554 : vector<1x1x128xf32> to vector<128xf32>
    %556 = vector.shape_cast %555 : vector<128xf32> to vector<1x1x128xf32>
    %557 = vector.broadcast %556 : vector<1x1x128xf32> to vector<7x14x128xf32>
    %558 = arith.mulf %553, %557 : vector<7x14x128xf32>
    %559 = arith.addf %552, %558 : vector<7x14x128xf32>
    %c11_472 = arith.constant 11 : index
    %c1_473 = arith.constant 1 : index
    %c0_474 = arith.constant 0 : index
    %560 = vector.load %arg6[%c11_472, %c1_473, %c0_474] : memref<20x20x128xf32, #tpu.memory_space<vmem>>, vector<7x14x128xf32>
    %c4_475 = arith.constant 4 : index
    %c1_476 = arith.constant 1 : index
    %c0_477 = arith.constant 0 : index
    %561 = vector.load %arg3[%c4_475, %c1_476, %c0_477] : memref<7x7x128xf32, #tpu.memory_space<vmem>>, vector<1x1x128xf32>
    %562 = vector.shape_cast %561 : vector<1x1x128xf32> to vector<128xf32>
    %563 = vector.shape_cast %562 : vector<128xf32> to vector<1x1x128xf32>
    %564 = vector.broadcast %563 : vector<1x1x128xf32> to vector<7x14x128xf32>
    %565 = arith.mulf %560, %564 : vector<7x14x128xf32>
    %566 = arith.addf %559, %565 : vector<7x14x128xf32>
    %c11_478 = arith.constant 11 : index
    %c2_479 = arith.constant 2 : index
    %c0_480 = arith.constant 0 : index
    %567 = vector.load %arg6[%c11_478, %c2_479, %c0_480] : memref<20x20x128xf32, #tpu.memory_space<vmem>>, vector<7x14x128xf32>
    %c4_481 = arith.constant 4 : index
    %c2_482 = arith.constant 2 : index
    %c0_483 = arith.constant 0 : index
    %568 = vector.load %arg3[%c4_481, %c2_482, %c0_483] : memref<7x7x128xf32, #tpu.memory_space<vmem>>, vector<1x1x128xf32>
    %569 = vector.shape_cast %568 : vector<1x1x128xf32> to vector<128xf32>
    %570 = vector.shape_cast %569 : vector<128xf32> to vector<1x1x128xf32>
    %571 = vector.broadcast %570 : vector<1x1x128xf32> to vector<7x14x128xf32>
    %572 = arith.mulf %567, %571 : vector<7x14x128xf32>
    %573 = arith.addf %566, %572 : vector<7x14x128xf32>
    %c11_484 = arith.constant 11 : index
    %c3_485 = arith.constant 3 : index
    %c0_486 = arith.constant 0 : index
    %574 = vector.load %arg6[%c11_484, %c3_485, %c0_486] : memref<20x20x128xf32, #tpu.memory_space<vmem>>, vector<7x14x128xf32>
    %c4_487 = arith.constant 4 : index
    %c3_488 = arith.constant 3 : index
    %c0_489 = arith.constant 0 : index
    %575 = vector.load %arg3[%c4_487, %c3_488, %c0_489] : memref<7x7x128xf32, #tpu.memory_space<vmem>>, vector<1x1x128xf32>
    %576 = vector.shape_cast %575 : vector<1x1x128xf32> to vector<128xf32>
    %577 = vector.shape_cast %576 : vector<128xf32> to vector<1x1x128xf32>
    %578 = vector.broadcast %577 : vector<1x1x128xf32> to vector<7x14x128xf32>
    %579 = arith.mulf %574, %578 : vector<7x14x128xf32>
    %580 = arith.addf %573, %579 : vector<7x14x128xf32>
    %c11_490 = arith.constant 11 : index
    %c4_491 = arith.constant 4 : index
    %c0_492 = arith.constant 0 : index
    %581 = vector.load %arg6[%c11_490, %c4_491, %c0_492] : memref<20x20x128xf32, #tpu.memory_space<vmem>>, vector<7x14x128xf32>
    %c4_493 = arith.constant 4 : index
    %c4_494 = arith.constant 4 : index
    %c0_495 = arith.constant 0 : index
    %582 = vector.load %arg3[%c4_493, %c4_494, %c0_495] : memref<7x7x128xf32, #tpu.memory_space<vmem>>, vector<1x1x128xf32>
    %583 = vector.shape_cast %582 : vector<1x1x128xf32> to vector<128xf32>
    %584 = vector.shape_cast %583 : vector<128xf32> to vector<1x1x128xf32>
    %585 = vector.broadcast %584 : vector<1x1x128xf32> to vector<7x14x128xf32>
    %586 = arith.mulf %581, %585 : vector<7x14x128xf32>
    %587 = arith.addf %580, %586 : vector<7x14x128xf32>
    %c11_496 = arith.constant 11 : index
    %c5_497 = arith.constant 5 : index
    %c0_498 = arith.constant 0 : index
    %588 = vector.load %arg6[%c11_496, %c5_497, %c0_498] : memref<20x20x128xf32, #tpu.memory_space<vmem>>, vector<7x14x128xf32>
    %c4_499 = arith.constant 4 : index
    %c5_500 = arith.constant 5 : index
    %c0_501 = arith.constant 0 : index
    %589 = vector.load %arg3[%c4_499, %c5_500, %c0_501] : memref<7x7x128xf32, #tpu.memory_space<vmem>>, vector<1x1x128xf32>
    %590 = vector.shape_cast %589 : vector<1x1x128xf32> to vector<128xf32>
    %591 = vector.shape_cast %590 : vector<128xf32> to vector<1x1x128xf32>
    %592 = vector.broadcast %591 : vector<1x1x128xf32> to vector<7x14x128xf32>
    %593 = arith.mulf %588, %592 : vector<7x14x128xf32>
    %594 = arith.addf %587, %593 : vector<7x14x128xf32>
    %c11_502 = arith.constant 11 : index
    %c6_503 = arith.constant 6 : index
    %c0_504 = arith.constant 0 : index
    %595 = vector.load %arg6[%c11_502, %c6_503, %c0_504] : memref<20x20x128xf32, #tpu.memory_space<vmem>>, vector<7x14x128xf32>
    %c4_505 = arith.constant 4 : index
    %c6_506 = arith.constant 6 : index
    %c0_507 = arith.constant 0 : index
    %596 = vector.load %arg3[%c4_505, %c6_506, %c0_507] : memref<7x7x128xf32, #tpu.memory_space<vmem>>, vector<1x1x128xf32>
    %597 = vector.shape_cast %596 : vector<1x1x128xf32> to vector<128xf32>
    %598 = vector.shape_cast %597 : vector<128xf32> to vector<1x1x128xf32>
    %599 = vector.broadcast %598 : vector<1x1x128xf32> to vector<7x14x128xf32>
    %600 = arith.mulf %595, %599 : vector<7x14x128xf32>
    %601 = arith.addf %594, %600 : vector<7x14x128xf32>
    %c12 = arith.constant 12 : index
    %c0_508 = arith.constant 0 : index
    %c0_509 = arith.constant 0 : index
    %602 = vector.load %arg6[%c12, %c0_508, %c0_509] : memref<20x20x128xf32, #tpu.memory_space<vmem>>, vector<7x14x128xf32>
    %c5_510 = arith.constant 5 : index
    %c0_511 = arith.constant 0 : index
    %c0_512 = arith.constant 0 : index
    %603 = vector.load %arg3[%c5_510, %c0_511, %c0_512] : memref<7x7x128xf32, #tpu.memory_space<vmem>>, vector<1x1x128xf32>
    %604 = vector.shape_cast %603 : vector<1x1x128xf32> to vector<128xf32>
    %605 = vector.shape_cast %604 : vector<128xf32> to vector<1x1x128xf32>
    %606 = vector.broadcast %605 : vector<1x1x128xf32> to vector<7x14x128xf32>
    %607 = arith.mulf %602, %606 : vector<7x14x128xf32>
    %608 = arith.addf %601, %607 : vector<7x14x128xf32>
    %c12_513 = arith.constant 12 : index
    %c1_514 = arith.constant 1 : index
    %c0_515 = arith.constant 0 : index
    %609 = vector.load %arg6[%c12_513, %c1_514, %c0_515] : memref<20x20x128xf32, #tpu.memory_space<vmem>>, vector<7x14x128xf32>
    %c5_516 = arith.constant 5 : index
    %c1_517 = arith.constant 1 : index
    %c0_518 = arith.constant 0 : index
    %610 = vector.load %arg3[%c5_516, %c1_517, %c0_518] : memref<7x7x128xf32, #tpu.memory_space<vmem>>, vector<1x1x128xf32>
    %611 = vector.shape_cast %610 : vector<1x1x128xf32> to vector<128xf32>
    %612 = vector.shape_cast %611 : vector<128xf32> to vector<1x1x128xf32>
    %613 = vector.broadcast %612 : vector<1x1x128xf32> to vector<7x14x128xf32>
    %614 = arith.mulf %609, %613 : vector<7x14x128xf32>
    %615 = arith.addf %608, %614 : vector<7x14x128xf32>
    %c12_519 = arith.constant 12 : index
    %c2_520 = arith.constant 2 : index
    %c0_521 = arith.constant 0 : index
    %616 = vector.load %arg6[%c12_519, %c2_520, %c0_521] : memref<20x20x128xf32, #tpu.memory_space<vmem>>, vector<7x14x128xf32>
    %c5_522 = arith.constant 5 : index
    %c2_523 = arith.constant 2 : index
    %c0_524 = arith.constant 0 : index
    %617 = vector.load %arg3[%c5_522, %c2_523, %c0_524] : memref<7x7x128xf32, #tpu.memory_space<vmem>>, vector<1x1x128xf32>
    %618 = vector.shape_cast %617 : vector<1x1x128xf32> to vector<128xf32>
    %619 = vector.shape_cast %618 : vector<128xf32> to vector<1x1x128xf32>
    %620 = vector.broadcast %619 : vector<1x1x128xf32> to vector<7x14x128xf32>
    %621 = arith.mulf %616, %620 : vector<7x14x128xf32>
    %622 = arith.addf %615, %621 : vector<7x14x128xf32>
    %c12_525 = arith.constant 12 : index
    %c3_526 = arith.constant 3 : index
    %c0_527 = arith.constant 0 : index
    %623 = vector.load %arg6[%c12_525, %c3_526, %c0_527] : memref<20x20x128xf32, #tpu.memory_space<vmem>>, vector<7x14x128xf32>
    %c5_528 = arith.constant 5 : index
    %c3_529 = arith.constant 3 : index
    %c0_530 = arith.constant 0 : index
    %624 = vector.load %arg3[%c5_528, %c3_529, %c0_530] : memref<7x7x128xf32, #tpu.memory_space<vmem>>, vector<1x1x128xf32>
    %625 = vector.shape_cast %624 : vector<1x1x128xf32> to vector<128xf32>
    %626 = vector.shape_cast %625 : vector<128xf32> to vector<1x1x128xf32>
    %627 = vector.broadcast %626 : vector<1x1x128xf32> to vector<7x14x128xf32>
    %628 = arith.mulf %623, %627 : vector<7x14x128xf32>
    %629 = arith.addf %622, %628 : vector<7x14x128xf32>
    %c12_531 = arith.constant 12 : index
    %c4_532 = arith.constant 4 : index
    %c0_533 = arith.constant 0 : index
    %630 = vector.load %arg6[%c12_531, %c4_532, %c0_533] : memref<20x20x128xf32, #tpu.memory_space<vmem>>, vector<7x14x128xf32>
    %c5_534 = arith.constant 5 : index
    %c4_535 = arith.constant 4 : index
    %c0_536 = arith.constant 0 : index
    %631 = vector.load %arg3[%c5_534, %c4_535, %c0_536] : memref<7x7x128xf32, #tpu.memory_space<vmem>>, vector<1x1x128xf32>
    %632 = vector.shape_cast %631 : vector<1x1x128xf32> to vector<128xf32>
    %633 = vector.shape_cast %632 : vector<128xf32> to vector<1x1x128xf32>
    %634 = vector.broadcast %633 : vector<1x1x128xf32> to vector<7x14x128xf32>
    %635 = arith.mulf %630, %634 : vector<7x14x128xf32>
    %636 = arith.addf %629, %635 : vector<7x14x128xf32>
    %c12_537 = arith.constant 12 : index
    %c5_538 = arith.constant 5 : index
    %c0_539 = arith.constant 0 : index
    %637 = vector.load %arg6[%c12_537, %c5_538, %c0_539] : memref<20x20x128xf32, #tpu.memory_space<vmem>>, vector<7x14x128xf32>
    %c5_540 = arith.constant 5 : index
    %c5_541 = arith.constant 5 : index
    %c0_542 = arith.constant 0 : index
    %638 = vector.load %arg3[%c5_540, %c5_541, %c0_542] : memref<7x7x128xf32, #tpu.memory_space<vmem>>, vector<1x1x128xf32>
    %639 = vector.shape_cast %638 : vector<1x1x128xf32> to vector<128xf32>
    %640 = vector.shape_cast %639 : vector<128xf32> to vector<1x1x128xf32>
    %641 = vector.broadcast %640 : vector<1x1x128xf32> to vector<7x14x128xf32>
    %642 = arith.mulf %637, %641 : vector<7x14x128xf32>
    %643 = arith.addf %636, %642 : vector<7x14x128xf32>
    %c12_543 = arith.constant 12 : index
    %c6_544 = arith.constant 6 : index
    %c0_545 = arith.constant 0 : index
    %644 = vector.load %arg6[%c12_543, %c6_544, %c0_545] : memref<20x20x128xf32, #tpu.memory_space<vmem>>, vector<7x14x128xf32>
    %c5_546 = arith.constant 5 : index
    %c6_547 = arith.constant 6 : index
    %c0_548 = arith.constant 0 : index
    %645 = vector.load %arg3[%c5_546, %c6_547, %c0_548] : memref<7x7x128xf32, #tpu.memory_space<vmem>>, vector<1x1x128xf32>
    %646 = vector.shape_cast %645 : vector<1x1x128xf32> to vector<128xf32>
    %647 = vector.shape_cast %646 : vector<128xf32> to vector<1x1x128xf32>
    %648 = vector.broadcast %647 : vector<1x1x128xf32> to vector<7x14x128xf32>
    %649 = arith.mulf %644, %648 : vector<7x14x128xf32>
    %650 = arith.addf %643, %649 : vector<7x14x128xf32>
    %c13 = arith.constant 13 : index
    %c0_549 = arith.constant 0 : index
    %c0_550 = arith.constant 0 : index
    %651 = vector.load %arg6[%c13, %c0_549, %c0_550] : memref<20x20x128xf32, #tpu.memory_space<vmem>>, vector<7x14x128xf32>
    %c6_551 = arith.constant 6 : index
    %c0_552 = arith.constant 0 : index
    %c0_553 = arith.constant 0 : index
    %652 = vector.load %arg3[%c6_551, %c0_552, %c0_553] : memref<7x7x128xf32, #tpu.memory_space<vmem>>, vector<1x1x128xf32>
    %653 = vector.shape_cast %652 : vector<1x1x128xf32> to vector<128xf32>
    %654 = vector.shape_cast %653 : vector<128xf32> to vector<1x1x128xf32>
    %655 = vector.broadcast %654 : vector<1x1x128xf32> to vector<7x14x128xf32>
    %656 = arith.mulf %651, %655 : vector<7x14x128xf32>
    %657 = arith.addf %650, %656 : vector<7x14x128xf32>
    %c13_554 = arith.constant 13 : index
    %c1_555 = arith.constant 1 : index
    %c0_556 = arith.constant 0 : index
    %658 = vector.load %arg6[%c13_554, %c1_555, %c0_556] : memref<20x20x128xf32, #tpu.memory_space<vmem>>, vector<7x14x128xf32>
    %c6_557 = arith.constant 6 : index
    %c1_558 = arith.constant 1 : index
    %c0_559 = arith.constant 0 : index
    %659 = vector.load %arg3[%c6_557, %c1_558, %c0_559] : memref<7x7x128xf32, #tpu.memory_space<vmem>>, vector<1x1x128xf32>
    %660 = vector.shape_cast %659 : vector<1x1x128xf32> to vector<128xf32>
    %661 = vector.shape_cast %660 : vector<128xf32> to vector<1x1x128xf32>
    %662 = vector.broadcast %661 : vector<1x1x128xf32> to vector<7x14x128xf32>
    %663 = arith.mulf %658, %662 : vector<7x14x128xf32>
    %664 = arith.addf %657, %663 : vector<7x14x128xf32>
    %c13_560 = arith.constant 13 : index
    %c2_561 = arith.constant 2 : index
    %c0_562 = arith.constant 0 : index
    %665 = vector.load %arg6[%c13_560, %c2_561, %c0_562] : memref<20x20x128xf32, #tpu.memory_space<vmem>>, vector<7x14x128xf32>
    %c6_563 = arith.constant 6 : index
    %c2_564 = arith.constant 2 : index
    %c0_565 = arith.constant 0 : index
    %666 = vector.load %arg3[%c6_563, %c2_564, %c0_565] : memref<7x7x128xf32, #tpu.memory_space<vmem>>, vector<1x1x128xf32>
    %667 = vector.shape_cast %666 : vector<1x1x128xf32> to vector<128xf32>
    %668 = vector.shape_cast %667 : vector<128xf32> to vector<1x1x128xf32>
    %669 = vector.broadcast %668 : vector<1x1x128xf32> to vector<7x14x128xf32>
    %670 = arith.mulf %665, %669 : vector<7x14x128xf32>
    %671 = arith.addf %664, %670 : vector<7x14x128xf32>
    %c13_566 = arith.constant 13 : index
    %c3_567 = arith.constant 3 : index
    %c0_568 = arith.constant 0 : index
    %672 = vector.load %arg6[%c13_566, %c3_567, %c0_568] : memref<20x20x128xf32, #tpu.memory_space<vmem>>, vector<7x14x128xf32>
    %c6_569 = arith.constant 6 : index
    %c3_570 = arith.constant 3 : index
    %c0_571 = arith.constant 0 : index
    %673 = vector.load %arg3[%c6_569, %c3_570, %c0_571] : memref<7x7x128xf32, #tpu.memory_space<vmem>>, vector<1x1x128xf32>
    %674 = vector.shape_cast %673 : vector<1x1x128xf32> to vector<128xf32>
    %675 = vector.shape_cast %674 : vector<128xf32> to vector<1x1x128xf32>
    %676 = vector.broadcast %675 : vector<1x1x128xf32> to vector<7x14x128xf32>
    %677 = arith.mulf %672, %676 : vector<7x14x128xf32>
    %678 = arith.addf %671, %677 : vector<7x14x128xf32>
    %c13_572 = arith.constant 13 : index
    %c4_573 = arith.constant 4 : index
    %c0_574 = arith.constant 0 : index
    %679 = vector.load %arg6[%c13_572, %c4_573, %c0_574] : memref<20x20x128xf32, #tpu.memory_space<vmem>>, vector<7x14x128xf32>
    %c6_575 = arith.constant 6 : index
    %c4_576 = arith.constant 4 : index
    %c0_577 = arith.constant 0 : index
    %680 = vector.load %arg3[%c6_575, %c4_576, %c0_577] : memref<7x7x128xf32, #tpu.memory_space<vmem>>, vector<1x1x128xf32>
    %681 = vector.shape_cast %680 : vector<1x1x128xf32> to vector<128xf32>
    %682 = vector.shape_cast %681 : vector<128xf32> to vector<1x1x128xf32>
    %683 = vector.broadcast %682 : vector<1x1x128xf32> to vector<7x14x128xf32>
    %684 = arith.mulf %679, %683 : vector<7x14x128xf32>
    %685 = arith.addf %678, %684 : vector<7x14x128xf32>
    %c13_578 = arith.constant 13 : index
    %c5_579 = arith.constant 5 : index
    %c0_580 = arith.constant 0 : index
    %686 = vector.load %arg6[%c13_578, %c5_579, %c0_580] : memref<20x20x128xf32, #tpu.memory_space<vmem>>, vector<7x14x128xf32>
    %c6_581 = arith.constant 6 : index
    %c5_582 = arith.constant 5 : index
    %c0_583 = arith.constant 0 : index
    %687 = vector.load %arg3[%c6_581, %c5_582, %c0_583] : memref<7x7x128xf32, #tpu.memory_space<vmem>>, vector<1x1x128xf32>
    %688 = vector.shape_cast %687 : vector<1x1x128xf32> to vector<128xf32>
    %689 = vector.shape_cast %688 : vector<128xf32> to vector<1x1x128xf32>
    %690 = vector.broadcast %689 : vector<1x1x128xf32> to vector<7x14x128xf32>
    %691 = arith.mulf %686, %690 : vector<7x14x128xf32>
    %692 = arith.addf %685, %691 : vector<7x14x128xf32>
    %c13_584 = arith.constant 13 : index
    %c6_585 = arith.constant 6 : index
    %c0_586 = arith.constant 0 : index
    %693 = vector.load %arg6[%c13_584, %c6_585, %c0_586] : memref<20x20x128xf32, #tpu.memory_space<vmem>>, vector<7x14x128xf32>
    %c6_587 = arith.constant 6 : index
    %c6_588 = arith.constant 6 : index
    %c0_589 = arith.constant 0 : index
    %694 = vector.load %arg3[%c6_587, %c6_588, %c0_589] : memref<7x7x128xf32, #tpu.memory_space<vmem>>, vector<1x1x128xf32>
    %695 = vector.shape_cast %694 : vector<1x1x128xf32> to vector<128xf32>
    %696 = vector.shape_cast %695 : vector<128xf32> to vector<1x1x128xf32>
    %697 = vector.broadcast %696 : vector<1x1x128xf32> to vector<7x14x128xf32>
    %698 = arith.mulf %693, %697 : vector<7x14x128xf32>
    %699 = arith.addf %692, %698 : vector<7x14x128xf32>
    %c0_590 = arith.constant 0 : index
    %c7_591 = arith.constant 7 : index
    %c0_592 = arith.constant 0 : index
    %c0_593 = arith.constant 0 : index
    %700 = vector.load %arg5[%c0_590, %c7_591, %c0_592, %c0_593] : memref<1x14x14x128xf32, #tpu.memory_space<vmem>>, vector<1x7x14x128xf32>
    %701 = vector.shape_cast %700 : vector<1x7x14x128xf32> to vector<7x14x128xf32>
    %702 = vector.shape_cast %699 : vector<7x14x128xf32> to vector<1x7x14x128xf32>
    tpu.vector_store %arg5[%c0_590, %c7_591, %c0_592, %c0_593], %702 {strides = array<i32>} : memref<1x14x14x128xf32, #tpu.memory_space<vmem>>, vector<1x7x14x128xf32>,
    return
  }
  func.func @transform_0(%arg0: i32, %arg1: i32) -> (i32, i32, i32, i32) {
    %c0_i32 = arith.constant 0 : i32
    %c0_i32_0 = arith.constant 0 : i32
    %c0_i32_1 = arith.constant 0 : i32
    return %arg0, %c0_i32, %c0_i32_0, %arg1 : i32, i32, i32, i32
  }
  func.func @transform_1(%arg0: i32, %arg1: i32) -> (i32, i32, i32) {
    %c0_i32 = arith.constant 0 : i32
    %c0_i32_0 = arith.constant 0 : i32
    %c0_i32_1 = arith.constant 0 : i32
    return %c0_i32, %c0_i32_0, %arg1 : i32, i32, i32
  }
  func.func @transform_2(%arg0: i32, %arg1: i32) -> (i32, i32) {
    %c0_i32 = arith.constant 0 : i32
    %c0_i32_0 = arith.constant 0 : i32
    return %c0_i32, %arg1 : i32, i32
  }
  func.func @transform_3(%arg0: i32, %arg1: i32) -> (i32, i32, i32, i32) {
    %c0_i32 = arith.constant 0 : i32
    %c0_i32_0 = arith.constant 0 : i32
    %c0_i32_1 = arith.constant 0 : i32
    return %arg0, %c0_i32, %c0_i32_0, %arg1 : i32, i32, i32, i32
  }
}

</mosaic_0001>

<llo_original>
// kernel: depthwise_conv2d_nchw.1
$region0: #{depthwise_conv2d_nchw.1}
  #allocation0 [shape = 'u32[]', space=smem, size = 0x4, offset = 0x4, fixed_abs, tag = 'smem constant byte address 0x4 - core index']
  #allocation1 [shape = 'u32[144,128]{1,0:T(1,128)}', space=vmem, size = 0x12000, scoped, tag = 'internal scratch']
  #allocation2 [shape = 'f32[20,20,128]{2,1,0:T(8,128)}', space=vmem, size = 0x3c000, scoped, tag = 'scratch operand']
  %s0 = inlined_call_operand.vmem [shape: f32[1,14,14,768], index: 0, kind: input, shape index: {}]
  %s1 = inlined_call_operand.vmem [shape: f32[7,7,768], index: 1, kind: input, shape index: {}]
  %s2 = inlined_call_operand.vmem [shape: f32[1,768], index: 2, kind: input, shape index: {}]
  %s3 = inlined_call_operand.vmem [shape: f32[1,14,14,768], index: 3, kind: output, shape index: {}]
  %s4 = sld [smem:[#allocation0]]
  $region155: #{depthwise_conv2d_nchw.1} parent=0
    _
  %s6 = ssub.s32 1, %s4
  %s7 = scalar_select 0, %s6, %s4
  $region1: #{depthwise_conv2d_nchw.1} parent=0
    #allocation3 [shape = 'u8[229376]{0}', space=vmem, size = 0x38000, scoped, tag = 'input window, operand 0']
    #allocation4 [shape = 'u8[57344]{0}', space=vmem, size = 0xe000, scoped, tag = 'input window, operand 1']
    #allocation5 [shape = 'u8[229376]{0}', space=vmem, size = 0x38000, scoped, tag = 'output window, operand 0']
    loop: start=0, step=1, limit=8
    $region2: #{depthwise_conv2d_nchw.1} parent=1 // loop_pre_header
      _
    $region3: #{depthwise_conv2d_nchw.1} parent=1 // loop_header
      %s9 = sphi 0, %s13
      %p10 = scmp.ge.s32.totalorder %s9, 8
      %s16 = sphi 0, %s28
      %s17 = sphi 0, %s24
      %s18 = sphi 0, %s16
      %s19 = sphi 0, %s17
      %s20 = sphi 0, %s18
      %s21 = sphi 0, %s19
      %s33 = sphi 0, %s35
      %s36 = sphi 0, %s33
      %s37 = sphi 0, %s36
      %s53 = sphi 0, %s37
      %s59 = sphi 0, %s61
      %s62 = sphi 0, %s59
      %s63 = sphi 0, %s62
      %s79 = sphi 0, %s63
      %s85 = sphi 0, %s87
      %s88 = sphi 0, %s85
      %s89 = sphi 0, %s88
      %s105 = sphi 0, %s89
      %s113 = sphi 0, %s115
      %s116 = sphi 0, %s113
      %s117 = sphi 0, %s116
      %s133 = sphi 0, %s117
    $region4: #{depthwise_conv2d_nchw.1} parent=1 // loop_header_branch
      %12 = sbr.rel (%p10) target = $region8
    $region5: #{depthwise_conv2d_nchw.1} parent=1 // loop_body
      %s14 = ssub.s32 %s9, 1
      %s15 = ssub.s32 %s9, 2
      %s22 = sadd.s32 1, %s17
      %p23 = scmp.ge.s32.totalorder %s22, 6
      %s24 = scalar_select %p23, 0, %s22
      %s25 = sadd.s32 1, %s16
      %s26 = scalar_select %p23, %s25, %s16
      %p27 = scmp.ge.s32.totalorder %s26, 1
      %s28 = scalar_select %p27, 0, %s26
      %s29 = ssub.s32 %s16, %s28
      %s30 = ssub.s32 %s17, %s24
      %s31 = sor.u32 %s29, %s30
      %p32 = scmp.eq.s32.totalorder %s31, 0
      %s34 = sadd.s32 %s33, 1
      %s35 = scalar_select %p32, %s33, %s34
      %p38 = pneg %p32
      %p39 = scmp.eq.s32.totalorder %s9, 5
      %p40 = por %p38, %p39
      %p41 = scmp.ne.s32.totalorder %s33, %s36
      %p42 = scmp.eq.s32.totalorder %s9, 0
      %p43 = por %p41, %p42
      %p44 = scmp.ne.s32.totalorder %s33, %s36
      %p45 = scmp.eq.s32.totalorder %s14, 5
      %p46 = por %p44, %p45
      %p47 = scmp.ne.s32.totalorder %s36, %s37
      %p48 = scmp.eq.s32.totalorder %s14, 0
      %p49 = por %p47, %p48
      %p50 = scmp.ne.s32.totalorder %s36, %s37
      %p51 = scmp.eq.s32.totalorder %s15, 5
      %p52 = por %p50, %p51
      %p54 = scmp.ne.s32.totalorder %s37, %s53
      %p55 = scmp.eq.s32.totalorder %s15, 0
      %p56 = por %p54, %p55
      %s57 = ssub.s32 %s17, %s24
      %p58 = scmp.eq.s32.totalorder %s57, 0
      %s60 = sadd.s32 %s59, 1
      %s61 = scalar_select %p58, %s59, %s60
      %p64 = pneg %p58
      %p65 = scmp.eq.s32.totalorder %s9, 5
      %p66 = por %p64, %p65
      %p67 = scmp.ne.s32.totalorder %s59, %s62
      %p68 = scmp.eq.s32.totalorder %s9, 0
      %p69 = por %p67, %p68
      %p70 = scmp.ne.s32.totalorder %s59, %s62
      %p71 = scmp.eq.s32.totalorder %s14, 5
      %p72 = por %p70, %p71
      %p73 = scmp.ne.s32.totalorder %s62, %s63
      %p74 = scmp.eq.s32.totalorder %s14, 0
      %p75 = por %p73, %p74
      %p76 = scmp.ne.s32.totalorder %s62, %s63
      %p77 = scmp.eq.s32.totalorder %s15, 5
      %p78 = por %p76, %p77
      %p80 = scmp.ne.s32.totalorder %s63, %s79
      %p81 = scmp.eq.s32.totalorder %s15, 0
      %p82 = por %p80, %p81
      %s83 = ssub.s32 %s17, %s24
      %p84 = scmp.eq.s32.totalorder %s83, 0
      %s86 = sadd.s32 %s85, 1
      %s87 = scalar_select %p84, %s85, %s86
      %p90 = pneg %p84
      %p91 = scmp.eq.s32.totalorder %s9, 5
      %p92 = por %p90, %p91
      %p93 = scmp.ne.s32.totalorder %s85, %s88
      %p94 = scmp.eq.s32.totalorder %s9, 0
      %p95 = por %p93, %p94
      %p96 = scmp.ne.s32.totalorder %s85, %s88
      %p97 = scmp.eq.s32.totalorder %s14, 5
      %p98 = por %p96, %p97
      %p99 = scmp.ne.s32.totalorder %s88, %s89
      %p100 = scmp.eq.s32.totalorder %s14, 0
      %p101 = por %p99, %p100
      %p102 = scmp.ne.s32.totalorder %s88, %s89
      %p103 = scmp.eq.s32.totalorder %s15, 5
      %p104 = por %p102, %p103
      %p106 = scmp.ne.s32.totalorder %s89, %s105
      %p107 = scmp.eq.s32.totalorder %s15, 0
      %p108 = por %p106, %p107
      %s109 = ssub.s32 %s16, %s28
      %s110 = ssub.s32 %s17, %s24
      %s111 = sor.u32 %s109, %s110
      %p112 = scmp.eq.s32.totalorder %s111, 0
      %s114 = sadd.s32 %s113, 1
      %s115 = scalar_select %p112, %s113, %s114
      %p118 = pneg %p112
      %p119 = scmp.eq.s32.totalorder %s9, 5
      %p120 = por %p118, %p119
      %p121 = scmp.ne.s32.totalorder %s113, %s116
      %p122 = scmp.eq.s32.totalorder %s9, 0
      %p123 = por %p121, %p122
      %p124 = scmp.ne.s32.totalorder %s113, %s116
      %p125 = scmp.eq.s32.totalorder %s14, 5
      %p126 = por %p124, %p125
      %p127 = scmp.ne.s32.totalorder %s116, %s117
      %p128 = scmp.eq.s32.totalorder %s14, 0
      %p129 = por %p127, %p128
      %p130 = scmp.ne.s32.totalorder %s116, %s117
      %p131 = scmp.eq.s32.totalorder %s15, 5
      %p132 = por %p130, %p131
      %p134 = scmp.ne.s32.totalorder %s117, %s133
      %p135 = scmp.eq.s32.totalorder %s15, 0
      %p136 = por %p134, %p135
      %p137 = scmp.le.s32.totalorder 1, %s9
      %p138 = scmp.lt.s32.totalorder %s9, 7
      %p139 = pnand %p137, %p138
      %p140 = pneg %p139
      // Predicated region
      $region9: #{depthwise_conv2d_nchw.1} parent=5 // pred_check
        _
      $region10: #{depthwise_conv2d_nchw.1} parent=5 // pred_check_branch
        %142 = sbr.rel (%p139) target = $region12
      $region11: #{depthwise_conv2d_nchw.1} parent=5 // pred_region
        %s143 = ssub.s32 %s9, 1
      $region12: #{depthwise_conv2d_nchw.1} parent=5 // pred_fallthru
        _
      %p144 = scmp.lt.s32.totalorder %s9, 6
      // Predicated region
      $region13: #{depthwise_conv2d_nchw.1} parent=5 // pred_check
        %p145 = pneg %p144
      $region14: #{depthwise_conv2d_nchw.1} parent=5 // pred_check_branch
        %147 = sbr.rel (%p145) target = $region16
      $region15: #{depthwise_conv2d_nchw.1} parent=5 // pred_region
        // Predicated region
        $region17: #{depthwise_conv2d_nchw.1} parent=15 // pred_check
          %p148 = pneg %p43
        $region18: #{depthwise_conv2d_nchw.1} parent=15 // pred_check_branch
          %150 = sbr.rel (%p148) target = $region20
        $region19: #{depthwise_conv2d_nchw.1} parent=15 // pred_region
          %s151 = sand.u32 %s33, 1
          %s152 = sand.u32 %s33, 1
          %s153 = smul.addr %s152, 224
          %s154 = scalar_lea.vmem [#allocation3], %s153
          %s155 = smul.addr %s16, 168
          %s156 = sadd.s32 %s17, %s155
          %s157 = smul.addr %s156, 8
          %s158 = scalar_lea.vmem %s0, %s157
          // Predicated region
          $region21: #{depthwise_conv2d_nchw.1} parent=19 // pred_check
            _
          $region22: #{depthwise_conv2d_nchw.1} parent=19 // pred_check_branch
            %160 = sbr.rel (0) target = $region24
          $region23: #{depthwise_conv2d_nchw.1} parent=19 // pred_region
            // Predicated region
            $region25: #{depthwise_conv2d_nchw.1} parent=23 // pred_check
              _
            $region26: #{depthwise_conv2d_nchw.1} parent=23 // pred_check_branch
              %162 = sbr.rel (0) target = $region28
            $region27: #{depthwise_conv2d_nchw.1} parent=23 // pred_region
              // Predicated region
              $region40: #{depthwise_conv2d_nchw.1} parent=27 // pred_check
                _
              $region41: #{depthwise_conv2d_nchw.1} parent=27 // pred_check_branch
                %231 = sbr.rel (0) target = $region43
              $region42: #{depthwise_conv2d_nchw.1} parent=27 // pred_region
                loop: start=0, step=1, limit=1
                $region44: #{depthwise_conv2d_nchw.1} parent=42 // loop_pre_header
                  _
                $region45: #{depthwise_conv2d_nchw.1} parent=42 // loop_header
                  %s233 = sphi 0, %s237
                  %p234 = scmp.ge.s32.totalorder %s233, 1
                  %s238 = sphi %s158, %s158
                  %s239 = sphi %s154, %s154
                $region46: #{depthwise_conv2d_nchw.1} parent=42 // loop_header_branch
                  %236 = sbr.rel (%p234) target = $region50
                $region47: #{depthwise_conv2d_nchw.1} parent=42 // loop_body
                  %v240 = vld [vmem:[%s238] sm:$0xff]
                  %241 = vst [vmem:[%s239] sm:$0xff] %v240
                  %v242 = vld [vmem:[%s238 + $0x30] sm:$0xff]
                  %243 = vst [vmem:[%s239 + $0x8] sm:$0xff] %v242
                  %v244 = vld [vmem:[%s238 + $0x60] sm:$0xff]
                  %245 = vst [vmem:[%s239 + $0x10] sm:$0xff] %v244
                  %v246 = vld [vmem:[%s238 + $0x90] sm:$0xff]
                  %247 = vst [vmem:[%s239 + $0x18] sm:$0xff] %v246
                  %v248 = vld [vmem:[%s238 + $0xc0] sm:$0xff]
                  %249 = vst [vmem:[%s239 + $0x20] sm:$0xff] %v248
                  %v250 = vld [vmem:[%s238 + $0xf0] sm:$0xff]
                  %251 = vst [vmem:[%s239 + $0x28] sm:$0xff] %v250
                  %v252 = vld [vmem:[%s238 + $0x120] sm:$0xff]
                  %253 = vst [vmem:[%s239 + $0x30] sm:$0xff] %v252
                  %v254 = vld [vmem:[%s238 + $0x150] sm:$0xff]
                  %255 = vst [vmem:[%s239 + $0x38] sm:$0xff] %v254
                  %v256 = vld [vmem:[%s238 + $0x180] sm:$0xff]
                  %257 = vst [vmem:[%s239 + $0x40] sm:$0xff] %v256
                  %v258 = vld [vmem:[%s238 + $0x1b0] sm:$0xff]
                  %259 = vst [vmem:[%s239 + $0x48] sm:$0xff] %v258
                  %v260 = vld [vmem:[%s238 + $0x1e0] sm:$0xff]
                  %261 = vst [vmem:[%s239 + $0x50] sm:$0xff] %v260
                  %v262 = vld [vmem:[%s238 + $0x210] sm:$0xff]
                  %263 = vst [vmem:[%s239 + $0x58] sm:$0xff] %v262
                  %v264 = vld [vmem:[%s238 + $0x240] sm:$0xff]
                  %265 = vst [vmem:[%s239 + $0x60] sm:$0xff] %v264
                  %v266 = vld [vmem:[%s238 + $0x270] sm:$0xff]
                  %267 = vst [vmem:[%s239 + $0x68] sm:$0xff] %v266
                  %v268 = vld [vmem:[%s238 + $0x2a0] sm:$0xff]
                  %269 = vst [vmem:[%s239 + $0x70] sm:$0xff] %v268
                  %v270 = vld [vmem:[%s238 + $0x2d0] sm:$0xff]
                  %271 = vst [vmem:[%s239 + $0x78] sm:$0xff] %v270
                  %v272 = vld [vmem:[%s238 + $0x300] sm:$0xff]
                  %273 = vst [vmem:[%s239 + $0x80] sm:$0xff] %v272
                  %v274 = vld [vmem:[%s238 + $0x330] sm:$0xff]
                  %275 = vst [vmem:[%s239 + $0x88] sm:$0xff] %v274
                  %v276 = vld [vmem:[%s238 + $0x360] sm:$0xff]
                  %277 = vst [vmem:[%s239 + $0x90] sm:$0xff] %v276
                  %v278 = vld [vmem:[%s238 + $0x390] sm:$0xff]
                  %279 = vst [vmem:[%s239 + $0x98] sm:$0xff] %v278
                  %v280 = vld [vmem:[%s238 + $0x3c0] sm:$0xff]
                  %281 = vst [vmem:[%s239 + $0xa0] sm:$0xff] %v280
                  %v282 = vld [vmem:[%s238 + $0x3f0] sm:$0xff]
                  %283 = vst [vmem:[%s239 + $0xa8] sm:$0xff] %v282
                  %v284 = vld [vmem:[%s238 + $0x420] sm:$0xff]
                  %285 = vst [vmem:[%s239 + $0xb0] sm:$0xff] %v284
                  %v286 = vld [vmem:[%s238 + $0x450] sm:$0xff]
                  %287 = vst [vmem:[%s239 + $0xb8] sm:$0xff] %v286
                  %v288 = vld [vmem:[%s238 + $0x480] sm:$0xff]
                  %289 = vst [vmem:[%s239 + $0xc0] sm:$0xff] %v288
                  %v290 = vld [vmem:[%s238 + $0x4b0] sm:$0xff]
                  %291 = vst [vmem:[%s239 + $0xc8] sm:$0xff] %v290
                  %v292 = vld [vmem:[%s238 + $0x4e0] sm:$0xff]
                  %293 = vst [vmem:[%s239 + $0xd0] sm:$0xff] %v292
                  %v294 = vld [vmem:[%s238 + $0x510] sm:$0xff]
                  %295 = vst [vmem:[%s239 + $0xd8] sm:$0xff] %v294
                $region48: #{depthwise_conv2d_nchw.1} parent=42 // loop_footer
                  %s237 = sadd.s32 1, %s233
                $region49: #{depthwise_conv2d_nchw.1} parent=42 // loop_footer_branch
                  %232 = sbr.rel target = $region45
                $region50: #{depthwise_conv2d_nchw.1} parent=42 // loop_exit
                  _
              $region43: #{depthwise_conv2d_nchw.1} parent=27 // pred_fallthru
                _
              // Predicated region
              $region51: #{depthwise_conv2d_nchw.1} parent=27 // pred_check
                _
              $region52: #{depthwise_conv2d_nchw.1} parent=27 // pred_check_branch
                %297 = sbr.rel target = $region54
              $region53: #{depthwise_conv2d_nchw.1} parent=27 // pred_region
                _
              $region54: #{depthwise_conv2d_nchw.1} parent=27 // pred_fallthru
                _
            $region28: #{depthwise_conv2d_nchw.1} parent=23 // pred_fallthru
              _
            // Predicated region
            $region29: #{depthwise_conv2d_nchw.1} parent=23 // pred_check
              _
            $region30: #{depthwise_conv2d_nchw.1} parent=23 // pred_check_branch
              %164 = sbr.rel target = $region32
            $region31: #{depthwise_conv2d_nchw.1} parent=23 // pred_region
              loop: start=0, step=1, limit=1
              $region33: #{depthwise_conv2d_nchw.1} parent=31 // loop_pre_header
                _
              $region34: #{depthwise_conv2d_nchw.1} parent=31 // loop_header
                %s167 = sphi 0, %s171
                %p168 = scmp.ge.s32.totalorder %s167, 1
                %s172 = sphi %s158, %s158
                %s173 = sphi %s154, %s154
              $region35: #{depthwise_conv2d_nchw.1} parent=31 // loop_header_branch
                %170 = sbr.rel (%p168) target = $region39
              $region36: #{depthwise_conv2d_nchw.1} parent=31 // loop_body
                %v174 = vld [vmem:[%s172] sm:$0xff]
                %175 = vst [vmem:[%s173] sm:$0xff] %v174
                %v176 = vld [vmem:[%s172 + $0x30] sm:$0xff]
                %177 = vst [vmem:[%s173 + $0x8] sm:$0xff] %v176
                %v178 = vld [vmem:[%s172 + $0x60] sm:$0xff]
                %179 = vst [vmem:[%s173 + $0x10] sm:$0xff] %v178
                %v180 = vld [vmem:[%s172 + $0x90] sm:$0xff]
                %181 = vst [vmem:[%s173 + $0x18] sm:$0xff] %v180
                %v182 = vld [vmem:[%s172 + $0xc0] sm:$0xff]
                %183 = vst [vmem:[%s173 + $0x20] sm:$0xff] %v182
                %v184 = vld [vmem:[%s172 + $0xf0] sm:$0xff]
                %185 = vst [vmem:[%s173 + $0x28] sm:$0xff] %v184
                %v186 = vld [vmem:[%s172 + $0x120] sm:$0xff]
                %187 = vst [vmem:[%s173 + $0x30] sm:$0xff] %v186
                %v188 = vld [vmem:[%s172 + $0x150] sm:$0xff]
                %189 = vst [vmem:[%s173 + $0x38] sm:$0xff] %v188
                %v190 = vld [vmem:[%s172 + $0x180] sm:$0xff]
                %191 = vst [vmem:[%s173 + $0x40] sm:$0xff] %v190
                %v192 = vld [vmem:[%s172 + $0x1b0] sm:$0xff]
                %193 = vst [vmem:[%s173 + $0x48] sm:$0xff] %v192
                %v194 = vld [vmem:[%s172 + $0x1e0] sm:$0xff]
                %195 = vst [vmem:[%s173 + $0x50] sm:$0xff] %v194
                %v196 = vld [vmem:[%s172 + $0x210] sm:$0xff]
                %197 = vst [vmem:[%s173 + $0x58] sm:$0xff] %v196
                %v198 = vld [vmem:[%s172 + $0x240] sm:$0xff]
                %199 = vst [vmem:[%s173 + $0x60] sm:$0xff] %v198
                %v200 = vld [vmem:[%s172 + $0x270] sm:$0xff]
                %201 = vst [vmem:[%s173 + $0x68] sm:$0xff] %v200
                %v202 = vld [vmem:[%s172 + $0x2a0] sm:$0xff]
                %203 = vst [vmem:[%s173 + $0x70] sm:$0xff] %v202
                %v204 = vld [vmem:[%s172 + $0x2d0] sm:$0xff]
                %205 = vst [vmem:[%s173 + $0x78] sm:$0xff] %v204
                %v206 = vld [vmem:[%s172 + $0x300] sm:$0xff]
                %207 = vst [vmem:[%s173 + $0x80] sm:$0xff] %v206
                %v208 = vld [vmem:[%s172 + $0x330] sm:$0xff]
                %209 = vst [vmem:[%s173 + $0x88] sm:$0xff] %v208
                %v210 = vld [vmem:[%s172 + $0x360] sm:$0xff]
                %211 = vst [vmem:[%s173 + $0x90] sm:$0xff] %v210
                %v212 = vld [vmem:[%s172 + $0x390] sm:$0xff]
                %213 = vst [vmem:[%s173 + $0x98] sm:$0xff] %v212
                %v214 = vld [vmem:[%s172 + $0x3c0] sm:$0xff]
                %215 = vst [vmem:[%s173 + $0xa0] sm:$0xff] %v214
                %v216 = vld [vmem:[%s172 + $0x3f0] sm:$0xff]
                %217 = vst [vmem:[%s173 + $0xa8] sm:$0xff] %v216
                %v218 = vld [vmem:[%s172 + $0x420] sm:$0xff]
                %219 = vst [vmem:[%s173 + $0xb0] sm:$0xff] %v218
                %v220 = vld [vmem:[%s172 + $0x450] sm:$0xff]
                %221 = vst [vmem:[%s173 + $0xb8] sm:$0xff] %v220
                %v222 = vld [vmem:[%s172 + $0x480] sm:$0xff]
                %223 = vst [vmem:[%s173 + $0xc0] sm:$0xff] %v222
                %v224 = vld [vmem:[%s172 + $0x4b0] sm:$0xff]
                %225 = vst [vmem:[%s173 + $0xc8] sm:$0xff] %v224
                %v226 = vld [vmem:[%s172 + $0x4e0] sm:$0xff]
                %227 = vst [vmem:[%s173 + $0xd0] sm:$0xff] %v226
                %v228 = vld [vmem:[%s172 + $0x510] sm:$0xff]
                %229 = vst [vmem:[%s173 + $0xd8] sm:$0xff] %v228
              $region37: #{depthwise_conv2d_nchw.1} parent=31 // loop_footer
                %s171 = sadd.s32 1, %s167
              $region38: #{depthwise_conv2d_nchw.1} parent=31 // loop_footer_branch
                %166 = sbr.rel target = $region34
              $region39: #{depthwise_conv2d_nchw.1} parent=31 // loop_exit
                _
            $region32: #{depthwise_conv2d_nchw.1} parent=23 // pred_fallthru
              _
          $region24: #{depthwise_conv2d_nchw.1} parent=19 // pred_fallthru
            _
          %298 = vnop
        $region20: #{depthwise_conv2d_nchw.1} parent=15 // pred_fallthru
          _
        // Predicated region
        $region55: #{depthwise_conv2d_nchw.1} parent=15 // pred_check
          %p299 = pneg %p69
        $region56: #{depthwise_conv2d_nchw.1} parent=15 // pred_check_branch
          %301 = sbr.rel (%p299) target = $region58
        $region57: #{depthwise_conv2d_nchw.1} parent=15 // pred_region
          %s302 = sand.u32 %s59, 1
          %s303 = sand.u32 %s59, 1
          %s304 = smul.addr %s303, 56
          %s305 = scalar_lea.vmem [#allocation4], %s304
          %s306 = smul.addr %s17, 8
          %s307 = scalar_lea.vmem %s1, %s306
          // Predicated region
          $region59: #{depthwise_conv2d_nchw.1} parent=57 // pred_check
            _
          $region60: #{depthwise_conv2d_nchw.1} parent=57 // pred_check_branch
            %309 = sbr.rel (0) target = $region62
          $region61: #{depthwise_conv2d_nchw.1} parent=57 // pred_region
            // Predicated region
            $region63: #{depthwise_conv2d_nchw.1} parent=61 // pred_check
              _
            $region64: #{depthwise_conv2d_nchw.1} parent=61 // pred_check_branch
              %311 = sbr.rel (0) target = $region66
            $region65: #{depthwise_conv2d_nchw.1} parent=61 // pred_region
              // Predicated region
              $region78: #{depthwise_conv2d_nchw.1} parent=65 // pred_check
                _
              $region79: #{depthwise_conv2d_nchw.1} parent=65 // pred_check_branch
                %338 = sbr.rel (0) target = $region81
              $region80: #{depthwise_conv2d_nchw.1} parent=65 // pred_region
                loop: start=0, step=1, limit=1
                $region82: #{depthwise_conv2d_nchw.1} parent=80 // loop_pre_header
                  _
                $region83: #{depthwise_conv2d_nchw.1} parent=80 // loop_header
                  %s340 = sphi 0, %s344
                  %p341 = scmp.ge.s32.totalorder %s340, 1
                  %s345 = sphi %s307, %s307
                  %s346 = sphi %s305, %s305
                $region84: #{depthwise_conv2d_nchw.1} parent=80 // loop_header_branch
                  %343 = sbr.rel (%p341) target = $region88
                $region85: #{depthwise_conv2d_nchw.1} parent=80 // loop_body
                  %v347 = vld [vmem:[%s345] sm:$0xff]
                  %348 = vst [vmem:[%s346] sm:$0xff] %v347
                  %v349 = vld [vmem:[%s345 + $0x30] sm:$0xff]
                  %350 = vst [vmem:[%s346 + $0x8] sm:$0xff] %v349
                  %v351 = vld [vmem:[%s345 + $0x60] sm:$0xff]
                  %352 = vst [vmem:[%s346 + $0x10] sm:$0xff] %v351
                  %v353 = vld [vmem:[%s345 + $0x90] sm:$0xff]
                  %354 = vst [vmem:[%s346 + $0x18] sm:$0xff] %v353
                  %v355 = vld [vmem:[%s345 + $0xc0] sm:$0xff]
                  %356 = vst [vmem:[%s346 + $0x20] sm:$0xff] %v355
                  %v357 = vld [vmem:[%s345 + $0xf0] sm:$0xff]
                  %358 = vst [vmem:[%s346 + $0x28] sm:$0xff] %v357
                  %v359 = vld [vmem:[%s345 + $0x120] sm:$0xff]
                  %360 = vst [vmem:[%s346 + $0x30] sm:$0xff] %v359
                $region86: #{depthwise_conv2d_nchw.1} parent=80 // loop_footer
                  %s344 = sadd.s32 1, %s340
                $region87: #{depthwise_conv2d_nchw.1} parent=80 // loop_footer_branch
                  %339 = sbr.rel target = $region83
                $region88: #{depthwise_conv2d_nchw.1} parent=80 // loop_exit
                  _
              $region81: #{depthwise_conv2d_nchw.1} parent=65 // pred_fallthru
                _
              // Predicated region
              $region89: #{depthwise_conv2d_nchw.1} parent=65 // pred_check
                _
              $region90: #{depthwise_conv2d_nchw.1} parent=65 // pred_check_branch
                %362 = sbr.rel target = $region92
              $region91: #{depthwise_conv2d_nchw.1} parent=65 // pred_region
                _
              $region92: #{depthwise_conv2d_nchw.1} parent=65 // pred_fallthru
                _
            $region66: #{depthwise_conv2d_nchw.1} parent=61 // pred_fallthru
              _
            // Predicated region
            $region67: #{depthwise_conv2d_nchw.1} parent=61 // pred_check
              _
            $region68: #{depthwise_conv2d_nchw.1} parent=61 // pred_check_branch
              %313 = sbr.rel target = $region70
            $region69: #{depthwise_conv2d_nchw.1} parent=61 // pred_region
              loop: start=0, step=1, limit=1
              $region71: #{depthwise_conv2d_nchw.1} parent=69 // loop_pre_header
                _
              $region72: #{depthwise_conv2d_nchw.1} parent=69 // loop_header
                %s316 = sphi 0, %s320
                %p317 = scmp.ge.s32.totalorder %s316, 1
                %s321 = sphi %s307, %s307
                %s322 = sphi %s305, %s305
              $region73: #{depthwise_conv2d_nchw.1} parent=69 // loop_header_branch
                %319 = sbr.rel (%p317) target = $region77
              $region74: #{depthwise_conv2d_nchw.1} parent=69 // loop_body
                %v323 = vld [vmem:[%s321] sm:$0xff]
                %324 = vst [vmem:[%s322] sm:$0xff] %v323
                %v325 = vld [vmem:[%s321 + $0x30] sm:$0xff]
                %326 = vst [vmem:[%s322 + $0x8] sm:$0xff] %v325
                %v327 = vld [vmem:[%s321 + $0x60] sm:$0xff]
                %328 = vst [vmem:[%s322 + $0x10] sm:$0xff] %v327
                %v329 = vld [vmem:[%s321 + $0x90] sm:$0xff]
                %330 = vst [vmem:[%s322 + $0x18] sm:$0xff] %v329
                %v331 = vld [vmem:[%s321 + $0xc0] sm:$0xff]
                %332 = vst [vmem:[%s322 + $0x20] sm:$0xff] %v331
                %v333 = vld [vmem:[%s321 + $0xf0] sm:$0xff]
                %334 = vst [vmem:[%s322 + $0x28] sm:$0xff] %v333
                %v335 = vld [vmem:[%s321 + $0x120] sm:$0xff]
                %336 = vst [vmem:[%s322 + $0x30] sm:$0xff] %v335
              $region75: #{depthwise_conv2d_nchw.1} parent=69 // loop_footer
                %s320 = sadd.s32 1, %s316
              $region76: #{depthwise_conv2d_nchw.1} parent=69 // loop_footer_branch
                %315 = sbr.rel target = $region72
              $region77: #{depthwise_conv2d_nchw.1} parent=69 // loop_exit
                _
            $region70: #{depthwise_conv2d_nchw.1} parent=61 // pred_fallthru
              _
          $region62: #{depthwise_conv2d_nchw.1} parent=57 // pred_fallthru
            _
          %363 = vnop
        $region58: #{depthwise_conv2d_nchw.1} parent=15 // pred_fallthru
          _
        // Predicated region
        $region93: #{depthwise_conv2d_nchw.1} parent=15 // pred_check
          %p364 = pneg %p95
        $region94: #{depthwise_conv2d_nchw.1} parent=15 // pred_check_branch
          %366 = sbr.rel (%p364) target = $region96
        $region95: #{depthwise_conv2d_nchw.1} parent=15 // pred_region
          %p367 = scmp.lt.s32.totalorder %s17, 5
          %s368 = scalar_select %p367, %s17, 5
          %s369 = scalar_lea.vmem %s2, %s368
        $region96: #{depthwise_conv2d_nchw.1} parent=15 // pred_fallthru
          _
      $region16: #{depthwise_conv2d_nchw.1} parent=5 // pred_fallthru
        _
      %p370 = scmp.le.s32.totalorder 1, %s9
      %p371 = scmp.lt.s32.totalorder %s9, 7
      %p372 = pnand %p370, %p371
      %p373 = pneg %p372
      // Predicated region
      $region97: #{depthwise_conv2d_nchw.1} parent=5 // pred_check
        _
      $region98: #{depthwise_conv2d_nchw.1} parent=5 // pred_check_branch
        %375 = sbr.rel (%p372) target = $region100
      $region99: #{depthwise_conv2d_nchw.1} parent=5 // pred_region
        %s376 = ssub.s32 %s9, 1
        %s377 = sand.u32 %s36, 1
        %s378 = sand.u32 %s36, 1
        %s379 = smul.addr %s378, 224
        %s380 = scalar_lea.vmem [#allocation3], %s379
        // Predicated region
        $region101: #{depthwise_conv2d_nchw.1} parent=99 // pred_check
          %p381 = pneg %p49
        $region102: #{depthwise_conv2d_nchw.1} parent=99 // pred_check_branch
          %383 = sbr.rel (%p381) target = $region104
        $region103: #{depthwise_conv2d_nchw.1} parent=99 // pred_region
          _
        $region104: #{depthwise_conv2d_nchw.1} parent=99 // pred_fallthru
          _
        %s384 = sand.u32 %s62, 1
        %s385 = sand.u32 %s62, 1
        %s386 = smul.addr %s385, 56
        %s387 = scalar_lea.vmem [#allocation4], %s386
        // Predicated region
        $region105: #{depthwise_conv2d_nchw.1} parent=99 // pred_check
          %p388 = pneg %p75
        $region106: #{depthwise_conv2d_nchw.1} parent=99 // pred_check_branch
          %390 = sbr.rel (%p388) target = $region108
        $region107: #{depthwise_conv2d_nchw.1} parent=99 // pred_region
          _
        $region108: #{depthwise_conv2d_nchw.1} parent=99 // pred_fallthru
          _
        %s391 = sand.u32 %s36, 1
        %s392 = sand.u32 %s36, 1
        %s393 = smul.addr %s392, 224
        %s394 = scalar_lea.vmem [#allocation3], %s393
        %p395 = pneg %p49
        %p396 = pneg %p46
        %s397 = sand.u32 %s62, 1
        %s398 = sand.u32 %s62, 1
        %s399 = smul.addr %s398, 56
        %s400 = scalar_lea.vmem [#allocation4], %s399
        %p401 = pneg %p75
        %p402 = pneg %p72
        %p403 = scmp.lt.s32.totalorder %s19, 5
        %s404 = scalar_select %p403, %s19, 5
        %s405 = scalar_lea.vmem %s2, %s404
        %p406 = pneg %p101
        %p407 = pneg %p98
        %p408 = pneg %p129
        %p409 = pneg %p126
        %s410 = sand.u32 %s116, 1
        %s411 = sand.u32 %s116, 1
        %s412 = smul.addr %s411, 224
        %s413 = scalar_lea.vmem [#allocation5], %s412
        %p414 = scmp.lt.s32.totalorder %s19, 5
        %s415 = scalar_select %p414, %s19, 5
        %s416 = scalar_lea.vmem %s2, %s415
        %417 = vst [vmem:[#allocation2] sm:$0xff] 0.0
        %418 = vst [vmem:[#allocation2 + $0x8] sm:$0xff] 0.0
        %419 = vst [vmem:[#allocation2 + $0x10] sm:$0xf] 0.0
        %420 = vst [vmem:[#allocation2 + $0x18] sm:$0xff] 0.0
        %421 = vst [vmem:[#allocation2 + $0x20] sm:$0xff] 0.0
        %422 = vst [vmem:[#allocation2 + $0x28] sm:$0xf] 0.0
        %423 = vst [vmem:[#allocation2 + $0x30] sm:$0xff] 0.0
        %424 = vst [vmem:[#allocation2 + $0x38] sm:$0xff] 0.0
        %425 = vst [vmem:[#allocation2 + $0x40] sm:$0xf] 0.0
        %426 = vst [vmem:[#allocation2 + $0x48] sm:$0xff] 0.0
        %427 = vst [vmem:[#allocation2 + $0x50] sm:$0xff] 0.0
        %428 = vst [vmem:[#allocation2 + $0x58] sm:$0xf] 0.0
        %429 = vst [vmem:[#allocation2 + $0x60] sm:$0xff] 0.0
        %430 = vst [vmem:[#allocation2 + $0x68] sm:$0xff] 0.0
        %431 = vst [vmem:[#allocation2 + $0x70] sm:$0xf] 0.0
        %432 = vst [vmem:[#allocation2 + $0x78] sm:$0xff] 0.0
        %433 = vst [vmem:[#allocation2 + $0x80] sm:$0xff] 0.0
        %434 = vst [vmem:[#allocation2 + $0x88] sm:$0xf] 0.0
        %435 = vst [vmem:[#allocation2 + $0x90] sm:$0xff] 0.0
        %436 = vst [vmem:[#allocation2 + $0x98] sm:$0xff] 0.0
        %437 = vst [vmem:[#allocation2 + $0xa0] sm:$0xf] 0.0
        %438 = vst [vmem:[#allocation2 + $0xa8] sm:$0xff] 0.0
        %439 = vst [vmem:[#allocation2 + $0xb0] sm:$0xff] 0.0
        %440 = vst [vmem:[#allocation2 + $0xb8] sm:$0xf] 0.0
        %441 = vst [vmem:[#allocation2 + $0xc0] sm:$0xff] 0.0
        %442 = vst [vmem:[#allocation2 + $0xc8] sm:$0xff] 0.0
        %443 = vst [vmem:[#allocation2 + $0xd0] sm:$0xf] 0.0
        %444 = vst [vmem:[#allocation2 + $0xd8] sm:$0xff] 0.0
        %445 = vst [vmem:[#allocation2 + $0xe0] sm:$0xff] 0.0
        %446 = vst [vmem:[#allocation2 + $0xe8] sm:$0xf] 0.0
        %447 = vst [vmem:[#allocation2 + $0xf0] sm:$0xff] 0.0
        %448 = vst [vmem:[#allocation2 + $0xf8] sm:$0xff] 0.0
        %449 = vst [vmem:[#allocation2 + $0x100] sm:$0xf] 0.0
        %450 = vst [vmem:[#allocation2 + $0x108] sm:$0xff] 0.0
        %451 = vst [vmem:[#allocation2 + $0x110] sm:$0xff] 0.0
        %452 = vst [vmem:[#allocation2 + $0x118] sm:$0xf] 0.0
        %453 = vst [vmem:[#allocation2 + $0x120] sm:$0xff] 0.0
        %454 = vst [vmem:[#allocation2 + $0x128] sm:$0xff] 0.0
        %455 = vst [vmem:[#allocation2 + $0x130] sm:$0xf] 0.0
        %456 = vst [vmem:[#allocation2 + $0x138] sm:$0xff] 0.0
        %457 = vst [vmem:[#allocation2 + $0x140] sm:$0xff] 0.0
        %458 = vst [vmem:[#allocation2 + $0x148] sm:$0xf] 0.0
        %459 = vst [vmem:[#allocation2 + $0x150] sm:$0xff] 0.0
        %460 = vst [vmem:[#allocation2 + $0x158] sm:$0xff] 0.0
        %461 = vst [vmem:[#allocation2 + $0x160] sm:$0xf] 0.0
        %462 = vst [vmem:[#allocation2 + $0x168] sm:$0xff] 0.0
        %463 = vst [vmem:[#allocation2 + $0x170] sm:$0xff] 0.0
        %464 = vst [vmem:[#allocation2 + $0x178] sm:$0xf] 0.0
        %465 = vst [vmem:[#allocation2 + $0x180] sm:$0xff] 0.0
        %466 = vst [vmem:[#allocation2 + $0x188] sm:$0xff] 0.0
        %467 = vst [vmem:[#allocation2 + $0x190] sm:$0xf] 0.0
        %468 = vst [vmem:[#allocation2 + $0x198] sm:$0xff] 0.0
        %469 = vst [vmem:[#allocation2 + $0x1a0] sm:$0xff] 0.0
        %470 = vst [vmem:[#allocation2 + $0x1a8] sm:$0xf] 0.0
        %471 = vst [vmem:[#allocation2 + $0x1b0] sm:$0xff] 0.0
        %472 = vst [vmem:[#allocation2 + $0x1b8] sm:$0xff] 0.0
        %473 = vst [vmem:[#allocation2 + $0x1c0] sm:$0xf] 0.0
        %474 = vst [vmem:[#allocation2 + $0x1c8] sm:$0xff] 0.0
        %475 = vst [vmem:[#allocation2 + $0x1d0] sm:$0xff] 0.0
        %476 = vst [vmem:[#allocation2 + $0x1d8] sm:$0xf] 0.0
        %v477 = vld [vmem:[%s380] sm:$0xff]
        %v478 = vld [vmem:[%s380 + $0x8] sm:$0x3f]
        %v479 = vld [vmem:[%s380 + $0x10] sm:$0xff]
        %v480 = vld [vmem:[%s380 + $0x18] sm:$0x3f]
        %v481 = vld [vmem:[%s380 + $0x20] sm:$0xff]
        %v482 = vld [vmem:[%s380 + $0x28] sm:$0x3f]
        %v483 = vld [vmem:[%s380 + $0x30] sm:$0xff]
        %v484 = vld [vmem:[%s380 + $0x38] sm:$0x3f]
        %v485 = vld [vmem:[%s380 + $0x40] sm:$0xff]
        %v486 = vld [vmem:[%s380 + $0x48] sm:$0x3f]
        %v487 = vld [vmem:[%s380 + $0x50] sm:$0xff]
        %v488 = vld [vmem:[%s380 + $0x58] sm:$0x3f]
        %v489 = vld [vmem:[%s380 + $0x60] sm:$0xff]
        %v490 = vld [vmem:[%s380 + $0x68] sm:$0x3f]
        %v491 = vld [vmem:[%s380 + $0x70] sm:$0xff]
        %v492 = vld [vmem:[%s380 + $0x78] sm:$0x3f]
        %v493 = vld [vmem:[%s380 + $0x80] sm:$0xff]
        %v494 = vld [vmem:[%s380 + $0x88] sm:$0x3f]
        %v495 = vld [vmem:[%s380 + $0x90] sm:$0xff]
        %v496 = vld [vmem:[%s380 + $0x98] sm:$0x3f]
        %v497 = vld [vmem:[%s380 + $0xa0] sm:$0xff]
        %v498 = vld [vmem:[%s380 + $0xa8] sm:$0x3f]
        %v499 = vld [vmem:[%s380 + $0xb0] sm:$0xff]
        %v500 = vld [vmem:[%s380 + $0xb8] sm:$0x3f]
        %v501 = vld [vmem:[%s380 + $0xc0] sm:$0xff]
        %v502 = vld [vmem:[%s380 + $0xc8] sm:$0x3f]
        %v503 = vld [vmem:[%s380 + $0xd0] sm:$0xff]
        %v504 = vld [vmem:[%s380 + $0xd8] sm:$0x3f]
        %s505 = scalar_lea.vmem [#allocation2], 72
        %506 = vst [vmem:[%s505 + $0x3] sm:$0xff] %v477
        %507 = vst [vmem:[%s505 + $0xb] sm:$0x3f] %v478
        %508 = vst [vmem:[%s505 + $0x1b] sm:$0xff] %v479
        %509 = vst [vmem:[%s505 + $0x23] sm:$0x3f] %v480
        %510 = vst [vmem:[%s505 + $0x33] sm:$0xff] %v481
        %511 = vst [vmem:[%s505 + $0x3b] sm:$0x3f] %v482
        %512 = vst [vmem:[%s505 + $0x4b] sm:$0xff] %v483
        %513 = vst [vmem:[%s505 + $0x53] sm:$0x3f] %v484
        %514 = vst [vmem:[%s505 + $0x63] sm:$0xff] %v485
        %515 = vst [vmem:[%s505 + $0x6b] sm:$0x3f] %v486
        %516 = vst [vmem:[%s505 + $0x7b] sm:$0xff] %v487
        %517 = vst [vmem:[%s505 + $0x83] sm:$0x3f] %v488
        %518 = vst [vmem:[%s505 + $0x93] sm:$0xff] %v489
        %519 = vst [vmem:[%s505 + $0x9b] sm:$0x3f] %v490
        %520 = vst [vmem:[%s505 + $0xab] sm:$0xff] %v491
        %521 = vst [vmem:[%s505 + $0xb3] sm:$0x3f] %v492
        %522 = vst [vmem:[%s505 + $0xc3] sm:$0xff] %v493
        %523 = vst [vmem:[%s505 + $0xcb] sm:$0x3f] %v494
        %524 = vst [vmem:[%s505 + $0xdb] sm:$0xff] %v495
        %525 = vst [vmem:[%s505 + $0xe3] sm:$0x3f] %v496
        %526 = vst [vmem:[%s505 + $0xf3] sm:$0xff] %v497
        %527 = vst [vmem:[%s505 + $0xfb] sm:$0x3f] %v498
        %528 = vst [vmem:[%s505 + $0x10b] sm:$0xff] %v499
        %529 = vst [vmem:[%s505 + $0x113] sm:$0x3f] %v500
        %530 = vst [vmem:[%s505 + $0x123] sm:$0xff] %v501
        %531 = vst [vmem:[%s505 + $0x12b] sm:$0x3f] %v502
        %532 = vst [vmem:[%s505 + $0x13b] sm:$0xff] %v503
        %533 = vst [vmem:[%s505 + $0x143] sm:$0x3f] %v504
        %v534 = vld [vmem:[%s416] sm:$0x1]
        %v536 = vlaneseq
        %v537 = vshrl.u32 %v536, 7
        %v538 = vsub.s32 0, %v537
        %v539 = vrot.slane %v534, %v538
        %v541 = vld [vmem:[#allocation2] sm:$0xff]
        %v542 = vld [vmem:[#allocation2 + $0x8] sm:$0x3f]
        %v543 = vld [vmem:[#allocation2 + $0x18] sm:$0xff]
        %v544 = vld [vmem:[#allocation2 + $0x20] sm:$0x3f]
        %v545 = vld [vmem:[#allocation2 + $0x30] sm:$0xff]
        %v546 = vld [vmem:[#allocation2 + $0x38] sm:$0x3f]
        %v547 = vld [vmem:[#allocation2 + $0x48] sm:$0xff]
        %v548 = vld [vmem:[#allocation2 + $0x50] sm:$0x3f]
        %v549 = vld [vmem:[#allocation2 + $0x60] sm:$0xff]
        %v550 = vld [vmem:[#allocation2 + $0x68] sm:$0x3f]
        %v551 = vld [vmem:[#allocation2 + $0x78] sm:$0xff]
        %v552 = vld [vmem:[#allocation2 + $0x80] sm:$0x3f]
        %v553 = vld [vmem:[#allocation2 + $0x90] sm:$0xff]
        %v554 = vld [vmem:[#allocation2 + $0x98] sm:$0x3f]
        %v555 = vld [vmem:[%s387] sm:$0x1]
        %v556 = vlaneseq
        %v557 = vshrl.u32 %v556, 7
        %v558 = vsub.s32 0, %v557
        %v559 = vrot.slane %v555, %v558
        %v560 = vmul.f32 %v541, %v559
        %v561 = vmul.f32 %v542, %v559
        %v562 = vmul.f32 %v543, %v559
        %v563 = vmul.f32 %v544, %v559
        %v564 = vmul.f32 %v545, %v559
        %v565 = vmul.f32 %v546, %v559
        %v566 = vmul.f32 %v547, %v559
        %v567 = vmul.f32 %v548, %v559
        %v568 = vmul.f32 %v549, %v559
        %v569 = vmul.f32 %v550, %v559
        %v570 = vmul.f32 %v551, %v559
        %v571 = vmul.f32 %v552, %v559
        %v572 = vmul.f32 %v553, %v559
        %v573 = vmul.f32 %v554, %v559
        %v574 = vadd.f32 %v539, %v560
        %v575 = vadd.f32 %v539, %v561
        %v576 = vadd.f32 %v539, %v562
        %v577 = vadd.f32 %v539, %v563
        %v578 = vadd.f32 %v539, %v564
        %v579 = vadd.f32 %v539, %v565
        %v580 = vadd.f32 %v539, %v566
        %v581 = vadd.f32 %v539, %v567
        %v582 = vadd.f32 %v539, %v568
        %v583 = vadd.f32 %v539, %v569
        %v584 = vadd.f32 %v539, %v570
        %v585 = vadd.f32 %v539, %v571
        %v586 = vadd.f32 %v539, %v572
        %v587 = vadd.f32 %v539, %v573
        %v588 = vld [vmem:[#allocation2 + $0x1] sm:$0xff]
        %v589 = vld [vmem:[#allocation2 + $0x9] sm:$0x3f]
        %v590 = vld [vmem:[#allocation2 + $0x19] sm:$0xff]
        %v591 = vld [vmem:[#allocation2 + $0x21] sm:$0x3f]
        %v592 = vld [vmem:[#allocation2 + $0x31] sm:$0xff]
        %v593 = vld [vmem:[#allocation2 + $0x39] sm:$0x3f]
        %v594 = vld [vmem:[#allocation2 + $0x49] sm:$0xff]
        %v595 = vld [vmem:[#allocation2 + $0x51] sm:$0x3f]
        %v596 = vld [vmem:[#allocation2 + $0x61] sm:$0xff]
        %v597 = vld [vmem:[#allocation2 + $0x69] sm:$0x3f]
        %v598 = vld [vmem:[#allocation2 + $0x79] sm:$0xff]
        %v599 = vld [vmem:[#allocation2 + $0x81] sm:$0x3f]
        %v600 = vld [vmem:[#allocation2 + $0x91] sm:$0xff]
        %v601 = vld [vmem:[#allocation2 + $0x99] sm:$0x3f]
        %v602 = vld [vmem:[%s387 + $0x1] sm:$0x1]
        %v603 = vlaneseq
        %v604 = vshrl.u32 %v603, 7
        %v605 = vsub.s32 0, %v604
        %v606 = vrot.slane %v602, %v605
        %v607 = vmul.f32 %v588, %v606
        %v608 = vmul.f32 %v589, %v606
        %v609 = vmul.f32 %v590, %v606
        %v610 = vmul.f32 %v591, %v606
        %v611 = vmul.f32 %v592, %v606
        %v612 = vmul.f32 %v593, %v606
        %v613 = vmul.f32 %v594, %v606
        %v614 = vmul.f32 %v595, %v606
        %v615 = vmul.f32 %v596, %v606
        %v616 = vmul.f32 %v597, %v606
        %v617 = vmul.f32 %v598, %v606
        %v618 = vmul.f32 %v599, %v606
        %v619 = vmul.f32 %v600, %v606
        %v620 = vmul.f32 %v601, %v606
        %v621 = vadd.f32 %v574, %v607
        %v622 = vadd.f32 %v575, %v608
        %v623 = vadd.f32 %v576, %v609
        %v624 = vadd.f32 %v577, %v610
        %v625 = vadd.f32 %v578, %v611
        %v626 = vadd.f32 %v579, %v612
        %v627 = vadd.f32 %v580, %v613
        %v628 = vadd.f32 %v581, %v614
        %v629 = vadd.f32 %v582, %v615
        %v630 = vadd.f32 %v583, %v616
        %v631 = vadd.f32 %v584, %v617
        %v632 = vadd.f32 %v585, %v618
        %v633 = vadd.f32 %v586, %v619
        %v634 = vadd.f32 %v587, %v620
        %v635 = vld [vmem:[#allocation2 + $0x2] sm:$0xff]
        %v636 = vld [vmem:[#allocation2 + $0xa] sm:$0x3f]
        %v637 = vld [vmem:[#allocation2 + $0x1a] sm:$0xff]
        %v638 = vld [vmem:[#allocation2 + $0x22] sm:$0x3f]
        %v639 = vld [vmem:[#allocation2 + $0x32] sm:$0xff]
        %v640 = vld [vmem:[#allocation2 + $0x3a] sm:$0x3f]
        %v641 = vld [vmem:[#allocation2 + $0x4a] sm:$0xff]
        %v642 = vld [vmem:[#allocation2 + $0x52] sm:$0x3f]
        %v643 = vld [vmem:[#allocation2 + $0x62] sm:$0xff]
        %v644 = vld [vmem:[#allocation2 + $0x6a] sm:$0x3f]
        %v645 = vld [vmem:[#allocation2 + $0x7a] sm:$0xff]
        %v646 = vld [vmem:[#allocation2 + $0x82] sm:$0x3f]
        %v647 = vld [vmem:[#allocation2 + $0x92] sm:$0xff]
        %v648 = vld [vmem:[#allocation2 + $0x9a] sm:$0x3f]
        %v649 = vld [vmem:[%s387 + $0x2] sm:$0x1]
        %v650 = vlaneseq
        %v651 = vshrl.u32 %v650, 7
        %v652 = vsub.s32 0, %v651
        %v653 = vrot.slane %v649, %v652
        %v654 = vmul.f32 %v635, %v653
        %v655 = vmul.f32 %v636, %v653
        %v656 = vmul.f32 %v637, %v653
        %v657 = vmul.f32 %v638, %v653
        %v658 = vmul.f32 %v639, %v653
        %v659 = vmul.f32 %v640, %v653
        %v660 = vmul.f32 %v641, %v653
        %v661 = vmul.f32 %v642, %v653
        %v662 = vmul.f32 %v643, %v653
        %v663 = vmul.f32 %v644, %v653
        %v664 = vmul.f32 %v645, %v653
        %v665 = vmul.f32 %v646, %v653
        %v666 = vmul.f32 %v647, %v653
        %v667 = vmul.f32 %v648, %v653
        %v668 = vadd.f32 %v621, %v654
        %v669 = vadd.f32 %v622, %v655
        %v670 = vadd.f32 %v623, %v656
        %v671 = vadd.f32 %v624, %v657
        %v672 = vadd.f32 %v625, %v658
        %v673 = vadd.f32 %v626, %v659
        %v674 = vadd.f32 %v627, %v660
        %v675 = vadd.f32 %v628, %v661
        %v676 = vadd.f32 %v629, %v662
        %v677 = vadd.f32 %v630, %v663
        %v678 = vadd.f32 %v631, %v664
        %v679 = vadd.f32 %v632, %v665
        %v680 = vadd.f32 %v633, %v666
        %v681 = vadd.f32 %v634, %v667
        %v682 = vld [vmem:[#allocation2 + $0x3] sm:$0xff]
        %v683 = vld [vmem:[#allocation2 + $0xb] sm:$0x3f]
        %v684 = vld [vmem:[#allocation2 + $0x1b] sm:$0xff]
        %v685 = vld [vmem:[#allocation2 + $0x23] sm:$0x3f]
        %v686 = vld [vmem:[#allocation2 + $0x33] sm:$0xff]
        %v687 = vld [vmem:[#allocation2 + $0x3b] sm:$0x3f]
        %v688 = vld [vmem:[#allocation2 + $0x4b] sm:$0xff]
        %v689 = vld [vmem:[#allocation2 + $0x53] sm:$0x3f]
        %v690 = vld [vmem:[#allocation2 + $0x63] sm:$0xff]
        %v691 = vld [vmem:[#allocation2 + $0x6b] sm:$0x3f]
        %v692 = vld [vmem:[#allocation2 + $0x7b] sm:$0xff]
        %v693 = vld [vmem:[#allocation2 + $0x83] sm:$0x3f]
        %v694 = vld [vmem:[#allocation2 + $0x93] sm:$0xff]
        %v695 = vld [vmem:[#allocation2 + $0x9b] sm:$0x3f]
        %v696 = vld [vmem:[%s387 + $0x3] sm:$0x1]
        %v697 = vlaneseq
        %v698 = vshrl.u32 %v697, 7
        %v699 = vsub.s32 0, %v698
        %v700 = vrot.slane %v696, %v699
        %v701 = vmul.f32 %v682, %v700
        %v702 = vmul.f32 %v683, %v700
        %v703 = vmul.f32 %v684, %v700
        %v704 = vmul.f32 %v685, %v700
        %v705 = vmul.f32 %v686, %v700
        %v706 = vmul.f32 %v687, %v700
        %v707 = vmul.f32 %v688, %v700
        %v708 = vmul.f32 %v689, %v700
        %v709 = vmul.f32 %v690, %v700
        %v710 = vmul.f32 %v691, %v700
        %v711 = vmul.f32 %v692, %v700
        %v712 = vmul.f32 %v693, %v700
        %v713 = vmul.f32 %v694, %v700
        %v714 = vmul.f32 %v695, %v700
        %v715 = vadd.f32 %v668, %v701
        %v716 = vadd.f32 %v669, %v702
        %v717 = vadd.f32 %v670, %v703
        %v718 = vadd.f32 %v671, %v704
        %v719 = vadd.f32 %v672, %v705
        %v720 = vadd.f32 %v673, %v706
        %v721 = vadd.f32 %v674, %v707
        %v722 = vadd.f32 %v675, %v708
        %v723 = vadd.f32 %v676, %v709
        %v724 = vadd.f32 %v677, %v710
        %v725 = vadd.f32 %v678, %v711
        %v726 = vadd.f32 %v679, %v712
        %v727 = vadd.f32 %v680, %v713
        %v728 = vadd.f32 %v681, %v714
        %v729 = vld [vmem:[#allocation2 + $0x4] sm:$0xff]
        %v730 = vld [vmem:[#allocation2 + $0xc] sm:$0x3f]
        %v731 = vld [vmem:[#allocation2 + $0x1c] sm:$0xff]
        %v732 = vld [vmem:[#allocation2 + $0x24] sm:$0x3f]
        %v733 = vld [vmem:[#allocation2 + $0x34] sm:$0xff]
        %v734 = vld [vmem:[#allocation2 + $0x3c] sm:$0x3f]
        %v735 = vld [vmem:[#allocation2 + $0x4c] sm:$0xff]
        %v736 = vld [vmem:[#allocation2 + $0x54] sm:$0x3f]
        %v737 = vld [vmem:[#allocation2 + $0x64] sm:$0xff]
        %v738 = vld [vmem:[#allocation2 + $0x6c] sm:$0x3f]
        %v739 = vld [vmem:[#allocation2 + $0x7c] sm:$0xff]
        %v740 = vld [vmem:[#allocation2 + $0x84] sm:$0x3f]
        %v741 = vld [vmem:[#allocation2 + $0x94] sm:$0xff]
        %v742 = vld [vmem:[#allocation2 + $0x9c] sm:$0x3f]
        %v743 = vld [vmem:[%s387 + $0x4] sm:$0x1]
        %v744 = vlaneseq
        %v745 = vshrl.u32 %v744, 7
        %v746 = vsub.s32 0, %v745
        %v747 = vrot.slane %v743, %v746
        %v748 = vmul.f32 %v729, %v747
        %v749 = vmul.f32 %v730, %v747
        %v750 = vmul.f32 %v731, %v747
        %v751 = vmul.f32 %v732, %v747
        %v752 = vmul.f32 %v733, %v747
        %v753 = vmul.f32 %v734, %v747
        %v754 = vmul.f32 %v735, %v747
        %v755 = vmul.f32 %v736, %v747
        %v756 = vmul.f32 %v737, %v747
        %v757 = vmul.f32 %v738, %v747
        %v758 = vmul.f32 %v739, %v747
        %v759 = vmul.f32 %v740, %v747
        %v760 = vmul.f32 %v741, %v747
        %v761 = vmul.f32 %v742, %v747
        %v762 = vadd.f32 %v715, %v748
        %v763 = vadd.f32 %v716, %v749
        %v764 = vadd.f32 %v717, %v750
        %v765 = vadd.f32 %v718, %v751
        %v766 = vadd.f32 %v719, %v752
        %v767 = vadd.f32 %v720, %v753
        %v768 = vadd.f32 %v721, %v754
        %v769 = vadd.f32 %v722, %v755
        %v770 = vadd.f32 %v723, %v756
        %v771 = vadd.f32 %v724, %v757
        %v772 = vadd.f32 %v725, %v758
        %v773 = vadd.f32 %v726, %v759
        %v774 = vadd.f32 %v727, %v760
        %v775 = vadd.f32 %v728, %v761
        %v776 = vld [vmem:[#allocation2 + $0x5] sm:$0xff]
        %v777 = vld [vmem:[#allocation2 + $0xd] sm:$0x3f]
        %v778 = vld [vmem:[#allocation2 + $0x1d] sm:$0xff]
        %v779 = vld [vmem:[#allocation2 + $0x25] sm:$0x3f]
        %v780 = vld [vmem:[#allocation2 + $0x35] sm:$0xff]
        %v781 = vld [vmem:[#allocation2 + $0x3d] sm:$0x3f]
        %v782 = vld [vmem:[#allocation2 + $0x4d] sm:$0xff]
        %v783 = vld [vmem:[#allocation2 + $0x55] sm:$0x3f]
        %v784 = vld [vmem:[#allocation2 + $0x65] sm:$0xff]
        %v785 = vld [vmem:[#allocation2 + $0x6d] sm:$0x3f]
        %v786 = vld [vmem:[#allocation2 + $0x7d] sm:$0xff]
        %v787 = vld [vmem:[#allocation2 + $0x85] sm:$0x3f]
        %v788 = vld [vmem:[#allocation2 + $0x95] sm:$0xff]
        %v789 = vld [vmem:[#allocation2 + $0x9d] sm:$0x3f]
        %v790 = vld [vmem:[%s387 + $0x5] sm:$0x1]
        %v791 = vlaneseq
        %v792 = vshrl.u32 %v791, 7
        %v793 = vsub.s32 0, %v792
        %v794 = vrot.slane %v790, %v793
        %v795 = vmul.f32 %v776, %v794
        %v796 = vmul.f32 %v777, %v794
        %v797 = vmul.f32 %v778, %v794
        %v798 = vmul.f32 %v779, %v794
        %v799 = vmul.f32 %v780, %v794
        %v800 = vmul.f32 %v781, %v794
        %v801 = vmul.f32 %v782, %v794
        %v802 = vmul.f32 %v783, %v794
        %v803 = vmul.f32 %v784, %v794
        %v804 = vmul.f32 %v785, %v794
        %v805 = vmul.f32 %v786, %v794
        %v806 = vmul.f32 %v787, %v794
        %v807 = vmul.f32 %v788, %v794
        %v808 = vmul.f32 %v789, %v794
        %v809 = vadd.f32 %v762, %v795
        %v810 = vadd.f32 %v763, %v796
        %v811 = vadd.f32 %v764, %v797
        %v812 = vadd.f32 %v765, %v798
        %v813 = vadd.f32 %v766, %v799
        %v814 = vadd.f32 %v767, %v800
        %v815 = vadd.f32 %v768, %v801
        %v816 = vadd.f32 %v769, %v802
        %v817 = vadd.f32 %v770, %v803
        %v818 = vadd.f32 %v771, %v804
        %v819 = vadd.f32 %v772, %v805
        %v820 = vadd.f32 %v773, %v806
        %v821 = vadd.f32 %v774, %v807
        %v822 = vadd.f32 %v775, %v808
        %v823 = vld [vmem:[#allocation2 + $0x6] sm:$0xff]
        %v824 = vld [vmem:[#allocation2 + $0xe] sm:$0x3f]
        %v825 = vld [vmem:[#allocation2 + $0x1e] sm:$0xff]
        %v826 = vld [vmem:[#allocation2 + $0x26] sm:$0x3f]
        %v827 = vld [vmem:[#allocation2 + $0x36] sm:$0xff]
        %v828 = vld [vmem:[#allocation2 + $0x3e] sm:$0x3f]
        %v829 = vld [vmem:[#allocation2 + $0x4e] sm:$0xff]
        %v830 = vld [vmem:[#allocation2 + $0x56] sm:$0x3f]
        %v831 = vld [vmem:[#allocation2 + $0x66] sm:$0xff]
        %v832 = vld [vmem:[#allocation2 + $0x6e] sm:$0x3f]
        %v833 = vld [vmem:[#allocation2 + $0x7e] sm:$0xff]
        %v834 = vld [vmem:[#allocation2 + $0x86] sm:$0x3f]
        %v835 = vld [vmem:[#allocation2 + $0x96] sm:$0xff]
        %v836 = vld [vmem:[#allocation2 + $0x9e] sm:$0x3f]
        %v837 = vld [vmem:[%s387 + $0x6] sm:$0x1]
        %v838 = vlaneseq
        %v839 = vshrl.u32 %v838, 7
        %v840 = vsub.s32 0, %v839
        %v841 = vrot.slane %v837, %v840
        %v842 = vmul.f32 %v823, %v841
        %v843 = vmul.f32 %v824, %v841
        %v844 = vmul.f32 %v825, %v841
        %v845 = vmul.f32 %v826, %v841
        %v846 = vmul.f32 %v827, %v841
        %v847 = vmul.f32 %v828, %v841
        %v848 = vmul.f32 %v829, %v841
        %v849 = vmul.f32 %v830, %v841
        %v850 = vmul.f32 %v831, %v841
        %v851 = vmul.f32 %v832, %v841
        %v852 = vmul.f32 %v833, %v841
        %v853 = vmul.f32 %v834, %v841
        %v854 = vmul.f32 %v835, %v841
        %v855 = vmul.f32 %v836, %v841
        %v856 = vadd.f32 %v809, %v842
        %v857 = vadd.f32 %v810, %v843
        %v858 = vadd.f32 %v811, %v844
        %v859 = vadd.f32 %v812, %v845
        %v860 = vadd.f32 %v813, %v846
        %v861 = vadd.f32 %v814, %v847
        %v862 = vadd.f32 %v815, %v848
        %v863 = vadd.f32 %v816, %v849
        %v864 = vadd.f32 %v817, %v850
        %v865 = vadd.f32 %v818, %v851
        %v866 = vadd.f32 %v819, %v852
        %v867 = vadd.f32 %v820, %v853
        %v868 = vadd.f32 %v821, %v854
        %v869 = vadd.f32 %v822, %v855
        %s870 = scalar_lea.vmem [#allocation2], 24
        %v871 = vld [vmem:[%s870] sm:$0xff]
        %v872 = vld [vmem:[%s870 + $0x8] sm:$0x3f]
        %v873 = vld [vmem:[%s870 + $0x18] sm:$0xff]
        %v874 = vld [vmem:[%s870 + $0x20] sm:$0x3f]
        %v875 = vld [vmem:[%s870 + $0x30] sm:$0xff]
        %v876 = vld [vmem:[%s870 + $0x38] sm:$0x3f]
        %v877 = vld [vmem:[%s870 + $0x48] sm:$0xff]
        %v878 = vld [vmem:[%s870 + $0x50] sm:$0x3f]
        %v879 = vld [vmem:[%s870 + $0x60] sm:$0xff]
        %v880 = vld [vmem:[%s870 + $0x68] sm:$0x3f]
        %v881 = vld [vmem:[%s870 + $0x78] sm:$0xff]
        %v882 = vld [vmem:[%s870 + $0x80] sm:$0x3f]
        %v883 = vld [vmem:[%s870 + $0x90] sm:$0xff]
        %v884 = vld [vmem:[%s870 + $0x98] sm:$0x3f]
        %s885 = scalar_lea.vmem %s387, 8 [#allocation4]
        %v886 = vld [vmem:[%s885] sm:$0x1]
        %v887 = vlaneseq
        %v888 = vshrl.u32 %v887, 7
        %v889 = vsub.s32 0, %v888
        %v890 = vrot.slane %v886, %v889
        %v891 = vmul.f32 %v871, %v890
        %v892 = vmul.f32 %v872, %v890
        %v893 = vmul.f32 %v873, %v890
        %v894 = vmul.f32 %v874, %v890
        %v895 = vmul.f32 %v875, %v890
        %v896 = vmul.f32 %v876, %v890
        %v897 = vmul.f32 %v877, %v890
        %v898 = vmul.f32 %v878, %v890
        %v899 = vmul.f32 %v879, %v890
        %v900 = vmul.f32 %v880, %v890
        %v901 = vmul.f32 %v881, %v890
        %v902 = vmul.f32 %v882, %v890
        %v903 = vmul.f32 %v883, %v890
        %v904 = vmul.f32 %v884, %v890
        %v905 = vadd.f32 %v856, %v891
        %v906 = vadd.f32 %v857, %v892
        %v907 = vadd.f32 %v858, %v893
        %v908 = vadd.f32 %v859, %v894
        %v909 = vadd.f32 %v860, %v895
        %v910 = vadd.f32 %v861, %v896
        %v911 = vadd.f32 %v862, %v897
        %v912 = vadd.f32 %v863, %v898
        %v913 = vadd.f32 %v864, %v899
        %v914 = vadd.f32 %v865, %v900
        %v915 = vadd.f32 %v866, %v901
        %v916 = vadd.f32 %v867, %v902
        %v917 = vadd.f32 %v868, %v903
        %v918 = vadd.f32 %v869, %v904
        %v919 = vld [vmem:[%s870 + $0x1] sm:$0xff]
        %v920 = vld [vmem:[%s870 + $0x9] sm:$0x3f]
        %v921 = vld [vmem:[%s870 + $0x19] sm:$0xff]
        %v922 = vld [vmem:[%s870 + $0x21] sm:$0x3f]
        %v923 = vld [vmem:[%s870 + $0x31] sm:$0xff]
        %v924 = vld [vmem:[%s870 + $0x39] sm:$0x3f]
        %v925 = vld [vmem:[%s870 + $0x49] sm:$0xff]
        %v926 = vld [vmem:[%s870 + $0x51] sm:$0x3f]
        %v927 = vld [vmem:[%s870 + $0x61] sm:$0xff]
        %v928 = vld [vmem:[%s870 + $0x69] sm:$0x3f]
        %v929 = vld [vmem:[%s870 + $0x79] sm:$0xff]
        %v930 = vld [vmem:[%s870 + $0x81] sm:$0x3f]
        %v931 = vld [vmem:[%s870 + $0x91] sm:$0xff]
        %v932 = vld [vmem:[%s870 + $0x99] sm:$0x3f]
        %v933 = vld [vmem:[%s885 + $0x1] sm:$0x1]
        %v934 = vlaneseq
        %v935 = vshrl.u32 %v934, 7
        %v936 = vsub.s32 0, %v935
        %v937 = vrot.slane %v933, %v936
        %v938 = vmul.f32 %v919, %v937
        %v939 = vmul.f32 %v920, %v937
        %v940 = vmul.f32 %v921, %v937
        %v941 = vmul.f32 %v922, %v937
        %v942 = vmul.f32 %v923, %v937
        %v943 = vmul.f32 %v924, %v937
        %v944 = vmul.f32 %v925, %v937
        %v945 = vmul.f32 %v926, %v937
        %v946 = vmul.f32 %v927, %v937
        %v947 = vmul.f32 %v928, %v937
        %v948 = vmul.f32 %v929, %v937
        %v949 = vmul.f32 %v930, %v937
        %v950 = vmul.f32 %v931, %v937
        %v951 = vmul.f32 %v932, %v937
        %v952 = vadd.f32 %v905, %v938
        %v953 = vadd.f32 %v906, %v939
        %v954 = vadd.f32 %v907, %v940
        %v955 = vadd.f32 %v908, %v941
        %v956 = vadd.f32 %v909, %v942
        %v957 = vadd.f32 %v910, %v943
        %v958 = vadd.f32 %v911, %v944
        %v959 = vadd.f32 %v912, %v945
        %v960 = vadd.f32 %v913, %v946
        %v961 = vadd.f32 %v914, %v947
        %v962 = vadd.f32 %v915, %v948
        %v963 = vadd.f32 %v916, %v949
        %v964 = vadd.f32 %v917, %v950
        %v965 = vadd.f32 %v918, %v951
        %v966 = vld [vmem:[%s870 + $0x2] sm:$0xff]
        %v967 = vld [vmem:[%s870 + $0xa] sm:$0x3f]
        %v968 = vld [vmem:[%s870 + $0x1a] sm:$0xff]
        %v969 = vld [vmem:[%s870 + $0x22] sm:$0x3f]
        %v970 = vld [vmem:[%s870 + $0x32] sm:$0xff]
        %v971 = vld [vmem:[%s870 + $0x3a] sm:$0x3f]
        %v972 = vld [vmem:[%s870 + $0x4a] sm:$0xff]
        %v973 = vld [vmem:[%s870 + $0x52] sm:$0x3f]
        %v974 = vld [vmem:[%s870 + $0x62] sm:$0xff]
        %v975 = vld [vmem:[%s870 + $0x6a] sm:$0x3f]
        %v976 = vld [vmem:[%s870 + $0x7a] sm:$0xff]
        %v977 = vld [vmem:[%s870 + $0x82] sm:$0x3f]
        %v978 = vld [vmem:[%s870 + $0x92] sm:$0xff]
        %v979 = vld [vmem:[%s870 + $0x9a] sm:$0x3f]
        %v980 = vld [vmem:[%s885 + $0x2] sm:$0x1]
        %v981 = vlaneseq
        %v982 = vshrl.u32 %v981, 7
        %v983 = vsub.s32 0, %v982
        %v984 = vrot.slane %v980, %v983
        %v985 = vmul.f32 %v966, %v984
        %v986 = vmul.f32 %v967, %v984
        %v987 = vmul.f32 %v968, %v984
        %v988 = vmul.f32 %v969, %v984
        %v989 = vmul.f32 %v970, %v984
        %v990 = vmul.f32 %v971, %v984
        %v991 = vmul.f32 %v972, %v984
        %v992 = vmul.f32 %v973, %v984
        %v993 = vmul.f32 %v974, %v984
        %v994 = vmul.f32 %v975, %v984
        %v995 = vmul.f32 %v976, %v984
        %v996 = vmul.f32 %v977, %v984
        %v997 = vmul.f32 %v978, %v984
        %v998 = vmul.f32 %v979, %v984
        %v999 = vadd.f32 %v952, %v985
        %v1000 = vadd.f32 %v953, %v986
        %v1001 = vadd.f32 %v954, %v987
        %v1002 = vadd.f32 %v955, %v988
        %v1003 = vadd.f32 %v956, %v989
        %v1004 = vadd.f32 %v957, %v990
        %v1005 = vadd.f32 %v958, %v991
        %v1006 = vadd.f32 %v959, %v992
        %v1007 = vadd.f32 %v960, %v993
        %v1008 = vadd.f32 %v961, %v994
        %v1009 = vadd.f32 %v962, %v995
        %v1010 = vadd.f32 %v963, %v996
        %v1011 = vadd.f32 %v964, %v997
        %v1012 = vadd.f32 %v965, %v998
        %v1013 = vld [vmem:[%s870 + $0x3] sm:$0xff]
        %v1014 = vld [vmem:[%s870 + $0xb] sm:$0x3f]
        %v1015 = vld [vmem:[%s870 + $0x1b] sm:$0xff]
        %v1016 = vld [vmem:[%s870 + $0x23] sm:$0x3f]
        %v1017 = vld [vmem:[%s870 + $0x33] sm:$0xff]
        %v1018 = vld [vmem:[%s870 + $0x3b] sm:$0x3f]
        %v1019 = vld [vmem:[%s870 + $0x4b] sm:$0xff]
        %v1020 = vld [vmem:[%s870 + $0x53] sm:$0x3f]
        %v1021 = vld [vmem:[%s870 + $0x63] sm:$0xff]
        %v1022 = vld [vmem:[%s870 + $0x6b] sm:$0x3f]
        %v1023 = vld [vmem:[%s870 + $0x7b] sm:$0xff]
        %v1024 = vld [vmem:[%s870 + $0x83] sm:$0x3f]
        %v1025 = vld [vmem:[%s870 + $0x93] sm:$0xff]
        %v1026 = vld [vmem:[%s870 + $0x9b] sm:$0x3f]
        %v1027 = vld [vmem:[%s885 + $0x3] sm:$0x1]
        %v1028 = vlaneseq
        %v1029 = vshrl.u32 %v1028, 7
        %v1030 = vsub.s32 0, %v1029
        %v1031 = vrot.slane %v1027, %v1030
        %v1032 = vmul.f32 %v1013, %v1031
        %v1033 = vmul.f32 %v1014, %v1031
        %v1034 = vmul.f32 %v1015, %v1031
        %v1035 = vmul.f32 %v1016, %v1031
        %v1036 = vmul.f32 %v1017, %v1031
        %v1037 = vmul.f32 %v1018, %v1031
        %v1038 = vmul.f32 %v1019, %v1031
        %v1039 = vmul.f32 %v1020, %v1031
        %v1040 = vmul.f32 %v1021, %v1031
        %v1041 = vmul.f32 %v1022, %v1031
        %v1042 = vmul.f32 %v1023, %v1031
        %v1043 = vmul.f32 %v1024, %v1031
        %v1044 = vmul.f32 %v1025, %v1031
        %v1045 = vmul.f32 %v1026, %v1031
        %v1046 = vadd.f32 %v999, %v1032
        %v1047 = vadd.f32 %v1000, %v1033
        %v1048 = vadd.f32 %v1001, %v1034
        %v1049 = vadd.f32 %v1002, %v1035
        %v1050 = vadd.f32 %v1003, %v1036
        %v1051 = vadd.f32 %v1004, %v1037
        %v1052 = vadd.f32 %v1005, %v1038
        %v1053 = vadd.f32 %v1006, %v1039
        %v1054 = vadd.f32 %v1007, %v1040
        %v1055 = vadd.f32 %v1008, %v1041
        %v1056 = vadd.f32 %v1009, %v1042
        %v1057 = vadd.f32 %v1010, %v1043
        %v1058 = vadd.f32 %v1011, %v1044
        %v1059 = vadd.f32 %v1012, %v1045
        %v1060 = vld [vmem:[%s870 + $0x4] sm:$0xff]
        %v1061 = vld [vmem:[%s870 + $0xc] sm:$0x3f]
        %v1062 = vld [vmem:[%s870 + $0x1c] sm:$0xff]
        %v1063 = vld [vmem:[%s870 + $0x24] sm:$0x3f]
        %v1064 = vld [vmem:[%s870 + $0x34] sm:$0xff]
        %v1065 = vld [vmem:[%s870 + $0x3c] sm:$0x3f]
        %v1066 = vld [vmem:[%s870 + $0x4c] sm:$0xff]
        %v1067 = vld [vmem:[%s870 + $0x54] sm:$0x3f]
        %v1068 = vld [vmem:[%s870 + $0x64] sm:$0xff]
        %v1069 = vld [vmem:[%s870 + $0x6c] sm:$0x3f]
        %v1070 = vld [vmem:[%s870 + $0x7c] sm:$0xff]
        %v1071 = vld [vmem:[%s870 + $0x84] sm:$0x3f]
        %v1072 = vld [vmem:[%s870 + $0x94] sm:$0xff]
        %v1073 = vld [vmem:[%s870 + $0x9c] sm:$0x3f]
        %v1074 = vld [vmem:[%s885 + $0x4] sm:$0x1]
        %v1075 = vlaneseq
        %v1076 = vshrl.u32 %v1075, 7
        %v1077 = vsub.s32 0, %v1076
        %v1078 = vrot.slane %v1074, %v1077
        %v1079 = vmul.f32 %v1060, %v1078
        %v1080 = vmul.f32 %v1061, %v1078
        %v1081 = vmul.f32 %v1062, %v1078
        %v1082 = vmul.f32 %v1063, %v1078
        %v1083 = vmul.f32 %v1064, %v1078
        %v1084 = vmul.f32 %v1065, %v1078
        %v1085 = vmul.f32 %v1066, %v1078
        %v1086 = vmul.f32 %v1067, %v1078
        %v1087 = vmul.f32 %v1068, %v1078
        %v1088 = vmul.f32 %v1069, %v1078
        %v1089 = vmul.f32 %v1070, %v1078
        %v1090 = vmul.f32 %v1071, %v1078
        %v1091 = vmul.f32 %v1072, %v1078
        %v1092 = vmul.f32 %v1073, %v1078
        %v1093 = vadd.f32 %v1046, %v1079
        %v1094 = vadd.f32 %v1047, %v1080
        %v1095 = vadd.f32 %v1048, %v1081
        %v1096 = vadd.f32 %v1049, %v1082
        %v1097 = vadd.f32 %v1050, %v1083
        %v1098 = vadd.f32 %v1051, %v1084
        %v1099 = vadd.f32 %v1052, %v1085
        %v1100 = vadd.f32 %v1053, %v1086
        %v1101 = vadd.f32 %v1054, %v1087
        %v1102 = vadd.f32 %v1055, %v1088
        %v1103 = vadd.f32 %v1056, %v1089
        %v1104 = vadd.f32 %v1057, %v1090
        %v1105 = vadd.f32 %v1058, %v1091
        %v1106 = vadd.f32 %v1059, %v1092
        %v1107 = vld [vmem:[%s870 + $0x5] sm:$0xff]
        %v1108 = vld [vmem:[%s870 + $0xd] sm:$0x3f]
        %v1109 = vld [vmem:[%s870 + $0x1d] sm:$0xff]
        %v1110 = vld [vmem:[%s870 + $0x25] sm:$0x3f]
        %v1111 = vld [vmem:[%s870 + $0x35] sm:$0xff]
        %v1112 = vld [vmem:[%s870 + $0x3d] sm:$0x3f]
        %v1113 = vld [vmem:[%s870 + $0x4d] sm:$0xff]
        %v1114 = vld [vmem:[%s870 + $0x55] sm:$0x3f]
        %v1115 = vld [vmem:[%s870 + $0x65] sm:$0xff]
        %v1116 = vld [vmem:[%s870 + $0x6d] sm:$0x3f]
        %v1117 = vld [vmem:[%s870 + $0x7d] sm:$0xff]
        %v1118 = vld [vmem:[%s870 + $0x85] sm:$0x3f]
        %v1119 = vld [vmem:[%s870 + $0x95] sm:$0xff]
        %v1120 = vld [vmem:[%s870 + $0x9d] sm:$0x3f]
        %v1121 = vld [vmem:[%s885 + $0x5] sm:$0x1]
        %v1122 = vlaneseq
        %v1123 = vshrl.u32 %v1122, 7
        %v1124 = vsub.s32 0, %v1123
        %v1125 = vrot.slane %v1121, %v1124
        %v1126 = vmul.f32 %v1107, %v1125
        %v1127 = vmul.f32 %v1108, %v1125
        %v1128 = vmul.f32 %v1109, %v1125
        %v1129 = vmul.f32 %v1110, %v1125
        %v1130 = vmul.f32 %v1111, %v1125
        %v1131 = vmul.f32 %v1112, %v1125
        %v1132 = vmul.f32 %v1113, %v1125
        %v1133 = vmul.f32 %v1114, %v1125
        %v1134 = vmul.f32 %v1115, %v1125
        %v1135 = vmul.f32 %v1116, %v1125
        %v1136 = vmul.f32 %v1117, %v1125
        %v1137 = vmul.f32 %v1118, %v1125
        %v1138 = vmul.f32 %v1119, %v1125
        %v1139 = vmul.f32 %v1120, %v1125
        %v1140 = vadd.f32 %v1093, %v1126
        %v1141 = vadd.f32 %v1094, %v1127
        %v1142 = vadd.f32 %v1095, %v1128
        %v1143 = vadd.f32 %v1096, %v1129
        %v1144 = vadd.f32 %v1097, %v1130
        %v1145 = vadd.f32 %v1098, %v1131
        %v1146 = vadd.f32 %v1099, %v1132
        %v1147 = vadd.f32 %v1100, %v1133
        %v1148 = vadd.f32 %v1101, %v1134
        %v1149 = vadd.f32 %v1102, %v1135
        %v1150 = vadd.f32 %v1103, %v1136
        %v1151 = vadd.f32 %v1104, %v1137
        %v1152 = vadd.f32 %v1105, %v1138
        %v1153 = vadd.f32 %v1106, %v1139
        %v1154 = vld [vmem:[%s870 + $0x6] sm:$0xff]
        %v1155 = vld [vmem:[%s870 + $0xe] sm:$0x3f]
        %v1156 = vld [vmem:[%s870 + $0x1e] sm:$0xff]
        %v1157 = vld [vmem:[%s870 + $0x26] sm:$0x3f]
        %v1158 = vld [vmem:[%s870 + $0x36] sm:$0xff]
        %v1159 = vld [vmem:[%s870 + $0x3e] sm:$0x3f]
        %v1160 = vld [vmem:[%s870 + $0x4e] sm:$0xff]
        %v1161 = vld [vmem:[%s870 + $0x56] sm:$0x3f]
        %v1162 = vld [vmem:[%s870 + $0x66] sm:$0xff]
        %v1163 = vld [vmem:[%s870 + $0x6e] sm:$0x3f]
        %v1164 = vld [vmem:[%s870 + $0x7e] sm:$0xff]
        %v1165 = vld [vmem:[%s870 + $0x86] sm:$0x3f]
        %v1166 = vld [vmem:[%s870 + $0x96] sm:$0xff]
        %v1167 = vld [vmem:[%s870 + $0x9e] sm:$0x3f]
        %v1168 = vld [vmem:[%s885 + $0x6] sm:$0x1]
        %v1169 = vlaneseq
        %v1170 = vshrl.u32 %v1169, 7
        %v1171 = vsub.s32 0, %v1170
        %v1172 = vrot.slane %v1168, %v1171
        %v1173 = vmul.f32 %v1154, %v1172
        %v1174 = vmul.f32 %v1155, %v1172
        %v1175 = vmul.f32 %v1156, %v1172
        %v1176 = vmul.f32 %v1157, %v1172
        %v1177 = vmul.f32 %v1158, %v1172
        %v1178 = vmul.f32 %v1159, %v1172
        %v1179 = vmul.f32 %v1160, %v1172
        %v1180 = vmul.f32 %v1161, %v1172
        %v1181 = vmul.f32 %v1162, %v1172
        %v1182 = vmul.f32 %v1163, %v1172
        %v1183 = vmul.f32 %v1164, %v1172
        %v1184 = vmul.f32 %v1165, %v1172
        %v1185 = vmul.f32 %v1166, %v1172
        %v1186 = vmul.f32 %v1167, %v1172
        %v1187 = vadd.f32 %v1140, %v1173
        %v1188 = vadd.f32 %v1141, %v1174
        %v1189 = vadd.f32 %v1142, %v1175
        %v1190 = vadd.f32 %v1143, %v1176
        %v1191 = vadd.f32 %v1144, %v1177
        %v1192 = vadd.f32 %v1145, %v1178
        %v1193 = vadd.f32 %v1146, %v1179
        %v1194 = vadd.f32 %v1147, %v1180
        %v1195 = vadd.f32 %v1148, %v1181
        %v1196 = vadd.f32 %v1149, %v1182
        %v1197 = vadd.f32 %v1150, %v1183
        %v1198 = vadd.f32 %v1151, %v1184
        %v1199 = vadd.f32 %v1152, %v1185
        %v1200 = vadd.f32 %v1153, %v1186
        %s1201 = scalar_lea.vmem [#allocation2], 48
        %v1202 = vld [vmem:[%s1201] sm:$0xff]
        %v1203 = vld [vmem:[%s1201 + $0x8] sm:$0x3f]
        %v1204 = vld [vmem:[%s1201 + $0x18] sm:$0xff]
        %v1205 = vld [vmem:[%s1201 + $0x20] sm:$0x3f]
        %v1206 = vld [vmem:[%s1201 + $0x30] sm:$0xff]
        %v1207 = vld [vmem:[%s1201 + $0x38] sm:$0x3f]
        %v1208 = vld [vmem:[%s1201 + $0x48] sm:$0xff]
        %v1209 = vld [vmem:[%s1201 + $0x50] sm:$0x3f]
        %v1210 = vld [vmem:[%s1201 + $0x60] sm:$0xff]
        %v1211 = vld [vmem:[%s1201 + $0x68] sm:$0x3f]
        %v1212 = vld [vmem:[%s1201 + $0x78] sm:$0xff]
        %v1213 = vld [vmem:[%s1201 + $0x80] sm:$0x3f]
        %v1214 = vld [vmem:[%s1201 + $0x90] sm:$0xff]
        %v1215 = vld [vmem:[%s1201 + $0x98] sm:$0x3f]
        %s1216 = scalar_lea.vmem %s387, 16 [#allocation4]
        %v1217 = vld [vmem:[%s1216] sm:$0x1]
        %v1218 = vlaneseq
        %v1219 = vshrl.u32 %v1218, 7
        %v1220 = vsub.s32 0, %v1219
        %v1221 = vrot.slane %v1217, %v1220
        %v1222 = vmul.f32 %v1202, %v1221
        %v1223 = vmul.f32 %v1203, %v1221
        %v1224 = vmul.f32 %v1204, %v1221
        %v1225 = vmul.f32 %v1205, %v1221
        %v1226 = vmul.f32 %v1206, %v1221
        %v1227 = vmul.f32 %v1207, %v1221
        %v1228 = vmul.f32 %v1208, %v1221
        %v1229 = vmul.f32 %v1209, %v1221
        %v1230 = vmul.f32 %v1210, %v1221
        %v1231 = vmul.f32 %v1211, %v1221
        %v1232 = vmul.f32 %v1212, %v1221
        %v1233 = vmul.f32 %v1213, %v1221
        %v1234 = vmul.f32 %v1214, %v1221
        %v1235 = vmul.f32 %v1215, %v1221
        %v1236 = vadd.f32 %v1187, %v1222
        %v1237 = vadd.f32 %v1188, %v1223
        %v1238 = vadd.f32 %v1189, %v1224
        %v1239 = vadd.f32 %v1190, %v1225
        %v1240 = vadd.f32 %v1191, %v1226
        %v1241 = vadd.f32 %v1192, %v1227
        %v1242 = vadd.f32 %v1193, %v1228
        %v1243 = vadd.f32 %v1194, %v1229
        %v1244 = vadd.f32 %v1195, %v1230
        %v1245 = vadd.f32 %v1196, %v1231
        %v1246 = vadd.f32 %v1197, %v1232
        %v1247 = vadd.f32 %v1198, %v1233
        %v1248 = vadd.f32 %v1199, %v1234
        %v1249 = vadd.f32 %v1200, %v1235
        %v1250 = vld [vmem:[%s1201 + $0x1] sm:$0xff]
        %v1251 = vld [vmem:[%s1201 + $0x9] sm:$0x3f]
        %v1252 = vld [vmem:[%s1201 + $0x19] sm:$0xff]
        %v1253 = vld [vmem:[%s1201 + $0x21] sm:$0x3f]
        %v1254 = vld [vmem:[%s1201 + $0x31] sm:$0xff]
        %v1255 = vld [vmem:[%s1201 + $0x39] sm:$0x3f]
        %v1256 = vld [vmem:[%s1201 + $0x49] sm:$0xff]
        %v1257 = vld [vmem:[%s1201 + $0x51] sm:$0x3f]
        %v1258 = vld [vmem:[%s1201 + $0x61] sm:$0xff]
        %v1259 = vld [vmem:[%s1201 + $0x69] sm:$0x3f]
        %v1260 = vld [vmem:[%s1201 + $0x79] sm:$0xff]
        %v1261 = vld [vmem:[%s1201 + $0x81] sm:$0x3f]
        %v1262 = vld [vmem:[%s1201 + $0x91] sm:$0xff]
        %v1263 = vld [vmem:[%s1201 + $0x99] sm:$0x3f]
        %v1264 = vld [vmem:[%s1216 + $0x1] sm:$0x1]
        %v1265 = vlaneseq
        %v1266 = vshrl.u32 %v1265, 7
        %v1267 = vsub.s32 0, %v1266
        %v1268 = vrot.slane %v1264, %v1267
        %v1269 = vmul.f32 %v1250, %v1268
        %v1270 = vmul.f32 %v1251, %v1268
        %v1271 = vmul.f32 %v1252, %v1268
        %v1272 = vmul.f32 %v1253, %v1268
        %v1273 = vmul.f32 %v1254, %v1268
        %v1274 = vmul.f32 %v1255, %v1268
        %v1275 = vmul.f32 %v1256, %v1268
        %v1276 = vmul.f32 %v1257, %v1268
        %v1277 = vmul.f32 %v1258, %v1268
        %v1278 = vmul.f32 %v1259, %v1268
        %v1279 = vmul.f32 %v1260, %v1268
        %v1280 = vmul.f32 %v1261, %v1268
        %v1281 = vmul.f32 %v1262, %v1268
        %v1282 = vmul.f32 %v1263, %v1268
        %v1283 = vadd.f32 %v1236, %v1269
        %v1284 = vadd.f32 %v1237, %v1270
        %v1285 = vadd.f32 %v1238, %v1271
        %v1286 = vadd.f32 %v1239, %v1272
        %v1287 = vadd.f32 %v1240, %v1273
        %v1288 = vadd.f32 %v1241, %v1274
        %v1289 = vadd.f32 %v1242, %v1275
        %v1290 = vadd.f32 %v1243, %v1276
        %v1291 = vadd.f32 %v1244, %v1277
        %v1292 = vadd.f32 %v1245, %v1278
        %v1293 = vadd.f32 %v1246, %v1279
        %v1294 = vadd.f32 %v1247, %v1280
        %v1295 = vadd.f32 %v1248, %v1281
        %v1296 = vadd.f32 %v1249, %v1282
        %v1297 = vld [vmem:[%s1201 + $0x2] sm:$0xff]
        %v1298 = vld [vmem:[%s1201 + $0xa] sm:$0x3f]
        %v1299 = vld [vmem:[%s1201 + $0x1a] sm:$0xff]
        %v1300 = vld [vmem:[%s1201 + $0x22] sm:$0x3f]
        %v1301 = vld [vmem:[%s1201 + $0x32] sm:$0xff]
        %v1302 = vld [vmem:[%s1201 + $0x3a] sm:$0x3f]
        %v1303 = vld [vmem:[%s1201 + $0x4a] sm:$0xff]
        %v1304 = vld [vmem:[%s1201 + $0x52] sm:$0x3f]
        %v1305 = vld [vmem:[%s1201 + $0x62] sm:$0xff]
        %v1306 = vld [vmem:[%s1201 + $0x6a] sm:$0x3f]
        %v1307 = vld [vmem:[%s1201 + $0x7a] sm:$0xff]
        %v1308 = vld [vmem:[%s1201 + $0x82] sm:$0x3f]
        %v1309 = vld [vmem:[%s1201 + $0x92] sm:$0xff]
        %v1310 = vld [vmem:[%s1201 + $0x9a] sm:$0x3f]
        %v1311 = vld [vmem:[%s1216 + $0x2] sm:$0x1]
        %v1312 = vlaneseq
        %v1313 = vshrl.u32 %v1312, 7
        %v1314 = vsub.s32 0, %v1313
        %v1315 = vrot.slane %v1311, %v1314
        %v1316 = vmul.f32 %v1297, %v1315
        %v1317 = vmul.f32 %v1298, %v1315
        %v1318 = vmul.f32 %v1299, %v1315
        %v1319 = vmul.f32 %v1300, %v1315
        %v1320 = vmul.f32 %v1301, %v1315
        %v1321 = vmul.f32 %v1302, %v1315
        %v1322 = vmul.f32 %v1303, %v1315
        %v1323 = vmul.f32 %v1304, %v1315
        %v1324 = vmul.f32 %v1305, %v1315
        %v1325 = vmul.f32 %v1306, %v1315
        %v1326 = vmul.f32 %v1307, %v1315
        %v1327 = vmul.f32 %v1308, %v1315
        %v1328 = vmul.f32 %v1309, %v1315
        %v1329 = vmul.f32 %v1310, %v1315
        %v1330 = vadd.f32 %v1283, %v1316
        %v1331 = vadd.f32 %v1284, %v1317
        %v1332 = vadd.f32 %v1285, %v1318
        %v1333 = vadd.f32 %v1286, %v1319
        %v1334 = vadd.f32 %v1287, %v1320
        %v1335 = vadd.f32 %v1288, %v1321
        %v1336 = vadd.f32 %v1289, %v1322
        %v1337 = vadd.f32 %v1290, %v1323
        %v1338 = vadd.f32 %v1291, %v1324
        %v1339 = vadd.f32 %v1292, %v1325
        %v1340 = vadd.f32 %v1293, %v1326
        %v1341 = vadd.f32 %v1294, %v1327
        %v1342 = vadd.f32 %v1295, %v1328
        %v1343 = vadd.f32 %v1296, %v1329
        %v1344 = vld [vmem:[%s1201 + $0x3] sm:$0xff]
        %v1345 = vld [vmem:[%s1201 + $0xb] sm:$0x3f]
        %v1346 = vld [vmem:[%s1201 + $0x1b] sm:$0xff]
        %v1347 = vld [vmem:[%s1201 + $0x23] sm:$0x3f]
        %v1348 = vld [vmem:[%s1201 + $0x33] sm:$0xff]
        %v1349 = vld [vmem:[%s1201 + $0x3b] sm:$0x3f]
        %v1350 = vld [vmem:[%s1201 + $0x4b] sm:$0xff]
        %v1351 = vld [vmem:[%s1201 + $0x53] sm:$0x3f]
        %v1352 = vld [vmem:[%s1201 + $0x63] sm:$0xff]
        %v1353 = vld [vmem:[%s1201 + $0x6b] sm:$0x3f]
        %v1354 = vld [vmem:[%s1201 + $0x7b] sm:$0xff]
        %v1355 = vld [vmem:[%s1201 + $0x83] sm:$0x3f]
        %v1356 = vld [vmem:[%s1201 + $0x93] sm:$0xff]
        %v1357 = vld [vmem:[%s1201 + $0x9b] sm:$0x3f]
        %v1358 = vld [vmem:[%s1216 + $0x3] sm:$0x1]
        %v1359 = vlaneseq
        %v1360 = vshrl.u32 %v1359, 7
        %v1361 = vsub.s32 0, %v1360
        %v1362 = vrot.slane %v1358, %v1361
        %v1363 = vmul.f32 %v1344, %v1362
        %v1364 = vmul.f32 %v1345, %v1362
        %v1365 = vmul.f32 %v1346, %v1362
        %v1366 = vmul.f32 %v1347, %v1362
        %v1367 = vmul.f32 %v1348, %v1362
        %v1368 = vmul.f32 %v1349, %v1362
        %v1369 = vmul.f32 %v1350, %v1362
        %v1370 = vmul.f32 %v1351, %v1362
        %v1371 = vmul.f32 %v1352, %v1362
        %v1372 = vmul.f32 %v1353, %v1362
        %v1373 = vmul.f32 %v1354, %v1362
        %v1374 = vmul.f32 %v1355, %v1362
        %v1375 = vmul.f32 %v1356, %v1362
        %v1376 = vmul.f32 %v1357, %v1362
        %v1377 = vadd.f32 %v1330, %v1363
        %v1378 = vadd.f32 %v1331, %v1364
        %v1379 = vadd.f32 %v1332, %v1365
        %v1380 = vadd.f32 %v1333, %v1366
        %v1381 = vadd.f32 %v1334, %v1367
        %v1382 = vadd.f32 %v1335, %v1368
        %v1383 = vadd.f32 %v1336, %v1369
        %v1384 = vadd.f32 %v1337, %v1370
        %v1385 = vadd.f32 %v1338, %v1371
        %v1386 = vadd.f32 %v1339, %v1372
        %v1387 = vadd.f32 %v1340, %v1373
        %v1388 = vadd.f32 %v1341, %v1374
        %v1389 = vadd.f32 %v1342, %v1375
        %v1390 = vadd.f32 %v1343, %v1376
        %v1391 = vld [vmem:[%s1201 + $0x4] sm:$0xff]
        %v1392 = vld [vmem:[%s1201 + $0xc] sm:$0x3f]
        %v1393 = vld [vmem:[%s1201 + $0x1c] sm:$0xff]
        %v1394 = vld [vmem:[%s1201 + $0x24] sm:$0x3f]
        %v1395 = vld [vmem:[%s1201 + $0x34] sm:$0xff]
        %v1396 = vld [vmem:[%s1201 + $0x3c] sm:$0x3f]
        %v1397 = vld [vmem:[%s1201 + $0x4c] sm:$0xff]
        %v1398 = vld [vmem:[%s1201 + $0x54] sm:$0x3f]
        %v1399 = vld [vmem:[%s1201 + $0x64] sm:$0xff]
        %v1400 = vld [vmem:[%s1201 + $0x6c] sm:$0x3f]
        %v1401 = vld [vmem:[%s1201 + $0x7c] sm:$0xff]
        %v1402 = vld [vmem:[%s1201 + $0x84] sm:$0x3f]
        %v1403 = vld [vmem:[%s1201 + $0x94] sm:$0xff]
        %v1404 = vld [vmem:[%s1201 + $0x9c] sm:$0x3f]
        %v1405 = vld [vmem:[%s1216 + $0x4] sm:$0x1]
        %v1406 = vlaneseq
        %v1407 = vshrl.u32 %v1406, 7
        %v1408 = vsub.s32 0, %v1407
        %v1409 = vrot.slane %v1405, %v1408
        %v1410 = vmul.f32 %v1391, %v1409
        %v1411 = vmul.f32 %v1392, %v1409
        %v1412 = vmul.f32 %v1393, %v1409
        %v1413 = vmul.f32 %v1394, %v1409
        %v1414 = vmul.f32 %v1395, %v1409
        %v1415 = vmul.f32 %v1396, %v1409
        %v1416 = vmul.f32 %v1397, %v1409
        %v1417 = vmul.f32 %v1398, %v1409
        %v1418 = vmul.f32 %v1399, %v1409
        %v1419 = vmul.f32 %v1400, %v1409
        %v1420 = vmul.f32 %v1401, %v1409
        %v1421 = vmul.f32 %v1402, %v1409
        %v1422 = vmul.f32 %v1403, %v1409
        %v1423 = vmul.f32 %v1404, %v1409
        %v1424 = vadd.f32 %v1377, %v1410
        %v1425 = vadd.f32 %v1378, %v1411
        %v1426 = vadd.f32 %v1379, %v1412
        %v1427 = vadd.f32 %v1380, %v1413
        %v1428 = vadd.f32 %v1381, %v1414
        %v1429 = vadd.f32 %v1382, %v1415
        %v1430 = vadd.f32 %v1383, %v1416
        %v1431 = vadd.f32 %v1384, %v1417
        %v1432 = vadd.f32 %v1385, %v1418
        %v1433 = vadd.f32 %v1386, %v1419
        %v1434 = vadd.f32 %v1387, %v1420
        %v1435 = vadd.f32 %v1388, %v1421
        %v1436 = vadd.f32 %v1389, %v1422
        %v1437 = vadd.f32 %v1390, %v1423
        %v1438 = vld [vmem:[%s1201 + $0x5] sm:$0xff]
        %v1439 = vld [vmem:[%s1201 + $0xd] sm:$0x3f]
        %v1440 = vld [vmem:[%s1201 + $0x1d] sm:$0xff]
        %v1441 = vld [vmem:[%s1201 + $0x25] sm:$0x3f]
        %v1442 = vld [vmem:[%s1201 + $0x35] sm:$0xff]
        %v1443 = vld [vmem:[%s1201 + $0x3d] sm:$0x3f]
        %v1444 = vld [vmem:[%s1201 + $0x4d] sm:$0xff]
        %v1445 = vld [vmem:[%s1201 + $0x55] sm:$0x3f]
        %v1446 = vld [vmem:[%s1201 + $0x65] sm:$0xff]
        %v1447 = vld [vmem:[%s1201 + $0x6d] sm:$0x3f]
        %v1448 = vld [vmem:[%s1201 + $0x7d] sm:$0xff]
        %v1449 = vld [vmem:[%s1201 + $0x85] sm:$0x3f]
        %v1450 = vld [vmem:[%s1201 + $0x95] sm:$0xff]
        %v1451 = vld [vmem:[%s1201 + $0x9d] sm:$0x3f]
        %v1452 = vld [vmem:[%s1216 + $0x5] sm:$0x1]
        %v1453 = vlaneseq
        %v1454 = vshrl.u32 %v1453, 7
        %v1455 = vsub.s32 0, %v1454
        %v1456 = vrot.slane %v1452, %v1455
        %v1457 = vmul.f32 %v1438, %v1456
        %v1458 = vmul.f32 %v1439, %v1456
        %v1459 = vmul.f32 %v1440, %v1456
        %v1460 = vmul.f32 %v1441, %v1456
        %v1461 = vmul.f32 %v1442, %v1456
        %v1462 = vmul.f32 %v1443, %v1456
        %v1463 = vmul.f32 %v1444, %v1456
        %v1464 = vmul.f32 %v1445, %v1456
        %v1465 = vmul.f32 %v1446, %v1456
        %v1466 = vmul.f32 %v1447, %v1456
        %v1467 = vmul.f32 %v1448, %v1456
        %v1468 = vmul.f32 %v1449, %v1456
        %v1469 = vmul.f32 %v1450, %v1456
        %v1470 = vmul.f32 %v1451, %v1456
        %v1471 = vadd.f32 %v1424, %v1457
        %v1472 = vadd.f32 %v1425, %v1458
        %v1473 = vadd.f32 %v1426, %v1459
        %v1474 = vadd.f32 %v1427, %v1460
        %v1475 = vadd.f32 %v1428, %v1461
        %v1476 = vadd.f32 %v1429, %v1462
        %v1477 = vadd.f32 %v1430, %v1463
        %v1478 = vadd.f32 %v1431, %v1464
        %v1479 = vadd.f32 %v1432, %v1465
        %v1480 = vadd.f32 %v1433, %v1466
        %v1481 = vadd.f32 %v1434, %v1467
        %v1482 = vadd.f32 %v1435, %v1468
        %v1483 = vadd.f32 %v1436, %v1469
        %v1484 = vadd.f32 %v1437, %v1470
        %v1485 = vld [vmem:[%s1201 + $0x6] sm:$0xff]
        %v1486 = vld [vmem:[%s1201 + $0xe] sm:$0x3f]
        %v1487 = vld [vmem:[%s1201 + $0x1e] sm:$0xff]
        %v1488 = vld [vmem:[%s1201 + $0x26] sm:$0x3f]
        %v1489 = vld [vmem:[%s1201 + $0x36] sm:$0xff]
        %v1490 = vld [vmem:[%s1201 + $0x3e] sm:$0x3f]
        %v1491 = vld [vmem:[%s1201 + $0x4e] sm:$0xff]
        %v1492 = vld [vmem:[%s1201 + $0x56] sm:$0x3f]
        %v1493 = vld [vmem:[%s1201 + $0x66] sm:$0xff]
        %v1494 = vld [vmem:[%s1201 + $0x6e] sm:$0x3f]
        %v1495 = vld [vmem:[%s1201 + $0x7e] sm:$0xff]
        %v1496 = vld [vmem:[%s1201 + $0x86] sm:$0x3f]
        %v1497 = vld [vmem:[%s1201 + $0x96] sm:$0xff]
        %v1498 = vld [vmem:[%s1201 + $0x9e] sm:$0x3f]
        %v1499 = vld [vmem:[%s1216 + $0x6] sm:$0x1]
        %v1500 = vlaneseq
        %v1501 = vshrl.u32 %v1500, 7
        %v1502 = vsub.s32 0, %v1501
        %v1503 = vrot.slane %v1499, %v1502
        %v1504 = vmul.f32 %v1485, %v1503
        %v1505 = vmul.f32 %v1486, %v1503
        %v1506 = vmul.f32 %v1487, %v1503
        %v1507 = vmul.f32 %v1488, %v1503
        %v1508 = vmul.f32 %v1489, %v1503
        %v1509 = vmul.f32 %v1490, %v1503
        %v1510 = vmul.f32 %v1491, %v1503
        %v1511 = vmul.f32 %v1492, %v1503
        %v1512 = vmul.f32 %v1493, %v1503
        %v1513 = vmul.f32 %v1494, %v1503
        %v1514 = vmul.f32 %v1495, %v1503
        %v1515 = vmul.f32 %v1496, %v1503
        %v1516 = vmul.f32 %v1497, %v1503
        %v1517 = vmul.f32 %v1498, %v1503
        %v1518 = vadd.f32 %v1471, %v1504
        %v1519 = vadd.f32 %v1472, %v1505
        %v1520 = vadd.f32 %v1473, %v1506
        %v1521 = vadd.f32 %v1474, %v1507
        %v1522 = vadd.f32 %v1475, %v1508
        %v1523 = vadd.f32 %v1476, %v1509
        %v1524 = vadd.f32 %v1477, %v1510
        %v1525 = vadd.f32 %v1478, %v1511
        %v1526 = vadd.f32 %v1479, %v1512
        %v1527 = vadd.f32 %v1480, %v1513
        %v1528 = vadd.f32 %v1481, %v1514
        %v1529 = vadd.f32 %v1482, %v1515
        %v1530 = vadd.f32 %v1483, %v1516
        %v1531 = vadd.f32 %v1484, %v1517
        %v1532 = vld [vmem:[%s505] sm:$0xff]
        %v1533 = vld [vmem:[%s505 + $0x8] sm:$0x3f]
        %v1534 = vld [vmem:[%s505 + $0x18] sm:$0xff]
        %v1535 = vld [vmem:[%s505 + $0x20] sm:$0x3f]
        %v1536 = vld [vmem:[%s505 + $0x30] sm:$0xff]
        %v1537 = vld [vmem:[%s505 + $0x38] sm:$0x3f]
        %v1538 = vld [vmem:[%s505 + $0x48] sm:$0xff]
        %v1539 = vld [vmem:[%s505 + $0x50] sm:$0x3f]
        %v1540 = vld [vmem:[%s505 + $0x60] sm:$0xff]
        %v1541 = vld [vmem:[%s505 + $0x68] sm:$0x3f]
        %v1542 = vld [vmem:[%s505 + $0x78] sm:$0xff]
        %v1543 = vld [vmem:[%s505 + $0x80] sm:$0x3f]
        %v1544 = vld [vmem:[%s505 + $0x90] sm:$0xff]
        %v1545 = vld [vmem:[%s505 + $0x98] sm:$0x3f]
        %s1546 = scalar_lea.vmem %s387, 24 [#allocation4]
        %v1547 = vld [vmem:[%s1546] sm:$0x1]
        %v1548 = vlaneseq
        %v1549 = vshrl.u32 %v1548, 7
        %v1550 = vsub.s32 0, %v1549
        %v1551 = vrot.slane %v1547, %v1550
        %v1552 = vmul.f32 %v1532, %v1551
        %v1553 = vmul.f32 %v1533, %v1551
        %v1554 = vmul.f32 %v1534, %v1551
        %v1555 = vmul.f32 %v1535, %v1551
        %v1556 = vmul.f32 %v1536, %v1551
        %v1557 = vmul.f32 %v1537, %v1551
        %v1558 = vmul.f32 %v1538, %v1551
        %v1559 = vmul.f32 %v1539, %v1551
        %v1560 = vmul.f32 %v1540, %v1551
        %v1561 = vmul.f32 %v1541, %v1551
        %v1562 = vmul.f32 %v1542, %v1551
        %v1563 = vmul.f32 %v1543, %v1551
        %v1564 = vmul.f32 %v1544, %v1551
        %v1565 = vmul.f32 %v1545, %v1551
        %v1566 = vadd.f32 %v1518, %v1552
        %v1567 = vadd.f32 %v1519, %v1553
        %v1568 = vadd.f32 %v1520, %v1554
        %v1569 = vadd.f32 %v1521, %v1555
        %v1570 = vadd.f32 %v1522, %v1556
        %v1571 = vadd.f32 %v1523, %v1557
        %v1572 = vadd.f32 %v1524, %v1558
        %v1573 = vadd.f32 %v1525, %v1559
        %v1574 = vadd.f32 %v1526, %v1560
        %v1575 = vadd.f32 %v1527, %v1561
        %v1576 = vadd.f32 %v1528, %v1562
        %v1577 = vadd.f32 %v1529, %v1563
        %v1578 = vadd.f32 %v1530, %v1564
        %v1579 = vadd.f32 %v1531, %v1565
        %v1580 = vld [vmem:[%s505 + $0x1] sm:$0xff]
        %v1581 = vld [vmem:[%s505 + $0x9] sm:$0x3f]
        %v1582 = vld [vmem:[%s505 + $0x19] sm:$0xff]
        %v1583 = vld [vmem:[%s505 + $0x21] sm:$0x3f]
        %v1584 = vld [vmem:[%s505 + $0x31] sm:$0xff]
        %v1585 = vld [vmem:[%s505 + $0x39] sm:$0x3f]
        %v1586 = vld [vmem:[%s505 + $0x49] sm:$0xff]
        %v1587 = vld [vmem:[%s505 + $0x51] sm:$0x3f]
        %v1588 = vld [vmem:[%s505 + $0x61] sm:$0xff]
        %v1589 = vld [vmem:[%s505 + $0x69] sm:$0x3f]
        %v1590 = vld [vmem:[%s505 + $0x79] sm:$0xff]
        %v1591 = vld [vmem:[%s505 + $0x81] sm:$0x3f]
        %v1592 = vld [vmem:[%s505 + $0x91] sm:$0xff]
        %v1593 = vld [vmem:[%s505 + $0x99] sm:$0x3f]
        %v1594 = vld [vmem:[%s1546 + $0x1] sm:$0x1]
        %v1595 = vlaneseq
        %v1596 = vshrl.u32 %v1595, 7
        %v1597 = vsub.s32 0, %v1596
        %v1598 = vrot.slane %v1594, %v1597
        %v1599 = vmul.f32 %v1580, %v1598
        %v1600 = vmul.f32 %v1581, %v1598
        %v1601 = vmul.f32 %v1582, %v1598
        %v1602 = vmul.f32 %v1583, %v1598
        %v1603 = vmul.f32 %v1584, %v1598
        %v1604 = vmul.f32 %v1585, %v1598
        %v1605 = vmul.f32 %v1586, %v1598
        %v1606 = vmul.f32 %v1587, %v1598
        %v1607 = vmul.f32 %v1588, %v1598
        %v1608 = vmul.f32 %v1589, %v1598
        %v1609 = vmul.f32 %v1590, %v1598
        %v1610 = vmul.f32 %v1591, %v1598
        %v1611 = vmul.f32 %v1592, %v1598
        %v1612 = vmul.f32 %v1593, %v1598
        %v1613 = vadd.f32 %v1566, %v1599
        %v1614 = vadd.f32 %v1567, %v1600
        %v1615 = vadd.f32 %v1568, %v1601
        %v1616 = vadd.f32 %v1569, %v1602
        %v1617 = vadd.f32 %v1570, %v1603
        %v1618 = vadd.f32 %v1571, %v1604
        %v1619 = vadd.f32 %v1572, %v1605
        %v1620 = vadd.f32 %v1573, %v1606
        %v1621 = vadd.f32 %v1574, %v1607
        %v1622 = vadd.f32 %v1575, %v1608
        %v1623 = vadd.f32 %v1576, %v1609
        %v1624 = vadd.f32 %v1577, %v1610
        %v1625 = vadd.f32 %v1578, %v1611
        %v1626 = vadd.f32 %v1579, %v1612
        %v1627 = vld [vmem:[%s505 + $0x2] sm:$0xff]
        %v1628 = vld [vmem:[%s505 + $0xa] sm:$0x3f]
        %v1629 = vld [vmem:[%s505 + $0x1a] sm:$0xff]
        %v1630 = vld [vmem:[%s505 + $0x22] sm:$0x3f]
        %v1631 = vld [vmem:[%s505 + $0x32] sm:$0xff]
        %v1632 = vld [vmem:[%s505 + $0x3a] sm:$0x3f]
        %v1633 = vld [vmem:[%s505 + $0x4a] sm:$0xff]
        %v1634 = vld [vmem:[%s505 + $0x52] sm:$0x3f]
        %v1635 = vld [vmem:[%s505 + $0x62] sm:$0xff]
        %v1636 = vld [vmem:[%s505 + $0x6a] sm:$0x3f]
        %v1637 = vld [vmem:[%s505 + $0x7a] sm:$0xff]
        %v1638 = vld [vmem:[%s505 + $0x82] sm:$0x3f]
        %v1639 = vld [vmem:[%s505 + $0x92] sm:$0xff]
        %v1640 = vld [vmem:[%s505 + $0x9a] sm:$0x3f]
        %v1641 = vld [vmem:[%s1546 + $0x2] sm:$0x1]
        %v1642 = vlaneseq
        %v1643 = vshrl.u32 %v1642, 7
        %v1644 = vsub.s32 0, %v1643
        %v1645 = vrot.slane %v1641, %v1644
        %v1646 = vmul.f32 %v1627, %v1645
        %v1647 = vmul.f32 %v1628, %v1645
        %v1648 = vmul.f32 %v1629, %v1645
        %v1649 = vmul.f32 %v1630, %v1645
        %v1650 = vmul.f32 %v1631, %v1645
        %v1651 = vmul.f32 %v1632, %v1645
        %v1652 = vmul.f32 %v1633, %v1645
        %v1653 = vmul.f32 %v1634, %v1645
        %v1654 = vmul.f32 %v1635, %v1645
        %v1655 = vmul.f32 %v1636, %v1645
        %v1656 = vmul.f32 %v1637, %v1645
        %v1657 = vmul.f32 %v1638, %v1645
        %v1658 = vmul.f32 %v1639, %v1645
        %v1659 = vmul.f32 %v1640, %v1645
        %v1660 = vadd.f32 %v1613, %v1646
        %v1661 = vadd.f32 %v1614, %v1647
        %v1662 = vadd.f32 %v1615, %v1648
        %v1663 = vadd.f32 %v1616, %v1649
        %v1664 = vadd.f32 %v1617, %v1650
        %v1665 = vadd.f32 %v1618, %v1651
        %v1666 = vadd.f32 %v1619, %v1652
        %v1667 = vadd.f32 %v1620, %v1653
        %v1668 = vadd.f32 %v1621, %v1654
        %v1669 = vadd.f32 %v1622, %v1655
        %v1670 = vadd.f32 %v1623, %v1656
        %v1671 = vadd.f32 %v1624, %v1657
        %v1672 = vadd.f32 %v1625, %v1658
        %v1673 = vadd.f32 %v1626, %v1659
        %v1674 = vld [vmem:[%s505 + $0x3] sm:$0xff]
        %v1675 = vld [vmem:[%s505 + $0xb] sm:$0x3f]
        %v1676 = vld [vmem:[%s505 + $0x1b] sm:$0xff]
        %v1677 = vld [vmem:[%s505 + $0x23] sm:$0x3f]
        %v1678 = vld [vmem:[%s505 + $0x33] sm:$0xff]
        %v1679 = vld [vmem:[%s505 + $0x3b] sm:$0x3f]
        %v1680 = vld [vmem:[%s505 + $0x4b] sm:$0xff]
        %v1681 = vld [vmem:[%s505 + $0x53] sm:$0x3f]
        %v1682 = vld [vmem:[%s505 + $0x63] sm:$0xff]
        %v1683 = vld [vmem:[%s505 + $0x6b] sm:$0x3f]
        %v1684 = vld [vmem:[%s505 + $0x7b] sm:$0xff]
        %v1685 = vld [vmem:[%s505 + $0x83] sm:$0x3f]
        %v1686 = vld [vmem:[%s505 + $0x93] sm:$0xff]
        %v1687 = vld [vmem:[%s505 + $0x9b] sm:$0x3f]
        %v1688 = vld [vmem:[%s1546 + $0x3] sm:$0x1]
        %v1689 = vlaneseq
        %v1690 = vshrl.u32 %v1689, 7
        %v1691 = vsub.s32 0, %v1690
        %v1692 = vrot.slane %v1688, %v1691
        %v1693 = vmul.f32 %v1674, %v1692
        %v1694 = vmul.f32 %v1675, %v1692
        %v1695 = vmul.f32 %v1676, %v1692
        %v1696 = vmul.f32 %v1677, %v1692
        %v1697 = vmul.f32 %v1678, %v1692
        %v1698 = vmul.f32 %v1679, %v1692
        %v1699 = vmul.f32 %v1680, %v1692
        %v1700 = vmul.f32 %v1681, %v1692
        %v1701 = vmul.f32 %v1682, %v1692
        %v1702 = vmul.f32 %v1683, %v1692
        %v1703 = vmul.f32 %v1684, %v1692
        %v1704 = vmul.f32 %v1685, %v1692
        %v1705 = vmul.f32 %v1686, %v1692
        %v1706 = vmul.f32 %v1687, %v1692
        %v1707 = vadd.f32 %v1660, %v1693
        %v1708 = vadd.f32 %v1661, %v1694
        %v1709 = vadd.f32 %v1662, %v1695
        %v1710 = vadd.f32 %v1663, %v1696
        %v1711 = vadd.f32 %v1664, %v1697
        %v1712 = vadd.f32 %v1665, %v1698
        %v1713 = vadd.f32 %v1666, %v1699
        %v1714 = vadd.f32 %v1667, %v1700
        %v1715 = vadd.f32 %v1668, %v1701
        %v1716 = vadd.f32 %v1669, %v1702
        %v1717 = vadd.f32 %v1670, %v1703
        %v1718 = vadd.f32 %v1671, %v1704
        %v1719 = vadd.f32 %v1672, %v1705
        %v1720 = vadd.f32 %v1673, %v1706
        %v1721 = vld [vmem:[%s505 + $0x4] sm:$0xff]
        %v1722 = vld [vmem:[%s505 + $0xc] sm:$0x3f]
        %v1723 = vld [vmem:[%s505 + $0x1c] sm:$0xff]
        %v1724 = vld [vmem:[%s505 + $0x24] sm:$0x3f]
        %v1725 = vld [vmem:[%s505 + $0x34] sm:$0xff]
        %v1726 = vld [vmem:[%s505 + $0x3c] sm:$0x3f]
        %v1727 = vld [vmem:[%s505 + $0x4c] sm:$0xff]
        %v1728 = vld [vmem:[%s505 + $0x54] sm:$0x3f]
        %v1729 = vld [vmem:[%s505 + $0x64] sm:$0xff]
        %v1730 = vld [vmem:[%s505 + $0x6c] sm:$0x3f]
        %v1731 = vld [vmem:[%s505 + $0x7c] sm:$0xff]
        %v1732 = vld [vmem:[%s505 + $0x84] sm:$0x3f]
        %v1733 = vld [vmem:[%s505 + $0x94] sm:$0xff]
        %v1734 = vld [vmem:[%s505 + $0x9c] sm:$0x3f]
        %v1735 = vld [vmem:[%s1546 + $0x4] sm:$0x1]
        %v1736 = vlaneseq
        %v1737 = vshrl.u32 %v1736, 7
        %v1738 = vsub.s32 0, %v1737
        %v1739 = vrot.slane %v1735, %v1738
        %v1740 = vmul.f32 %v1721, %v1739
        %v1741 = vmul.f32 %v1722, %v1739
        %v1742 = vmul.f32 %v1723, %v1739
        %v1743 = vmul.f32 %v1724, %v1739
        %v1744 = vmul.f32 %v1725, %v1739
        %v1745 = vmul.f32 %v1726, %v1739
        %v1746 = vmul.f32 %v1727, %v1739
        %v1747 = vmul.f32 %v1728, %v1739
        %v1748 = vmul.f32 %v1729, %v1739
        %v1749 = vmul.f32 %v1730, %v1739
        %v1750 = vmul.f32 %v1731, %v1739
        %v1751 = vmul.f32 %v1732, %v1739
        %v1752 = vmul.f32 %v1733, %v1739
        %v1753 = vmul.f32 %v1734, %v1739
        %v1754 = vadd.f32 %v1707, %v1740
        %v1755 = vadd.f32 %v1708, %v1741
        %v1756 = vadd.f32 %v1709, %v1742
        %v1757 = vadd.f32 %v1710, %v1743
        %v1758 = vadd.f32 %v1711, %v1744
        %v1759 = vadd.f32 %v1712, %v1745
        %v1760 = vadd.f32 %v1713, %v1746
        %v1761 = vadd.f32 %v1714, %v1747
        %v1762 = vadd.f32 %v1715, %v1748
        %v1763 = vadd.f32 %v1716, %v1749
        %v1764 = vadd.f32 %v1717, %v1750
        %v1765 = vadd.f32 %v1718, %v1751
        %v1766 = vadd.f32 %v1719, %v1752
        %v1767 = vadd.f32 %v1720, %v1753
        %v1768 = vld [vmem:[%s505 + $0x5] sm:$0xff]
        %v1769 = vld [vmem:[%s505 + $0xd] sm:$0x3f]
        %v1770 = vld [vmem:[%s505 + $0x1d] sm:$0xff]
        %v1771 = vld [vmem:[%s505 + $0x25] sm:$0x3f]
        %v1772 = vld [vmem:[%s505 + $0x35] sm:$0xff]
        %v1773 = vld [vmem:[%s505 + $0x3d] sm:$0x3f]
        %v1774 = vld [vmem:[%s505 + $0x4d] sm:$0xff]
        %v1775 = vld [vmem:[%s505 + $0x55] sm:$0x3f]
        %v1776 = vld [vmem:[%s505 + $0x65] sm:$0xff]
        %v1777 = vld [vmem:[%s505 + $0x6d] sm:$0x3f]
        %v1778 = vld [vmem:[%s505 + $0x7d] sm:$0xff]
        %v1779 = vld [vmem:[%s505 + $0x85] sm:$0x3f]
        %v1780 = vld [vmem:[%s505 + $0x95] sm:$0xff]
        %v1781 = vld [vmem:[%s505 + $0x9d] sm:$0x3f]
        %v1782 = vld [vmem:[%s1546 + $0x5] sm:$0x1]
        %v1783 = vlaneseq
        %v1784 = vshrl.u32 %v1783, 7
        %v1785 = vsub.s32 0, %v1784
        %v1786 = vrot.slane %v1782, %v1785
        %v1787 = vmul.f32 %v1768, %v1786
        %v1788 = vmul.f32 %v1769, %v1786
        %v1789 = vmul.f32 %v1770, %v1786
        %v1790 = vmul.f32 %v1771, %v1786
        %v1791 = vmul.f32 %v1772, %v1786
        %v1792 = vmul.f32 %v1773, %v1786
        %v1793 = vmul.f32 %v1774, %v1786
        %v1794 = vmul.f32 %v1775, %v1786
        %v1795 = vmul.f32 %v1776, %v1786
        %v1796 = vmul.f32 %v1777, %v1786
        %v1797 = vmul.f32 %v1778, %v1786
        %v1798 = vmul.f32 %v1779, %v1786
        %v1799 = vmul.f32 %v1780, %v1786
        %v1800 = vmul.f32 %v1781, %v1786
        %v1801 = vadd.f32 %v1754, %v1787
        %v1802 = vadd.f32 %v1755, %v1788
        %v1803 = vadd.f32 %v1756, %v1789
        %v1804 = vadd.f32 %v1757, %v1790
        %v1805 = vadd.f32 %v1758, %v1791
        %v1806 = vadd.f32 %v1759, %v1792
        %v1807 = vadd.f32 %v1760, %v1793
        %v1808 = vadd.f32 %v1761, %v1794
        %v1809 = vadd.f32 %v1762, %v1795
        %v1810 = vadd.f32 %v1763, %v1796
        %v1811 = vadd.f32 %v1764, %v1797
        %v1812 = vadd.f32 %v1765, %v1798
        %v1813 = vadd.f32 %v1766, %v1799
        %v1814 = vadd.f32 %v1767, %v1800
        %v1815 = vld [vmem:[%s505 + $0x6] sm:$0xff]
        %v1816 = vld [vmem:[%s505 + $0xe] sm:$0x3f]
        %v1817 = vld [vmem:[%s505 + $0x1e] sm:$0xff]
        %v1818 = vld [vmem:[%s505 + $0x26] sm:$0x3f]
        %v1819 = vld [vmem:[%s505 + $0x36] sm:$0xff]
        %v1820 = vld [vmem:[%s505 + $0x3e] sm:$0x3f]
        %v1821 = vld [vmem:[%s505 + $0x4e] sm:$0xff]
        %v1822 = vld [vmem:[%s505 + $0x56] sm:$0x3f]
        %v1823 = vld [vmem:[%s505 + $0x66] sm:$0xff]
        %v1824 = vld [vmem:[%s505 + $0x6e] sm:$0x3f]
        %v1825 = vld [vmem:[%s505 + $0x7e] sm:$0xff]
        %v1826 = vld [vmem:[%s505 + $0x86] sm:$0x3f]
        %v1827 = vld [vmem:[%s505 + $0x96] sm:$0xff]
        %v1828 = vld [vmem:[%s505 + $0x9e] sm:$0x3f]
        %v1829 = vld [vmem:[%s1546 + $0x6] sm:$0x1]
        %v1830 = vlaneseq
        %v1831 = vshrl.u32 %v1830, 7
        %v1832 = vsub.s32 0, %v1831
        %v1833 = vrot.slane %v1829, %v1832
        %v1834 = vmul.f32 %v1815, %v1833
        %v1835 = vmul.f32 %v1816, %v1833
        %v1836 = vmul.f32 %v1817, %v1833
        %v1837 = vmul.f32 %v1818, %v1833
        %v1838 = vmul.f32 %v1819, %v1833
        %v1839 = vmul.f32 %v1820, %v1833
        %v1840 = vmul.f32 %v1821, %v1833
        %v1841 = vmul.f32 %v1822, %v1833
        %v1842 = vmul.f32 %v1823, %v1833
        %v1843 = vmul.f32 %v1824, %v1833
        %v1844 = vmul.f32 %v1825, %v1833
        %v1845 = vmul.f32 %v1826, %v1833
        %v1846 = vmul.f32 %v1827, %v1833
        %v1847 = vmul.f32 %v1828, %v1833
        %v1848 = vadd.f32 %v1801, %v1834
        %v1849 = vadd.f32 %v1802, %v1835
        %v1850 = vadd.f32 %v1803, %v1836
        %v1851 = vadd.f32 %v1804, %v1837
        %v1852 = vadd.f32 %v1805, %v1838
        %v1853 = vadd.f32 %v1806, %v1839
        %v1854 = vadd.f32 %v1807, %v1840
        %v1855 = vadd.f32 %v1808, %v1841
        %v1856 = vadd.f32 %v1809, %v1842
        %v1857 = vadd.f32 %v1810, %v1843
        %v1858 = vadd.f32 %v1811, %v1844
        %v1859 = vadd.f32 %v1812, %v1845
        %v1860 = vadd.f32 %v1813, %v1846
        %v1861 = vadd.f32 %v1814, %v1847
        %s1862 = scalar_lea.vmem [#allocation2], 96
        %v1863 = vld [vmem:[%s1862] sm:$0xff]
        %v1864 = vld [vmem:[%s1862 + $0x8] sm:$0x3f]
        %v1865 = vld [vmem:[%s1862 + $0x18] sm:$0xff]
        %v1866 = vld [vmem:[%s1862 + $0x20] sm:$0x3f]
        %v1867 = vld [vmem:[%s1862 + $0x30] sm:$0xff]
        %v1868 = vld [vmem:[%s1862 + $0x38] sm:$0x3f]
        %v1869 = vld [vmem:[%s1862 + $0x48] sm:$0xff]
        %v1870 = vld [vmem:[%s1862 + $0x50] sm:$0x3f]
        %v1871 = vld [vmem:[%s1862 + $0x60] sm:$0xff]
        %v1872 = vld [vmem:[%s1862 + $0x68] sm:$0x3f]
        %v1873 = vld [vmem:[%s1862 + $0x78] sm:$0xff]
        %v1874 = vld [vmem:[%s1862 + $0x80] sm:$0x3f]
        %v1875 = vld [vmem:[%s1862 + $0x90] sm:$0xff]
        %v1876 = vld [vmem:[%s1862 + $0x98] sm:$0x3f]
        %s1877 = scalar_lea.vmem %s387, 32 [#allocation4]
        %v1878 = vld [vmem:[%s1877] sm:$0x1]
        %v1879 = vlaneseq
        %v1880 = vshrl.u32 %v1879, 7
        %v1881 = vsub.s32 0, %v1880
        %v1882 = vrot.slane %v1878, %v1881
        %v1883 = vmul.f32 %v1863, %v1882
        %v1884 = vmul.f32 %v1864, %v1882
        %v1885 = vmul.f32 %v1865, %v1882
        %v1886 = vmul.f32 %v1866, %v1882
        %v1887 = vmul.f32 %v1867, %v1882
        %v1888 = vmul.f32 %v1868, %v1882
        %v1889 = vmul.f32 %v1869, %v1882
        %v1890 = vmul.f32 %v1870, %v1882
        %v1891 = vmul.f32 %v1871, %v1882
        %v1892 = vmul.f32 %v1872, %v1882
        %v1893 = vmul.f32 %v1873, %v1882
        %v1894 = vmul.f32 %v1874, %v1882
        %v1895 = vmul.f32 %v1875, %v1882
        %v1896 = vmul.f32 %v1876, %v1882
        %v1897 = vadd.f32 %v1848, %v1883
        %v1898 = vadd.f32 %v1849, %v1884
        %v1899 = vadd.f32 %v1850, %v1885
        %v1900 = vadd.f32 %v1851, %v1886
        %v1901 = vadd.f32 %v1852, %v1887
        %v1902 = vadd.f32 %v1853, %v1888
        %v1903 = vadd.f32 %v1854, %v1889
        %v1904 = vadd.f32 %v1855, %v1890
        %v1905 = vadd.f32 %v1856, %v1891
        %v1906 = vadd.f32 %v1857, %v1892
        %v1907 = vadd.f32 %v1858, %v1893
        %v1908 = vadd.f32 %v1859, %v1894
        %v1909 = vadd.f32 %v1860, %v1895
        %v1910 = vadd.f32 %v1861, %v1896
        %v1911 = vld [vmem:[%s1862 + $0x1] sm:$0xff]
        %v1912 = vld [vmem:[%s1862 + $0x9] sm:$0x3f]
        %v1913 = vld [vmem:[%s1862 + $0x19] sm:$0xff]
        %v1914 = vld [vmem:[%s1862 + $0x21] sm:$0x3f]
        %v1915 = vld [vmem:[%s1862 + $0x31] sm:$0xff]
        %v1916 = vld [vmem:[%s1862 + $0x39] sm:$0x3f]
        %v1917 = vld [vmem:[%s1862 + $0x49] sm:$0xff]
        %v1918 = vld [vmem:[%s1862 + $0x51] sm:$0x3f]
        %v1919 = vld [vmem:[%s1862 + $0x61] sm:$0xff]
        %v1920 = vld [vmem:[%s1862 + $0x69] sm:$0x3f]
        %v1921 = vld [vmem:[%s1862 + $0x79] sm:$0xff]
        %v1922 = vld [vmem:[%s1862 + $0x81] sm:$0x3f]
        %v1923 = vld [vmem:[%s1862 + $0x91] sm:$0xff]
        %v1924 = vld [vmem:[%s1862 + $0x99] sm:$0x3f]
        %v1925 = vld [vmem:[%s1877 + $0x1] sm:$0x1]
        %v1926 = vlaneseq
        %v1927 = vshrl.u32 %v1926, 7
        %v1928 = vsub.s32 0, %v1927
        %v1929 = vrot.slane %v1925, %v1928
        %v1930 = vmul.f32 %v1911, %v1929
        %v1931 = vmul.f32 %v1912, %v1929
        %v1932 = vmul.f32 %v1913, %v1929
        %v1933 = vmul.f32 %v1914, %v1929
        %v1934 = vmul.f32 %v1915, %v1929
        %v1935 = vmul.f32 %v1916, %v1929
        %v1936 = vmul.f32 %v1917, %v1929
        %v1937 = vmul.f32 %v1918, %v1929
        %v1938 = vmul.f32 %v1919, %v1929
        %v1939 = vmul.f32 %v1920, %v1929
        %v1940 = vmul.f32 %v1921, %v1929
        %v1941 = vmul.f32 %v1922, %v1929
        %v1942 = vmul.f32 %v1923, %v1929
        %v1943 = vmul.f32 %v1924, %v1929
        %v1944 = vadd.f32 %v1897, %v1930
        %v1945 = vadd.f32 %v1898, %v1931
        %v1946 = vadd.f32 %v1899, %v1932
        %v1947 = vadd.f32 %v1900, %v1933
        %v1948 = vadd.f32 %v1901, %v1934
        %v1949 = vadd.f32 %v1902, %v1935
        %v1950 = vadd.f32 %v1903, %v1936
        %v1951 = vadd.f32 %v1904, %v1937
        %v1952 = vadd.f32 %v1905, %v1938
        %v1953 = vadd.f32 %v1906, %v1939
        %v1954 = vadd.f32 %v1907, %v1940
        %v1955 = vadd.f32 %v1908, %v1941
        %v1956 = vadd.f32 %v1909, %v1942
        %v1957 = vadd.f32 %v1910, %v1943
        %v1958 = vld [vmem:[%s1862 + $0x2] sm:$0xff]
        %v1959 = vld [vmem:[%s1862 + $0xa] sm:$0x3f]
        %v1960 = vld [vmem:[%s1862 + $0x1a] sm:$0xff]
        %v1961 = vld [vmem:[%s1862 + $0x22] sm:$0x3f]
        %v1962 = vld [vmem:[%s1862 + $0x32] sm:$0xff]
        %v1963 = vld [vmem:[%s1862 + $0x3a] sm:$0x3f]
        %v1964 = vld [vmem:[%s1862 + $0x4a] sm:$0xff]
        %v1965 = vld [vmem:[%s1862 + $0x52] sm:$0x3f]
        %v1966 = vld [vmem:[%s1862 + $0x62] sm:$0xff]
        %v1967 = vld [vmem:[%s1862 + $0x6a] sm:$0x3f]
        %v1968 = vld [vmem:[%s1862 + $0x7a] sm:$0xff]
        %v1969 = vld [vmem:[%s1862 + $0x82] sm:$0x3f]
        %v1970 = vld [vmem:[%s1862 + $0x92] sm:$0xff]
        %v1971 = vld [vmem:[%s1862 + $0x9a] sm:$0x3f]
        %v1972 = vld [vmem:[%s1877 + $0x2] sm:$0x1]
        %v1973 = vlaneseq
        %v1974 = vshrl.u32 %v1973, 7
        %v1975 = vsub.s32 0, %v1974
        %v1976 = vrot.slane %v1972, %v1975
        %v1977 = vmul.f32 %v1958, %v1976
        %v1978 = vmul.f32 %v1959, %v1976
        %v1979 = vmul.f32 %v1960, %v1976
        %v1980 = vmul.f32 %v1961, %v1976
        %v1981 = vmul.f32 %v1962, %v1976
        %v1982 = vmul.f32 %v1963, %v1976
        %v1983 = vmul.f32 %v1964, %v1976
        %v1984 = vmul.f32 %v1965, %v1976
        %v1985 = vmul.f32 %v1966, %v1976
        %v1986 = vmul.f32 %v1967, %v1976
        %v1987 = vmul.f32 %v1968, %v1976
        %v1988 = vmul.f32 %v1969, %v1976
        %v1989 = vmul.f32 %v1970, %v1976
        %v1990 = vmul.f32 %v1971, %v1976
        %v1991 = vadd.f32 %v1944, %v1977
        %v1992 = vadd.f32 %v1945, %v1978
        %v1993 = vadd.f32 %v1946, %v1979
        %v1994 = vadd.f32 %v1947, %v1980
        %v1995 = vadd.f32 %v1948, %v1981
        %v1996 = vadd.f32 %v1949, %v1982
        %v1997 = vadd.f32 %v1950, %v1983
        %v1998 = vadd.f32 %v1951, %v1984
        %v1999 = vadd.f32 %v1952, %v1985
        %v2000 = vadd.f32 %v1953, %v1986
        %v2001 = vadd.f32 %v1954, %v1987
        %v2002 = vadd.f32 %v1955, %v1988
        %v2003 = vadd.f32 %v1956, %v1989
        %v2004 = vadd.f32 %v1957, %v1990
        %v2005 = vld [vmem:[%s1862 + $0x3] sm:$0xff]
        %v2006 = vld [vmem:[%s1862 + $0xb] sm:$0x3f]
        %v2007 = vld [vmem:[%s1862 + $0x1b] sm:$0xff]
        %v2008 = vld [vmem:[%s1862 + $0x23] sm:$0x3f]
        %v2009 = vld [vmem:[%s1862 + $0x33] sm:$0xff]
        %v2010 = vld [vmem:[%s1862 + $0x3b] sm:$0x3f]
        %v2011 = vld [vmem:[%s1862 + $0x4b] sm:$0xff]
        %v2012 = vld [vmem:[%s1862 + $0x53] sm:$0x3f]
        %v2013 = vld [vmem:[%s1862 + $0x63] sm:$0xff]
        %v2014 = vld [vmem:[%s1862 + $0x6b] sm:$0x3f]
        %v2015 = vld [vmem:[%s1862 + $0x7b] sm:$0xff]
        %v2016 = vld [vmem:[%s1862 + $0x83] sm:$0x3f]
        %v2017 = vld [vmem:[%s1862 + $0x93] sm:$0xff]
        %v2018 = vld [vmem:[%s1862 + $0x9b] sm:$0x3f]
        %v2019 = vld [vmem:[%s1877 + $0x3] sm:$0x1]
        %v2020 = vlaneseq
        %v2021 = vshrl.u32 %v2020, 7
        %v2022 = vsub.s32 0, %v2021
        %v2023 = vrot.slane %v2019, %v2022
        %v2024 = vmul.f32 %v2005, %v2023
        %v2025 = vmul.f32 %v2006, %v2023
        %v2026 = vmul.f32 %v2007, %v2023
        %v2027 = vmul.f32 %v2008, %v2023
        %v2028 = vmul.f32 %v2009, %v2023
        %v2029 = vmul.f32 %v2010, %v2023
        %v2030 = vmul.f32 %v2011, %v2023
        %v2031 = vmul.f32 %v2012, %v2023
        %v2032 = vmul.f32 %v2013, %v2023
        %v2033 = vmul.f32 %v2014, %v2023
        %v2034 = vmul.f32 %v2015, %v2023
        %v2035 = vmul.f32 %v2016, %v2023
        %v2036 = vmul.f32 %v2017, %v2023
        %v2037 = vmul.f32 %v2018, %v2023
        %v2038 = vadd.f32 %v1991, %v2024
        %v2039 = vadd.f32 %v1992, %v2025
        %v2040 = vadd.f32 %v1993, %v2026
        %v2041 = vadd.f32 %v1994, %v2027
        %v2042 = vadd.f32 %v1995, %v2028
        %v2043 = vadd.f32 %v1996, %v2029
        %v2044 = vadd.f32 %v1997, %v2030
        %v2045 = vadd.f32 %v1998, %v2031
        %v2046 = vadd.f32 %v1999, %v2032
        %v2047 = vadd.f32 %v2000, %v2033
        %v2048 = vadd.f32 %v2001, %v2034
        %v2049 = vadd.f32 %v2002, %v2035
        %v2050 = vadd.f32 %v2003, %v2036
        %v2051 = vadd.f32 %v2004, %v2037
        %v2052 = vld [vmem:[%s1862 + $0x4] sm:$0xff]
        %v2053 = vld [vmem:[%s1862 + $0xc] sm:$0x3f]
        %v2054 = vld [vmem:[%s1862 + $0x1c] sm:$0xff]
        %v2055 = vld [vmem:[%s1862 + $0x24] sm:$0x3f]
        %v2056 = vld [vmem:[%s1862 + $0x34] sm:$0xff]
        %v2057 = vld [vmem:[%s1862 + $0x3c] sm:$0x3f]
        %v2058 = vld [vmem:[%s1862 + $0x4c] sm:$0xff]
        %v2059 = vld [vmem:[%s1862 + $0x54] sm:$0x3f]
        %v2060 = vld [vmem:[%s1862 + $0x64] sm:$0xff]
        %v2061 = vld [vmem:[%s1862 + $0x6c] sm:$0x3f]
        %v2062 = vld [vmem:[%s1862 + $0x7c] sm:$0xff]
        %v2063 = vld [vmem:[%s1862 + $0x84] sm:$0x3f]
        %v2064 = vld [vmem:[%s1862 + $0x94] sm:$0xff]
        %v2065 = vld [vmem:[%s1862 + $0x9c] sm:$0x3f]
        %v2066 = vld [vmem:[%s1877 + $0x4] sm:$0x1]
        %v2067 = vlaneseq
        %v2068 = vshrl.u32 %v2067, 7
        %v2069 = vsub.s32 0, %v2068
        %v2070 = vrot.slane %v2066, %v2069
        %v2071 = vmul.f32 %v2052, %v2070
        %v2072 = vmul.f32 %v2053, %v2070
        %v2073 = vmul.f32 %v2054, %v2070
        %v2074 = vmul.f32 %v2055, %v2070
        %v2075 = vmul.f32 %v2056, %v2070
        %v2076 = vmul.f32 %v2057, %v2070
        %v2077 = vmul.f32 %v2058, %v2070
        %v2078 = vmul.f32 %v2059, %v2070
        %v2079 = vmul.f32 %v2060, %v2070
        %v2080 = vmul.f32 %v2061, %v2070
        %v2081 = vmul.f32 %v2062, %v2070
        %v2082 = vmul.f32 %v2063, %v2070
        %v2083 = vmul.f32 %v2064, %v2070
        %v2084 = vmul.f32 %v2065, %v2070
        %v2085 = vadd.f32 %v2038, %v2071
        %v2086 = vadd.f32 %v2039, %v2072
        %v2087 = vadd.f32 %v2040, %v2073
        %v2088 = vadd.f32 %v2041, %v2074
        %v2089 = vadd.f32 %v2042, %v2075
        %v2090 = vadd.f32 %v2043, %v2076
        %v2091 = vadd.f32 %v2044, %v2077
        %v2092 = vadd.f32 %v2045, %v2078
        %v2093 = vadd.f32 %v2046, %v2079
        %v2094 = vadd.f32 %v2047, %v2080
        %v2095 = vadd.f32 %v2048, %v2081
        %v2096 = vadd.f32 %v2049, %v2082
        %v2097 = vadd.f32 %v2050, %v2083
        %v2098 = vadd.f32 %v2051, %v2084
        %v2099 = vld [vmem:[%s1862 + $0x5] sm:$0xff]
        %v2100 = vld [vmem:[%s1862 + $0xd] sm:$0x3f]
        %v2101 = vld [vmem:[%s1862 + $0x1d] sm:$0xff]
        %v2102 = vld [vmem:[%s1862 + $0x25] sm:$0x3f]
        %v2103 = vld [vmem:[%s1862 + $0x35] sm:$0xff]
        %v2104 = vld [vmem:[%s1862 + $0x3d] sm:$0x3f]
        %v2105 = vld [vmem:[%s1862 + $0x4d] sm:$0xff]
        %v2106 = vld [vmem:[%s1862 + $0x55] sm:$0x3f]
        %v2107 = vld [vmem:[%s1862 + $0x65] sm:$0xff]
        %v2108 = vld [vmem:[%s1862 + $0x6d] sm:$0x3f]
        %v2109 = vld [vmem:[%s1862 + $0x7d] sm:$0xff]
        %v2110 = vld [vmem:[%s1862 + $0x85] sm:$0x3f]
        %v2111 = vld [vmem:[%s1862 + $0x95] sm:$0xff]
        %v2112 = vld [vmem:[%s1862 + $0x9d] sm:$0x3f]
        %v2113 = vld [vmem:[%s1877 + $0x5] sm:$0x1]
        %v2114 = vlaneseq
        %v2115 = vshrl.u32 %v2114, 7
        %v2116 = vsub.s32 0, %v2115
        %v2117 = vrot.slane %v2113, %v2116
        %v2118 = vmul.f32 %v2099, %v2117
        %v2119 = vmul.f32 %v2100, %v2117
        %v2120 = vmul.f32 %v2101, %v2117
        %v2121 = vmul.f32 %v2102, %v2117
        %v2122 = vmul.f32 %v2103, %v2117
        %v2123 = vmul.f32 %v2104, %v2117
        %v2124 = vmul.f32 %v2105, %v2117
        %v2125 = vmul.f32 %v2106, %v2117
        %v2126 = vmul.f32 %v2107, %v2117
        %v2127 = vmul.f32 %v2108, %v2117
        %v2128 = vmul.f32 %v2109, %v2117
        %v2129 = vmul.f32 %v2110, %v2117
        %v2130 = vmul.f32 %v2111, %v2117
        %v2131 = vmul.f32 %v2112, %v2117
        %v2132 = vadd.f32 %v2085, %v2118
        %v2133 = vadd.f32 %v2086, %v2119
        %v2134 = vadd.f32 %v2087, %v2120
        %v2135 = vadd.f32 %v2088, %v2121
        %v2136 = vadd.f32 %v2089, %v2122
        %v2137 = vadd.f32 %v2090, %v2123
        %v2138 = vadd.f32 %v2091, %v2124
        %v2139 = vadd.f32 %v2092, %v2125
        %v2140 = vadd.f32 %v2093, %v2126
        %v2141 = vadd.f32 %v2094, %v2127
        %v2142 = vadd.f32 %v2095, %v2128
        %v2143 = vadd.f32 %v2096, %v2129
        %v2144 = vadd.f32 %v2097, %v2130
        %v2145 = vadd.f32 %v2098, %v2131
        %v2146 = vld [vmem:[%s1862 + $0x6] sm:$0xff]
        %v2147 = vld [vmem:[%s1862 + $0xe] sm:$0x3f]
        %v2148 = vld [vmem:[%s1862 + $0x1e] sm:$0xff]
        %v2149 = vld [vmem:[%s1862 + $0x26] sm:$0x3f]
        %v2150 = vld [vmem:[%s1862 + $0x36] sm:$0xff]
        %v2151 = vld [vmem:[%s1862 + $0x3e] sm:$0x3f]
        %v2152 = vld [vmem:[%s1862 + $0x4e] sm:$0xff]
        %v2153 = vld [vmem:[%s1862 + $0x56] sm:$0x3f]
        %v2154 = vld [vmem:[%s1862 + $0x66] sm:$0xff]
        %v2155 = vld [vmem:[%s1862 + $0x6e] sm:$0x3f]
        %v2156 = vld [vmem:[%s1862 + $0x7e] sm:$0xff]
        %v2157 = vld [vmem:[%s1862 + $0x86] sm:$0x3f]
        %v2158 = vld [vmem:[%s1862 + $0x96] sm:$0xff]
        %v2159 = vld [vmem:[%s1862 + $0x9e] sm:$0x3f]
        %v2160 = vld [vmem:[%s1877 + $0x6] sm:$0x1]
        %v2161 = vlaneseq
        %v2162 = vshrl.u32 %v2161, 7
        %v2163 = vsub.s32 0, %v2162
        %v2164 = vrot.slane %v2160, %v2163
        %v2165 = vmul.f32 %v2146, %v2164
        %v2166 = vmul.f32 %v2147, %v2164
        %v2167 = vmul.f32 %v2148, %v2164
        %v2168 = vmul.f32 %v2149, %v2164
        %v2169 = vmul.f32 %v2150, %v2164
        %v2170 = vmul.f32 %v2151, %v2164
        %v2171 = vmul.f32 %v2152, %v2164
        %v2172 = vmul.f32 %v2153, %v2164
        %v2173 = vmul.f32 %v2154, %v2164
        %v2174 = vmul.f32 %v2155, %v2164
        %v2175 = vmul.f32 %v2156, %v2164
        %v2176 = vmul.f32 %v2157, %v2164
        %v2177 = vmul.f32 %v2158, %v2164
        %v2178 = vmul.f32 %v2159, %v2164
        %v2179 = vadd.f32 %v2132, %v2165
        %v2180 = vadd.f32 %v2133, %v2166
        %v2181 = vadd.f32 %v2134, %v2167
        %v2182 = vadd.f32 %v2135, %v2168
        %v2183 = vadd.f32 %v2136, %v2169
        %v2184 = vadd.f32 %v2137, %v2170
        %v2185 = vadd.f32 %v2138, %v2171
        %v2186 = vadd.f32 %v2139, %v2172
        %v2187 = vadd.f32 %v2140, %v2173
        %v2188 = vadd.f32 %v2141, %v2174
        %v2189 = vadd.f32 %v2142, %v2175
        %v2190 = vadd.f32 %v2143, %v2176
        %v2191 = vadd.f32 %v2144, %v2177
        %v2192 = vadd.f32 %v2145, %v2178
        %s2193 = scalar_lea.vmem [#allocation2], 120
        %v2194 = vld [vmem:[%s2193] sm:$0xff]
        %v2195 = vld [vmem:[%s2193 + $0x8] sm:$0x3f]
        %v2196 = vld [vmem:[%s2193 + $0x18] sm:$0xff]
        %v2197 = vld [vmem:[%s2193 + $0x20] sm:$0x3f]
        %v2198 = vld [vmem:[%s2193 + $0x30] sm:$0xff]
        %v2199 = vld [vmem:[%s2193 + $0x38] sm:$0x3f]
        %v2200 = vld [vmem:[%s2193 + $0x48] sm:$0xff]
        %v2201 = vld [vmem:[%s2193 + $0x50] sm:$0x3f]
        %v2202 = vld [vmem:[%s2193 + $0x60] sm:$0xff]
        %v2203 = vld [vmem:[%s2193 + $0x68] sm:$0x3f]
        %v2204 = vld [vmem:[%s2193 + $0x78] sm:$0xff]
        %v2205 = vld [vmem:[%s2193 + $0x80] sm:$0x3f]
        %v2206 = vld [vmem:[%s2193 + $0x90] sm:$0xff]
        %v2207 = vld [vmem:[%s2193 + $0x98] sm:$0x3f]
        %s2208 = scalar_lea.vmem %s387, 40 [#allocation4]
        %v2209 = vld [vmem:[%s2208] sm:$0x1]
        %v2210 = vlaneseq
        %v2211 = vshrl.u32 %v2210, 7
        %v2212 = vsub.s32 0, %v2211
        %v2213 = vrot.slane %v2209, %v2212
        %v2214 = vmul.f32 %v2194, %v2213
        %v2215 = vmul.f32 %v2195, %v2213
        %v2216 = vmul.f32 %v2196, %v2213
        %v2217 = vmul.f32 %v2197, %v2213
        %v2218 = vmul.f32 %v2198, %v2213
        %v2219 = vmul.f32 %v2199, %v2213
        %v2220 = vmul.f32 %v2200, %v2213
        %v2221 = vmul.f32 %v2201, %v2213
        %v2222 = vmul.f32 %v2202, %v2213
        %v2223 = vmul.f32 %v2203, %v2213
        %v2224 = vmul.f32 %v2204, %v2213
        %v2225 = vmul.f32 %v2205, %v2213
        %v2226 = vmul.f32 %v2206, %v2213
        %v2227 = vmul.f32 %v2207, %v2213
        %v2228 = vadd.f32 %v2179, %v2214
        %v2229 = vadd.f32 %v2180, %v2215
        %v2230 = vadd.f32 %v2181, %v2216
        %v2231 = vadd.f32 %v2182, %v2217
        %v2232 = vadd.f32 %v2183, %v2218
        %v2233 = vadd.f32 %v2184, %v2219
        %v2234 = vadd.f32 %v2185, %v2220
        %v2235 = vadd.f32 %v2186, %v2221
        %v2236 = vadd.f32 %v2187, %v2222
        %v2237 = vadd.f32 %v2188, %v2223
        %v2238 = vadd.f32 %v2189, %v2224
        %v2239 = vadd.f32 %v2190, %v2225
        %v2240 = vadd.f32 %v2191, %v2226
        %v2241 = vadd.f32 %v2192, %v2227
        %v2242 = vld [vmem:[%s2193 + $0x1] sm:$0xff]
        %v2243 = vld [vmem:[%s2193 + $0x9] sm:$0x3f]
        %v2244 = vld [vmem:[%s2193 + $0x19] sm:$0xff]
        %v2245 = vld [vmem:[%s2193 + $0x21] sm:$0x3f]
        %v2246 = vld [vmem:[%s2193 + $0x31] sm:$0xff]
        %v2247 = vld [vmem:[%s2193 + $0x39] sm:$0x3f]
        %v2248 = vld [vmem:[%s2193 + $0x49] sm:$0xff]
        %v2249 = vld [vmem:[%s2193 + $0x51] sm:$0x3f]
        %v2250 = vld [vmem:[%s2193 + $0x61] sm:$0xff]
        %v2251 = vld [vmem:[%s2193 + $0x69] sm:$0x3f]
        %v2252 = vld [vmem:[%s2193 + $0x79] sm:$0xff]
        %v2253 = vld [vmem:[%s2193 + $0x81] sm:$0x3f]
        %v2254 = vld [vmem:[%s2193 + $0x91] sm:$0xff]
        %v2255 = vld [vmem:[%s2193 + $0x99] sm:$0x3f]
        %v2256 = vld [vmem:[%s2208 + $0x1] sm:$0x1]
        %v2257 = vlaneseq
        %v2258 = vshrl.u32 %v2257, 7
        %v2259 = vsub.s32 0, %v2258
        %v2260 = vrot.slane %v2256, %v2259
        %v2261 = vmul.f32 %v2242, %v2260
        %v2262 = vmul.f32 %v2243, %v2260
        %v2263 = vmul.f32 %v2244, %v2260
        %v2264 = vmul.f32 %v2245, %v2260
        %v2265 = vmul.f32 %v2246, %v2260
        %v2266 = vmul.f32 %v2247, %v2260
        %v2267 = vmul.f32 %v2248, %v2260
        %v2268 = vmul.f32 %v2249, %v2260
        %v2269 = vmul.f32 %v2250, %v2260
        %v2270 = vmul.f32 %v2251, %v2260
        %v2271 = vmul.f32 %v2252, %v2260
        %v2272 = vmul.f32 %v2253, %v2260
        %v2273 = vmul.f32 %v2254, %v2260
        %v2274 = vmul.f32 %v2255, %v2260
        %v2275 = vadd.f32 %v2228, %v2261
        %v2276 = vadd.f32 %v2229, %v2262
        %v2277 = vadd.f32 %v2230, %v2263
        %v2278 = vadd.f32 %v2231, %v2264
        %v2279 = vadd.f32 %v2232, %v2265
        %v2280 = vadd.f32 %v2233, %v2266
        %v2281 = vadd.f32 %v2234, %v2267
        %v2282 = vadd.f32 %v2235, %v2268
        %v2283 = vadd.f32 %v2236, %v2269
        %v2284 = vadd.f32 %v2237, %v2270
        %v2285 = vadd.f32 %v2238, %v2271
        %v2286 = vadd.f32 %v2239, %v2272
        %v2287 = vadd.f32 %v2240, %v2273
        %v2288 = vadd.f32 %v2241, %v2274
        %v2289 = vld [vmem:[%s2193 + $0x2] sm:$0xff]
        %v2290 = vld [vmem:[%s2193 + $0xa] sm:$0x3f]
        %v2291 = vld [vmem:[%s2193 + $0x1a] sm:$0xff]
        %v2292 = vld [vmem:[%s2193 + $0x22] sm:$0x3f]
        %v2293 = vld [vmem:[%s2193 + $0x32] sm:$0xff]
        %v2294 = vld [vmem:[%s2193 + $0x3a] sm:$0x3f]
        %v2295 = vld [vmem:[%s2193 + $0x4a] sm:$0xff]
        %v2296 = vld [vmem:[%s2193 + $0x52] sm:$0x3f]
        %v2297 = vld [vmem:[%s2193 + $0x62] sm:$0xff]
        %v2298 = vld [vmem:[%s2193 + $0x6a] sm:$0x3f]
        %v2299 = vld [vmem:[%s2193 + $0x7a] sm:$0xff]
        %v2300 = vld [vmem:[%s2193 + $0x82] sm:$0x3f]
        %v2301 = vld [vmem:[%s2193 + $0x92] sm:$0xff]
        %v2302 = vld [vmem:[%s2193 + $0x9a] sm:$0x3f]
        %v2303 = vld [vmem:[%s2208 + $0x2] sm:$0x1]
        %v2304 = vlaneseq
        %v2305 = vshrl.u32 %v2304, 7
        %v2306 = vsub.s32 0, %v2305
        %v2307 = vrot.slane %v2303, %v2306
        %v2308 = vmul.f32 %v2289, %v2307
        %v2309 = vmul.f32 %v2290, %v2307
        %v2310 = vmul.f32 %v2291, %v2307
        %v2311 = vmul.f32 %v2292, %v2307
        %v2312 = vmul.f32 %v2293, %v2307
        %v2313 = vmul.f32 %v2294, %v2307
        %v2314 = vmul.f32 %v2295, %v2307
        %v2315 = vmul.f32 %v2296, %v2307
        %v2316 = vmul.f32 %v2297, %v2307
        %v2317 = vmul.f32 %v2298, %v2307
        %v2318 = vmul.f32 %v2299, %v2307
        %v2319 = vmul.f32 %v2300, %v2307
        %v2320 = vmul.f32 %v2301, %v2307
        %v2321 = vmul.f32 %v2302, %v2307
        %v2322 = vadd.f32 %v2275, %v2308
        %v2323 = vadd.f32 %v2276, %v2309
        %v2324 = vadd.f32 %v2277, %v2310
        %v2325 = vadd.f32 %v2278, %v2311
        %v2326 = vadd.f32 %v2279, %v2312
        %v2327 = vadd.f32 %v2280, %v2313
        %v2328 = vadd.f32 %v2281, %v2314
        %v2329 = vadd.f32 %v2282, %v2315
        %v2330 = vadd.f32 %v2283, %v2316
        %v2331 = vadd.f32 %v2284, %v2317
        %v2332 = vadd.f32 %v2285, %v2318
        %v2333 = vadd.f32 %v2286, %v2319
        %v2334 = vadd.f32 %v2287, %v2320
        %v2335 = vadd.f32 %v2288, %v2321
        %v2336 = vld [vmem:[%s2193 + $0x3] sm:$0xff]
        %v2337 = vld [vmem:[%s2193 + $0xb] sm:$0x3f]
        %v2338 = vld [vmem:[%s2193 + $0x1b] sm:$0xff]
        %v2339 = vld [vmem:[%s2193 + $0x23] sm:$0x3f]
        %v2340 = vld [vmem:[%s2193 + $0x33] sm:$0xff]
        %v2341 = vld [vmem:[%s2193 + $0x3b] sm:$0x3f]
        %v2342 = vld [vmem:[%s2193 + $0x4b] sm:$0xff]
        %v2343 = vld [vmem:[%s2193 + $0x53] sm:$0x3f]
        %v2344 = vld [vmem:[%s2193 + $0x63] sm:$0xff]
        %v2345 = vld [vmem:[%s2193 + $0x6b] sm:$0x3f]
        %v2346 = vld [vmem:[%s2193 + $0x7b] sm:$0xff]
        %v2347 = vld [vmem:[%s2193 + $0x83] sm:$0x3f]
        %v2348 = vld [vmem:[%s2193 + $0x93] sm:$0xff]
        %v2349 = vld [vmem:[%s2193 + $0x9b] sm:$0x3f]
        %v2350 = vld [vmem:[%s2208 + $0x3] sm:$0x1]
        %v2351 = vlaneseq
        %v2352 = vshrl.u32 %v2351, 7
        %v2353 = vsub.s32 0, %v2352
        %v2354 = vrot.slane %v2350, %v2353
        %v2355 = vmul.f32 %v2336, %v2354
        %v2356 = vmul.f32 %v2337, %v2354
        %v2357 = vmul.f32 %v2338, %v2354
        %v2358 = vmul.f32 %v2339, %v2354
        %v2359 = vmul.f32 %v2340, %v2354
        %v2360 = vmul.f32 %v2341, %v2354
        %v2361 = vmul.f32 %v2342, %v2354
        %v2362 = vmul.f32 %v2343, %v2354
        %v2363 = vmul.f32 %v2344, %v2354
        %v2364 = vmul.f32 %v2345, %v2354
        %v2365 = vmul.f32 %v2346, %v2354
        %v2366 = vmul.f32 %v2347, %v2354
        %v2367 = vmul.f32 %v2348, %v2354
        %v2368 = vmul.f32 %v2349, %v2354
        %v2369 = vadd.f32 %v2322, %v2355
        %v2370 = vadd.f32 %v2323, %v2356
        %v2371 = vadd.f32 %v2324, %v2357
        %v2372 = vadd.f32 %v2325, %v2358
        %v2373 = vadd.f32 %v2326, %v2359
        %v2374 = vadd.f32 %v2327, %v2360
        %v2375 = vadd.f32 %v2328, %v2361
        %v2376 = vadd.f32 %v2329, %v2362
        %v2377 = vadd.f32 %v2330, %v2363
        %v2378 = vadd.f32 %v2331, %v2364
        %v2379 = vadd.f32 %v2332, %v2365
        %v2380 = vadd.f32 %v2333, %v2366
        %v2381 = vadd.f32 %v2334, %v2367
        %v2382 = vadd.f32 %v2335, %v2368
        %v2383 = vld [vmem:[%s2193 + $0x4] sm:$0xff]
        %v2384 = vld [vmem:[%s2193 + $0xc] sm:$0x3f]
        %v2385 = vld [vmem:[%s2193 + $0x1c] sm:$0xff]
        %v2386 = vld [vmem:[%s2193 + $0x24] sm:$0x3f]
        %v2387 = vld [vmem:[%s2193 + $0x34] sm:$0xff]
        %v2388 = vld [vmem:[%s2193 + $0x3c] sm:$0x3f]
        %v2389 = vld [vmem:[%s2193 + $0x4c] sm:$0xff]
        %v2390 = vld [vmem:[%s2193 + $0x54] sm:$0x3f]
        %v2391 = vld [vmem:[%s2193 + $0x64] sm:$0xff]
        %v2392 = vld [vmem:[%s2193 + $0x6c] sm:$0x3f]
        %v2393 = vld [vmem:[%s2193 + $0x7c] sm:$0xff]
        %v2394 = vld [vmem:[%s2193 + $0x84] sm:$0x3f]
        %v2395 = vld [vmem:[%s2193 + $0x94] sm:$0xff]
        %v2396 = vld [vmem:[%s2193 + $0x9c] sm:$0x3f]
        %v2397 = vld [vmem:[%s2208 + $0x4] sm:$0x1]
        %v2398 = vlaneseq
        %v2399 = vshrl.u32 %v2398, 7
        %v2400 = vsub.s32 0, %v2399
        %v2401 = vrot.slane %v2397, %v2400
        %v2402 = vmul.f32 %v2383, %v2401
        %v2403 = vmul.f32 %v2384, %v2401
        %v2404 = vmul.f32 %v2385, %v2401
        %v2405 = vmul.f32 %v2386, %v2401
        %v2406 = vmul.f32 %v2387, %v2401
        %v2407 = vmul.f32 %v2388, %v2401
        %v2408 = vmul.f32 %v2389, %v2401
        %v2409 = vmul.f32 %v2390, %v2401
        %v2410 = vmul.f32 %v2391, %v2401
        %v2411 = vmul.f32 %v2392, %v2401
        %v2412 = vmul.f32 %v2393, %v2401
        %v2413 = vmul.f32 %v2394, %v2401
        %v2414 = vmul.f32 %v2395, %v2401
        %v2415 = vmul.f32 %v2396, %v2401
        %v2416 = vadd.f32 %v2369, %v2402
        %v2417 = vadd.f32 %v2370, %v2403
        %v2418 = vadd.f32 %v2371, %v2404
        %v2419 = vadd.f32 %v2372, %v2405
        %v2420 = vadd.f32 %v2373, %v2406
        %v2421 = vadd.f32 %v2374, %v2407
        %v2422 = vadd.f32 %v2375, %v2408
        %v2423 = vadd.f32 %v2376, %v2409
        %v2424 = vadd.f32 %v2377, %v2410
        %v2425 = vadd.f32 %v2378, %v2411
        %v2426 = vadd.f32 %v2379, %v2412
        %v2427 = vadd.f32 %v2380, %v2413
        %v2428 = vadd.f32 %v2381, %v2414
        %v2429 = vadd.f32 %v2382, %v2415
        %v2430 = vld [vmem:[%s2193 + $0x5] sm:$0xff]
        %v2431 = vld [vmem:[%s2193 + $0xd] sm:$0x3f]
        %v2432 = vld [vmem:[%s2193 + $0x1d] sm:$0xff]
        %v2433 = vld [vmem:[%s2193 + $0x25] sm:$0x3f]
        %v2434 = vld [vmem:[%s2193 + $0x35] sm:$0xff]
        %v2435 = vld [vmem:[%s2193 + $0x3d] sm:$0x3f]
        %v2436 = vld [vmem:[%s2193 + $0x4d] sm:$0xff]
        %v2437 = vld [vmem:[%s2193 + $0x55] sm:$0x3f]
        %v2438 = vld [vmem:[%s2193 + $0x65] sm:$0xff]
        %v2439 = vld [vmem:[%s2193 + $0x6d] sm:$0x3f]
        %v2440 = vld [vmem:[%s2193 + $0x7d] sm:$0xff]
        %v2441 = vld [vmem:[%s2193 + $0x85] sm:$0x3f]
        %v2442 = vld [vmem:[%s2193 + $0x95] sm:$0xff]
        %v2443 = vld [vmem:[%s2193 + $0x9d] sm:$0x3f]
        %v2444 = vld [vmem:[%s2208 + $0x5] sm:$0x1]
        %v2445 = vlaneseq
        %v2446 = vshrl.u32 %v2445, 7
        %v2447 = vsub.s32 0, %v2446
        %v2448 = vrot.slane %v2444, %v2447
        %v2449 = vmul.f32 %v2430, %v2448
        %v2450 = vmul.f32 %v2431, %v2448
        %v2451 = vmul.f32 %v2432, %v2448
        %v2452 = vmul.f32 %v2433, %v2448
        %v2453 = vmul.f32 %v2434, %v2448
        %v2454 = vmul.f32 %v2435, %v2448
        %v2455 = vmul.f32 %v2436, %v2448
        %v2456 = vmul.f32 %v2437, %v2448
        %v2457 = vmul.f32 %v2438, %v2448
        %v2458 = vmul.f32 %v2439, %v2448
        %v2459 = vmul.f32 %v2440, %v2448
        %v2460 = vmul.f32 %v2441, %v2448
        %v2461 = vmul.f32 %v2442, %v2448
        %v2462 = vmul.f32 %v2443, %v2448
        %v2463 = vadd.f32 %v2416, %v2449
        %v2464 = vadd.f32 %v2417, %v2450
        %v2465 = vadd.f32 %v2418, %v2451
        %v2466 = vadd.f32 %v2419, %v2452
        %v2467 = vadd.f32 %v2420, %v2453
        %v2468 = vadd.f32 %v2421, %v2454
        %v2469 = vadd.f32 %v2422, %v2455
        %v2470 = vadd.f32 %v2423, %v2456
        %v2471 = vadd.f32 %v2424, %v2457
        %v2472 = vadd.f32 %v2425, %v2458
        %v2473 = vadd.f32 %v2426, %v2459
        %v2474 = vadd.f32 %v2427, %v2460
        %v2475 = vadd.f32 %v2428, %v2461
        %v2476 = vadd.f32 %v2429, %v2462
        %v2477 = vld [vmem:[%s2193 + $0x6] sm:$0xff]
        %v2478 = vld [vmem:[%s2193 + $0xe] sm:$0x3f]
        %v2479 = vld [vmem:[%s2193 + $0x1e] sm:$0xff]
        %v2480 = vld [vmem:[%s2193 + $0x26] sm:$0x3f]
        %v2481 = vld [vmem:[%s2193 + $0x36] sm:$0xff]
        %v2482 = vld [vmem:[%s2193 + $0x3e] sm:$0x3f]
        %v2483 = vld [vmem:[%s2193 + $0x4e] sm:$0xff]
        %v2484 = vld [vmem:[%s2193 + $0x56] sm:$0x3f]
        %v2485 = vld [vmem:[%s2193 + $0x66] sm:$0xff]
        %v2486 = vld [vmem:[%s2193 + $0x6e] sm:$0x3f]
        %v2487 = vld [vmem:[%s2193 + $0x7e] sm:$0xff]
        %v2488 = vld [vmem:[%s2193 + $0x86] sm:$0x3f]
        %v2489 = vld [vmem:[%s2193 + $0x96] sm:$0xff]
        %v2490 = vld [vmem:[%s2193 + $0x9e] sm:$0x3f]
        %v2491 = vld [vmem:[%s2208 + $0x6] sm:$0x1]
        %v2492 = vlaneseq
        %v2493 = vshrl.u32 %v2492, 7
        %v2494 = vsub.s32 0, %v2493
        %v2495 = vrot.slane %v2491, %v2494
        %v2496 = vmul.f32 %v2477, %v2495
        %v2497 = vmul.f32 %v2478, %v2495
        %v2498 = vmul.f32 %v2479, %v2495
        %v2499 = vmul.f32 %v2480, %v2495
        %v2500 = vmul.f32 %v2481, %v2495
        %v2501 = vmul.f32 %v2482, %v2495
        %v2502 = vmul.f32 %v2483, %v2495
        %v2503 = vmul.f32 %v2484, %v2495
        %v2504 = vmul.f32 %v2485, %v2495
        %v2505 = vmul.f32 %v2486, %v2495
        %v2506 = vmul.f32 %v2487, %v2495
        %v2507 = vmul.f32 %v2488, %v2495
        %v2508 = vmul.f32 %v2489, %v2495
        %v2509 = vmul.f32 %v2490, %v2495
        %v2510 = vadd.f32 %v2463, %v2496
        %v2511 = vadd.f32 %v2464, %v2497
        %v2512 = vadd.f32 %v2465, %v2498
        %v2513 = vadd.f32 %v2466, %v2499
        %v2514 = vadd.f32 %v2467, %v2500
        %v2515 = vadd.f32 %v2468, %v2501
        %v2516 = vadd.f32 %v2469, %v2502
        %v2517 = vadd.f32 %v2470, %v2503
        %v2518 = vadd.f32 %v2471, %v2504
        %v2519 = vadd.f32 %v2472, %v2505
        %v2520 = vadd.f32 %v2473, %v2506
        %v2521 = vadd.f32 %v2474, %v2507
        %v2522 = vadd.f32 %v2475, %v2508
        %v2523 = vadd.f32 %v2476, %v2509
        %s2524 = scalar_lea.vmem [#allocation2], 144
        %v2525 = vld [vmem:[%s2524] sm:$0xff]
        %v2526 = vld [vmem:[%s2524 + $0x8] sm:$0x3f]
        %v2527 = vld [vmem:[%s2524 + $0x18] sm:$0xff]
        %v2528 = vld [vmem:[%s2524 + $0x20] sm:$0x3f]
        %v2529 = vld [vmem:[%s2524 + $0x30] sm:$0xff]
        %v2530 = vld [vmem:[%s2524 + $0x38] sm:$0x3f]
        %v2531 = vld [vmem:[%s2524 + $0x48] sm:$0xff]
        %v2532 = vld [vmem:[%s2524 + $0x50] sm:$0x3f]
        %v2533 = vld [vmem:[%s2524 + $0x60] sm:$0xff]
        %v2534 = vld [vmem:[%s2524 + $0x68] sm:$0x3f]
        %v2535 = vld [vmem:[%s2524 + $0x78] sm:$0xff]
        %v2536 = vld [vmem:[%s2524 + $0x80] sm:$0x3f]
        %v2537 = vld [vmem:[%s2524 + $0x90] sm:$0xff]
        %v2538 = vld [vmem:[%s2524 + $0x98] sm:$0x3f]
        %s2539 = scalar_lea.vmem %s387, 48 [#allocation4]
        %v2540 = vld [vmem:[%s2539] sm:$0x1]
        %v2541 = vlaneseq
        %v2542 = vshrl.u32 %v2541, 7
        %v2543 = vsub.s32 0, %v2542
        %v2544 = vrot.slane %v2540, %v2543
        %v2545 = vmul.f32 %v2525, %v2544
        %v2546 = vmul.f32 %v2526, %v2544
        %v2547 = vmul.f32 %v2527, %v2544
        %v2548 = vmul.f32 %v2528, %v2544
        %v2549 = vmul.f32 %v2529, %v2544
        %v2550 = vmul.f32 %v2530, %v2544
        %v2551 = vmul.f32 %v2531, %v2544
        %v2552 = vmul.f32 %v2532, %v2544
        %v2553 = vmul.f32 %v2533, %v2544
        %v2554 = vmul.f32 %v2534, %v2544
        %v2555 = vmul.f32 %v2535, %v2544
        %v2556 = vmul.f32 %v2536, %v2544
        %v2557 = vmul.f32 %v2537, %v2544
        %v2558 = vmul.f32 %v2538, %v2544
        %v2559 = vadd.f32 %v2510, %v2545
        %v2560 = vadd.f32 %v2511, %v2546
        %v2561 = vadd.f32 %v2512, %v2547
        %v2562 = vadd.f32 %v2513, %v2548
        %v2563 = vadd.f32 %v2514, %v2549
        %v2564 = vadd.f32 %v2515, %v2550
        %v2565 = vadd.f32 %v2516, %v2551
        %v2566 = vadd.f32 %v2517, %v2552
        %v2567 = vadd.f32 %v2518, %v2553
        %v2568 = vadd.f32 %v2519, %v2554
        %v2569 = vadd.f32 %v2520, %v2555
        %v2570 = vadd.f32 %v2521, %v2556
        %v2571 = vadd.f32 %v2522, %v2557
        %v2572 = vadd.f32 %v2523, %v2558
        %v2573 = vld [vmem:[%s2524 + $0x1] sm:$0xff]
        %v2574 = vld [vmem:[%s2524 + $0x9] sm:$0x3f]
        %v2575 = vld [vmem:[%s2524 + $0x19] sm:$0xff]
        %v2576 = vld [vmem:[%s2524 + $0x21] sm:$0x3f]
        %v2577 = vld [vmem:[%s2524 + $0x31] sm:$0xff]
        %v2578 = vld [vmem:[%s2524 + $0x39] sm:$0x3f]
        %v2579 = vld [vmem:[%s2524 + $0x49] sm:$0xff]
        %v2580 = vld [vmem:[%s2524 + $0x51] sm:$0x3f]
        %v2581 = vld [vmem:[%s2524 + $0x61] sm:$0xff]
        %v2582 = vld [vmem:[%s2524 + $0x69] sm:$0x3f]
        %v2583 = vld [vmem:[%s2524 + $0x79] sm:$0xff]
        %v2584 = vld [vmem:[%s2524 + $0x81] sm:$0x3f]
        %v2585 = vld [vmem:[%s2524 + $0x91] sm:$0xff]
        %v2586 = vld [vmem:[%s2524 + $0x99] sm:$0x3f]
        %v2587 = vld [vmem:[%s2539 + $0x1] sm:$0x1]
        %v2588 = vlaneseq
        %v2589 = vshrl.u32 %v2588, 7
        %v2590 = vsub.s32 0, %v2589
        %v2591 = vrot.slane %v2587, %v2590
        %v2592 = vmul.f32 %v2573, %v2591
        %v2593 = vmul.f32 %v2574, %v2591
        %v2594 = vmul.f32 %v2575, %v2591
        %v2595 = vmul.f32 %v2576, %v2591
        %v2596 = vmul.f32 %v2577, %v2591
        %v2597 = vmul.f32 %v2578, %v2591
        %v2598 = vmul.f32 %v2579, %v2591
        %v2599 = vmul.f32 %v2580, %v2591
        %v2600 = vmul.f32 %v2581, %v2591
        %v2601 = vmul.f32 %v2582, %v2591
        %v2602 = vmul.f32 %v2583, %v2591
        %v2603 = vmul.f32 %v2584, %v2591
        %v2604 = vmul.f32 %v2585, %v2591
        %v2605 = vmul.f32 %v2586, %v2591
        %v2606 = vadd.f32 %v2559, %v2592
        %v2607 = vadd.f32 %v2560, %v2593
        %v2608 = vadd.f32 %v2561, %v2594
        %v2609 = vadd.f32 %v2562, %v2595
        %v2610 = vadd.f32 %v2563, %v2596
        %v2611 = vadd.f32 %v2564, %v2597
        %v2612 = vadd.f32 %v2565, %v2598
        %v2613 = vadd.f32 %v2566, %v2599
        %v2614 = vadd.f32 %v2567, %v2600
        %v2615 = vadd.f32 %v2568, %v2601
        %v2616 = vadd.f32 %v2569, %v2602
        %v2617 = vadd.f32 %v2570, %v2603
        %v2618 = vadd.f32 %v2571, %v2604
        %v2619 = vadd.f32 %v2572, %v2605
        %v2620 = vld [vmem:[%s2524 + $0x2] sm:$0xff]
        %v2621 = vld [vmem:[%s2524 + $0xa] sm:$0x3f]
        %v2622 = vld [vmem:[%s2524 + $0x1a] sm:$0xff]
        %v2623 = vld [vmem:[%s2524 + $0x22] sm:$0x3f]
        %v2624 = vld [vmem:[%s2524 + $0x32] sm:$0xff]
        %v2625 = vld [vmem:[%s2524 + $0x3a] sm:$0x3f]
        %v2626 = vld [vmem:[%s2524 + $0x4a] sm:$0xff]
        %v2627 = vld [vmem:[%s2524 + $0x52] sm:$0x3f]
        %v2628 = vld [vmem:[%s2524 + $0x62] sm:$0xff]
        %v2629 = vld [vmem:[%s2524 + $0x6a] sm:$0x3f]
        %v2630 = vld [vmem:[%s2524 + $0x7a] sm:$0xff]
        %v2631 = vld [vmem:[%s2524 + $0x82] sm:$0x3f]
        %v2632 = vld [vmem:[%s2524 + $0x92] sm:$0xff]
        %v2633 = vld [vmem:[%s2524 + $0x9a] sm:$0x3f]
        %v2634 = vld [vmem:[%s2539 + $0x2] sm:$0x1]
        %v2635 = vlaneseq
        %v2636 = vshrl.u32 %v2635, 7
        %v2637 = vsub.s32 0, %v2636
        %v2638 = vrot.slane %v2634, %v2637
        %v2639 = vmul.f32 %v2620, %v2638
        %v2640 = vmul.f32 %v2621, %v2638
        %v2641 = vmul.f32 %v2622, %v2638
        %v2642 = vmul.f32 %v2623, %v2638
        %v2643 = vmul.f32 %v2624, %v2638
        %v2644 = vmul.f32 %v2625, %v2638
        %v2645 = vmul.f32 %v2626, %v2638
        %v2646 = vmul.f32 %v2627, %v2638
        %v2647 = vmul.f32 %v2628, %v2638
        %v2648 = vmul.f32 %v2629, %v2638
        %v2649 = vmul.f32 %v2630, %v2638
        %v2650 = vmul.f32 %v2631, %v2638
        %v2651 = vmul.f32 %v2632, %v2638
        %v2652 = vmul.f32 %v2633, %v2638
        %v2653 = vadd.f32 %v2606, %v2639
        %v2654 = vadd.f32 %v2607, %v2640
        %v2655 = vadd.f32 %v2608, %v2641
        %v2656 = vadd.f32 %v2609, %v2642
        %v2657 = vadd.f32 %v2610, %v2643
        %v2658 = vadd.f32 %v2611, %v2644
        %v2659 = vadd.f32 %v2612, %v2645
        %v2660 = vadd.f32 %v2613, %v2646
        %v2661 = vadd.f32 %v2614, %v2647
        %v2662 = vadd.f32 %v2615, %v2648
        %v2663 = vadd.f32 %v2616, %v2649
        %v2664 = vadd.f32 %v2617, %v2650
        %v2665 = vadd.f32 %v2618, %v2651
        %v2666 = vadd.f32 %v2619, %v2652
        %v2667 = vld [vmem:[%s2524 + $0x3] sm:$0xff]
        %v2668 = vld [vmem:[%s2524 + $0xb] sm:$0x3f]
        %v2669 = vld [vmem:[%s2524 + $0x1b] sm:$0xff]
        %v2670 = vld [vmem:[%s2524 + $0x23] sm:$0x3f]
        %v2671 = vld [vmem:[%s2524 + $0x33] sm:$0xff]
        %v2672 = vld [vmem:[%s2524 + $0x3b] sm:$0x3f]
        %v2673 = vld [vmem:[%s2524 + $0x4b] sm:$0xff]
        %v2674 = vld [vmem:[%s2524 + $0x53] sm:$0x3f]
        %v2675 = vld [vmem:[%s2524 + $0x63] sm:$0xff]
        %v2676 = vld [vmem:[%s2524 + $0x6b] sm:$0x3f]
        %v2677 = vld [vmem:[%s2524 + $0x7b] sm:$0xff]
        %v2678 = vld [vmem:[%s2524 + $0x83] sm:$0x3f]
        %v2679 = vld [vmem:[%s2524 + $0x93] sm:$0xff]
        %v2680 = vld [vmem:[%s2524 + $0x9b] sm:$0x3f]
        %v2681 = vld [vmem:[%s2539 + $0x3] sm:$0x1]
        %v2682 = vlaneseq
        %v2683 = vshrl.u32 %v2682, 7
        %v2684 = vsub.s32 0, %v2683
        %v2685 = vrot.slane %v2681, %v2684
        %v2686 = vmul.f32 %v2667, %v2685
        %v2687 = vmul.f32 %v2668, %v2685
        %v2688 = vmul.f32 %v2669, %v2685
        %v2689 = vmul.f32 %v2670, %v2685
        %v2690 = vmul.f32 %v2671, %v2685
        %v2691 = vmul.f32 %v2672, %v2685
        %v2692 = vmul.f32 %v2673, %v2685
        %v2693 = vmul.f32 %v2674, %v2685
        %v2694 = vmul.f32 %v2675, %v2685
        %v2695 = vmul.f32 %v2676, %v2685
        %v2696 = vmul.f32 %v2677, %v2685
        %v2697 = vmul.f32 %v2678, %v2685
        %v2698 = vmul.f32 %v2679, %v2685
        %v2699 = vmul.f32 %v2680, %v2685
        %v2700 = vadd.f32 %v2653, %v2686
        %v2701 = vadd.f32 %v2654, %v2687
        %v2702 = vadd.f32 %v2655, %v2688
        %v2703 = vadd.f32 %v2656, %v2689
        %v2704 = vadd.f32 %v2657, %v2690
        %v2705 = vadd.f32 %v2658, %v2691
        %v2706 = vadd.f32 %v2659, %v2692
        %v2707 = vadd.f32 %v2660, %v2693
        %v2708 = vadd.f32 %v2661, %v2694
        %v2709 = vadd.f32 %v2662, %v2695
        %v2710 = vadd.f32 %v2663, %v2696
        %v2711 = vadd.f32 %v2664, %v2697
        %v2712 = vadd.f32 %v2665, %v2698
        %v2713 = vadd.f32 %v2666, %v2699
        %v2714 = vld [vmem:[%s2524 + $0x4] sm:$0xff]
        %v2715 = vld [vmem:[%s2524 + $0xc] sm:$0x3f]
        %v2716 = vld [vmem:[%s2524 + $0x1c] sm:$0xff]
        %v2717 = vld [vmem:[%s2524 + $0x24] sm:$0x3f]
        %v2718 = vld [vmem:[%s2524 + $0x34] sm:$0xff]
        %v2719 = vld [vmem:[%s2524 + $0x3c] sm:$0x3f]
        %v2720 = vld [vmem:[%s2524 + $0x4c] sm:$0xff]
        %v2721 = vld [vmem:[%s2524 + $0x54] sm:$0x3f]
        %v2722 = vld [vmem:[%s2524 + $0x64] sm:$0xff]
        %v2723 = vld [vmem:[%s2524 + $0x6c] sm:$0x3f]
        %v2724 = vld [vmem:[%s2524 + $0x7c] sm:$0xff]
        %v2725 = vld [vmem:[%s2524 + $0x84] sm:$0x3f]
        %v2726 = vld [vmem:[%s2524 + $0x94] sm:$0xff]
        %v2727 = vld [vmem:[%s2524 + $0x9c] sm:$0x3f]
        %v2728 = vld [vmem:[%s2539 + $0x4] sm:$0x1]
        %v2729 = vlaneseq
        %v2730 = vshrl.u32 %v2729, 7
        %v2731 = vsub.s32 0, %v2730
        %v2732 = vrot.slane %v2728, %v2731
        %v2733 = vmul.f32 %v2714, %v2732
        %v2734 = vmul.f32 %v2715, %v2732
        %v2735 = vmul.f32 %v2716, %v2732
        %v2736 = vmul.f32 %v2717, %v2732
        %v2737 = vmul.f32 %v2718, %v2732
        %v2738 = vmul.f32 %v2719, %v2732
        %v2739 = vmul.f32 %v2720, %v2732
        %v2740 = vmul.f32 %v2721, %v2732
        %v2741 = vmul.f32 %v2722, %v2732
        %v2742 = vmul.f32 %v2723, %v2732
        %v2743 = vmul.f32 %v2724, %v2732
        %v2744 = vmul.f32 %v2725, %v2732
        %v2745 = vmul.f32 %v2726, %v2732
        %v2746 = vmul.f32 %v2727, %v2732
        %v2747 = vadd.f32 %v2700, %v2733
        %v2748 = vadd.f32 %v2701, %v2734
        %v2749 = vadd.f32 %v2702, %v2735
        %v2750 = vadd.f32 %v2703, %v2736
        %v2751 = vadd.f32 %v2704, %v2737
        %v2752 = vadd.f32 %v2705, %v2738
        %v2753 = vadd.f32 %v2706, %v2739
        %v2754 = vadd.f32 %v2707, %v2740
        %v2755 = vadd.f32 %v2708, %v2741
        %v2756 = vadd.f32 %v2709, %v2742
        %v2757 = vadd.f32 %v2710, %v2743
        %v2758 = vadd.f32 %v2711, %v2744
        %v2759 = vadd.f32 %v2712, %v2745
        %v2760 = vadd.f32 %v2713, %v2746
        %v2761 = vld [vmem:[%s2524 + $0x5] sm:$0xff]
        %v2762 = vld [vmem:[%s2524 + $0xd] sm:$0x3f]
        %v2763 = vld [vmem:[%s2524 + $0x1d] sm:$0xff]
        %v2764 = vld [vmem:[%s2524 + $0x25] sm:$0x3f]
        %v2765 = vld [vmem:[%s2524 + $0x35] sm:$0xff]
        %v2766 = vld [vmem:[%s2524 + $0x3d] sm:$0x3f]
        %v2767 = vld [vmem:[%s2524 + $0x4d] sm:$0xff]
        %v2768 = vld [vmem:[%s2524 + $0x55] sm:$0x3f]
        %v2769 = vld [vmem:[%s2524 + $0x65] sm:$0xff]
        %v2770 = vld [vmem:[%s2524 + $0x6d] sm:$0x3f]
        %v2771 = vld [vmem:[%s2524 + $0x7d] sm:$0xff]
        %v2772 = vld [vmem:[%s2524 + $0x85] sm:$0x3f]
        %v2773 = vld [vmem:[%s2524 + $0x95] sm:$0xff]
        %v2774 = vld [vmem:[%s2524 + $0x9d] sm:$0x3f]
        %v2775 = vld [vmem:[%s2539 + $0x5] sm:$0x1]
        %v2776 = vlaneseq
        %v2777 = vshrl.u32 %v2776, 7
        %v2778 = vsub.s32 0, %v2777
        %v2779 = vrot.slane %v2775, %v2778
        %v2780 = vmul.f32 %v2761, %v2779
        %v2781 = vmul.f32 %v2762, %v2779
        %v2782 = vmul.f32 %v2763, %v2779
        %v2783 = vmul.f32 %v2764, %v2779
        %v2784 = vmul.f32 %v2765, %v2779
        %v2785 = vmul.f32 %v2766, %v2779
        %v2786 = vmul.f32 %v2767, %v2779
        %v2787 = vmul.f32 %v2768, %v2779
        %v2788 = vmul.f32 %v2769, %v2779
        %v2789 = vmul.f32 %v2770, %v2779
        %v2790 = vmul.f32 %v2771, %v2779
        %v2791 = vmul.f32 %v2772, %v2779
        %v2792 = vmul.f32 %v2773, %v2779
        %v2793 = vmul.f32 %v2774, %v2779
        %v2794 = vadd.f32 %v2747, %v2780
        %v2795 = vadd.f32 %v2748, %v2781
        %v2796 = vadd.f32 %v2749, %v2782
        %v2797 = vadd.f32 %v2750, %v2783
        %v2798 = vadd.f32 %v2751, %v2784
        %v2799 = vadd.f32 %v2752, %v2785
        %v2800 = vadd.f32 %v2753, %v2786
        %v2801 = vadd.f32 %v2754, %v2787
        %v2802 = vadd.f32 %v2755, %v2788
        %v2803 = vadd.f32 %v2756, %v2789
        %v2804 = vadd.f32 %v2757, %v2790
        %v2805 = vadd.f32 %v2758, %v2791
        %v2806 = vadd.f32 %v2759, %v2792
        %v2807 = vadd.f32 %v2760, %v2793
        %v2808 = vld [vmem:[%s2524 + $0x6] sm:$0xff]
        %v2809 = vld [vmem:[%s2524 + $0xe] sm:$0x3f]
        %v2810 = vld [vmem:[%s2524 + $0x1e] sm:$0xff]
        %v2811 = vld [vmem:[%s2524 + $0x26] sm:$0x3f]
        %v2812 = vld [vmem:[%s2524 + $0x36] sm:$0xff]
        %v2813 = vld [vmem:[%s2524 + $0x3e] sm:$0x3f]
        %v2814 = vld [vmem:[%s2524 + $0x4e] sm:$0xff]
        %v2815 = vld [vmem:[%s2524 + $0x56] sm:$0x3f]
        %v2816 = vld [vmem:[%s2524 + $0x66] sm:$0xff]
        %v2817 = vld [vmem:[%s2524 + $0x6e] sm:$0x3f]
        %v2818 = vld [vmem:[%s2524 + $0x7e] sm:$0xff]
        %v2819 = vld [vmem:[%s2524 + $0x86] sm:$0x3f]
        %v2820 = vld [vmem:[%s2524 + $0x96] sm:$0xff]
        %v2821 = vld [vmem:[%s2524 + $0x9e] sm:$0x3f]
        %v2822 = vld [vmem:[%s2539 + $0x6] sm:$0x1]
        %v2823 = vlaneseq
        %v2824 = vshrl.u32 %v2823, 7
        %v2825 = vsub.s32 0, %v2824
        %v2826 = vrot.slane %v2822, %v2825
        %v2827 = vmul.f32 %v2808, %v2826
        %v2828 = vmul.f32 %v2809, %v2826
        %v2829 = vmul.f32 %v2810, %v2826
        %v2830 = vmul.f32 %v2811, %v2826
        %v2831 = vmul.f32 %v2812, %v2826
        %v2832 = vmul.f32 %v2813, %v2826
        %v2833 = vmul.f32 %v2814, %v2826
        %v2834 = vmul.f32 %v2815, %v2826
        %v2835 = vmul.f32 %v2816, %v2826
        %v2836 = vmul.f32 %v2817, %v2826
        %v2837 = vmul.f32 %v2818, %v2826
        %v2838 = vmul.f32 %v2819, %v2826
        %v2839 = vmul.f32 %v2820, %v2826
        %v2840 = vmul.f32 %v2821, %v2826
        %v2841 = vadd.f32 %v2794, %v2827
        %v2842 = vadd.f32 %v2795, %v2828
        %v2843 = vadd.f32 %v2796, %v2829
        %v2844 = vadd.f32 %v2797, %v2830
        %v2845 = vadd.f32 %v2798, %v2831
        %v2846 = vadd.f32 %v2799, %v2832
        %v2847 = vadd.f32 %v2800, %v2833
        %v2848 = vadd.f32 %v2801, %v2834
        %v2849 = vadd.f32 %v2802, %v2835
        %v2850 = vadd.f32 %v2803, %v2836
        %v2851 = vadd.f32 %v2804, %v2837
        %v2852 = vadd.f32 %v2805, %v2838
        %v2853 = vadd.f32 %v2806, %v2839
        %v2854 = vadd.f32 %v2807, %v2840
        %2855 = vst [vmem:[%s413] sm:$0xff] %v2841
        %2856 = vst [vmem:[%s413 + $0x8] sm:$0x3f] %v2842
        %2857 = vst [vmem:[%s413 + $0x10] sm:$0xff] %v2843
        %2858 = vst [vmem:[%s413 + $0x18] sm:$0x3f] %v2844
        %2859 = vst [vmem:[%s413 + $0x20] sm:$0xff] %v2845
        %2860 = vst [vmem:[%s413 + $0x28] sm:$0x3f] %v2846
        %2861 = vst [vmem:[%s413 + $0x30] sm:$0xff] %v2847
        %2862 = vst [vmem:[%s413 + $0x38] sm:$0x3f] %v2848
        %2863 = vst [vmem:[%s413 + $0x40] sm:$0xff] %v2849
        %2864 = vst [vmem:[%s413 + $0x48] sm:$0x3f] %v2850
        %2865 = vst [vmem:[%s413 + $0x50] sm:$0xff] %v2851
        %2866 = vst [vmem:[%s413 + $0x58] sm:$0x3f] %v2852
        %2867 = vst [vmem:[%s413 + $0x60] sm:$0xff] %v2853
        %2868 = vst [vmem:[%s413 + $0x68] sm:$0x3f] %v2854
        %s2869 = scalar_lea.vmem [#allocation2], 168
        %v2870 = vld [vmem:[%s2869] sm:$0xff]
        %v2871 = vld [vmem:[%s2869 + $0x8] sm:$0x3f]
        %v2872 = vld [vmem:[%s2869 + $0x18] sm:$0xff]
        %v2873 = vld [vmem:[%s2869 + $0x20] sm:$0x3f]
        %v2874 = vld [vmem:[%s2869 + $0x30] sm:$0xff]
        %v2875 = vld [vmem:[%s2869 + $0x38] sm:$0x3f]
        %v2876 = vld [vmem:[%s2869 + $0x48] sm:$0xff]
        %v2877 = vld [vmem:[%s2869 + $0x50] sm:$0x3f]
        %v2878 = vld [vmem:[%s2869 + $0x60] sm:$0xff]
        %v2879 = vld [vmem:[%s2869 + $0x68] sm:$0x3f]
        %v2880 = vld [vmem:[%s2869 + $0x78] sm:$0xff]
        %v2881 = vld [vmem:[%s2869 + $0x80] sm:$0x3f]
        %v2882 = vld [vmem:[%s2869 + $0x90] sm:$0xff]
        %v2883 = vld [vmem:[%s2869 + $0x98] sm:$0x3f]
        %v2884 = vld [vmem:[%s387] sm:$0x1]
        %v2885 = vlaneseq
        %v2886 = vshrl.u32 %v2885, 7
        %v2887 = vsub.s32 0, %v2886
        %v2888 = vrot.slane %v2884, %v2887
        %v2889 = vmul.f32 %v2870, %v2888
        %v2890 = vmul.f32 %v2871, %v2888
        %v2891 = vmul.f32 %v2872, %v2888
        %v2892 = vmul.f32 %v2873, %v2888
        %v2893 = vmul.f32 %v2874, %v2888
        %v2894 = vmul.f32 %v2875, %v2888
        %v2895 = vmul.f32 %v2876, %v2888
        %v2896 = vmul.f32 %v2877, %v2888
        %v2897 = vmul.f32 %v2878, %v2888
        %v2898 = vmul.f32 %v2879, %v2888
        %v2899 = vmul.f32 %v2880, %v2888
        %v2900 = vmul.f32 %v2881, %v2888
        %v2901 = vmul.f32 %v2882, %v2888
        %v2902 = vmul.f32 %v2883, %v2888
        %v2903 = vadd.f32 %v539, %v2889
        %v2904 = vadd.f32 %v539, %v2890
        %v2905 = vadd.f32 %v539, %v2891
        %v2906 = vadd.f32 %v539, %v2892
        %v2907 = vadd.f32 %v539, %v2893
        %v2908 = vadd.f32 %v539, %v2894
        %v2909 = vadd.f32 %v539, %v2895
        %v2910 = vadd.f32 %v539, %v2896
        %v2911 = vadd.f32 %v539, %v2897
        %v2912 = vadd.f32 %v539, %v2898
        %v2913 = vadd.f32 %v539, %v2899
        %v2914 = vadd.f32 %v539, %v2900
        %v2915 = vadd.f32 %v539, %v2901
        %v2916 = vadd.f32 %v539, %v2902
        %v2917 = vld [vmem:[%s2869 + $0x1] sm:$0xff]
        %v2918 = vld [vmem:[%s2869 + $0x9] sm:$0x3f]
        %v2919 = vld [vmem:[%s2869 + $0x19] sm:$0xff]
        %v2920 = vld [vmem:[%s2869 + $0x21] sm:$0x3f]
        %v2921 = vld [vmem:[%s2869 + $0x31] sm:$0xff]
        %v2922 = vld [vmem:[%s2869 + $0x39] sm:$0x3f]
        %v2923 = vld [vmem:[%s2869 + $0x49] sm:$0xff]
        %v2924 = vld [vmem:[%s2869 + $0x51] sm:$0x3f]
        %v2925 = vld [vmem:[%s2869 + $0x61] sm:$0xff]
        %v2926 = vld [vmem:[%s2869 + $0x69] sm:$0x3f]
        %v2927 = vld [vmem:[%s2869 + $0x79] sm:$0xff]
        %v2928 = vld [vmem:[%s2869 + $0x81] sm:$0x3f]
        %v2929 = vld [vmem:[%s2869 + $0x91] sm:$0xff]
        %v2930 = vld [vmem:[%s2869 + $0x99] sm:$0x3f]
        %v2931 = vld [vmem:[%s387 + $0x1] sm:$0x1]
        %v2932 = vlaneseq
        %v2933 = vshrl.u32 %v2932, 7
        %v2934 = vsub.s32 0, %v2933
        %v2935 = vrot.slane %v2931, %v2934
        %v2936 = vmul.f32 %v2917, %v2935
        %v2937 = vmul.f32 %v2918, %v2935
        %v2938 = vmul.f32 %v2919, %v2935
        %v2939 = vmul.f32 %v2920, %v2935
        %v2940 = vmul.f32 %v2921, %v2935
        %v2941 = vmul.f32 %v2922, %v2935
        %v2942 = vmul.f32 %v2923, %v2935
        %v2943 = vmul.f32 %v2924, %v2935
        %v2944 = vmul.f32 %v2925, %v2935
        %v2945 = vmul.f32 %v2926, %v2935
        %v2946 = vmul.f32 %v2927, %v2935
        %v2947 = vmul.f32 %v2928, %v2935
        %v2948 = vmul.f32 %v2929, %v2935
        %v2949 = vmul.f32 %v2930, %v2935
        %v2950 = vadd.f32 %v2903, %v2936
        %v2951 = vadd.f32 %v2904, %v2937
        %v2952 = vadd.f32 %v2905, %v2938
        %v2953 = vadd.f32 %v2906, %v2939
        %v2954 = vadd.f32 %v2907, %v2940
        %v2955 = vadd.f32 %v2908, %v2941
        %v2956 = vadd.f32 %v2909, %v2942
        %v2957 = vadd.f32 %v2910, %v2943
        %v2958 = vadd.f32 %v2911, %v2944
        %v2959 = vadd.f32 %v2912, %v2945
        %v2960 = vadd.f32 %v2913, %v2946
        %v2961 = vadd.f32 %v2914, %v2947
        %v2962 = vadd.f32 %v2915, %v2948
        %v2963 = vadd.f32 %v2916, %v2949
        %v2964 = vld [vmem:[%s2869 + $0x2] sm:$0xff]
        %v2965 = vld [vmem:[%s2869 + $0xa] sm:$0x3f]
        %v2966 = vld [vmem:[%s2869 + $0x1a] sm:$0xff]
        %v2967 = vld [vmem:[%s2869 + $0x22] sm:$0x3f]
        %v2968 = vld [vmem:[%s2869 + $0x32] sm:$0xff]
        %v2969 = vld [vmem:[%s2869 + $0x3a] sm:$0x3f]
        %v2970 = vld [vmem:[%s2869 + $0x4a] sm:$0xff]
        %v2971 = vld [vmem:[%s2869 + $0x52] sm:$0x3f]
        %v2972 = vld [vmem:[%s2869 + $0x62] sm:$0xff]
        %v2973 = vld [vmem:[%s2869 + $0x6a] sm:$0x3f]
        %v2974 = vld [vmem:[%s2869 + $0x7a] sm:$0xff]
        %v2975 = vld [vmem:[%s2869 + $0x82] sm:$0x3f]
        %v2976 = vld [vmem:[%s2869 + $0x92] sm:$0xff]
        %v2977 = vld [vmem:[%s2869 + $0x9a] sm:$0x3f]
        %v2978 = vld [vmem:[%s387 + $0x2] sm:$0x1]
        %v2979 = vlaneseq
        %v2980 = vshrl.u32 %v2979, 7
        %v2981 = vsub.s32 0, %v2980
        %v2982 = vrot.slane %v2978, %v2981
        %v2983 = vmul.f32 %v2964, %v2982
        %v2984 = vmul.f32 %v2965, %v2982
        %v2985 = vmul.f32 %v2966, %v2982
        %v2986 = vmul.f32 %v2967, %v2982
        %v2987 = vmul.f32 %v2968, %v2982
        %v2988 = vmul.f32 %v2969, %v2982
        %v2989 = vmul.f32 %v2970, %v2982
        %v2990 = vmul.f32 %v2971, %v2982
        %v2991 = vmul.f32 %v2972, %v2982
        %v2992 = vmul.f32 %v2973, %v2982
        %v2993 = vmul.f32 %v2974, %v2982
        %v2994 = vmul.f32 %v2975, %v2982
        %v2995 = vmul.f32 %v2976, %v2982
        %v2996 = vmul.f32 %v2977, %v2982
        %v2997 = vadd.f32 %v2950, %v2983
        %v2998 = vadd.f32 %v2951, %v2984
        %v2999 = vadd.f32 %v2952, %v2985
        %v3000 = vadd.f32 %v2953, %v2986
        %v3001 = vadd.f32 %v2954, %v2987
        %v3002 = vadd.f32 %v2955, %v2988
        %v3003 = vadd.f32 %v2956, %v2989
        %v3004 = vadd.f32 %v2957, %v2990
        %v3005 = vadd.f32 %v2958, %v2991
        %v3006 = vadd.f32 %v2959, %v2992
        %v3007 = vadd.f32 %v2960, %v2993
        %v3008 = vadd.f32 %v2961, %v2994
        %v3009 = vadd.f32 %v2962, %v2995
        %v3010 = vadd.f32 %v2963, %v2996
        %v3011 = vld [vmem:[%s2869 + $0x3] sm:$0xff]
        %v3012 = vld [vmem:[%s2869 + $0xb] sm:$0x3f]
        %v3013 = vld [vmem:[%s2869 + $0x1b] sm:$0xff]
        %v3014 = vld [vmem:[%s2869 + $0x23] sm:$0x3f]
        %v3015 = vld [vmem:[%s2869 + $0x33] sm:$0xff]
        %v3016 = vld [vmem:[%s2869 + $0x3b] sm:$0x3f]
        %v3017 = vld [vmem:[%s2869 + $0x4b] sm:$0xff]
        %v3018 = vld [vmem:[%s2869 + $0x53] sm:$0x3f]
        %v3019 = vld [vmem:[%s2869 + $0x63] sm:$0xff]
        %v3020 = vld [vmem:[%s2869 + $0x6b] sm:$0x3f]
        %v3021 = vld [vmem:[%s2869 + $0x7b] sm:$0xff]
        %v3022 = vld [vmem:[%s2869 + $0x83] sm:$0x3f]
        %v3023 = vld [vmem:[%s2869 + $0x93] sm:$0xff]
        %v3024 = vld [vmem:[%s2869 + $0x9b] sm:$0x3f]
        %v3025 = vld [vmem:[%s387 + $0x3] sm:$0x1]
        %v3026 = vlaneseq
        %v3027 = vshrl.u32 %v3026, 7
        %v3028 = vsub.s32 0, %v3027
        %v3029 = vrot.slane %v3025, %v3028
        %v3030 = vmul.f32 %v3011, %v3029
        %v3031 = vmul.f32 %v3012, %v3029
        %v3032 = vmul.f32 %v3013, %v3029
        %v3033 = vmul.f32 %v3014, %v3029
        %v3034 = vmul.f32 %v3015, %v3029
        %v3035 = vmul.f32 %v3016, %v3029
        %v3036 = vmul.f32 %v3017, %v3029
        %v3037 = vmul.f32 %v3018, %v3029
        %v3038 = vmul.f32 %v3019, %v3029
        %v3039 = vmul.f32 %v3020, %v3029
        %v3040 = vmul.f32 %v3021, %v3029
        %v3041 = vmul.f32 %v3022, %v3029
        %v3042 = vmul.f32 %v3023, %v3029
        %v3043 = vmul.f32 %v3024, %v3029
        %v3044 = vadd.f32 %v2997, %v3030
        %v3045 = vadd.f32 %v2998, %v3031
        %v3046 = vadd.f32 %v2999, %v3032
        %v3047 = vadd.f32 %v3000, %v3033
        %v3048 = vadd.f32 %v3001, %v3034
        %v3049 = vadd.f32 %v3002, %v3035
        %v3050 = vadd.f32 %v3003, %v3036
        %v3051 = vadd.f32 %v3004, %v3037
        %v3052 = vadd.f32 %v3005, %v3038
        %v3053 = vadd.f32 %v3006, %v3039
        %v3054 = vadd.f32 %v3007, %v3040
        %v3055 = vadd.f32 %v3008, %v3041
        %v3056 = vadd.f32 %v3009, %v3042
        %v3057 = vadd.f32 %v3010, %v3043
        %v3058 = vld [vmem:[%s2869 + $0x4] sm:$0xff]
        %v3059 = vld [vmem:[%s2869 + $0xc] sm:$0x3f]
        %v3060 = vld [vmem:[%s2869 + $0x1c] sm:$0xff]
        %v3061 = vld [vmem:[%s2869 + $0x24] sm:$0x3f]
        %v3062 = vld [vmem:[%s2869 + $0x34] sm:$0xff]
        %v3063 = vld [vmem:[%s2869 + $0x3c] sm:$0x3f]
        %v3064 = vld [vmem:[%s2869 + $0x4c] sm:$0xff]
        %v3065 = vld [vmem:[%s2869 + $0x54] sm:$0x3f]
        %v3066 = vld [vmem:[%s2869 + $0x64] sm:$0xff]
        %v3067 = vld [vmem:[%s2869 + $0x6c] sm:$0x3f]
        %v3068 = vld [vmem:[%s2869 + $0x7c] sm:$0xff]
        %v3069 = vld [vmem:[%s2869 + $0x84] sm:$0x3f]
        %v3070 = vld [vmem:[%s2869 + $0x94] sm:$0xff]
        %v3071 = vld [vmem:[%s2869 + $0x9c] sm:$0x3f]
        %v3072 = vld [vmem:[%s387 + $0x4] sm:$0x1]
        %v3073 = vlaneseq
        %v3074 = vshrl.u32 %v3073, 7
        %v3075 = vsub.s32 0, %v3074
        %v3076 = vrot.slane %v3072, %v3075
        %v3077 = vmul.f32 %v3058, %v3076
        %v3078 = vmul.f32 %v3059, %v3076
        %v3079 = vmul.f32 %v3060, %v3076
        %v3080 = vmul.f32 %v3061, %v3076
        %v3081 = vmul.f32 %v3062, %v3076
        %v3082 = vmul.f32 %v3063, %v3076
        %v3083 = vmul.f32 %v3064, %v3076
        %v3084 = vmul.f32 %v3065, %v3076
        %v3085 = vmul.f32 %v3066, %v3076
        %v3086 = vmul.f32 %v3067, %v3076
        %v3087 = vmul.f32 %v3068, %v3076
        %v3088 = vmul.f32 %v3069, %v3076
        %v3089 = vmul.f32 %v3070, %v3076
        %v3090 = vmul.f32 %v3071, %v3076
        %v3091 = vadd.f32 %v3044, %v3077
        %v3092 = vadd.f32 %v3045, %v3078
        %v3093 = vadd.f32 %v3046, %v3079
        %v3094 = vadd.f32 %v3047, %v3080
        %v3095 = vadd.f32 %v3048, %v3081
        %v3096 = vadd.f32 %v3049, %v3082
        %v3097 = vadd.f32 %v3050, %v3083
        %v3098 = vadd.f32 %v3051, %v3084
        %v3099 = vadd.f32 %v3052, %v3085
        %v3100 = vadd.f32 %v3053, %v3086
        %v3101 = vadd.f32 %v3054, %v3087
        %v3102 = vadd.f32 %v3055, %v3088
        %v3103 = vadd.f32 %v3056, %v3089
        %v3104 = vadd.f32 %v3057, %v3090
        %v3105 = vld [vmem:[%s2869 + $0x5] sm:$0xff]
        %v3106 = vld [vmem:[%s2869 + $0xd] sm:$0x3f]
        %v3107 = vld [vmem:[%s2869 + $0x1d] sm:$0xff]
        %v3108 = vld [vmem:[%s2869 + $0x25] sm:$0x3f]
        %v3109 = vld [vmem:[%s2869 + $0x35] sm:$0xff]
        %v3110 = vld [vmem:[%s2869 + $0x3d] sm:$0x3f]
        %v3111 = vld [vmem:[%s2869 + $0x4d] sm:$0xff]
        %v3112 = vld [vmem:[%s2869 + $0x55] sm:$0x3f]
        %v3113 = vld [vmem:[%s2869 + $0x65] sm:$0xff]
        %v3114 = vld [vmem:[%s2869 + $0x6d] sm:$0x3f]
        %v3115 = vld [vmem:[%s2869 + $0x7d] sm:$0xff]
        %v3116 = vld [vmem:[%s2869 + $0x85] sm:$0x3f]
        %v3117 = vld [vmem:[%s2869 + $0x95] sm:$0xff]
        %v3118 = vld [vmem:[%s2869 + $0x9d] sm:$0x3f]
        %v3119 = vld [vmem:[%s387 + $0x5] sm:$0x1]
        %v3120 = vlaneseq
        %v3121 = vshrl.u32 %v3120, 7
        %v3122 = vsub.s32 0, %v3121
        %v3123 = vrot.slane %v3119, %v3122
        %v3124 = vmul.f32 %v3105, %v3123
        %v3125 = vmul.f32 %v3106, %v3123
        %v3126 = vmul.f32 %v3107, %v3123
        %v3127 = vmul.f32 %v3108, %v3123
        %v3128 = vmul.f32 %v3109, %v3123
        %v3129 = vmul.f32 %v3110, %v3123
        %v3130 = vmul.f32 %v3111, %v3123
        %v3131 = vmul.f32 %v3112, %v3123
        %v3132 = vmul.f32 %v3113, %v3123
        %v3133 = vmul.f32 %v3114, %v3123
        %v3134 = vmul.f32 %v3115, %v3123
        %v3135 = vmul.f32 %v3116, %v3123
        %v3136 = vmul.f32 %v3117, %v3123
        %v3137 = vmul.f32 %v3118, %v3123
        %v3138 = vadd.f32 %v3091, %v3124
        %v3139 = vadd.f32 %v3092, %v3125
        %v3140 = vadd.f32 %v3093, %v3126
        %v3141 = vadd.f32 %v3094, %v3127
        %v3142 = vadd.f32 %v3095, %v3128
        %v3143 = vadd.f32 %v3096, %v3129
        %v3144 = vadd.f32 %v3097, %v3130
        %v3145 = vadd.f32 %v3098, %v3131
        %v3146 = vadd.f32 %v3099, %v3132
        %v3147 = vadd.f32 %v3100, %v3133
        %v3148 = vadd.f32 %v3101, %v3134
        %v3149 = vadd.f32 %v3102, %v3135
        %v3150 = vadd.f32 %v3103, %v3136
        %v3151 = vadd.f32 %v3104, %v3137
        %v3152 = vld [vmem:[%s2869 + $0x6] sm:$0xff]
        %v3153 = vld [vmem:[%s2869 + $0xe] sm:$0x3f]
        %v3154 = vld [vmem:[%s2869 + $0x1e] sm:$0xff]
        %v3155 = vld [vmem:[%s2869 + $0x26] sm:$0x3f]
        %v3156 = vld [vmem:[%s2869 + $0x36] sm:$0xff]
        %v3157 = vld [vmem:[%s2869 + $0x3e] sm:$0x3f]
        %v3158 = vld [vmem:[%s2869 + $0x4e] sm:$0xff]
        %v3159 = vld [vmem:[%s2869 + $0x56] sm:$0x3f]
        %v3160 = vld [vmem:[%s2869 + $0x66] sm:$0xff]
        %v3161 = vld [vmem:[%s2869 + $0x6e] sm:$0x3f]
        %v3162 = vld [vmem:[%s2869 + $0x7e] sm:$0xff]
        %v3163 = vld [vmem:[%s2869 + $0x86] sm:$0x3f]
        %v3164 = vld [vmem:[%s2869 + $0x96] sm:$0xff]
        %v3165 = vld [vmem:[%s2869 + $0x9e] sm:$0x3f]
        %v3166 = vld [vmem:[%s387 + $0x6] sm:$0x1]
        %v3167 = vlaneseq
        %v3168 = vshrl.u32 %v3167, 7
        %v3169 = vsub.s32 0, %v3168
        %v3170 = vrot.slane %v3166, %v3169
        %v3171 = vmul.f32 %v3152, %v3170
        %v3172 = vmul.f32 %v3153, %v3170
        %v3173 = vmul.f32 %v3154, %v3170
        %v3174 = vmul.f32 %v3155, %v3170
        %v3175 = vmul.f32 %v3156, %v3170
        %v3176 = vmul.f32 %v3157, %v3170
        %v3177 = vmul.f32 %v3158, %v3170
        %v3178 = vmul.f32 %v3159, %v3170
        %v3179 = vmul.f32 %v3160, %v3170
        %v3180 = vmul.f32 %v3161, %v3170
        %v3181 = vmul.f32 %v3162, %v3170
        %v3182 = vmul.f32 %v3163, %v3170
        %v3183 = vmul.f32 %v3164, %v3170
        %v3184 = vmul.f32 %v3165, %v3170
        %v3185 = vadd.f32 %v3138, %v3171
        %v3186 = vadd.f32 %v3139, %v3172
        %v3187 = vadd.f32 %v3140, %v3173
        %v3188 = vadd.f32 %v3141, %v3174
        %v3189 = vadd.f32 %v3142, %v3175
        %v3190 = vadd.f32 %v3143, %v3176
        %v3191 = vadd.f32 %v3144, %v3177
        %v3192 = vadd.f32 %v3145, %v3178
        %v3193 = vadd.f32 %v3146, %v3179
        %v3194 = vadd.f32 %v3147, %v3180
        %v3195 = vadd.f32 %v3148, %v3181
        %v3196 = vadd.f32 %v3149, %v3182
        %v3197 = vadd.f32 %v3150, %v3183
        %v3198 = vadd.f32 %v3151, %v3184
        %s3199 = scalar_lea.vmem [#allocation2], 192
        %v3200 = vld [vmem:[%s3199] sm:$0xff]
        %v3201 = vld [vmem:[%s3199 + $0x8] sm:$0x3f]
        %v3202 = vld [vmem:[%s3199 + $0x18] sm:$0xff]
        %v3203 = vld [vmem:[%s3199 + $0x20] sm:$0x3f]
        %v3204 = vld [vmem:[%s3199 + $0x30] sm:$0xff]
        %v3205 = vld [vmem:[%s3199 + $0x38] sm:$0x3f]
        %v3206 = vld [vmem:[%s3199 + $0x48] sm:$0xff]
        %v3207 = vld [vmem:[%s3199 + $0x50] sm:$0x3f]
        %v3208 = vld [vmem:[%s3199 + $0x60] sm:$0xff]
        %v3209 = vld [vmem:[%s3199 + $0x68] sm:$0x3f]
        %v3210 = vld [vmem:[%s3199 + $0x78] sm:$0xff]
        %v3211 = vld [vmem:[%s3199 + $0x80] sm:$0x3f]
        %v3212 = vld [vmem:[%s3199 + $0x90] sm:$0xff]
        %v3213 = vld [vmem:[%s3199 + $0x98] sm:$0x3f]
        %v3214 = vld [vmem:[%s885] sm:$0x1]
        %v3215 = vlaneseq
        %v3216 = vshrl.u32 %v3215, 7
        %v3217 = vsub.s32 0, %v3216
        %v3218 = vrot.slane %v3214, %v3217
        %v3219 = vmul.f32 %v3200, %v3218
        %v3220 = vmul.f32 %v3201, %v3218
        %v3221 = vmul.f32 %v3202, %v3218
        %v3222 = vmul.f32 %v3203, %v3218
        %v3223 = vmul.f32 %v3204, %v3218
        %v3224 = vmul.f32 %v3205, %v3218
        %v3225 = vmul.f32 %v3206, %v3218
        %v3226 = vmul.f32 %v3207, %v3218
        %v3227 = vmul.f32 %v3208, %v3218
        %v3228 = vmul.f32 %v3209, %v3218
        %v3229 = vmul.f32 %v3210, %v3218
        %v3230 = vmul.f32 %v3211, %v3218
        %v3231 = vmul.f32 %v3212, %v3218
        %v3232 = vmul.f32 %v3213, %v3218
        %v3233 = vadd.f32 %v3185, %v3219
        %v3234 = vadd.f32 %v3186, %v3220
        %v3235 = vadd.f32 %v3187, %v3221
        %v3236 = vadd.f32 %v3188, %v3222
        %v3237 = vadd.f32 %v3189, %v3223
        %v3238 = vadd.f32 %v3190, %v3224
        %v3239 = vadd.f32 %v3191, %v3225
        %v3240 = vadd.f32 %v3192, %v3226
        %v3241 = vadd.f32 %v3193, %v3227
        %v3242 = vadd.f32 %v3194, %v3228
        %v3243 = vadd.f32 %v3195, %v3229
        %v3244 = vadd.f32 %v3196, %v3230
        %v3245 = vadd.f32 %v3197, %v3231
        %v3246 = vadd.f32 %v3198, %v3232
        %v3247 = vld [vmem:[%s3199 + $0x1] sm:$0xff]
        %v3248 = vld [vmem:[%s3199 + $0x9] sm:$0x3f]
        %v3249 = vld [vmem:[%s3199 + $0x19] sm:$0xff]
        %v3250 = vld [vmem:[%s3199 + $0x21] sm:$0x3f]
        %v3251 = vld [vmem:[%s3199 + $0x31] sm:$0xff]
        %v3252 = vld [vmem:[%s3199 + $0x39] sm:$0x3f]
        %v3253 = vld [vmem:[%s3199 + $0x49] sm:$0xff]
        %v3254 = vld [vmem:[%s3199 + $0x51] sm:$0x3f]
        %v3255 = vld [vmem:[%s3199 + $0x61] sm:$0xff]
        %v3256 = vld [vmem:[%s3199 + $0x69] sm:$0x3f]
        %v3257 = vld [vmem:[%s3199 + $0x79] sm:$0xff]
        %v3258 = vld [vmem:[%s3199 + $0x81] sm:$0x3f]
        %v3259 = vld [vmem:[%s3199 + $0x91] sm:$0xff]
        %v3260 = vld [vmem:[%s3199 + $0x99] sm:$0x3f]
        %v3261 = vld [vmem:[%s885 + $0x1] sm:$0x1]
        %v3262 = vlaneseq
        %v3263 = vshrl.u32 %v3262, 7
        %v3264 = vsub.s32 0, %v3263
        %v3265 = vrot.slane %v3261, %v3264
        %v3266 = vmul.f32 %v3247, %v3265
        %v3267 = vmul.f32 %v3248, %v3265
        %v3268 = vmul.f32 %v3249, %v3265
        %v3269 = vmul.f32 %v3250, %v3265
        %v3270 = vmul.f32 %v3251, %v3265
        %v3271 = vmul.f32 %v3252, %v3265
        %v3272 = vmul.f32 %v3253, %v3265
        %v3273 = vmul.f32 %v3254, %v3265
        %v3274 = vmul.f32 %v3255, %v3265
        %v3275 = vmul.f32 %v3256, %v3265
        %v3276 = vmul.f32 %v3257, %v3265
        %v3277 = vmul.f32 %v3258, %v3265
        %v3278 = vmul.f32 %v3259, %v3265
        %v3279 = vmul.f32 %v3260, %v3265
        %v3280 = vadd.f32 %v3233, %v3266
        %v3281 = vadd.f32 %v3234, %v3267
        %v3282 = vadd.f32 %v3235, %v3268
        %v3283 = vadd.f32 %v3236, %v3269
        %v3284 = vadd.f32 %v3237, %v3270
        %v3285 = vadd.f32 %v3238, %v3271
        %v3286 = vadd.f32 %v3239, %v3272
        %v3287 = vadd.f32 %v3240, %v3273
        %v3288 = vadd.f32 %v3241, %v3274
        %v3289 = vadd.f32 %v3242, %v3275
        %v3290 = vadd.f32 %v3243, %v3276
        %v3291 = vadd.f32 %v3244, %v3277
        %v3292 = vadd.f32 %v3245, %v3278
        %v3293 = vadd.f32 %v3246, %v3279
        %v3294 = vld [vmem:[%s3199 + $0x2] sm:$0xff]
        %v3295 = vld [vmem:[%s3199 + $0xa] sm:$0x3f]
        %v3296 = vld [vmem:[%s3199 + $0x1a] sm:$0xff]
        %v3297 = vld [vmem:[%s3199 + $0x22] sm:$0x3f]
        %v3298 = vld [vmem:[%s3199 + $0x32] sm:$0xff]
        %v3299 = vld [vmem:[%s3199 + $0x3a] sm:$0x3f]
        %v3300 = vld [vmem:[%s3199 + $0x4a] sm:$0xff]
        %v3301 = vld [vmem:[%s3199 + $0x52] sm:$0x3f]
        %v3302 = vld [vmem:[%s3199 + $0x62] sm:$0xff]
        %v3303 = vld [vmem:[%s3199 + $0x6a] sm:$0x3f]
        %v3304 = vld [vmem:[%s3199 + $0x7a] sm:$0xff]
        %v3305 = vld [vmem:[%s3199 + $0x82] sm:$0x3f]
        %v3306 = vld [vmem:[%s3199 + $0x92] sm:$0xff]
        %v3307 = vld [vmem:[%s3199 + $0x9a] sm:$0x3f]
        %v3308 = vld [vmem:[%s885 + $0x2] sm:$0x1]
        %v3309 = vlaneseq
        %v3310 = vshrl.u32 %v3309, 7
        %v3311 = vsub.s32 0, %v3310
        %v3312 = vrot.slane %v3308, %v3311
        %v3313 = vmul.f32 %v3294, %v3312
        %v3314 = vmul.f32 %v3295, %v3312
        %v3315 = vmul.f32 %v3296, %v3312
        %v3316 = vmul.f32 %v3297, %v3312
        %v3317 = vmul.f32 %v3298, %v3312
        %v3318 = vmul.f32 %v3299, %v3312
        %v3319 = vmul.f32 %v3300, %v3312
        %v3320 = vmul.f32 %v3301, %v3312
        %v3321 = vmul.f32 %v3302, %v3312
        %v3322 = vmul.f32 %v3303, %v3312
        %v3323 = vmul.f32 %v3304, %v3312
        %v3324 = vmul.f32 %v3305, %v3312
        %v3325 = vmul.f32 %v3306, %v3312
        %v3326 = vmul.f32 %v3307, %v3312
        %v3327 = vadd.f32 %v3280, %v3313
        %v3328 = vadd.f32 %v3281, %v3314
        %v3329 = vadd.f32 %v3282, %v3315
        %v3330 = vadd.f32 %v3283, %v3316
        %v3331 = vadd.f32 %v3284, %v3317
        %v3332 = vadd.f32 %v3285, %v3318
        %v3333 = vadd.f32 %v3286, %v3319
        %v3334 = vadd.f32 %v3287, %v3320
        %v3335 = vadd.f32 %v3288, %v3321
        %v3336 = vadd.f32 %v3289, %v3322
        %v3337 = vadd.f32 %v3290, %v3323
        %v3338 = vadd.f32 %v3291, %v3324
        %v3339 = vadd.f32 %v3292, %v3325
        %v3340 = vadd.f32 %v3293, %v3326
        %v3341 = vld [vmem:[%s3199 + $0x3] sm:$0xff]
        %v3342 = vld [vmem:[%s3199 + $0xb] sm:$0x3f]
        %v3343 = vld [vmem:[%s3199 + $0x1b] sm:$0xff]
        %v3344 = vld [vmem:[%s3199 + $0x23] sm:$0x3f]
        %v3345 = vld [vmem:[%s3199 + $0x33] sm:$0xff]
        %v3346 = vld [vmem:[%s3199 + $0x3b] sm:$0x3f]
        %v3347 = vld [vmem:[%s3199 + $0x4b] sm:$0xff]
        %v3348 = vld [vmem:[%s3199 + $0x53] sm:$0x3f]
        %v3349 = vld [vmem:[%s3199 + $0x63] sm:$0xff]
        %v3350 = vld [vmem:[%s3199 + $0x6b] sm:$0x3f]
        %v3351 = vld [vmem:[%s3199 + $0x7b] sm:$0xff]
        %v3352 = vld [vmem:[%s3199 + $0x83] sm:$0x3f]
        %v3353 = vld [vmem:[%s3199 + $0x93] sm:$0xff]
        %v3354 = vld [vmem:[%s3199 + $0x9b] sm:$0x3f]
        %v3355 = vld [vmem:[%s885 + $0x3] sm:$0x1]
        %v3356 = vlaneseq
        %v3357 = vshrl.u32 %v3356, 7
        %v3358 = vsub.s32 0, %v3357
        %v3359 = vrot.slane %v3355, %v3358
        %v3360 = vmul.f32 %v3341, %v3359
        %v3361 = vmul.f32 %v3342, %v3359
        %v3362 = vmul.f32 %v3343, %v3359
        %v3363 = vmul.f32 %v3344, %v3359
        %v3364 = vmul.f32 %v3345, %v3359
        %v3365 = vmul.f32 %v3346, %v3359
        %v3366 = vmul.f32 %v3347, %v3359
        %v3367 = vmul.f32 %v3348, %v3359
        %v3368 = vmul.f32 %v3349, %v3359
        %v3369 = vmul.f32 %v3350, %v3359
        %v3370 = vmul.f32 %v3351, %v3359
        %v3371 = vmul.f32 %v3352, %v3359
        %v3372 = vmul.f32 %v3353, %v3359
        %v3373 = vmul.f32 %v3354, %v3359
        %v3374 = vadd.f32 %v3327, %v3360
        %v3375 = vadd.f32 %v3328, %v3361
        %v3376 = vadd.f32 %v3329, %v3362
        %v3377 = vadd.f32 %v3330, %v3363
        %v3378 = vadd.f32 %v3331, %v3364
        %v3379 = vadd.f32 %v3332, %v3365
        %v3380 = vadd.f32 %v3333, %v3366
        %v3381 = vadd.f32 %v3334, %v3367
        %v3382 = vadd.f32 %v3335, %v3368
        %v3383 = vadd.f32 %v3336, %v3369
        %v3384 = vadd.f32 %v3337, %v3370
        %v3385 = vadd.f32 %v3338, %v3371
        %v3386 = vadd.f32 %v3339, %v3372
        %v3387 = vadd.f32 %v3340, %v3373
        %v3388 = vld [vmem:[%s3199 + $0x4] sm:$0xff]
        %v3389 = vld [vmem:[%s3199 + $0xc] sm:$0x3f]
        %v3390 = vld [vmem:[%s3199 + $0x1c] sm:$0xff]
        %v3391 = vld [vmem:[%s3199 + $0x24] sm:$0x3f]
        %v3392 = vld [vmem:[%s3199 + $0x34] sm:$0xff]
        %v3393 = vld [vmem:[%s3199 + $0x3c] sm:$0x3f]
        %v3394 = vld [vmem:[%s3199 + $0x4c] sm:$0xff]
        %v3395 = vld [vmem:[%s3199 + $0x54] sm:$0x3f]
        %v3396 = vld [vmem:[%s3199 + $0x64] sm:$0xff]
        %v3397 = vld [vmem:[%s3199 + $0x6c] sm:$0x3f]
        %v3398 = vld [vmem:[%s3199 + $0x7c] sm:$0xff]
        %v3399 = vld [vmem:[%s3199 + $0x84] sm:$0x3f]
        %v3400 = vld [vmem:[%s3199 + $0x94] sm:$0xff]
        %v3401 = vld [vmem:[%s3199 + $0x9c] sm:$0x3f]
        %v3402 = vld [vmem:[%s885 + $0x4] sm:$0x1]
        %v3403 = vlaneseq
        %v3404 = vshrl.u32 %v3403, 7
        %v3405 = vsub.s32 0, %v3404
        %v3406 = vrot.slane %v3402, %v3405
        %v3407 = vmul.f32 %v3388, %v3406
        %v3408 = vmul.f32 %v3389, %v3406
        %v3409 = vmul.f32 %v3390, %v3406
        %v3410 = vmul.f32 %v3391, %v3406
        %v3411 = vmul.f32 %v3392, %v3406
        %v3412 = vmul.f32 %v3393, %v3406
        %v3413 = vmul.f32 %v3394, %v3406
        %v3414 = vmul.f32 %v3395, %v3406
        %v3415 = vmul.f32 %v3396, %v3406
        %v3416 = vmul.f32 %v3397, %v3406
        %v3417 = vmul.f32 %v3398, %v3406
        %v3418 = vmul.f32 %v3399, %v3406
        %v3419 = vmul.f32 %v3400, %v3406
        %v3420 = vmul.f32 %v3401, %v3406
        %v3421 = vadd.f32 %v3374, %v3407
        %v3422 = vadd.f32 %v3375, %v3408
        %v3423 = vadd.f32 %v3376, %v3409
        %v3424 = vadd.f32 %v3377, %v3410
        %v3425 = vadd.f32 %v3378, %v3411
        %v3426 = vadd.f32 %v3379, %v3412
        %v3427 = vadd.f32 %v3380, %v3413
        %v3428 = vadd.f32 %v3381, %v3414
        %v3429 = vadd.f32 %v3382, %v3415
        %v3430 = vadd.f32 %v3383, %v3416
        %v3431 = vadd.f32 %v3384, %v3417
        %v3432 = vadd.f32 %v3385, %v3418
        %v3433 = vadd.f32 %v3386, %v3419
        %v3434 = vadd.f32 %v3387, %v3420
        %v3435 = vld [vmem:[%s3199 + $0x5] sm:$0xff]
        %v3436 = vld [vmem:[%s3199 + $0xd] sm:$0x3f]
        %v3437 = vld [vmem:[%s3199 + $0x1d] sm:$0xff]
        %v3438 = vld [vmem:[%s3199 + $0x25] sm:$0x3f]
        %v3439 = vld [vmem:[%s3199 + $0x35] sm:$0xff]
        %v3440 = vld [vmem:[%s3199 + $0x3d] sm:$0x3f]
        %v3441 = vld [vmem:[%s3199 + $0x4d] sm:$0xff]
        %v3442 = vld [vmem:[%s3199 + $0x55] sm:$0x3f]
        %v3443 = vld [vmem:[%s3199 + $0x65] sm:$0xff]
        %v3444 = vld [vmem:[%s3199 + $0x6d] sm:$0x3f]
        %v3445 = vld [vmem:[%s3199 + $0x7d] sm:$0xff]
        %v3446 = vld [vmem:[%s3199 + $0x85] sm:$0x3f]
        %v3447 = vld [vmem:[%s3199 + $0x95] sm:$0xff]
        %v3448 = vld [vmem:[%s3199 + $0x9d] sm:$0x3f]
        %v3449 = vld [vmem:[%s885 + $0x5] sm:$0x1]
        %v3450 = vlaneseq
        %v3451 = vshrl.u32 %v3450, 7
        %v3452 = vsub.s32 0, %v3451
        %v3453 = vrot.slane %v3449, %v3452
        %v3454 = vmul.f32 %v3435, %v3453
        %v3455 = vmul.f32 %v3436, %v3453
        %v3456 = vmul.f32 %v3437, %v3453
        %v3457 = vmul.f32 %v3438, %v3453
        %v3458 = vmul.f32 %v3439, %v3453
        %v3459 = vmul.f32 %v3440, %v3453
        %v3460 = vmul.f32 %v3441, %v3453
        %v3461 = vmul.f32 %v3442, %v3453
        %v3462 = vmul.f32 %v3443, %v3453
        %v3463 = vmul.f32 %v3444, %v3453
        %v3464 = vmul.f32 %v3445, %v3453
        %v3465 = vmul.f32 %v3446, %v3453
        %v3466 = vmul.f32 %v3447, %v3453
        %v3467 = vmul.f32 %v3448, %v3453
        %v3468 = vadd.f32 %v3421, %v3454
        %v3469 = vadd.f32 %v3422, %v3455
        %v3470 = vadd.f32 %v3423, %v3456
        %v3471 = vadd.f32 %v3424, %v3457
        %v3472 = vadd.f32 %v3425, %v3458
        %v3473 = vadd.f32 %v3426, %v3459
        %v3474 = vadd.f32 %v3427, %v3460
        %v3475 = vadd.f32 %v3428, %v3461
        %v3476 = vadd.f32 %v3429, %v3462
        %v3477 = vadd.f32 %v3430, %v3463
        %v3478 = vadd.f32 %v3431, %v3464
        %v3479 = vadd.f32 %v3432, %v3465
        %v3480 = vadd.f32 %v3433, %v3466
        %v3481 = vadd.f32 %v3434, %v3467
        %v3482 = vld [vmem:[%s3199 + $0x6] sm:$0xff]
        %v3483 = vld [vmem:[%s3199 + $0xe] sm:$0x3f]
        %v3484 = vld [vmem:[%s3199 + $0x1e] sm:$0xff]
        %v3485 = vld [vmem:[%s3199 + $0x26] sm:$0x3f]
        %v3486 = vld [vmem:[%s3199 + $0x36] sm:$0xff]
        %v3487 = vld [vmem:[%s3199 + $0x3e] sm:$0x3f]
        %v3488 = vld [vmem:[%s3199 + $0x4e] sm:$0xff]
        %v3489 = vld [vmem:[%s3199 + $0x56] sm:$0x3f]
        %v3490 = vld [vmem:[%s3199 + $0x66] sm:$0xff]
        %v3491 = vld [vmem:[%s3199 + $0x6e] sm:$0x3f]
        %v3492 = vld [vmem:[%s3199 + $0x7e] sm:$0xff]
        %v3493 = vld [vmem:[%s3199 + $0x86] sm:$0x3f]
        %v3494 = vld [vmem:[%s3199 + $0x96] sm:$0xff]
        %v3495 = vld [vmem:[%s3199 + $0x9e] sm:$0x3f]
        %v3496 = vld [vmem:[%s885 + $0x6] sm:$0x1]
        %v3497 = vlaneseq
        %v3498 = vshrl.u32 %v3497, 7
        %v3499 = vsub.s32 0, %v3498
        %v3500 = vrot.slane %v3496, %v3499
        %v3501 = vmul.f32 %v3482, %v3500
        %v3502 = vmul.f32 %v3483, %v3500
        %v3503 = vmul.f32 %v3484, %v3500
        %v3504 = vmul.f32 %v3485, %v3500
        %v3505 = vmul.f32 %v3486, %v3500
        %v3506 = vmul.f32 %v3487, %v3500
        %v3507 = vmul.f32 %v3488, %v3500
        %v3508 = vmul.f32 %v3489, %v3500
        %v3509 = vmul.f32 %v3490, %v3500
        %v3510 = vmul.f32 %v3491, %v3500
        %v3511 = vmul.f32 %v3492, %v3500
        %v3512 = vmul.f32 %v3493, %v3500
        %v3513 = vmul.f32 %v3494, %v3500
        %v3514 = vmul.f32 %v3495, %v3500
        %v3515 = vadd.f32 %v3468, %v3501
        %v3516 = vadd.f32 %v3469, %v3502
        %v3517 = vadd.f32 %v3470, %v3503
        %v3518 = vadd.f32 %v3471, %v3504
        %v3519 = vadd.f32 %v3472, %v3505
        %v3520 = vadd.f32 %v3473, %v3506
        %v3521 = vadd.f32 %v3474, %v3507
        %v3522 = vadd.f32 %v3475, %v3508
        %v3523 = vadd.f32 %v3476, %v3509
        %v3524 = vadd.f32 %v3477, %v3510
        %v3525 = vadd.f32 %v3478, %v3511
        %v3526 = vadd.f32 %v3479, %v3512
        %v3527 = vadd.f32 %v3480, %v3513
        %v3528 = vadd.f32 %v3481, %v3514
        %s3529 = scalar_lea.vmem [#allocation2], 216
        %v3530 = vld [vmem:[%s3529] sm:$0xff]
        %v3531 = vld [vmem:[%s3529 + $0x8] sm:$0x3f]
        %v3532 = vld [vmem:[%s3529 + $0x18] sm:$0xff]
        %v3533 = vld [vmem:[%s3529 + $0x20] sm:$0x3f]
        %v3534 = vld [vmem:[%s3529 + $0x30] sm:$0xff]
        %v3535 = vld [vmem:[%s3529 + $0x38] sm:$0x3f]
        %v3536 = vld [vmem:[%s3529 + $0x48] sm:$0xff]
        %v3537 = vld [vmem:[%s3529 + $0x50] sm:$0x3f]
        %v3538 = vld [vmem:[%s3529 + $0x60] sm:$0xff]
        %v3539 = vld [vmem:[%s3529 + $0x68] sm:$0x3f]
        %v3540 = vld [vmem:[%s3529 + $0x78] sm:$0xff]
        %v3541 = vld [vmem:[%s3529 + $0x80] sm:$0x3f]
        %v3542 = vld [vmem:[%s3529 + $0x90] sm:$0xff]
        %v3543 = vld [vmem:[%s3529 + $0x98] sm:$0x3f]
        %v3544 = vld [vmem:[%s1216] sm:$0x1]
        %v3545 = vlaneseq
        %v3546 = vshrl.u32 %v3545, 7
        %v3547 = vsub.s32 0, %v3546
        %v3548 = vrot.slane %v3544, %v3547
        %v3549 = vmul.f32 %v3530, %v3548
        %v3550 = vmul.f32 %v3531, %v3548
        %v3551 = vmul.f32 %v3532, %v3548
        %v3552 = vmul.f32 %v3533, %v3548
        %v3553 = vmul.f32 %v3534, %v3548
        %v3554 = vmul.f32 %v3535, %v3548
        %v3555 = vmul.f32 %v3536, %v3548
        %v3556 = vmul.f32 %v3537, %v3548
        %v3557 = vmul.f32 %v3538, %v3548
        %v3558 = vmul.f32 %v3539, %v3548
        %v3559 = vmul.f32 %v3540, %v3548
        %v3560 = vmul.f32 %v3541, %v3548
        %v3561 = vmul.f32 %v3542, %v3548
        %v3562 = vmul.f32 %v3543, %v3548
        %v3563 = vadd.f32 %v3515, %v3549
        %v3564 = vadd.f32 %v3516, %v3550
        %v3565 = vadd.f32 %v3517, %v3551
        %v3566 = vadd.f32 %v3518, %v3552
        %v3567 = vadd.f32 %v3519, %v3553
        %v3568 = vadd.f32 %v3520, %v3554
        %v3569 = vadd.f32 %v3521, %v3555
        %v3570 = vadd.f32 %v3522, %v3556
        %v3571 = vadd.f32 %v3523, %v3557
        %v3572 = vadd.f32 %v3524, %v3558
        %v3573 = vadd.f32 %v3525, %v3559
        %v3574 = vadd.f32 %v3526, %v3560
        %v3575 = vadd.f32 %v3527, %v3561
        %v3576 = vadd.f32 %v3528, %v3562
        %v3577 = vld [vmem:[%s3529 + $0x1] sm:$0xff]
        %v3578 = vld [vmem:[%s3529 + $0x9] sm:$0x3f]
        %v3579 = vld [vmem:[%s3529 + $0x19] sm:$0xff]
        %v3580 = vld [vmem:[%s3529 + $0x21] sm:$0x3f]
        %v3581 = vld [vmem:[%s3529 + $0x31] sm:$0xff]
        %v3582 = vld [vmem:[%s3529 + $0x39] sm:$0x3f]
        %v3583 = vld [vmem:[%s3529 + $0x49] sm:$0xff]
        %v3584 = vld [vmem:[%s3529 + $0x51] sm:$0x3f]
        %v3585 = vld [vmem:[%s3529 + $0x61] sm:$0xff]
        %v3586 = vld [vmem:[%s3529 + $0x69] sm:$0x3f]
        %v3587 = vld [vmem:[%s3529 + $0x79] sm:$0xff]
        %v3588 = vld [vmem:[%s3529 + $0x81] sm:$0x3f]
        %v3589 = vld [vmem:[%s3529 + $0x91] sm:$0xff]
        %v3590 = vld [vmem:[%s3529 + $0x99] sm:$0x3f]
        %v3591 = vld [vmem:[%s1216 + $0x1] sm:$0x1]
        %v3592 = vlaneseq
        %v3593 = vshrl.u32 %v3592, 7
        %v3594 = vsub.s32 0, %v3593
        %v3595 = vrot.slane %v3591, %v3594
        %v3596 = vmul.f32 %v3577, %v3595
        %v3597 = vmul.f32 %v3578, %v3595
        %v3598 = vmul.f32 %v3579, %v3595
        %v3599 = vmul.f32 %v3580, %v3595
        %v3600 = vmul.f32 %v3581, %v3595
        %v3601 = vmul.f32 %v3582, %v3595
        %v3602 = vmul.f32 %v3583, %v3595
        %v3603 = vmul.f32 %v3584, %v3595
        %v3604 = vmul.f32 %v3585, %v3595
        %v3605 = vmul.f32 %v3586, %v3595
        %v3606 = vmul.f32 %v3587, %v3595
        %v3607 = vmul.f32 %v3588, %v3595
        %v3608 = vmul.f32 %v3589, %v3595
        %v3609 = vmul.f32 %v3590, %v3595
        %v3610 = vadd.f32 %v3563, %v3596
        %v3611 = vadd.f32 %v3564, %v3597
        %v3612 = vadd.f32 %v3565, %v3598
        %v3613 = vadd.f32 %v3566, %v3599
        %v3614 = vadd.f32 %v3567, %v3600
        %v3615 = vadd.f32 %v3568, %v3601
        %v3616 = vadd.f32 %v3569, %v3602
        %v3617 = vadd.f32 %v3570, %v3603
        %v3618 = vadd.f32 %v3571, %v3604
        %v3619 = vadd.f32 %v3572, %v3605
        %v3620 = vadd.f32 %v3573, %v3606
        %v3621 = vadd.f32 %v3574, %v3607
        %v3622 = vadd.f32 %v3575, %v3608
        %v3623 = vadd.f32 %v3576, %v3609
        %v3624 = vld [vmem:[%s3529 + $0x2] sm:$0xff]
        %v3625 = vld [vmem:[%s3529 + $0xa] sm:$0x3f]
        %v3626 = vld [vmem:[%s3529 + $0x1a] sm:$0xff]
        %v3627 = vld [vmem:[%s3529 + $0x22] sm:$0x3f]
        %v3628 = vld [vmem:[%s3529 + $0x32] sm:$0xff]
        %v3629 = vld [vmem:[%s3529 + $0x3a] sm:$0x3f]
        %v3630 = vld [vmem:[%s3529 + $0x4a] sm:$0xff]
        %v3631 = vld [vmem:[%s3529 + $0x52] sm:$0x3f]
        %v3632 = vld [vmem:[%s3529 + $0x62] sm:$0xff]
        %v3633 = vld [vmem:[%s3529 + $0x6a] sm:$0x3f]
        %v3634 = vld [vmem:[%s3529 + $0x7a] sm:$0xff]
        %v3635 = vld [vmem:[%s3529 + $0x82] sm:$0x3f]
        %v3636 = vld [vmem:[%s3529 + $0x92] sm:$0xff]
        %v3637 = vld [vmem:[%s3529 + $0x9a] sm:$0x3f]
        %v3638 = vld [vmem:[%s1216 + $0x2] sm:$0x1]
        %v3639 = vlaneseq
        %v3640 = vshrl.u32 %v3639, 7
        %v3641 = vsub.s32 0, %v3640
        %v3642 = vrot.slane %v3638, %v3641
        %v3643 = vmul.f32 %v3624, %v3642
        %v3644 = vmul.f32 %v3625, %v3642
        %v3645 = vmul.f32 %v3626, %v3642
        %v3646 = vmul.f32 %v3627, %v3642
        %v3647 = vmul.f32 %v3628, %v3642
        %v3648 = vmul.f32 %v3629, %v3642
        %v3649 = vmul.f32 %v3630, %v3642
        %v3650 = vmul.f32 %v3631, %v3642
        %v3651 = vmul.f32 %v3632, %v3642
        %v3652 = vmul.f32 %v3633, %v3642
        %v3653 = vmul.f32 %v3634, %v3642
        %v3654 = vmul.f32 %v3635, %v3642
        %v3655 = vmul.f32 %v3636, %v3642
        %v3656 = vmul.f32 %v3637, %v3642
        %v3657 = vadd.f32 %v3610, %v3643
        %v3658 = vadd.f32 %v3611, %v3644
        %v3659 = vadd.f32 %v3612, %v3645
        %v3660 = vadd.f32 %v3613, %v3646
        %v3661 = vadd.f32 %v3614, %v3647
        %v3662 = vadd.f32 %v3615, %v3648
        %v3663 = vadd.f32 %v3616, %v3649
        %v3664 = vadd.f32 %v3617, %v3650
        %v3665 = vadd.f32 %v3618, %v3651
        %v3666 = vadd.f32 %v3619, %v3652
        %v3667 = vadd.f32 %v3620, %v3653
        %v3668 = vadd.f32 %v3621, %v3654
        %v3669 = vadd.f32 %v3622, %v3655
        %v3670 = vadd.f32 %v3623, %v3656
        %v3671 = vld [vmem:[%s3529 + $0x3] sm:$0xff]
        %v3672 = vld [vmem:[%s3529 + $0xb] sm:$0x3f]
        %v3673 = vld [vmem:[%s3529 + $0x1b] sm:$0xff]
        %v3674 = vld [vmem:[%s3529 + $0x23] sm:$0x3f]
        %v3675 = vld [vmem:[%s3529 + $0x33] sm:$0xff]
        %v3676 = vld [vmem:[%s3529 + $0x3b] sm:$0x3f]
        %v3677 = vld [vmem:[%s3529 + $0x4b] sm:$0xff]
        %v3678 = vld [vmem:[%s3529 + $0x53] sm:$0x3f]
        %v3679 = vld [vmem:[%s3529 + $0x63] sm:$0xff]
        %v3680 = vld [vmem:[%s3529 + $0x6b] sm:$0x3f]
        %v3681 = vld [vmem:[%s3529 + $0x7b] sm:$0xff]
        %v3682 = vld [vmem:[%s3529 + $0x83] sm:$0x3f]
        %v3683 = vld [vmem:[%s3529 + $0x93] sm:$0xff]
        %v3684 = vld [vmem:[%s3529 + $0x9b] sm:$0x3f]
        %v3685 = vld [vmem:[%s1216 + $0x3] sm:$0x1]
        %v3686 = vlaneseq
        %v3687 = vshrl.u32 %v3686, 7
        %v3688 = vsub.s32 0, %v3687
        %v3689 = vrot.slane %v3685, %v3688
        %v3690 = vmul.f32 %v3671, %v3689
        %v3691 = vmul.f32 %v3672, %v3689
        %v3692 = vmul.f32 %v3673, %v3689
        %v3693 = vmul.f32 %v3674, %v3689
        %v3694 = vmul.f32 %v3675, %v3689
        %v3695 = vmul.f32 %v3676, %v3689
        %v3696 = vmul.f32 %v3677, %v3689
        %v3697 = vmul.f32 %v3678, %v3689
        %v3698 = vmul.f32 %v3679, %v3689
        %v3699 = vmul.f32 %v3680, %v3689
        %v3700 = vmul.f32 %v3681, %v3689
        %v3701 = vmul.f32 %v3682, %v3689
        %v3702 = vmul.f32 %v3683, %v3689
        %v3703 = vmul.f32 %v3684, %v3689
        %v3704 = vadd.f32 %v3657, %v3690
        %v3705 = vadd.f32 %v3658, %v3691
        %v3706 = vadd.f32 %v3659, %v3692
        %v3707 = vadd.f32 %v3660, %v3693
        %v3708 = vadd.f32 %v3661, %v3694
        %v3709 = vadd.f32 %v3662, %v3695
        %v3710 = vadd.f32 %v3663, %v3696
        %v3711 = vadd.f32 %v3664, %v3697
        %v3712 = vadd.f32 %v3665, %v3698
        %v3713 = vadd.f32 %v3666, %v3699
        %v3714 = vadd.f32 %v3667, %v3700
        %v3715 = vadd.f32 %v3668, %v3701
        %v3716 = vadd.f32 %v3669, %v3702
        %v3717 = vadd.f32 %v3670, %v3703
        %v3718 = vld [vmem:[%s3529 + $0x4] sm:$0xff]
        %v3719 = vld [vmem:[%s3529 + $0xc] sm:$0x3f]
        %v3720 = vld [vmem:[%s3529 + $0x1c] sm:$0xff]
        %v3721 = vld [vmem:[%s3529 + $0x24] sm:$0x3f]
        %v3722 = vld [vmem:[%s3529 + $0x34] sm:$0xff]
        %v3723 = vld [vmem:[%s3529 + $0x3c] sm:$0x3f]
        %v3724 = vld [vmem:[%s3529 + $0x4c] sm:$0xff]
        %v3725 = vld [vmem:[%s3529 + $0x54] sm:$0x3f]
        %v3726 = vld [vmem:[%s3529 + $0x64] sm:$0xff]
        %v3727 = vld [vmem:[%s3529 + $0x6c] sm:$0x3f]
        %v3728 = vld [vmem:[%s3529 + $0x7c] sm:$0xff]
        %v3729 = vld [vmem:[%s3529 + $0x84] sm:$0x3f]
        %v3730 = vld [vmem:[%s3529 + $0x94] sm:$0xff]
        %v3731 = vld [vmem:[%s3529 + $0x9c] sm:$0x3f]
        %v3732 = vld [vmem:[%s1216 + $0x4] sm:$0x1]
        %v3733 = vlaneseq
        %v3734 = vshrl.u32 %v3733, 7
        %v3735 = vsub.s32 0, %v3734
        %v3736 = vrot.slane %v3732, %v3735
        %v3737 = vmul.f32 %v3718, %v3736
        %v3738 = vmul.f32 %v3719, %v3736
        %v3739 = vmul.f32 %v3720, %v3736
        %v3740 = vmul.f32 %v3721, %v3736
        %v3741 = vmul.f32 %v3722, %v3736
        %v3742 = vmul.f32 %v3723, %v3736
        %v3743 = vmul.f32 %v3724, %v3736
        %v3744 = vmul.f32 %v3725, %v3736
        %v3745 = vmul.f32 %v3726, %v3736
        %v3746 = vmul.f32 %v3727, %v3736
        %v3747 = vmul.f32 %v3728, %v3736
        %v3748 = vmul.f32 %v3729, %v3736
        %v3749 = vmul.f32 %v3730, %v3736
        %v3750 = vmul.f32 %v3731, %v3736
        %v3751 = vadd.f32 %v3704, %v3737
        %v3752 = vadd.f32 %v3705, %v3738
        %v3753 = vadd.f32 %v3706, %v3739
        %v3754 = vadd.f32 %v3707, %v3740
        %v3755 = vadd.f32 %v3708, %v3741
        %v3756 = vadd.f32 %v3709, %v3742
        %v3757 = vadd.f32 %v3710, %v3743
        %v3758 = vadd.f32 %v3711, %v3744
        %v3759 = vadd.f32 %v3712, %v3745
        %v3760 = vadd.f32 %v3713, %v3746
        %v3761 = vadd.f32 %v3714, %v3747
        %v3762 = vadd.f32 %v3715, %v3748
        %v3763 = vadd.f32 %v3716, %v3749
        %v3764 = vadd.f32 %v3717, %v3750
        %v3765 = vld [vmem:[%s3529 + $0x5] sm:$0xff]
        %v3766 = vld [vmem:[%s3529 + $0xd] sm:$0x3f]
        %v3767 = vld [vmem:[%s3529 + $0x1d] sm:$0xff]
        %v3768 = vld [vmem:[%s3529 + $0x25] sm:$0x3f]
        %v3769 = vld [vmem:[%s3529 + $0x35] sm:$0xff]
        %v3770 = vld [vmem:[%s3529 + $0x3d] sm:$0x3f]
        %v3771 = vld [vmem:[%s3529 + $0x4d] sm:$0xff]
        %v3772 = vld [vmem:[%s3529 + $0x55] sm:$0x3f]
        %v3773 = vld [vmem:[%s3529 + $0x65] sm:$0xff]
        %v3774 = vld [vmem:[%s3529 + $0x6d] sm:$0x3f]
        %v3775 = vld [vmem:[%s3529 + $0x7d] sm:$0xff]
        %v3776 = vld [vmem:[%s3529 + $0x85] sm:$0x3f]
        %v3777 = vld [vmem:[%s3529 + $0x95] sm:$0xff]
        %v3778 = vld [vmem:[%s3529 + $0x9d] sm:$0x3f]
        %v3779 = vld [vmem:[%s1216 + $0x5] sm:$0x1]
        %v3780 = vlaneseq
        %v3781 = vshrl.u32 %v3780, 7
        %v3782 = vsub.s32 0, %v3781
        %v3783 = vrot.slane %v3779, %v3782
        %v3784 = vmul.f32 %v3765, %v3783
        %v3785 = vmul.f32 %v3766, %v3783
        %v3786 = vmul.f32 %v3767, %v3783
        %v3787 = vmul.f32 %v3768, %v3783
        %v3788 = vmul.f32 %v3769, %v3783
        %v3789 = vmul.f32 %v3770, %v3783
        %v3790 = vmul.f32 %v3771, %v3783
        %v3791 = vmul.f32 %v3772, %v3783
        %v3792 = vmul.f32 %v3773, %v3783
        %v3793 = vmul.f32 %v3774, %v3783
        %v3794 = vmul.f32 %v3775, %v3783
        %v3795 = vmul.f32 %v3776, %v3783
        %v3796 = vmul.f32 %v3777, %v3783
        %v3797 = vmul.f32 %v3778, %v3783
        %v3798 = vadd.f32 %v3751, %v3784
        %v3799 = vadd.f32 %v3752, %v3785
        %v3800 = vadd.f32 %v3753, %v3786
        %v3801 = vadd.f32 %v3754, %v3787
        %v3802 = vadd.f32 %v3755, %v3788
        %v3803 = vadd.f32 %v3756, %v3789
        %v3804 = vadd.f32 %v3757, %v3790
        %v3805 = vadd.f32 %v3758, %v3791
        %v3806 = vadd.f32 %v3759, %v3792
        %v3807 = vadd.f32 %v3760, %v3793
        %v3808 = vadd.f32 %v3761, %v3794
        %v3809 = vadd.f32 %v3762, %v3795
        %v3810 = vadd.f32 %v3763, %v3796
        %v3811 = vadd.f32 %v3764, %v3797
        %v3812 = vld [vmem:[%s3529 + $0x6] sm:$0xff]
        %v3813 = vld [vmem:[%s3529 + $0xe] sm:$0x3f]
        %v3814 = vld [vmem:[%s3529 + $0x1e] sm:$0xff]
        %v3815 = vld [vmem:[%s3529 + $0x26] sm:$0x3f]
        %v3816 = vld [vmem:[%s3529 + $0x36] sm:$0xff]
        %v3817 = vld [vmem:[%s3529 + $0x3e] sm:$0x3f]
        %v3818 = vld [vmem:[%s3529 + $0x4e] sm:$0xff]
        %v3819 = vld [vmem:[%s3529 + $0x56] sm:$0x3f]
        %v3820 = vld [vmem:[%s3529 + $0x66] sm:$0xff]
        %v3821 = vld [vmem:[%s3529 + $0x6e] sm:$0x3f]
        %v3822 = vld [vmem:[%s3529 + $0x7e] sm:$0xff]
        %v3823 = vld [vmem:[%s3529 + $0x86] sm:$0x3f]
        %v3824 = vld [vmem:[%s3529 + $0x96] sm:$0xff]
        %v3825 = vld [vmem:[%s3529 + $0x9e] sm:$0x3f]
        %v3826 = vld [vmem:[%s1216 + $0x6] sm:$0x1]
        %v3827 = vlaneseq
        %v3828 = vshrl.u32 %v3827, 7
        %v3829 = vsub.s32 0, %v3828
        %v3830 = vrot.slane %v3826, %v3829
        %v3831 = vmul.f32 %v3812, %v3830
        %v3832 = vmul.f32 %v3813, %v3830
        %v3833 = vmul.f32 %v3814, %v3830
        %v3834 = vmul.f32 %v3815, %v3830
        %v3835 = vmul.f32 %v3816, %v3830
        %v3836 = vmul.f32 %v3817, %v3830
        %v3837 = vmul.f32 %v3818, %v3830
        %v3838 = vmul.f32 %v3819, %v3830
        %v3839 = vmul.f32 %v3820, %v3830
        %v3840 = vmul.f32 %v3821, %v3830
        %v3841 = vmul.f32 %v3822, %v3830
        %v3842 = vmul.f32 %v3823, %v3830
        %v3843 = vmul.f32 %v3824, %v3830
        %v3844 = vmul.f32 %v3825, %v3830
        %v3845 = vadd.f32 %v3798, %v3831
        %v3846 = vadd.f32 %v3799, %v3832
        %v3847 = vadd.f32 %v3800, %v3833
        %v3848 = vadd.f32 %v3801, %v3834
        %v3849 = vadd.f32 %v3802, %v3835
        %v3850 = vadd.f32 %v3803, %v3836
        %v3851 = vadd.f32 %v3804, %v3837
        %v3852 = vadd.f32 %v3805, %v3838
        %v3853 = vadd.f32 %v3806, %v3839
        %v3854 = vadd.f32 %v3807, %v3840
        %v3855 = vadd.f32 %v3808, %v3841
        %v3856 = vadd.f32 %v3809, %v3842
        %v3857 = vadd.f32 %v3810, %v3843
        %v3858 = vadd.f32 %v3811, %v3844
        %s3859 = scalar_lea.vmem [#allocation2], 240
        %v3860 = vld [vmem:[%s3859] sm:$0xff]
        %v3861 = vld [vmem:[%s3859 + $0x8] sm:$0x3f]
        %v3862 = vld [vmem:[%s3859 + $0x18] sm:$0xff]
        %v3863 = vld [vmem:[%s3859 + $0x20] sm:$0x3f]
        %v3864 = vld [vmem:[%s3859 + $0x30] sm:$0xff]
        %v3865 = vld [vmem:[%s3859 + $0x38] sm:$0x3f]
        %v3866 = vld [vmem:[%s3859 + $0x48] sm:$0xff]
        %v3867 = vld [vmem:[%s3859 + $0x50] sm:$0x3f]
        %v3868 = vld [vmem:[%s3859 + $0x60] sm:$0xff]
        %v3869 = vld [vmem:[%s3859 + $0x68] sm:$0x3f]
        %v3870 = vld [vmem:[%s3859 + $0x78] sm:$0xff]
        %v3871 = vld [vmem:[%s3859 + $0x80] sm:$0x3f]
        %v3872 = vld [vmem:[%s3859 + $0x90] sm:$0xff]
        %v3873 = vld [vmem:[%s3859 + $0x98] sm:$0x3f]
        %v3874 = vld [vmem:[%s1546] sm:$0x1]
        %v3875 = vlaneseq
        %v3876 = vshrl.u32 %v3875, 7
        %v3877 = vsub.s32 0, %v3876
        %v3878 = vrot.slane %v3874, %v3877
        %v3879 = vmul.f32 %v3860, %v3878
        %v3880 = vmul.f32 %v3861, %v3878
        %v3881 = vmul.f32 %v3862, %v3878
        %v3882 = vmul.f32 %v3863, %v3878
        %v3883 = vmul.f32 %v3864, %v3878
        %v3884 = vmul.f32 %v3865, %v3878
        %v3885 = vmul.f32 %v3866, %v3878
        %v3886 = vmul.f32 %v3867, %v3878
        %v3887 = vmul.f32 %v3868, %v3878
        %v3888 = vmul.f32 %v3869, %v3878
        %v3889 = vmul.f32 %v3870, %v3878
        %v3890 = vmul.f32 %v3871, %v3878
        %v3891 = vmul.f32 %v3872, %v3878
        %v3892 = vmul.f32 %v3873, %v3878
        %v3893 = vadd.f32 %v3845, %v3879
        %v3894 = vadd.f32 %v3846, %v3880
        %v3895 = vadd.f32 %v3847, %v3881
        %v3896 = vadd.f32 %v3848, %v3882
        %v3897 = vadd.f32 %v3849, %v3883
        %v3898 = vadd.f32 %v3850, %v3884
        %v3899 = vadd.f32 %v3851, %v3885
        %v3900 = vadd.f32 %v3852, %v3886
        %v3901 = vadd.f32 %v3853, %v3887
        %v3902 = vadd.f32 %v3854, %v3888
        %v3903 = vadd.f32 %v3855, %v3889
        %v3904 = vadd.f32 %v3856, %v3890
        %v3905 = vadd.f32 %v3857, %v3891
        %v3906 = vadd.f32 %v3858, %v3892
        %v3907 = vld [vmem:[%s3859 + $0x1] sm:$0xff]
        %v3908 = vld [vmem:[%s3859 + $0x9] sm:$0x3f]
        %v3909 = vld [vmem:[%s3859 + $0x19] sm:$0xff]
        %v3910 = vld [vmem:[%s3859 + $0x21] sm:$0x3f]
        %v3911 = vld [vmem:[%s3859 + $0x31] sm:$0xff]
        %v3912 = vld [vmem:[%s3859 + $0x39] sm:$0x3f]
        %v3913 = vld [vmem:[%s3859 + $0x49] sm:$0xff]
        %v3914 = vld [vmem:[%s3859 + $0x51] sm:$0x3f]
        %v3915 = vld [vmem:[%s3859 + $0x61] sm:$0xff]
        %v3916 = vld [vmem:[%s3859 + $0x69] sm:$0x3f]
        %v3917 = vld [vmem:[%s3859 + $0x79] sm:$0xff]
        %v3918 = vld [vmem:[%s3859 + $0x81] sm:$0x3f]
        %v3919 = vld [vmem:[%s3859 + $0x91] sm:$0xff]
        %v3920 = vld [vmem:[%s3859 + $0x99] sm:$0x3f]
        %v3921 = vld [vmem:[%s1546 + $0x1] sm:$0x1]
        %v3922 = vlaneseq
        %v3923 = vshrl.u32 %v3922, 7
        %v3924 = vsub.s32 0, %v3923
        %v3925 = vrot.slane %v3921, %v3924
        %v3926 = vmul.f32 %v3907, %v3925
        %v3927 = vmul.f32 %v3908, %v3925
        %v3928 = vmul.f32 %v3909, %v3925
        %v3929 = vmul.f32 %v3910, %v3925
        %v3930 = vmul.f32 %v3911, %v3925
        %v3931 = vmul.f32 %v3912, %v3925
        %v3932 = vmul.f32 %v3913, %v3925
        %v3933 = vmul.f32 %v3914, %v3925
        %v3934 = vmul.f32 %v3915, %v3925
        %v3935 = vmul.f32 %v3916, %v3925
        %v3936 = vmul.f32 %v3917, %v3925
        %v3937 = vmul.f32 %v3918, %v3925
        %v3938 = vmul.f32 %v3919, %v3925
        %v3939 = vmul.f32 %v3920, %v3925
        %v3940 = vadd.f32 %v3893, %v3926
        %v3941 = vadd.f32 %v3894, %v3927
        %v3942 = vadd.f32 %v3895, %v3928
        %v3943 = vadd.f32 %v3896, %v3929
        %v3944 = vadd.f32 %v3897, %v3930
        %v3945 = vadd.f32 %v3898, %v3931
        %v3946 = vadd.f32 %v3899, %v3932
        %v3947 = vadd.f32 %v3900, %v3933
        %v3948 = vadd.f32 %v3901, %v3934
        %v3949 = vadd.f32 %v3902, %v3935
        %v3950 = vadd.f32 %v3903, %v3936
        %v3951 = vadd.f32 %v3904, %v3937
        %v3952 = vadd.f32 %v3905, %v3938
        %v3953 = vadd.f32 %v3906, %v3939
        %v3954 = vld [vmem:[%s3859 + $0x2] sm:$0xff]
        %v3955 = vld [vmem:[%s3859 + $0xa] sm:$0x3f]
        %v3956 = vld [vmem:[%s3859 + $0x1a] sm:$0xff]
        %v3957 = vld [vmem:[%s3859 + $0x22] sm:$0x3f]
        %v3958 = vld [vmem:[%s3859 + $0x32] sm:$0xff]
        %v3959 = vld [vmem:[%s3859 + $0x3a] sm:$0x3f]
        %v3960 = vld [vmem:[%s3859 + $0x4a] sm:$0xff]
        %v3961 = vld [vmem:[%s3859 + $0x52] sm:$0x3f]
        %v3962 = vld [vmem:[%s3859 + $0x62] sm:$0xff]
        %v3963 = vld [vmem:[%s3859 + $0x6a] sm:$0x3f]
        %v3964 = vld [vmem:[%s3859 + $0x7a] sm:$0xff]
        %v3965 = vld [vmem:[%s3859 + $0x82] sm:$0x3f]
        %v3966 = vld [vmem:[%s3859 + $0x92] sm:$0xff]
        %v3967 = vld [vmem:[%s3859 + $0x9a] sm:$0x3f]
        %v3968 = vld [vmem:[%s1546 + $0x2] sm:$0x1]
        %v3969 = vlaneseq
        %v3970 = vshrl.u32 %v3969, 7
        %v3971 = vsub.s32 0, %v3970
        %v3972 = vrot.slane %v3968, %v3971
        %v3973 = vmul.f32 %v3954, %v3972
        %v3974 = vmul.f32 %v3955, %v3972
        %v3975 = vmul.f32 %v3956, %v3972
        %v3976 = vmul.f32 %v3957, %v3972
        %v3977 = vmul.f32 %v3958, %v3972
        %v3978 = vmul.f32 %v3959, %v3972
        %v3979 = vmul.f32 %v3960, %v3972
        %v3980 = vmul.f32 %v3961, %v3972
        %v3981 = vmul.f32 %v3962, %v3972
        %v3982 = vmul.f32 %v3963, %v3972
        %v3983 = vmul.f32 %v3964, %v3972
        %v3984 = vmul.f32 %v3965, %v3972
        %v3985 = vmul.f32 %v3966, %v3972
        %v3986 = vmul.f32 %v3967, %v3972
        %v3987 = vadd.f32 %v3940, %v3973
        %v3988 = vadd.f32 %v3941, %v3974
        %v3989 = vadd.f32 %v3942, %v3975
        %v3990 = vadd.f32 %v3943, %v3976
        %v3991 = vadd.f32 %v3944, %v3977
        %v3992 = vadd.f32 %v3945, %v3978
        %v3993 = vadd.f32 %v3946, %v3979
        %v3994 = vadd.f32 %v3947, %v3980
        %v3995 = vadd.f32 %v3948, %v3981
        %v3996 = vadd.f32 %v3949, %v3982
        %v3997 = vadd.f32 %v3950, %v3983
        %v3998 = vadd.f32 %v3951, %v3984
        %v3999 = vadd.f32 %v3952, %v3985
        %v4000 = vadd.f32 %v3953, %v3986
        %v4001 = vld [vmem:[%s3859 + $0x3] sm:$0xff]
        %v4002 = vld [vmem:[%s3859 + $0xb] sm:$0x3f]
        %v4003 = vld [vmem:[%s3859 + $0x1b] sm:$0xff]
        %v4004 = vld [vmem:[%s3859 + $0x23] sm:$0x3f]
        %v4005 = vld [vmem:[%s3859 + $0x33] sm:$0xff]
        %v4006 = vld [vmem:[%s3859 + $0x3b] sm:$0x3f]
        %v4007 = vld [vmem:[%s3859 + $0x4b] sm:$0xff]
        %v4008 = vld [vmem:[%s3859 + $0x53] sm:$0x3f]
        %v4009 = vld [vmem:[%s3859 + $0x63] sm:$0xff]
        %v4010 = vld [vmem:[%s3859 + $0x6b] sm:$0x3f]
        %v4011 = vld [vmem:[%s3859 + $0x7b] sm:$0xff]
        %v4012 = vld [vmem:[%s3859 + $0x83] sm:$0x3f]
        %v4013 = vld [vmem:[%s3859 + $0x93] sm:$0xff]
        %v4014 = vld [vmem:[%s3859 + $0x9b] sm:$0x3f]
        %v4015 = vld [vmem:[%s1546 + $0x3] sm:$0x1]
        %v4016 = vlaneseq
        %v4017 = vshrl.u32 %v4016, 7
        %v4018 = vsub.s32 0, %v4017
        %v4019 = vrot.slane %v4015, %v4018
        %v4020 = vmul.f32 %v4001, %v4019
        %v4021 = vmul.f32 %v4002, %v4019
        %v4022 = vmul.f32 %v4003, %v4019
        %v4023 = vmul.f32 %v4004, %v4019
        %v4024 = vmul.f32 %v4005, %v4019
        %v4025 = vmul.f32 %v4006, %v4019
        %v4026 = vmul.f32 %v4007, %v4019
        %v4027 = vmul.f32 %v4008, %v4019
        %v4028 = vmul.f32 %v4009, %v4019
        %v4029 = vmul.f32 %v4010, %v4019
        %v4030 = vmul.f32 %v4011, %v4019
        %v4031 = vmul.f32 %v4012, %v4019
        %v4032 = vmul.f32 %v4013, %v4019
        %v4033 = vmul.f32 %v4014, %v4019
        %v4034 = vadd.f32 %v3987, %v4020
        %v4035 = vadd.f32 %v3988, %v4021
        %v4036 = vadd.f32 %v3989, %v4022
        %v4037 = vadd.f32 %v3990, %v4023
        %v4038 = vadd.f32 %v3991, %v4024
        %v4039 = vadd.f32 %v3992, %v4025
        %v4040 = vadd.f32 %v3993, %v4026
        %v4041 = vadd.f32 %v3994, %v4027
        %v4042 = vadd.f32 %v3995, %v4028
        %v4043 = vadd.f32 %v3996, %v4029
        %v4044 = vadd.f32 %v3997, %v4030
        %v4045 = vadd.f32 %v3998, %v4031
        %v4046 = vadd.f32 %v3999, %v4032
        %v4047 = vadd.f32 %v4000, %v4033
        %v4048 = vld [vmem:[%s3859 + $0x4] sm:$0xff]
        %v4049 = vld [vmem:[%s3859 + $0xc] sm:$0x3f]
        %v4050 = vld [vmem:[%s3859 + $0x1c] sm:$0xff]
        %v4051 = vld [vmem:[%s3859 + $0x24] sm:$0x3f]
        %v4052 = vld [vmem:[%s3859 + $0x34] sm:$0xff]
        %v4053 = vld [vmem:[%s3859 + $0x3c] sm:$0x3f]
        %v4054 = vld [vmem:[%s3859 + $0x4c] sm:$0xff]
        %v4055 = vld [vmem:[%s3859 + $0x54] sm:$0x3f]
        %v4056 = vld [vmem:[%s3859 + $0x64] sm:$0xff]
        %v4057 = vld [vmem:[%s3859 + $0x6c] sm:$0x3f]
        %v4058 = vld [vmem:[%s3859 + $0x7c] sm:$0xff]
        %v4059 = vld [vmem:[%s3859 + $0x84] sm:$0x3f]
        %v4060 = vld [vmem:[%s3859 + $0x94] sm:$0xff]
        %v4061 = vld [vmem:[%s3859 + $0x9c] sm:$0x3f]
        %v4062 = vld [vmem:[%s1546 + $0x4] sm:$0x1]
        %v4063 = vlaneseq
        %v4064 = vshrl.u32 %v4063, 7
        %v4065 = vsub.s32 0, %v4064
        %v4066 = vrot.slane %v4062, %v4065
        %v4067 = vmul.f32 %v4048, %v4066
        %v4068 = vmul.f32 %v4049, %v4066
        %v4069 = vmul.f32 %v4050, %v4066
        %v4070 = vmul.f32 %v4051, %v4066
        %v4071 = vmul.f32 %v4052, %v4066
        %v4072 = vmul.f32 %v4053, %v4066
        %v4073 = vmul.f32 %v4054, %v4066
        %v4074 = vmul.f32 %v4055, %v4066
        %v4075 = vmul.f32 %v4056, %v4066
        %v4076 = vmul.f32 %v4057, %v4066
        %v4077 = vmul.f32 %v4058, %v4066
        %v4078 = vmul.f32 %v4059, %v4066
        %v4079 = vmul.f32 %v4060, %v4066
        %v4080 = vmul.f32 %v4061, %v4066
        %v4081 = vadd.f32 %v4034, %v4067
        %v4082 = vadd.f32 %v4035, %v4068
        %v4083 = vadd.f32 %v4036, %v4069
        %v4084 = vadd.f32 %v4037, %v4070
        %v4085 = vadd.f32 %v4038, %v4071
        %v4086 = vadd.f32 %v4039, %v4072
        %v4087 = vadd.f32 %v4040, %v4073
        %v4088 = vadd.f32 %v4041, %v4074
        %v4089 = vadd.f32 %v4042, %v4075
        %v4090 = vadd.f32 %v4043, %v4076
        %v4091 = vadd.f32 %v4044, %v4077
        %v4092 = vadd.f32 %v4045, %v4078
        %v4093 = vadd.f32 %v4046, %v4079
        %v4094 = vadd.f32 %v4047, %v4080
        %v4095 = vld [vmem:[%s3859 + $0x5] sm:$0xff]
        %v4096 = vld [vmem:[%s3859 + $0xd] sm:$0x3f]
        %v4097 = vld [vmem:[%s3859 + $0x1d] sm:$0xff]
        %v4098 = vld [vmem:[%s3859 + $0x25] sm:$0x3f]
        %v4099 = vld [vmem:[%s3859 + $0x35] sm:$0xff]
        %v4100 = vld [vmem:[%s3859 + $0x3d] sm:$0x3f]
        %v4101 = vld [vmem:[%s3859 + $0x4d] sm:$0xff]
        %v4102 = vld [vmem:[%s3859 + $0x55] sm:$0x3f]
        %v4103 = vld [vmem:[%s3859 + $0x65] sm:$0xff]
        %v4104 = vld [vmem:[%s3859 + $0x6d] sm:$0x3f]
        %v4105 = vld [vmem:[%s3859 + $0x7d] sm:$0xff]
        %v4106 = vld [vmem:[%s3859 + $0x85] sm:$0x3f]
        %v4107 = vld [vmem:[%s3859 + $0x95] sm:$0xff]
        %v4108 = vld [vmem:[%s3859 + $0x9d] sm:$0x3f]
        %v4109 = vld [vmem:[%s1546 + $0x5] sm:$0x1]
        %v4110 = vlaneseq
        %v4111 = vshrl.u32 %v4110, 7
        %v4112 = vsub.s32 0, %v4111
        %v4113 = vrot.slane %v4109, %v4112
        %v4114 = vmul.f32 %v4095, %v4113
        %v4115 = vmul.f32 %v4096, %v4113
        %v4116 = vmul.f32 %v4097, %v4113
        %v4117 = vmul.f32 %v4098, %v4113
        %v4118 = vmul.f32 %v4099, %v4113
        %v4119 = vmul.f32 %v4100, %v4113
        %v4120 = vmul.f32 %v4101, %v4113
        %v4121 = vmul.f32 %v4102, %v4113
        %v4122 = vmul.f32 %v4103, %v4113
        %v4123 = vmul.f32 %v4104, %v4113
        %v4124 = vmul.f32 %v4105, %v4113
        %v4125 = vmul.f32 %v4106, %v4113
        %v4126 = vmul.f32 %v4107, %v4113
        %v4127 = vmul.f32 %v4108, %v4113
        %v4128 = vadd.f32 %v4081, %v4114
        %v4129 = vadd.f32 %v4082, %v4115
        %v4130 = vadd.f32 %v4083, %v4116
        %v4131 = vadd.f32 %v4084, %v4117
        %v4132 = vadd.f32 %v4085, %v4118
        %v4133 = vadd.f32 %v4086, %v4119
        %v4134 = vadd.f32 %v4087, %v4120
        %v4135 = vadd.f32 %v4088, %v4121
        %v4136 = vadd.f32 %v4089, %v4122
        %v4137 = vadd.f32 %v4090, %v4123
        %v4138 = vadd.f32 %v4091, %v4124
        %v4139 = vadd.f32 %v4092, %v4125
        %v4140 = vadd.f32 %v4093, %v4126
        %v4141 = vadd.f32 %v4094, %v4127
        %v4142 = vld [vmem:[%s3859 + $0x6] sm:$0xff]
        %v4143 = vld [vmem:[%s3859 + $0xe] sm:$0x3f]
        %v4144 = vld [vmem:[%s3859 + $0x1e] sm:$0xff]
        %v4145 = vld [vmem:[%s3859 + $0x26] sm:$0x3f]
        %v4146 = vld [vmem:[%s3859 + $0x36] sm:$0xff]
        %v4147 = vld [vmem:[%s3859 + $0x3e] sm:$0x3f]
        %v4148 = vld [vmem:[%s3859 + $0x4e] sm:$0xff]
        %v4149 = vld [vmem:[%s3859 + $0x56] sm:$0x3f]
        %v4150 = vld [vmem:[%s3859 + $0x66] sm:$0xff]
        %v4151 = vld [vmem:[%s3859 + $0x6e] sm:$0x3f]
        %v4152 = vld [vmem:[%s3859 + $0x7e] sm:$0xff]
        %v4153 = vld [vmem:[%s3859 + $0x86] sm:$0x3f]
        %v4154 = vld [vmem:[%s3859 + $0x96] sm:$0xff]
        %v4155 = vld [vmem:[%s3859 + $0x9e] sm:$0x3f]
        %v4156 = vld [vmem:[%s1546 + $0x6] sm:$0x1]
        %v4157 = vlaneseq
        %v4158 = vshrl.u32 %v4157, 7
        %v4159 = vsub.s32 0, %v4158
        %v4160 = vrot.slane %v4156, %v4159
        %v4161 = vmul.f32 %v4142, %v4160
        %v4162 = vmul.f32 %v4143, %v4160
        %v4163 = vmul.f32 %v4144, %v4160
        %v4164 = vmul.f32 %v4145, %v4160
        %v4165 = vmul.f32 %v4146, %v4160
        %v4166 = vmul.f32 %v4147, %v4160
        %v4167 = vmul.f32 %v4148, %v4160
        %v4168 = vmul.f32 %v4149, %v4160
        %v4169 = vmul.f32 %v4150, %v4160
        %v4170 = vmul.f32 %v4151, %v4160
        %v4171 = vmul.f32 %v4152, %v4160
        %v4172 = vmul.f32 %v4153, %v4160
        %v4173 = vmul.f32 %v4154, %v4160
        %v4174 = vmul.f32 %v4155, %v4160
        %v4175 = vadd.f32 %v4128, %v4161
        %v4176 = vadd.f32 %v4129, %v4162
        %v4177 = vadd.f32 %v4130, %v4163
        %v4178 = vadd.f32 %v4131, %v4164
        %v4179 = vadd.f32 %v4132, %v4165
        %v4180 = vadd.f32 %v4133, %v4166
        %v4181 = vadd.f32 %v4134, %v4167
        %v4182 = vadd.f32 %v4135, %v4168
        %v4183 = vadd.f32 %v4136, %v4169
        %v4184 = vadd.f32 %v4137, %v4170
        %v4185 = vadd.f32 %v4138, %v4171
        %v4186 = vadd.f32 %v4139, %v4172
        %v4187 = vadd.f32 %v4140, %v4173
        %v4188 = vadd.f32 %v4141, %v4174
        %s4189 = scalar_lea.vmem [#allocation2], 264
        %v4190 = vld [vmem:[%s4189] sm:$0xff]
        %v4191 = vld [vmem:[%s4189 + $0x8] sm:$0x3f]
        %v4192 = vld [vmem:[%s4189 + $0x18] sm:$0xff]
        %v4193 = vld [vmem:[%s4189 + $0x20] sm:$0x3f]
        %v4194 = vld [vmem:[%s4189 + $0x30] sm:$0xff]
        %v4195 = vld [vmem:[%s4189 + $0x38] sm:$0x3f]
        %v4196 = vld [vmem:[%s4189 + $0x48] sm:$0xff]
        %v4197 = vld [vmem:[%s4189 + $0x50] sm:$0x3f]
        %v4198 = vld [vmem:[%s4189 + $0x60] sm:$0xff]
        %v4199 = vld [vmem:[%s4189 + $0x68] sm:$0x3f]
        %v4200 = vld [vmem:[%s4189 + $0x78] sm:$0xff]
        %v4201 = vld [vmem:[%s4189 + $0x80] sm:$0x3f]
        %v4202 = vld [vmem:[%s4189 + $0x90] sm:$0xff]
        %v4203 = vld [vmem:[%s4189 + $0x98] sm:$0x3f]
        %v4204 = vld [vmem:[%s1877] sm:$0x1]
        %v4205 = vlaneseq
        %v4206 = vshrl.u32 %v4205, 7
        %v4207 = vsub.s32 0, %v4206
        %v4208 = vrot.slane %v4204, %v4207
        %v4209 = vmul.f32 %v4190, %v4208
        %v4210 = vmul.f32 %v4191, %v4208
        %v4211 = vmul.f32 %v4192, %v4208
        %v4212 = vmul.f32 %v4193, %v4208
        %v4213 = vmul.f32 %v4194, %v4208
        %v4214 = vmul.f32 %v4195, %v4208
        %v4215 = vmul.f32 %v4196, %v4208
        %v4216 = vmul.f32 %v4197, %v4208
        %v4217 = vmul.f32 %v4198, %v4208
        %v4218 = vmul.f32 %v4199, %v4208
        %v4219 = vmul.f32 %v4200, %v4208
        %v4220 = vmul.f32 %v4201, %v4208
        %v4221 = vmul.f32 %v4202, %v4208
        %v4222 = vmul.f32 %v4203, %v4208
        %v4223 = vadd.f32 %v4175, %v4209
        %v4224 = vadd.f32 %v4176, %v4210
        %v4225 = vadd.f32 %v4177, %v4211
        %v4226 = vadd.f32 %v4178, %v4212
        %v4227 = vadd.f32 %v4179, %v4213
        %v4228 = vadd.f32 %v4180, %v4214
        %v4229 = vadd.f32 %v4181, %v4215
        %v4230 = vadd.f32 %v4182, %v4216
        %v4231 = vadd.f32 %v4183, %v4217
        %v4232 = vadd.f32 %v4184, %v4218
        %v4233 = vadd.f32 %v4185, %v4219
        %v4234 = vadd.f32 %v4186, %v4220
        %v4235 = vadd.f32 %v4187, %v4221
        %v4236 = vadd.f32 %v4188, %v4222
        %v4237 = vld [vmem:[%s4189 + $0x1] sm:$0xff]
        %v4238 = vld [vmem:[%s4189 + $0x9] sm:$0x3f]
        %v4239 = vld [vmem:[%s4189 + $0x19] sm:$0xff]
        %v4240 = vld [vmem:[%s4189 + $0x21] sm:$0x3f]
        %v4241 = vld [vmem:[%s4189 + $0x31] sm:$0xff]
        %v4242 = vld [vmem:[%s4189 + $0x39] sm:$0x3f]
        %v4243 = vld [vmem:[%s4189 + $0x49] sm:$0xff]
        %v4244 = vld [vmem:[%s4189 + $0x51] sm:$0x3f]
        %v4245 = vld [vmem:[%s4189 + $0x61] sm:$0xff]
        %v4246 = vld [vmem:[%s4189 + $0x69] sm:$0x3f]
        %v4247 = vld [vmem:[%s4189 + $0x79] sm:$0xff]
        %v4248 = vld [vmem:[%s4189 + $0x81] sm:$0x3f]
        %v4249 = vld [vmem:[%s4189 + $0x91] sm:$0xff]
        %v4250 = vld [vmem:[%s4189 + $0x99] sm:$0x3f]
        %v4251 = vld [vmem:[%s1877 + $0x1] sm:$0x1]
        %v4252 = vlaneseq
        %v4253 = vshrl.u32 %v4252, 7
        %v4254 = vsub.s32 0, %v4253
        %v4255 = vrot.slane %v4251, %v4254
        %v4256 = vmul.f32 %v4237, %v4255
        %v4257 = vmul.f32 %v4238, %v4255
        %v4258 = vmul.f32 %v4239, %v4255
        %v4259 = vmul.f32 %v4240, %v4255
        %v4260 = vmul.f32 %v4241, %v4255
        %v4261 = vmul.f32 %v4242, %v4255
        %v4262 = vmul.f32 %v4243, %v4255
        %v4263 = vmul.f32 %v4244, %v4255
        %v4264 = vmul.f32 %v4245, %v4255
        %v4265 = vmul.f32 %v4246, %v4255
        %v4266 = vmul.f32 %v4247, %v4255
        %v4267 = vmul.f32 %v4248, %v4255
        %v4268 = vmul.f32 %v4249, %v4255
        %v4269 = vmul.f32 %v4250, %v4255
        %v4270 = vadd.f32 %v4223, %v4256
        %v4271 = vadd.f32 %v4224, %v4257
        %v4272 = vadd.f32 %v4225, %v4258
        %v4273 = vadd.f32 %v4226, %v4259
        %v4274 = vadd.f32 %v4227, %v4260
        %v4275 = vadd.f32 %v4228, %v4261
        %v4276 = vadd.f32 %v4229, %v4262
        %v4277 = vadd.f32 %v4230, %v4263
        %v4278 = vadd.f32 %v4231, %v4264
        %v4279 = vadd.f32 %v4232, %v4265
        %v4280 = vadd.f32 %v4233, %v4266
        %v4281 = vadd.f32 %v4234, %v4267
        %v4282 = vadd.f32 %v4235, %v4268
        %v4283 = vadd.f32 %v4236, %v4269
        %v4284 = vld [vmem:[%s4189 + $0x2] sm:$0xff]
        %v4285 = vld [vmem:[%s4189 + $0xa] sm:$0x3f]
        %v4286 = vld [vmem:[%s4189 + $0x1a] sm:$0xff]
        %v4287 = vld [vmem:[%s4189 + $0x22] sm:$0x3f]
        %v4288 = vld [vmem:[%s4189 + $0x32] sm:$0xff]
        %v4289 = vld [vmem:[%s4189 + $0x3a] sm:$0x3f]
        %v4290 = vld [vmem:[%s4189 + $0x4a] sm:$0xff]
        %v4291 = vld [vmem:[%s4189 + $0x52] sm:$0x3f]
        %v4292 = vld [vmem:[%s4189 + $0x62] sm:$0xff]
        %v4293 = vld [vmem:[%s4189 + $0x6a] sm:$0x3f]
        %v4294 = vld [vmem:[%s4189 + $0x7a] sm:$0xff]
        %v4295 = vld [vmem:[%s4189 + $0x82] sm:$0x3f]
        %v4296 = vld [vmem:[%s4189 + $0x92] sm:$0xff]
        %v4297 = vld [vmem:[%s4189 + $0x9a] sm:$0x3f]
        %v4298 = vld [vmem:[%s1877 + $0x2] sm:$0x1]
        %v4299 = vlaneseq
        %v4300 = vshrl.u32 %v4299, 7
        %v4301 = vsub.s32 0, %v4300
        %v4302 = vrot.slane %v4298, %v4301
        %v4303 = vmul.f32 %v4284, %v4302
        %v4304 = vmul.f32 %v4285, %v4302
        %v4305 = vmul.f32 %v4286, %v4302
        %v4306 = vmul.f32 %v4287, %v4302
        %v4307 = vmul.f32 %v4288, %v4302
        %v4308 = vmul.f32 %v4289, %v4302
        %v4309 = vmul.f32 %v4290, %v4302
        %v4310 = vmul.f32 %v4291, %v4302
        %v4311 = vmul.f32 %v4292, %v4302
        %v4312 = vmul.f32 %v4293, %v4302
        %v4313 = vmul.f32 %v4294, %v4302
        %v4314 = vmul.f32 %v4295, %v4302
        %v4315 = vmul.f32 %v4296, %v4302
        %v4316 = vmul.f32 %v4297, %v4302
        %v4317 = vadd.f32 %v4270, %v4303
        %v4318 = vadd.f32 %v4271, %v4304
        %v4319 = vadd.f32 %v4272, %v4305
        %v4320 = vadd.f32 %v4273, %v4306
        %v4321 = vadd.f32 %v4274, %v4307
        %v4322 = vadd.f32 %v4275, %v4308
        %v4323 = vadd.f32 %v4276, %v4309
        %v4324 = vadd.f32 %v4277, %v4310
        %v4325 = vadd.f32 %v4278, %v4311
        %v4326 = vadd.f32 %v4279, %v4312
        %v4327 = vadd.f32 %v4280, %v4313
        %v4328 = vadd.f32 %v4281, %v4314
        %v4329 = vadd.f32 %v4282, %v4315
        %v4330 = vadd.f32 %v4283, %v4316
        %v4331 = vld [vmem:[%s4189 + $0x3] sm:$0xff]
        %v4332 = vld [vmem:[%s4189 + $0xb] sm:$0x3f]
        %v4333 = vld [vmem:[%s4189 + $0x1b] sm:$0xff]
        %v4334 = vld [vmem:[%s4189 + $0x23] sm:$0x3f]
        %v4335 = vld [vmem:[%s4189 + $0x33] sm:$0xff]
        %v4336 = vld [vmem:[%s4189 + $0x3b] sm:$0x3f]
        %v4337 = vld [vmem:[%s4189 + $0x4b] sm:$0xff]
        %v4338 = vld [vmem:[%s4189 + $0x53] sm:$0x3f]
        %v4339 = vld [vmem:[%s4189 + $0x63] sm:$0xff]
        %v4340 = vld [vmem:[%s4189 + $0x6b] sm:$0x3f]
        %v4341 = vld [vmem:[%s4189 + $0x7b] sm:$0xff]
        %v4342 = vld [vmem:[%s4189 + $0x83] sm:$0x3f]
        %v4343 = vld [vmem:[%s4189 + $0x93] sm:$0xff]
        %v4344 = vld [vmem:[%s4189 + $0x9b] sm:$0x3f]
        %v4345 = vld [vmem:[%s1877 + $0x3] sm:$0x1]
        %v4346 = vlaneseq
        %v4347 = vshrl.u32 %v4346, 7
        %v4348 = vsub.s32 0, %v4347
        %v4349 = vrot.slane %v4345, %v4348
        %v4350 = vmul.f32 %v4331, %v4349
        %v4351 = vmul.f32 %v4332, %v4349
        %v4352 = vmul.f32 %v4333, %v4349
        %v4353 = vmul.f32 %v4334, %v4349
        %v4354 = vmul.f32 %v4335, %v4349
        %v4355 = vmul.f32 %v4336, %v4349
        %v4356 = vmul.f32 %v4337, %v4349
        %v4357 = vmul.f32 %v4338, %v4349
        %v4358 = vmul.f32 %v4339, %v4349
        %v4359 = vmul.f32 %v4340, %v4349
        %v4360 = vmul.f32 %v4341, %v4349
        %v4361 = vmul.f32 %v4342, %v4349
        %v4362 = vmul.f32 %v4343, %v4349
        %v4363 = vmul.f32 %v4344, %v4349
        %v4364 = vadd.f32 %v4317, %v4350
        %v4365 = vadd.f32 %v4318, %v4351
        %v4366 = vadd.f32 %v4319, %v4352
        %v4367 = vadd.f32 %v4320, %v4353
        %v4368 = vadd.f32 %v4321, %v4354
        %v4369 = vadd.f32 %v4322, %v4355
        %v4370 = vadd.f32 %v4323, %v4356
        %v4371 = vadd.f32 %v4324, %v4357
        %v4372 = vadd.f32 %v4325, %v4358
        %v4373 = vadd.f32 %v4326, %v4359
        %v4374 = vadd.f32 %v4327, %v4360
        %v4375 = vadd.f32 %v4328, %v4361
        %v4376 = vadd.f32 %v4329, %v4362
        %v4377 = vadd.f32 %v4330, %v4363
        %v4378 = vld [vmem:[%s4189 + $0x4] sm:$0xff]
        %v4379 = vld [vmem:[%s4189 + $0xc] sm:$0x3f]
        %v4380 = vld [vmem:[%s4189 + $0x1c] sm:$0xff]
        %v4381 = vld [vmem:[%s4189 + $0x24] sm:$0x3f]
        %v4382 = vld [vmem:[%s4189 + $0x34] sm:$0xff]
        %v4383 = vld [vmem:[%s4189 + $0x3c] sm:$0x3f]
        %v4384 = vld [vmem:[%s4189 + $0x4c] sm:$0xff]
        %v4385 = vld [vmem:[%s4189 + $0x54] sm:$0x3f]
        %v4386 = vld [vmem:[%s4189 + $0x64] sm:$0xff]
        %v4387 = vld [vmem:[%s4189 + $0x6c] sm:$0x3f]
        %v4388 = vld [vmem:[%s4189 + $0x7c] sm:$0xff]
        %v4389 = vld [vmem:[%s4189 + $0x84] sm:$0x3f]
        %v4390 = vld [vmem:[%s4189 + $0x94] sm:$0xff]
        %v4391 = vld [vmem:[%s4189 + $0x9c] sm:$0x3f]
        %v4392 = vld [vmem:[%s1877 + $0x4] sm:$0x1]
        %v4393 = vlaneseq
        %v4394 = vshrl.u32 %v4393, 7
        %v4395 = vsub.s32 0, %v4394
        %v4396 = vrot.slane %v4392, %v4395
        %v4397 = vmul.f32 %v4378, %v4396
        %v4398 = vmul.f32 %v4379, %v4396
        %v4399 = vmul.f32 %v4380, %v4396
        %v4400 = vmul.f32 %v4381, %v4396
        %v4401 = vmul.f32 %v4382, %v4396
        %v4402 = vmul.f32 %v4383, %v4396
        %v4403 = vmul.f32 %v4384, %v4396
        %v4404 = vmul.f32 %v4385, %v4396
        %v4405 = vmul.f32 %v4386, %v4396
        %v4406 = vmul.f32 %v4387, %v4396
        %v4407 = vmul.f32 %v4388, %v4396
        %v4408 = vmul.f32 %v4389, %v4396
        %v4409 = vmul.f32 %v4390, %v4396
        %v4410 = vmul.f32 %v4391, %v4396
        %v4411 = vadd.f32 %v4364, %v4397
        %v4412 = vadd.f32 %v4365, %v4398
        %v4413 = vadd.f32 %v4366, %v4399
        %v4414 = vadd.f32 %v4367, %v4400
        %v4415 = vadd.f32 %v4368, %v4401
        %v4416 = vadd.f32 %v4369, %v4402
        %v4417 = vadd.f32 %v4370, %v4403
        %v4418 = vadd.f32 %v4371, %v4404
        %v4419 = vadd.f32 %v4372, %v4405
        %v4420 = vadd.f32 %v4373, %v4406
        %v4421 = vadd.f32 %v4374, %v4407
        %v4422 = vadd.f32 %v4375, %v4408
        %v4423 = vadd.f32 %v4376, %v4409
        %v4424 = vadd.f32 %v4377, %v4410
        %v4425 = vld [vmem:[%s4189 + $0x5] sm:$0xff]
        %v4426 = vld [vmem:[%s4189 + $0xd] sm:$0x3f]
        %v4427 = vld [vmem:[%s4189 + $0x1d] sm:$0xff]
        %v4428 = vld [vmem:[%s4189 + $0x25] sm:$0x3f]
        %v4429 = vld [vmem:[%s4189 + $0x35] sm:$0xff]
        %v4430 = vld [vmem:[%s4189 + $0x3d] sm:$0x3f]
        %v4431 = vld [vmem:[%s4189 + $0x4d] sm:$0xff]
        %v4432 = vld [vmem:[%s4189 + $0x55] sm:$0x3f]
        %v4433 = vld [vmem:[%s4189 + $0x65] sm:$0xff]
        %v4434 = vld [vmem:[%s4189 + $0x6d] sm:$0x3f]
        %v4435 = vld [vmem:[%s4189 + $0x7d] sm:$0xff]
        %v4436 = vld [vmem:[%s4189 + $0x85] sm:$0x3f]
        %v4437 = vld [vmem:[%s4189 + $0x95] sm:$0xff]
        %v4438 = vld [vmem:[%s4189 + $0x9d] sm:$0x3f]
        %v4439 = vld [vmem:[%s1877 + $0x5] sm:$0x1]
        %v4440 = vlaneseq
        %v4441 = vshrl.u32 %v4440, 7
        %v4442 = vsub.s32 0, %v4441
        %v4443 = vrot.slane %v4439, %v4442
        %v4444 = vmul.f32 %v4425, %v4443
        %v4445 = vmul.f32 %v4426, %v4443
        %v4446 = vmul.f32 %v4427, %v4443
        %v4447 = vmul.f32 %v4428, %v4443
        %v4448 = vmul.f32 %v4429, %v4443
        %v4449 = vmul.f32 %v4430, %v4443
        %v4450 = vmul.f32 %v4431, %v4443
        %v4451 = vmul.f32 %v4432, %v4443
        %v4452 = vmul.f32 %v4433, %v4443
        %v4453 = vmul.f32 %v4434, %v4443
        %v4454 = vmul.f32 %v4435, %v4443
        %v4455 = vmul.f32 %v4436, %v4443
        %v4456 = vmul.f32 %v4437, %v4443
        %v4457 = vmul.f32 %v4438, %v4443
        %v4458 = vadd.f32 %v4411, %v4444
        %v4459 = vadd.f32 %v4412, %v4445
        %v4460 = vadd.f32 %v4413, %v4446
        %v4461 = vadd.f32 %v4414, %v4447
        %v4462 = vadd.f32 %v4415, %v4448
        %v4463 = vadd.f32 %v4416, %v4449
        %v4464 = vadd.f32 %v4417, %v4450
        %v4465 = vadd.f32 %v4418, %v4451
        %v4466 = vadd.f32 %v4419, %v4452
        %v4467 = vadd.f32 %v4420, %v4453
        %v4468 = vadd.f32 %v4421, %v4454
        %v4469 = vadd.f32 %v4422, %v4455
        %v4470 = vadd.f32 %v4423, %v4456
        %v4471 = vadd.f32 %v4424, %v4457
        %v4472 = vld [vmem:[%s4189 + $0x6] sm:$0xff]
        %v4473 = vld [vmem:[%s4189 + $0xe] sm:$0x3f]
        %v4474 = vld [vmem:[%s4189 + $0x1e] sm:$0xff]
        %v4475 = vld [vmem:[%s4189 + $0x26] sm:$0x3f]
        %v4476 = vld [vmem:[%s4189 + $0x36] sm:$0xff]
        %v4477 = vld [vmem:[%s4189 + $0x3e] sm:$0x3f]
        %v4478 = vld [vmem:[%s4189 + $0x4e] sm:$0xff]
        %v4479 = vld [vmem:[%s4189 + $0x56] sm:$0x3f]
        %v4480 = vld [vmem:[%s4189 + $0x66] sm:$0xff]
        %v4481 = vld [vmem:[%s4189 + $0x6e] sm:$0x3f]
        %v4482 = vld [vmem:[%s4189 + $0x7e] sm:$0xff]
        %v4483 = vld [vmem:[%s4189 + $0x86] sm:$0x3f]
        %v4484 = vld [vmem:[%s4189 + $0x96] sm:$0xff]
        %v4485 = vld [vmem:[%s4189 + $0x9e] sm:$0x3f]
        %v4486 = vld [vmem:[%s1877 + $0x6] sm:$0x1]
        %v4487 = vlaneseq
        %v4488 = vshrl.u32 %v4487, 7
        %v4489 = vsub.s32 0, %v4488
        %v4490 = vrot.slane %v4486, %v4489
        %v4491 = vmul.f32 %v4472, %v4490
        %v4492 = vmul.f32 %v4473, %v4490
        %v4493 = vmul.f32 %v4474, %v4490
        %v4494 = vmul.f32 %v4475, %v4490
        %v4495 = vmul.f32 %v4476, %v4490
        %v4496 = vmul.f32 %v4477, %v4490
        %v4497 = vmul.f32 %v4478, %v4490
        %v4498 = vmul.f32 %v4479, %v4490
        %v4499 = vmul.f32 %v4480, %v4490
        %v4500 = vmul.f32 %v4481, %v4490
        %v4501 = vmul.f32 %v4482, %v4490
        %v4502 = vmul.f32 %v4483, %v4490
        %v4503 = vmul.f32 %v4484, %v4490
        %v4504 = vmul.f32 %v4485, %v4490
        %v4505 = vadd.f32 %v4458, %v4491
        %v4506 = vadd.f32 %v4459, %v4492
        %v4507 = vadd.f32 %v4460, %v4493
        %v4508 = vadd.f32 %v4461, %v4494
        %v4509 = vadd.f32 %v4462, %v4495
        %v4510 = vadd.f32 %v4463, %v4496
        %v4511 = vadd.f32 %v4464, %v4497
        %v4512 = vadd.f32 %v4465, %v4498
        %v4513 = vadd.f32 %v4466, %v4499
        %v4514 = vadd.f32 %v4467, %v4500
        %v4515 = vadd.f32 %v4468, %v4501
        %v4516 = vadd.f32 %v4469, %v4502
        %v4517 = vadd.f32 %v4470, %v4503
        %v4518 = vadd.f32 %v4471, %v4504
        %s4519 = scalar_lea.vmem [#allocation2], 288
        %v4520 = vld [vmem:[%s4519] sm:$0xff]
        %v4521 = vld [vmem:[%s4519 + $0x8] sm:$0x3f]
        %v4522 = vld [vmem:[%s4519 + $0x18] sm:$0xff]
        %v4523 = vld [vmem:[%s4519 + $0x20] sm:$0x3f]
        %v4524 = vld [vmem:[%s4519 + $0x30] sm:$0xff]
        %v4525 = vld [vmem:[%s4519 + $0x38] sm:$0x3f]
        %v4526 = vld [vmem:[%s4519 + $0x48] sm:$0xff]
        %v4527 = vld [vmem:[%s4519 + $0x50] sm:$0x3f]
        %v4528 = vld [vmem:[%s4519 + $0x60] sm:$0xff]
        %v4529 = vld [vmem:[%s4519 + $0x68] sm:$0x3f]
        %v4530 = vld [vmem:[%s4519 + $0x78] sm:$0xff]
        %v4531 = vld [vmem:[%s4519 + $0x80] sm:$0x3f]
        %v4532 = vld [vmem:[%s4519 + $0x90] sm:$0xff]
        %v4533 = vld [vmem:[%s4519 + $0x98] sm:$0x3f]
        %v4534 = vld [vmem:[%s2208] sm:$0x1]
        %v4535 = vlaneseq
        %v4536 = vshrl.u32 %v4535, 7
        %v4537 = vsub.s32 0, %v4536
        %v4538 = vrot.slane %v4534, %v4537
        %v4539 = vmul.f32 %v4520, %v4538
        %v4540 = vmul.f32 %v4521, %v4538
        %v4541 = vmul.f32 %v4522, %v4538
        %v4542 = vmul.f32 %v4523, %v4538
        %v4543 = vmul.f32 %v4524, %v4538
        %v4544 = vmul.f32 %v4525, %v4538
        %v4545 = vmul.f32 %v4526, %v4538
        %v4546 = vmul.f32 %v4527, %v4538
        %v4547 = vmul.f32 %v4528, %v4538
        %v4548 = vmul.f32 %v4529, %v4538
        %v4549 = vmul.f32 %v4530, %v4538
        %v4550 = vmul.f32 %v4531, %v4538
        %v4551 = vmul.f32 %v4532, %v4538
        %v4552 = vmul.f32 %v4533, %v4538
        %v4553 = vadd.f32 %v4505, %v4539
        %v4554 = vadd.f32 %v4506, %v4540
        %v4555 = vadd.f32 %v4507, %v4541
        %v4556 = vadd.f32 %v4508, %v4542
        %v4557 = vadd.f32 %v4509, %v4543
        %v4558 = vadd.f32 %v4510, %v4544
        %v4559 = vadd.f32 %v4511, %v4545
        %v4560 = vadd.f32 %v4512, %v4546
        %v4561 = vadd.f32 %v4513, %v4547
        %v4562 = vadd.f32 %v4514, %v4548
        %v4563 = vadd.f32 %v4515, %v4549
        %v4564 = vadd.f32 %v4516, %v4550
        %v4565 = vadd.f32 %v4517, %v4551
        %v4566 = vadd.f32 %v4518, %v4552
        %v4567 = vld [vmem:[%s4519 + $0x1] sm:$0xff]
        %v4568 = vld [vmem:[%s4519 + $0x9] sm:$0x3f]
        %v4569 = vld [vmem:[%s4519 + $0x19] sm:$0xff]
        %v4570 = vld [vmem:[%s4519 + $0x21] sm:$0x3f]
        %v4571 = vld [vmem:[%s4519 + $0x31] sm:$0xff]
        %v4572 = vld [vmem:[%s4519 + $0x39] sm:$0x3f]
        %v4573 = vld [vmem:[%s4519 + $0x49] sm:$0xff]
        %v4574 = vld [vmem:[%s4519 + $0x51] sm:$0x3f]
        %v4575 = vld [vmem:[%s4519 + $0x61] sm:$0xff]
        %v4576 = vld [vmem:[%s4519 + $0x69] sm:$0x3f]
        %v4577 = vld [vmem:[%s4519 + $0x79] sm:$0xff]
        %v4578 = vld [vmem:[%s4519 + $0x81] sm:$0x3f]
        %v4579 = vld [vmem:[%s4519 + $0x91] sm:$0xff]
        %v4580 = vld [vmem:[%s4519 + $0x99] sm:$0x3f]
        %v4581 = vld [vmem:[%s2208 + $0x1] sm:$0x1]
        %v4582 = vlaneseq
        %v4583 = vshrl.u32 %v4582, 7
        %v4584 = vsub.s32 0, %v4583
        %v4585 = vrot.slane %v4581, %v4584
        %v4586 = vmul.f32 %v4567, %v4585
        %v4587 = vmul.f32 %v4568, %v4585
        %v4588 = vmul.f32 %v4569, %v4585
        %v4589 = vmul.f32 %v4570, %v4585
        %v4590 = vmul.f32 %v4571, %v4585
        %v4591 = vmul.f32 %v4572, %v4585
        %v4592 = vmul.f32 %v4573, %v4585
        %v4593 = vmul.f32 %v4574, %v4585
        %v4594 = vmul.f32 %v4575, %v4585
        %v4595 = vmul.f32 %v4576, %v4585
        %v4596 = vmul.f32 %v4577, %v4585
        %v4597 = vmul.f32 %v4578, %v4585
        %v4598 = vmul.f32 %v4579, %v4585
        %v4599 = vmul.f32 %v4580, %v4585
        %v4600 = vadd.f32 %v4553, %v4586
        %v4601 = vadd.f32 %v4554, %v4587
        %v4602 = vadd.f32 %v4555, %v4588
        %v4603 = vadd.f32 %v4556, %v4589
        %v4604 = vadd.f32 %v4557, %v4590
        %v4605 = vadd.f32 %v4558, %v4591
        %v4606 = vadd.f32 %v4559, %v4592
        %v4607 = vadd.f32 %v4560, %v4593
        %v4608 = vadd.f32 %v4561, %v4594
        %v4609 = vadd.f32 %v4562, %v4595
        %v4610 = vadd.f32 %v4563, %v4596
        %v4611 = vadd.f32 %v4564, %v4597
        %v4612 = vadd.f32 %v4565, %v4598
        %v4613 = vadd.f32 %v4566, %v4599
        %v4614 = vld [vmem:[%s4519 + $0x2] sm:$0xff]
        %v4615 = vld [vmem:[%s4519 + $0xa] sm:$0x3f]
        %v4616 = vld [vmem:[%s4519 + $0x1a] sm:$0xff]
        %v4617 = vld [vmem:[%s4519 + $0x22] sm:$0x3f]
        %v4618 = vld [vmem:[%s4519 + $0x32] sm:$0xff]
        %v4619 = vld [vmem:[%s4519 + $0x3a] sm:$0x3f]
        %v4620 = vld [vmem:[%s4519 + $0x4a] sm:$0xff]
        %v4621 = vld [vmem:[%s4519 + $0x52] sm:$0x3f]
        %v4622 = vld [vmem:[%s4519 + $0x62] sm:$0xff]
        %v4623 = vld [vmem:[%s4519 + $0x6a] sm:$0x3f]
        %v4624 = vld [vmem:[%s4519 + $0x7a] sm:$0xff]
        %v4625 = vld [vmem:[%s4519 + $0x82] sm:$0x3f]
        %v4626 = vld [vmem:[%s4519 + $0x92] sm:$0xff]
        %v4627 = vld [vmem:[%s4519 + $0x9a] sm:$0x3f]
        %v4628 = vld [vmem:[%s2208 + $0x2] sm:$0x1]
        %v4629 = vlaneseq
        %v4630 = vshrl.u32 %v4629, 7
        %v4631 = vsub.s32 0, %v4630
        %v4632 = vrot.slane %v4628, %v4631
        %v4633 = vmul.f32 %v4614, %v4632
        %v4634 = vmul.f32 %v4615, %v4632
        %v4635 = vmul.f32 %v4616, %v4632
        %v4636 = vmul.f32 %v4617, %v4632
        %v4637 = vmul.f32 %v4618, %v4632
        %v4638 = vmul.f32 %v4619, %v4632
        %v4639 = vmul.f32 %v4620, %v4632
        %v4640 = vmul.f32 %v4621, %v4632
        %v4641 = vmul.f32 %v4622, %v4632
        %v4642 = vmul.f32 %v4623, %v4632
        %v4643 = vmul.f32 %v4624, %v4632
        %v4644 = vmul.f32 %v4625, %v4632
        %v4645 = vmul.f32 %v4626, %v4632
        %v4646 = vmul.f32 %v4627, %v4632
        %v4647 = vadd.f32 %v4600, %v4633
        %v4648 = vadd.f32 %v4601, %v4634
        %v4649 = vadd.f32 %v4602, %v4635
        %v4650 = vadd.f32 %v4603, %v4636
        %v4651 = vadd.f32 %v4604, %v4637
        %v4652 = vadd.f32 %v4605, %v4638
        %v4653 = vadd.f32 %v4606, %v4639
        %v4654 = vadd.f32 %v4607, %v4640
        %v4655 = vadd.f32 %v4608, %v4641
        %v4656 = vadd.f32 %v4609, %v4642
        %v4657 = vadd.f32 %v4610, %v4643
        %v4658 = vadd.f32 %v4611, %v4644
        %v4659 = vadd.f32 %v4612, %v4645
        %v4660 = vadd.f32 %v4613, %v4646
        %v4661 = vld [vmem:[%s4519 + $0x3] sm:$0xff]
        %v4662 = vld [vmem:[%s4519 + $0xb] sm:$0x3f]
        %v4663 = vld [vmem:[%s4519 + $0x1b] sm:$0xff]
        %v4664 = vld [vmem:[%s4519 + $0x23] sm:$0x3f]
        %v4665 = vld [vmem:[%s4519 + $0x33] sm:$0xff]
        %v4666 = vld [vmem:[%s4519 + $0x3b] sm:$0x3f]
        %v4667 = vld [vmem:[%s4519 + $0x4b] sm:$0xff]
        %v4668 = vld [vmem:[%s4519 + $0x53] sm:$0x3f]
        %v4669 = vld [vmem:[%s4519 + $0x63] sm:$0xff]
        %v4670 = vld [vmem:[%s4519 + $0x6b] sm:$0x3f]
        %v4671 = vld [vmem:[%s4519 + $0x7b] sm:$0xff]
        %v4672 = vld [vmem:[%s4519 + $0x83] sm:$0x3f]
        %v4673 = vld [vmem:[%s4519 + $0x93] sm:$0xff]
        %v4674 = vld [vmem:[%s4519 + $0x9b] sm:$0x3f]
        %v4675 = vld [vmem:[%s2208 + $0x3] sm:$0x1]
        %v4676 = vlaneseq
        %v4677 = vshrl.u32 %v4676, 7
        %v4678 = vsub.s32 0, %v4677
        %v4679 = vrot.slane %v4675, %v4678
        %v4680 = vmul.f32 %v4661, %v4679
        %v4681 = vmul.f32 %v4662, %v4679
        %v4682 = vmul.f32 %v4663, %v4679
        %v4683 = vmul.f32 %v4664, %v4679
        %v4684 = vmul.f32 %v4665, %v4679
        %v4685 = vmul.f32 %v4666, %v4679
        %v4686 = vmul.f32 %v4667, %v4679
        %v4687 = vmul.f32 %v4668, %v4679
        %v4688 = vmul.f32 %v4669, %v4679
        %v4689 = vmul.f32 %v4670, %v4679
        %v4690 = vmul.f32 %v4671, %v4679
        %v4691 = vmul.f32 %v4672, %v4679
        %v4692 = vmul.f32 %v4673, %v4679
        %v4693 = vmul.f32 %v4674, %v4679
        %v4694 = vadd.f32 %v4647, %v4680
        %v4695 = vadd.f32 %v4648, %v4681
        %v4696 = vadd.f32 %v4649, %v4682
        %v4697 = vadd.f32 %v4650, %v4683
        %v4698 = vadd.f32 %v4651, %v4684
        %v4699 = vadd.f32 %v4652, %v4685
        %v4700 = vadd.f32 %v4653, %v4686
        %v4701 = vadd.f32 %v4654, %v4687
        %v4702 = vadd.f32 %v4655, %v4688
        %v4703 = vadd.f32 %v4656, %v4689
        %v4704 = vadd.f32 %v4657, %v4690
        %v4705 = vadd.f32 %v4658, %v4691
        %v4706 = vadd.f32 %v4659, %v4692
        %v4707 = vadd.f32 %v4660, %v4693
        %v4708 = vld [vmem:[%s4519 + $0x4] sm:$0xff]
        %v4709 = vld [vmem:[%s4519 + $0xc] sm:$0x3f]
        %v4710 = vld [vmem:[%s4519 + $0x1c] sm:$0xff]
        %v4711 = vld [vmem:[%s4519 + $0x24] sm:$0x3f]
        %v4712 = vld [vmem:[%s4519 + $0x34] sm:$0xff]
        %v4713 = vld [vmem:[%s4519 + $0x3c] sm:$0x3f]
        %v4714 = vld [vmem:[%s4519 + $0x4c] sm:$0xff]
        %v4715 = vld [vmem:[%s4519 + $0x54] sm:$0x3f]
        %v4716 = vld [vmem:[%s4519 + $0x64] sm:$0xff]
        %v4717 = vld [vmem:[%s4519 + $0x6c] sm:$0x3f]
        %v4718 = vld [vmem:[%s4519 + $0x7c] sm:$0xff]
        %v4719 = vld [vmem:[%s4519 + $0x84] sm:$0x3f]
        %v4720 = vld [vmem:[%s4519 + $0x94] sm:$0xff]
        %v4721 = vld [vmem:[%s4519 + $0x9c] sm:$0x3f]
        %v4722 = vld [vmem:[%s2208 + $0x4] sm:$0x1]
        %v4723 = vlaneseq
        %v4724 = vshrl.u32 %v4723, 7
        %v4725 = vsub.s32 0, %v4724
        %v4726 = vrot.slane %v4722, %v4725
        %v4727 = vmul.f32 %v4708, %v4726
        %v4728 = vmul.f32 %v4709, %v4726
        %v4729 = vmul.f32 %v4710, %v4726
        %v4730 = vmul.f32 %v4711, %v4726
        %v4731 = vmul.f32 %v4712, %v4726
        %v4732 = vmul.f32 %v4713, %v4726
        %v4733 = vmul.f32 %v4714, %v4726
        %v4734 = vmul.f32 %v4715, %v4726
        %v4735 = vmul.f32 %v4716, %v4726
        %v4736 = vmul.f32 %v4717, %v4726
        %v4737 = vmul.f32 %v4718, %v4726
        %v4738 = vmul.f32 %v4719, %v4726
        %v4739 = vmul.f32 %v4720, %v4726
        %v4740 = vmul.f32 %v4721, %v4726
        %v4741 = vadd.f32 %v4694, %v4727
        %v4742 = vadd.f32 %v4695, %v4728
        %v4743 = vadd.f32 %v4696, %v4729
        %v4744 = vadd.f32 %v4697, %v4730
        %v4745 = vadd.f32 %v4698, %v4731
        %v4746 = vadd.f32 %v4699, %v4732
        %v4747 = vadd.f32 %v4700, %v4733
        %v4748 = vadd.f32 %v4701, %v4734
        %v4749 = vadd.f32 %v4702, %v4735
        %v4750 = vadd.f32 %v4703, %v4736
        %v4751 = vadd.f32 %v4704, %v4737
        %v4752 = vadd.f32 %v4705, %v4738
        %v4753 = vadd.f32 %v4706, %v4739
        %v4754 = vadd.f32 %v4707, %v4740
        %v4755 = vld [vmem:[%s4519 + $0x5] sm:$0xff]
        %v4756 = vld [vmem:[%s4519 + $0xd] sm:$0x3f]
        %v4757 = vld [vmem:[%s4519 + $0x1d] sm:$0xff]
        %v4758 = vld [vmem:[%s4519 + $0x25] sm:$0x3f]
        %v4759 = vld [vmem:[%s4519 + $0x35] sm:$0xff]
        %v4760 = vld [vmem:[%s4519 + $0x3d] sm:$0x3f]
        %v4761 = vld [vmem:[%s4519 + $0x4d] sm:$0xff]
        %v4762 = vld [vmem:[%s4519 + $0x55] sm:$0x3f]
        %v4763 = vld [vmem:[%s4519 + $0x65] sm:$0xff]
        %v4764 = vld [vmem:[%s4519 + $0x6d] sm:$0x3f]
        %v4765 = vld [vmem:[%s4519 + $0x7d] sm:$0xff]
        %v4766 = vld [vmem:[%s4519 + $0x85] sm:$0x3f]
        %v4767 = vld [vmem:[%s4519 + $0x95] sm:$0xff]
        %v4768 = vld [vmem:[%s4519 + $0x9d] sm:$0x3f]
        %v4769 = vld [vmem:[%s2208 + $0x5] sm:$0x1]
        %v4770 = vlaneseq
        %v4771 = vshrl.u32 %v4770, 7
        %v4772 = vsub.s32 0, %v4771
        %v4773 = vrot.slane %v4769, %v4772
        %v4774 = vmul.f32 %v4755, %v4773
        %v4775 = vmul.f32 %v4756, %v4773
        %v4776 = vmul.f32 %v4757, %v4773
        %v4777 = vmul.f32 %v4758, %v4773
        %v4778 = vmul.f32 %v4759, %v4773
        %v4779 = vmul.f32 %v4760, %v4773
        %v4780 = vmul.f32 %v4761, %v4773
        %v4781 = vmul.f32 %v4762, %v4773
        %v4782 = vmul.f32 %v4763, %v4773
        %v4783 = vmul.f32 %v4764, %v4773
        %v4784 = vmul.f32 %v4765, %v4773
        %v4785 = vmul.f32 %v4766, %v4773
        %v4786 = vmul.f32 %v4767, %v4773
        %v4787 = vmul.f32 %v4768, %v4773
        %v4788 = vadd.f32 %v4741, %v4774
        %v4789 = vadd.f32 %v4742, %v4775
        %v4790 = vadd.f32 %v4743, %v4776
        %v4791 = vadd.f32 %v4744, %v4777
        %v4792 = vadd.f32 %v4745, %v4778
        %v4793 = vadd.f32 %v4746, %v4779
        %v4794 = vadd.f32 %v4747, %v4780
        %v4795 = vadd.f32 %v4748, %v4781
        %v4796 = vadd.f32 %v4749, %v4782
        %v4797 = vadd.f32 %v4750, %v4783
        %v4798 = vadd.f32 %v4751, %v4784
        %v4799 = vadd.f32 %v4752, %v4785
        %v4800 = vadd.f32 %v4753, %v4786
        %v4801 = vadd.f32 %v4754, %v4787
        %v4802 = vld [vmem:[%s4519 + $0x6] sm:$0xff]
        %v4803 = vld [vmem:[%s4519 + $0xe] sm:$0x3f]
        %v4804 = vld [vmem:[%s4519 + $0x1e] sm:$0xff]
        %v4805 = vld [vmem:[%s4519 + $0x26] sm:$0x3f]
        %v4806 = vld [vmem:[%s4519 + $0x36] sm:$0xff]
        %v4807 = vld [vmem:[%s4519 + $0x3e] sm:$0x3f]
        %v4808 = vld [vmem:[%s4519 + $0x4e] sm:$0xff]
        %v4809 = vld [vmem:[%s4519 + $0x56] sm:$0x3f]
        %v4810 = vld [vmem:[%s4519 + $0x66] sm:$0xff]
        %v4811 = vld [vmem:[%s4519 + $0x6e] sm:$0x3f]
        %v4812 = vld [vmem:[%s4519 + $0x7e] sm:$0xff]
        %v4813 = vld [vmem:[%s4519 + $0x86] sm:$0x3f]
        %v4814 = vld [vmem:[%s4519 + $0x96] sm:$0xff]
        %v4815 = vld [vmem:[%s4519 + $0x9e] sm:$0x3f]
        %v4816 = vld [vmem:[%s2208 + $0x6] sm:$0x1]
        %v4817 = vlaneseq
        %v4818 = vshrl.u32 %v4817, 7
        %v4819 = vsub.s32 0, %v4818
        %v4820 = vrot.slane %v4816, %v4819
        %v4821 = vmul.f32 %v4802, %v4820
        %v4822 = vmul.f32 %v4803, %v4820
        %v4823 = vmul.f32 %v4804, %v4820
        %v4824 = vmul.f32 %v4805, %v4820
        %v4825 = vmul.f32 %v4806, %v4820
        %v4826 = vmul.f32 %v4807, %v4820
        %v4827 = vmul.f32 %v4808, %v4820
        %v4828 = vmul.f32 %v4809, %v4820
        %v4829 = vmul.f32 %v4810, %v4820
        %v4830 = vmul.f32 %v4811, %v4820
        %v4831 = vmul.f32 %v4812, %v4820
        %v4832 = vmul.f32 %v4813, %v4820
        %v4833 = vmul.f32 %v4814, %v4820
        %v4834 = vmul.f32 %v4815, %v4820
        %v4835 = vadd.f32 %v4788, %v4821
        %v4836 = vadd.f32 %v4789, %v4822
        %v4837 = vadd.f32 %v4790, %v4823
        %v4838 = vadd.f32 %v4791, %v4824
        %v4839 = vadd.f32 %v4792, %v4825
        %v4840 = vadd.f32 %v4793, %v4826
        %v4841 = vadd.f32 %v4794, %v4827
        %v4842 = vadd.f32 %v4795, %v4828
        %v4843 = vadd.f32 %v4796, %v4829
        %v4844 = vadd.f32 %v4797, %v4830
        %v4845 = vadd.f32 %v4798, %v4831
        %v4846 = vadd.f32 %v4799, %v4832
        %v4847 = vadd.f32 %v4800, %v4833
        %v4848 = vadd.f32 %v4801, %v4834
        %s4849 = scalar_lea.vmem [#allocation2], 312
        %v4850 = vld [vmem:[%s4849] sm:$0xff]
        %v4851 = vld [vmem:[%s4849 + $0x8] sm:$0x3f]
        %v4852 = vld [vmem:[%s4849 + $0x18] sm:$0xff]
        %v4853 = vld [vmem:[%s4849 + $0x20] sm:$0x3f]
        %v4854 = vld [vmem:[%s4849 + $0x30] sm:$0xff]
        %v4855 = vld [vmem:[%s4849 + $0x38] sm:$0x3f]
        %v4856 = vld [vmem:[%s4849 + $0x48] sm:$0xff]
        %v4857 = vld [vmem:[%s4849 + $0x50] sm:$0x3f]
        %v4858 = vld [vmem:[%s4849 + $0x60] sm:$0xff]
        %v4859 = vld [vmem:[%s4849 + $0x68] sm:$0x3f]
        %v4860 = vld [vmem:[%s4849 + $0x78] sm:$0xff]
        %v4861 = vld [vmem:[%s4849 + $0x80] sm:$0x3f]
        %v4862 = vld [vmem:[%s4849 + $0x90] sm:$0xff]
        %v4863 = vld [vmem:[%s4849 + $0x98] sm:$0x3f]
        %v4864 = vld [vmem:[%s2539] sm:$0x1]
        %v4865 = vlaneseq
        %v4866 = vshrl.u32 %v4865, 7
        %v4867 = vsub.s32 0, %v4866
        %v4868 = vrot.slane %v4864, %v4867
        %v4869 = vmul.f32 %v4850, %v4868
        %v4870 = vmul.f32 %v4851, %v4868
        %v4871 = vmul.f32 %v4852, %v4868
        %v4872 = vmul.f32 %v4853, %v4868
        %v4873 = vmul.f32 %v4854, %v4868
        %v4874 = vmul.f32 %v4855, %v4868
        %v4875 = vmul.f32 %v4856, %v4868
        %v4876 = vmul.f32 %v4857, %v4868
        %v4877 = vmul.f32 %v4858, %v4868
        %v4878 = vmul.f32 %v4859, %v4868
        %v4879 = vmul.f32 %v4860, %v4868
        %v4880 = vmul.f32 %v4861, %v4868
        %v4881 = vmul.f32 %v4862, %v4868
        %v4882 = vmul.f32 %v4863, %v4868
        %v4883 = vadd.f32 %v4835, %v4869
        %v4884 = vadd.f32 %v4836, %v4870
        %v4885 = vadd.f32 %v4837, %v4871
        %v4886 = vadd.f32 %v4838, %v4872
        %v4887 = vadd.f32 %v4839, %v4873
        %v4888 = vadd.f32 %v4840, %v4874
        %v4889 = vadd.f32 %v4841, %v4875
        %v4890 = vadd.f32 %v4842, %v4876
        %v4891 = vadd.f32 %v4843, %v4877
        %v4892 = vadd.f32 %v4844, %v4878
        %v4893 = vadd.f32 %v4845, %v4879
        %v4894 = vadd.f32 %v4846, %v4880
        %v4895 = vadd.f32 %v4847, %v4881
        %v4896 = vadd.f32 %v4848, %v4882
        %v4897 = vld [vmem:[%s4849 + $0x1] sm:$0xff]
        %v4898 = vld [vmem:[%s4849 + $0x9] sm:$0x3f]
        %v4899 = vld [vmem:[%s4849 + $0x19] sm:$0xff]
        %v4900 = vld [vmem:[%s4849 + $0x21] sm:$0x3f]
        %v4901 = vld [vmem:[%s4849 + $0x31] sm:$0xff]
        %v4902 = vld [vmem:[%s4849 + $0x39] sm:$0x3f]
        %v4903 = vld [vmem:[%s4849 + $0x49] sm:$0xff]
        %v4904 = vld [vmem:[%s4849 + $0x51] sm:$0x3f]
        %v4905 = vld [vmem:[%s4849 + $0x61] sm:$0xff]
        %v4906 = vld [vmem:[%s4849 + $0x69] sm:$0x3f]
        %v4907 = vld [vmem:[%s4849 + $0x79] sm:$0xff]
        %v4908 = vld [vmem:[%s4849 + $0x81] sm:$0x3f]
        %v4909 = vld [vmem:[%s4849 + $0x91] sm:$0xff]
        %v4910 = vld [vmem:[%s4849 + $0x99] sm:$0x3f]
        %v4911 = vld [vmem:[%s2539 + $0x1] sm:$0x1]
        %v4912 = vlaneseq
        %v4913 = vshrl.u32 %v4912, 7
        %v4914 = vsub.s32 0, %v4913
        %v4915 = vrot.slane %v4911, %v4914
        %v4916 = vmul.f32 %v4897, %v4915
        %v4917 = vmul.f32 %v4898, %v4915
        %v4918 = vmul.f32 %v4899, %v4915
        %v4919 = vmul.f32 %v4900, %v4915
        %v4920 = vmul.f32 %v4901, %v4915
        %v4921 = vmul.f32 %v4902, %v4915
        %v4922 = vmul.f32 %v4903, %v4915
        %v4923 = vmul.f32 %v4904, %v4915
        %v4924 = vmul.f32 %v4905, %v4915
        %v4925 = vmul.f32 %v4906, %v4915
        %v4926 = vmul.f32 %v4907, %v4915
        %v4927 = vmul.f32 %v4908, %v4915
        %v4928 = vmul.f32 %v4909, %v4915
        %v4929 = vmul.f32 %v4910, %v4915
        %v4930 = vadd.f32 %v4883, %v4916
        %v4931 = vadd.f32 %v4884, %v4917
        %v4932 = vadd.f32 %v4885, %v4918
        %v4933 = vadd.f32 %v4886, %v4919
        %v4934 = vadd.f32 %v4887, %v4920
        %v4935 = vadd.f32 %v4888, %v4921
        %v4936 = vadd.f32 %v4889, %v4922
        %v4937 = vadd.f32 %v4890, %v4923
        %v4938 = vadd.f32 %v4891, %v4924
        %v4939 = vadd.f32 %v4892, %v4925
        %v4940 = vadd.f32 %v4893, %v4926
        %v4941 = vadd.f32 %v4894, %v4927
        %v4942 = vadd.f32 %v4895, %v4928
        %v4943 = vadd.f32 %v4896, %v4929
        %v4944 = vld [vmem:[%s4849 + $0x2] sm:$0xff]
        %v4945 = vld [vmem:[%s4849 + $0xa] sm:$0x3f]
        %v4946 = vld [vmem:[%s4849 + $0x1a] sm:$0xff]
        %v4947 = vld [vmem:[%s4849 + $0x22] sm:$0x3f]
        %v4948 = vld [vmem:[%s4849 + $0x32] sm:$0xff]
        %v4949 = vld [vmem:[%s4849 + $0x3a] sm:$0x3f]
        %v4950 = vld [vmem:[%s4849 + $0x4a] sm:$0xff]
        %v4951 = vld [vmem:[%s4849 + $0x52] sm:$0x3f]
        %v4952 = vld [vmem:[%s4849 + $0x62] sm:$0xff]
        %v4953 = vld [vmem:[%s4849 + $0x6a] sm:$0x3f]
        %v4954 = vld [vmem:[%s4849 + $0x7a] sm:$0xff]
        %v4955 = vld [vmem:[%s4849 + $0x82] sm:$0x3f]
        %v4956 = vld [vmem:[%s4849 + $0x92] sm:$0xff]
        %v4957 = vld [vmem:[%s4849 + $0x9a] sm:$0x3f]
        %v4958 = vld [vmem:[%s2539 + $0x2] sm:$0x1]
        %v4959 = vlaneseq
        %v4960 = vshrl.u32 %v4959, 7
        %v4961 = vsub.s32 0, %v4960
        %v4962 = vrot.slane %v4958, %v4961
        %v4963 = vmul.f32 %v4944, %v4962
        %v4964 = vmul.f32 %v4945, %v4962
        %v4965 = vmul.f32 %v4946, %v4962
        %v4966 = vmul.f32 %v4947, %v4962
        %v4967 = vmul.f32 %v4948, %v4962
        %v4968 = vmul.f32 %v4949, %v4962
        %v4969 = vmul.f32 %v4950, %v4962
        %v4970 = vmul.f32 %v4951, %v4962
        %v4971 = vmul.f32 %v4952, %v4962
        %v4972 = vmul.f32 %v4953, %v4962
        %v4973 = vmul.f32 %v4954, %v4962
        %v4974 = vmul.f32 %v4955, %v4962
        %v4975 = vmul.f32 %v4956, %v4962
        %v4976 = vmul.f32 %v4957, %v4962
        %v4977 = vadd.f32 %v4930, %v4963
        %v4978 = vadd.f32 %v4931, %v4964
        %v4979 = vadd.f32 %v4932, %v4965
        %v4980 = vadd.f32 %v4933, %v4966
        %v4981 = vadd.f32 %v4934, %v4967
        %v4982 = vadd.f32 %v4935, %v4968
        %v4983 = vadd.f32 %v4936, %v4969
        %v4984 = vadd.f32 %v4937, %v4970
        %v4985 = vadd.f32 %v4938, %v4971
        %v4986 = vadd.f32 %v4939, %v4972
        %v4987 = vadd.f32 %v4940, %v4973
        %v4988 = vadd.f32 %v4941, %v4974
        %v4989 = vadd.f32 %v4942, %v4975
        %v4990 = vadd.f32 %v4943, %v4976
        %v4991 = vld [vmem:[%s4849 + $0x3] sm:$0xff]
        %v4992 = vld [vmem:[%s4849 + $0xb] sm:$0x3f]
        %v4993 = vld [vmem:[%s4849 + $0x1b] sm:$0xff]
        %v4994 = vld [vmem:[%s4849 + $0x23] sm:$0x3f]
        %v4995 = vld [vmem:[%s4849 + $0x33] sm:$0xff]
        %v4996 = vld [vmem:[%s4849 + $0x3b] sm:$0x3f]
        %v4997 = vld [vmem:[%s4849 + $0x4b] sm:$0xff]
        %v4998 = vld [vmem:[%s4849 + $0x53] sm:$0x3f]
        %v4999 = vld [vmem:[%s4849 + $0x63] sm:$0xff]
        %v5000 = vld [vmem:[%s4849 + $0x6b] sm:$0x3f]
        %v5001 = vld [vmem:[%s4849 + $0x7b] sm:$0xff]
        %v5002 = vld [vmem:[%s4849 + $0x83] sm:$0x3f]
        %v5003 = vld [vmem:[%s4849 + $0x93] sm:$0xff]
        %v5004 = vld [vmem:[%s4849 + $0x9b] sm:$0x3f]
        %v5005 = vld [vmem:[%s2539 + $0x3] sm:$0x1]
        %v5006 = vlaneseq
        %v5007 = vshrl.u32 %v5006, 7
        %v5008 = vsub.s32 0, %v5007
        %v5009 = vrot.slane %v5005, %v5008
        %v5010 = vmul.f32 %v4991, %v5009
        %v5011 = vmul.f32 %v4992, %v5009
        %v5012 = vmul.f32 %v4993, %v5009
        %v5013 = vmul.f32 %v4994, %v5009
        %v5014 = vmul.f32 %v4995, %v5009
        %v5015 = vmul.f32 %v4996, %v5009
        %v5016 = vmul.f32 %v4997, %v5009
        %v5017 = vmul.f32 %v4998, %v5009
        %v5018 = vmul.f32 %v4999, %v5009
        %v5019 = vmul.f32 %v5000, %v5009
        %v5020 = vmul.f32 %v5001, %v5009
        %v5021 = vmul.f32 %v5002, %v5009
        %v5022 = vmul.f32 %v5003, %v5009
        %v5023 = vmul.f32 %v5004, %v5009
        %v5024 = vadd.f32 %v4977, %v5010
        %v5025 = vadd.f32 %v4978, %v5011
        %v5026 = vadd.f32 %v4979, %v5012
        %v5027 = vadd.f32 %v4980, %v5013
        %v5028 = vadd.f32 %v4981, %v5014
        %v5029 = vadd.f32 %v4982, %v5015
        %v5030 = vadd.f32 %v4983, %v5016
        %v5031 = vadd.f32 %v4984, %v5017
        %v5032 = vadd.f32 %v4985, %v5018
        %v5033 = vadd.f32 %v4986, %v5019
        %v5034 = vadd.f32 %v4987, %v5020
        %v5035 = vadd.f32 %v4988, %v5021
        %v5036 = vadd.f32 %v4989, %v5022
        %v5037 = vadd.f32 %v4990, %v5023
        %v5038 = vld [vmem:[%s4849 + $0x4] sm:$0xff]
        %v5039 = vld [vmem:[%s4849 + $0xc] sm:$0x3f]
        %v5040 = vld [vmem:[%s4849 + $0x1c] sm:$0xff]
        %v5041 = vld [vmem:[%s4849 + $0x24] sm:$0x3f]
        %v5042 = vld [vmem:[%s4849 + $0x34] sm:$0xff]
        %v5043 = vld [vmem:[%s4849 + $0x3c] sm:$0x3f]
        %v5044 = vld [vmem:[%s4849 + $0x4c] sm:$0xff]
        %v5045 = vld [vmem:[%s4849 + $0x54] sm:$0x3f]
        %v5046 = vld [vmem:[%s4849 + $0x64] sm:$0xff]
        %v5047 = vld [vmem:[%s4849 + $0x6c] sm:$0x3f]
        %v5048 = vld [vmem:[%s4849 + $0x7c] sm:$0xff]
        %v5049 = vld [vmem:[%s4849 + $0x84] sm:$0x3f]
        %v5050 = vld [vmem:[%s4849 + $0x94] sm:$0xff]
        %v5051 = vld [vmem:[%s4849 + $0x9c] sm:$0x3f]
        %v5052 = vld [vmem:[%s2539 + $0x4] sm:$0x1]
        %v5053 = vlaneseq
        %v5054 = vshrl.u32 %v5053, 7
        %v5055 = vsub.s32 0, %v5054
        %v5056 = vrot.slane %v5052, %v5055
        %v5057 = vmul.f32 %v5038, %v5056
        %v5058 = vmul.f32 %v5039, %v5056
        %v5059 = vmul.f32 %v5040, %v5056
        %v5060 = vmul.f32 %v5041, %v5056
        %v5061 = vmul.f32 %v5042, %v5056
        %v5062 = vmul.f32 %v5043, %v5056
        %v5063 = vmul.f32 %v5044, %v5056
        %v5064 = vmul.f32 %v5045, %v5056
        %v5065 = vmul.f32 %v5046, %v5056
        %v5066 = vmul.f32 %v5047, %v5056
        %v5067 = vmul.f32 %v5048, %v5056
        %v5068 = vmul.f32 %v5049, %v5056
        %v5069 = vmul.f32 %v5050, %v5056
        %v5070 = vmul.f32 %v5051, %v5056
        %v5071 = vadd.f32 %v5024, %v5057
        %v5072 = vadd.f32 %v5025, %v5058
        %v5073 = vadd.f32 %v5026, %v5059
        %v5074 = vadd.f32 %v5027, %v5060
        %v5075 = vadd.f32 %v5028, %v5061
        %v5076 = vadd.f32 %v5029, %v5062
        %v5077 = vadd.f32 %v5030, %v5063
        %v5078 = vadd.f32 %v5031, %v5064
        %v5079 = vadd.f32 %v5032, %v5065
        %v5080 = vadd.f32 %v5033, %v5066
        %v5081 = vadd.f32 %v5034, %v5067
        %v5082 = vadd.f32 %v5035, %v5068
        %v5083 = vadd.f32 %v5036, %v5069
        %v5084 = vadd.f32 %v5037, %v5070
        %v5085 = vld [vmem:[%s4849 + $0x5] sm:$0xff]
        %v5086 = vld [vmem:[%s4849 + $0xd] sm:$0x3f]
        %v5087 = vld [vmem:[%s4849 + $0x1d] sm:$0xff]
        %v5088 = vld [vmem:[%s4849 + $0x25] sm:$0x3f]
        %v5089 = vld [vmem:[%s4849 + $0x35] sm:$0xff]
        %v5090 = vld [vmem:[%s4849 + $0x3d] sm:$0x3f]
        %v5091 = vld [vmem:[%s4849 + $0x4d] sm:$0xff]
        %v5092 = vld [vmem:[%s4849 + $0x55] sm:$0x3f]
        %v5093 = vld [vmem:[%s4849 + $0x65] sm:$0xff]
        %v5094 = vld [vmem:[%s4849 + $0x6d] sm:$0x3f]
        %v5095 = vld [vmem:[%s4849 + $0x7d] sm:$0xff]
        %v5096 = vld [vmem:[%s4849 + $0x85] sm:$0x3f]
        %v5097 = vld [vmem:[%s4849 + $0x95] sm:$0xff]
        %v5098 = vld [vmem:[%s4849 + $0x9d] sm:$0x3f]
        %v5099 = vld [vmem:[%s2539 + $0x5] sm:$0x1]
        %v5100 = vlaneseq
        %v5101 = vshrl.u32 %v5100, 7
        %v5102 = vsub.s32 0, %v5101
        %v5103 = vrot.slane %v5099, %v5102
        %v5104 = vmul.f32 %v5085, %v5103
        %v5105 = vmul.f32 %v5086, %v5103
        %v5106 = vmul.f32 %v5087, %v5103
        %v5107 = vmul.f32 %v5088, %v5103
        %v5108 = vmul.f32 %v5089, %v5103
        %v5109 = vmul.f32 %v5090, %v5103
        %v5110 = vmul.f32 %v5091, %v5103
        %v5111 = vmul.f32 %v5092, %v5103
        %v5112 = vmul.f32 %v5093, %v5103
        %v5113 = vmul.f32 %v5094, %v5103
        %v5114 = vmul.f32 %v5095, %v5103
        %v5115 = vmul.f32 %v5096, %v5103
        %v5116 = vmul.f32 %v5097, %v5103
        %v5117 = vmul.f32 %v5098, %v5103
        %v5118 = vadd.f32 %v5071, %v5104
        %v5119 = vadd.f32 %v5072, %v5105
        %v5120 = vadd.f32 %v5073, %v5106
        %v5121 = vadd.f32 %v5074, %v5107
        %v5122 = vadd.f32 %v5075, %v5108
        %v5123 = vadd.f32 %v5076, %v5109
        %v5124 = vadd.f32 %v5077, %v5110
        %v5125 = vadd.f32 %v5078, %v5111
        %v5126 = vadd.f32 %v5079, %v5112
        %v5127 = vadd.f32 %v5080, %v5113
        %v5128 = vadd.f32 %v5081, %v5114
        %v5129 = vadd.f32 %v5082, %v5115
        %v5130 = vadd.f32 %v5083, %v5116
        %v5131 = vadd.f32 %v5084, %v5117
        %v5132 = vld [vmem:[%s4849 + $0x6] sm:$0xff]
        %v5133 = vld [vmem:[%s4849 + $0xe] sm:$0x3f]
        %v5134 = vld [vmem:[%s4849 + $0x1e] sm:$0xff]
        %v5135 = vld [vmem:[%s4849 + $0x26] sm:$0x3f]
        %v5136 = vld [vmem:[%s4849 + $0x36] sm:$0xff]
        %v5137 = vld [vmem:[%s4849 + $0x3e] sm:$0x3f]
        %v5138 = vld [vmem:[%s4849 + $0x4e] sm:$0xff]
        %v5139 = vld [vmem:[%s4849 + $0x56] sm:$0x3f]
        %v5140 = vld [vmem:[%s4849 + $0x66] sm:$0xff]
        %v5141 = vld [vmem:[%s4849 + $0x6e] sm:$0x3f]
        %v5142 = vld [vmem:[%s4849 + $0x7e] sm:$0xff]
        %v5143 = vld [vmem:[%s4849 + $0x86] sm:$0x3f]
        %v5144 = vld [vmem:[%s4849 + $0x96] sm:$0xff]
        %v5145 = vld [vmem:[%s4849 + $0x9e] sm:$0x3f]
        %v5146 = vld [vmem:[%s2539 + $0x6] sm:$0x1]
        %v5147 = vlaneseq
        %v5148 = vshrl.u32 %v5147, 7
        %v5149 = vsub.s32 0, %v5148
        %v5150 = vrot.slane %v5146, %v5149
        %v5151 = vmul.f32 %v5132, %v5150
        %v5152 = vmul.f32 %v5133, %v5150
        %v5153 = vmul.f32 %v5134, %v5150
        %v5154 = vmul.f32 %v5135, %v5150
        %v5155 = vmul.f32 %v5136, %v5150
        %v5156 = vmul.f32 %v5137, %v5150
        %v5157 = vmul.f32 %v5138, %v5150
        %v5158 = vmul.f32 %v5139, %v5150
        %v5159 = vmul.f32 %v5140, %v5150
        %v5160 = vmul.f32 %v5141, %v5150
        %v5161 = vmul.f32 %v5142, %v5150
        %v5162 = vmul.f32 %v5143, %v5150
        %v5163 = vmul.f32 %v5144, %v5150
        %v5164 = vmul.f32 %v5145, %v5150
        %v5165 = vadd.f32 %v5118, %v5151
        %v5166 = vadd.f32 %v5119, %v5152
        %v5167 = vadd.f32 %v5120, %v5153
        %v5168 = vadd.f32 %v5121, %v5154
        %v5169 = vadd.f32 %v5122, %v5155
        %v5170 = vadd.f32 %v5123, %v5156
        %v5171 = vadd.f32 %v5124, %v5157
        %v5172 = vadd.f32 %v5125, %v5158
        %v5173 = vadd.f32 %v5126, %v5159
        %v5174 = vadd.f32 %v5127, %v5160
        %v5175 = vadd.f32 %v5128, %v5161
        %v5176 = vadd.f32 %v5129, %v5162
        %v5177 = vadd.f32 %v5130, %v5163
        %v5178 = vadd.f32 %v5131, %v5164
        %s5179 = scalar_lea.vmem %s413, 112 [#allocation5]
        %5180 = vst [vmem:[%s5179] sm:$0xff] %v5165
        %5181 = vst [vmem:[%s5179 + $0x8] sm:$0x3f] %v5166
        %5182 = vst [vmem:[%s5179 + $0x10] sm:$0xff] %v5167
        %5183 = vst [vmem:[%s5179 + $0x18] sm:$0x3f] %v5168
        %5184 = vst [vmem:[%s5179 + $0x20] sm:$0xff] %v5169
        %5185 = vst [vmem:[%s5179 + $0x28] sm:$0x3f] %v5170
        %5186 = vst [vmem:[%s5179 + $0x30] sm:$0xff] %v5171
        %5187 = vst [vmem:[%s5179 + $0x38] sm:$0x3f] %v5172
        %5188 = vst [vmem:[%s5179 + $0x40] sm:$0xff] %v5173
        %5189 = vst [vmem:[%s5179 + $0x48] sm:$0x3f] %v5174
        %5190 = vst [vmem:[%s5179 + $0x50] sm:$0xff] %v5175
        %5191 = vst [vmem:[%s5179 + $0x58] sm:$0x3f] %v5176
        %5192 = vst [vmem:[%s5179 + $0x60] sm:$0xff] %v5177
        %5193 = vst [vmem:[%s5179 + $0x68] sm:$0x3f] %v5178
        %s5194 = sand.u32 %s116, 1
        %s5195 = sand.u32 %s116, 1
        %s5196 = smul.addr %s5195, 224
        %s5197 = scalar_lea.vmem [#allocation5], %s5196
        // Predicated region
        $region109: #{depthwise_conv2d_nchw.1} parent=99 // pred_check
          %p5198 = pneg %p126
        $region110: #{depthwise_conv2d_nchw.1} parent=99 // pred_check_branch
          %5200 = sbr.rel (%p5198) target = $region112
        $region111: #{depthwise_conv2d_nchw.1} parent=99 // pred_region
          %s5201 = smul.addr %s18, 168
          %s5202 = sadd.s32 %s19, %s5201
          %s5203 = smul.addr %s5202, 8
          %s5204 = scalar_lea.vmem %s3, %s5203
          // Predicated region
          $region113: #{depthwise_conv2d_nchw.1} parent=111 // pred_check
            _
          $region114: #{depthwise_conv2d_nchw.1} parent=111 // pred_check_branch
            %5206 = sbr.rel (0) target = $region116
          $region115: #{depthwise_conv2d_nchw.1} parent=111 // pred_region
            // Predicated region
            $region117: #{depthwise_conv2d_nchw.1} parent=115 // pred_check
              _
            $region118: #{depthwise_conv2d_nchw.1} parent=115 // pred_check_branch
              %5208 = sbr.rel (0) target = $region120
            $region119: #{depthwise_conv2d_nchw.1} parent=115 // pred_region
              // Predicated region
              $region132: #{depthwise_conv2d_nchw.1} parent=119 // pred_check
                _
              $region133: #{depthwise_conv2d_nchw.1} parent=119 // pred_check_branch
                %5277 = sbr.rel (0) target = $region135
              $region134: #{depthwise_conv2d_nchw.1} parent=119 // pred_region
                loop: start=0, step=1, limit=1
                $region136: #{depthwise_conv2d_nchw.1} parent=134 // loop_pre_header
                  _
                $region137: #{depthwise_conv2d_nchw.1} parent=134 // loop_header
                  %s5279 = sphi 0, %s5283
                  %p5280 = scmp.ge.s32.totalorder %s5279, 1
                  %s5284 = sphi %s5197, %s5197
                  %s5285 = sphi %s5204, %s5204
                $region138: #{depthwise_conv2d_nchw.1} parent=134 // loop_header_branch
                  %5282 = sbr.rel (%p5280) target = $region142
                $region139: #{depthwise_conv2d_nchw.1} parent=134 // loop_body
                  %v5286 = vld [vmem:[%s5284] sm:$0xff]
                  %5287 = vst [vmem:[%s5285] sm:$0xff] %v5286
                  %v5288 = vld [vmem:[%s5284 + $0x8] sm:$0xff]
                  %5289 = vst [vmem:[%s5285 + $0x30] sm:$0xff] %v5288
                  %v5290 = vld [vmem:[%s5284 + $0x10] sm:$0xff]
                  %5291 = vst [vmem:[%s5285 + $0x60] sm:$0xff] %v5290
                  %v5292 = vld [vmem:[%s5284 + $0x18] sm:$0xff]
                  %5293 = vst [vmem:[%s5285 + $0x90] sm:$0xff] %v5292
                  %v5294 = vld [vmem:[%s5284 + $0x20] sm:$0xff]
                  %5295 = vst [vmem:[%s5285 + $0xc0] sm:$0xff] %v5294
                  %v5296 = vld [vmem:[%s5284 + $0x28] sm:$0xff]
                  %5297 = vst [vmem:[%s5285 + $0xf0] sm:$0xff] %v5296
                  %v5298 = vld [vmem:[%s5284 + $0x30] sm:$0xff]
                  %5299 = vst [vmem:[%s5285 + $0x120] sm:$0xff] %v5298
                  %v5300 = vld [vmem:[%s5284 + $0x38] sm:$0xff]
                  %5301 = vst [vmem:[%s5285 + $0x150] sm:$0xff] %v5300
                  %v5302 = vld [vmem:[%s5284 + $0x40] sm:$0xff]
                  %5303 = vst [vmem:[%s5285 + $0x180] sm:$0xff] %v5302
                  %v5304 = vld [vmem:[%s5284 + $0x48] sm:$0xff]
                  %5305 = vst [vmem:[%s5285 + $0x1b0] sm:$0xff] %v5304
                  %v5306 = vld [vmem:[%s5284 + $0x50] sm:$0xff]
                  %5307 = vst [vmem:[%s5285 + $0x1e0] sm:$0xff] %v5306
                  %v5308 = vld [vmem:[%s5284 + $0x58] sm:$0xff]
                  %5309 = vst [vmem:[%s5285 + $0x210] sm:$0xff] %v5308
                  %v5310 = vld [vmem:[%s5284 + $0x60] sm:$0xff]
                  %5311 = vst [vmem:[%s5285 + $0x240] sm:$0xff] %v5310
                  %v5312 = vld [vmem:[%s5284 + $0x68] sm:$0xff]
                  %5313 = vst [vmem:[%s5285 + $0x270] sm:$0xff] %v5312
                  %v5314 = vld [vmem:[%s5284 + $0x70] sm:$0xff]
                  %5315 = vst [vmem:[%s5285 + $0x2a0] sm:$0xff] %v5314
                  %v5316 = vld [vmem:[%s5284 + $0x78] sm:$0xff]
                  %5317 = vst [vmem:[%s5285 + $0x2d0] sm:$0xff] %v5316
                  %v5318 = vld [vmem:[%s5284 + $0x80] sm:$0xff]
                  %5319 = vst [vmem:[%s5285 + $0x300] sm:$0xff] %v5318
                  %v5320 = vld [vmem:[%s5284 + $0x88] sm:$0xff]
                  %5321 = vst [vmem:[%s5285 + $0x330] sm:$0xff] %v5320
                  %v5322 = vld [vmem:[%s5284 + $0x90] sm:$0xff]
                  %5323 = vst [vmem:[%s5285 + $0x360] sm:$0xff] %v5322
                  %v5324 = vld [vmem:[%s5284 + $0x98] sm:$0xff]
                  %5325 = vst [vmem:[%s5285 + $0x390] sm:$0xff] %v5324
                  %v5326 = vld [vmem:[%s5284 + $0xa0] sm:$0xff]
                  %5327 = vst [vmem:[%s5285 + $0x3c0] sm:$0xff] %v5326
                  %v5328 = vld [vmem:[%s5284 + $0xa8] sm:$0xff]
                  %5329 = vst [vmem:[%s5285 + $0x3f0] sm:$0xff] %v5328
                  %v5330 = vld [vmem:[%s5284 + $0xb0] sm:$0xff]
                  %5331 = vst [vmem:[%s5285 + $0x420] sm:$0xff] %v5330
                  %v5332 = vld [vmem:[%s5284 + $0xb8] sm:$0xff]
                  %5333 = vst [vmem:[%s5285 + $0x450] sm:$0xff] %v5332
                  %v5334 = vld [vmem:[%s5284 + $0xc0] sm:$0xff]
                  %5335 = vst [vmem:[%s5285 + $0x480] sm:$0xff] %v5334
                  %v5336 = vld [vmem:[%s5284 + $0xc8] sm:$0xff]
                  %5337 = vst [vmem:[%s5285 + $0x4b0] sm:$0xff] %v5336
                  %v5338 = vld [vmem:[%s5284 + $0xd0] sm:$0xff]
                  %5339 = vst [vmem:[%s5285 + $0x4e0] sm:$0xff] %v5338
                  %v5340 = vld [vmem:[%s5284 + $0xd8] sm:$0xff]
                  %5341 = vst [vmem:[%s5285 + $0x510] sm:$0xff] %v5340
                $region140: #{depthwise_conv2d_nchw.1} parent=134 // loop_footer
                  %s5283 = sadd.s32 1, %s5279
                $region141: #{depthwise_conv2d_nchw.1} parent=134 // loop_footer_branch
                  %5278 = sbr.rel target = $region137
                $region142: #{depthwise_conv2d_nchw.1} parent=134 // loop_exit
                  _
              $region135: #{depthwise_conv2d_nchw.1} parent=119 // pred_fallthru
                _
              // Predicated region
              $region143: #{depthwise_conv2d_nchw.1} parent=119 // pred_check
                _
              $region144: #{depthwise_conv2d_nchw.1} parent=119 // pred_check_branch
                %5343 = sbr.rel target = $region146
              $region145: #{depthwise_conv2d_nchw.1} parent=119 // pred_region
                _
              $region146: #{depthwise_conv2d_nchw.1} parent=119 // pred_fallthru
                _
            $region120: #{depthwise_conv2d_nchw.1} parent=115 // pred_fallthru
              _
            // Predicated region
            $region121: #{depthwise_conv2d_nchw.1} parent=115 // pred_check
              _
            $region122: #{depthwise_conv2d_nchw.1} parent=115 // pred_check_branch
              %5210 = sbr.rel target = $region124
            $region123: #{depthwise_conv2d_nchw.1} parent=115 // pred_region
              loop: start=0, step=1, limit=1
              $region125: #{depthwise_conv2d_nchw.1} parent=123 // loop_pre_header
                _
              $region126: #{depthwise_conv2d_nchw.1} parent=123 // loop_header
                %s5213 = sphi 0, %s5217
                %p5214 = scmp.ge.s32.totalorder %s5213, 1
                %s5218 = sphi %s5197, %s5197
                %s5219 = sphi %s5204, %s5204
              $region127: #{depthwise_conv2d_nchw.1} parent=123 // loop_header_branch
                %5216 = sbr.rel (%p5214) target = $region131
              $region128: #{depthwise_conv2d_nchw.1} parent=123 // loop_body
                %v5220 = vld [vmem:[%s5218] sm:$0xff]
                %5221 = vst [vmem:[%s5219] sm:$0xff] %v5220
                %v5222 = vld [vmem:[%s5218 + $0x8] sm:$0xff]
                %5223 = vst [vmem:[%s5219 + $0x30] sm:$0xff] %v5222
                %v5224 = vld [vmem:[%s5218 + $0x10] sm:$0xff]
                %5225 = vst [vmem:[%s5219 + $0x60] sm:$0xff] %v5224
                %v5226 = vld [vmem:[%s5218 + $0x18] sm:$0xff]
                %5227 = vst [vmem:[%s5219 + $0x90] sm:$0xff] %v5226
                %v5228 = vld [vmem:[%s5218 + $0x20] sm:$0xff]
                %5229 = vst [vmem:[%s5219 + $0xc0] sm:$0xff] %v5228
                %v5230 = vld [vmem:[%s5218 + $0x28] sm:$0xff]
                %5231 = vst [vmem:[%s5219 + $0xf0] sm:$0xff] %v5230
                %v5232 = vld [vmem:[%s5218 + $0x30] sm:$0xff]
                %5233 = vst [vmem:[%s5219 + $0x120] sm:$0xff] %v5232
                %v5234 = vld [vmem:[%s5218 + $0x38] sm:$0xff]
                %5235 = vst [vmem:[%s5219 + $0x150] sm:$0xff] %v5234
                %v5236 = vld [vmem:[%s5218 + $0x40] sm:$0xff]
                %5237 = vst [vmem:[%s5219 + $0x180] sm:$0xff] %v5236
                %v5238 = vld [vmem:[%s5218 + $0x48] sm:$0xff]
                %5239 = vst [vmem:[%s5219 + $0x1b0] sm:$0xff] %v5238
                %v5240 = vld [vmem:[%s5218 + $0x50] sm:$0xff]
                %5241 = vst [vmem:[%s5219 + $0x1e0] sm:$0xff] %v5240
                %v5242 = vld [vmem:[%s5218 + $0x58] sm:$0xff]
                %5243 = vst [vmem:[%s5219 + $0x210] sm:$0xff] %v5242
                %v5244 = vld [vmem:[%s5218 + $0x60] sm:$0xff]
                %5245 = vst [vmem:[%s5219 + $0x240] sm:$0xff] %v5244
                %v5246 = vld [vmem:[%s5218 + $0x68] sm:$0xff]
                %5247 = vst [vmem:[%s5219 + $0x270] sm:$0xff] %v5246
                %v5248 = vld [vmem:[%s5218 + $0x70] sm:$0xff]
                %5249 = vst [vmem:[%s5219 + $0x2a0] sm:$0xff] %v5248
                %v5250 = vld [vmem:[%s5218 + $0x78] sm:$0xff]
                %5251 = vst [vmem:[%s5219 + $0x2d0] sm:$0xff] %v5250
                %v5252 = vld [vmem:[%s5218 + $0x80] sm:$0xff]
                %5253 = vst [vmem:[%s5219 + $0x300] sm:$0xff] %v5252
                %v5254 = vld [vmem:[%s5218 + $0x88] sm:$0xff]
                %5255 = vst [vmem:[%s5219 + $0x330] sm:$0xff] %v5254
                %v5256 = vld [vmem:[%s5218 + $0x90] sm:$0xff]
                %5257 = vst [vmem:[%s5219 + $0x360] sm:$0xff] %v5256
                %v5258 = vld [vmem:[%s5218 + $0x98] sm:$0xff]
                %5259 = vst [vmem:[%s5219 + $0x390] sm:$0xff] %v5258
                %v5260 = vld [vmem:[%s5218 + $0xa0] sm:$0xff]
                %5261 = vst [vmem:[%s5219 + $0x3c0] sm:$0xff] %v5260
                %v5262 = vld [vmem:[%s5218 + $0xa8] sm:$0xff]
                %5263 = vst [vmem:[%s5219 + $0x3f0] sm:$0xff] %v5262
                %v5264 = vld [vmem:[%s5218 + $0xb0] sm:$0xff]
                %5265 = vst [vmem:[%s5219 + $0x420] sm:$0xff] %v5264
                %v5266 = vld [vmem:[%s5218 + $0xb8] sm:$0xff]
                %5267 = vst [vmem:[%s5219 + $0x450] sm:$0xff] %v5266
                %v5268 = vld [vmem:[%s5218 + $0xc0] sm:$0xff]
                %5269 = vst [vmem:[%s5219 + $0x480] sm:$0xff] %v5268
                %v5270 = vld [vmem:[%s5218 + $0xc8] sm:$0xff]
                %5271 = vst [vmem:[%s5219 + $0x4b0] sm:$0xff] %v5270
                %v5272 = vld [vmem:[%s5218 + $0xd0] sm:$0xff]
                %5273 = vst [vmem:[%s5219 + $0x4e0] sm:$0xff] %v5272
                %v5274 = vld [vmem:[%s5218 + $0xd8] sm:$0xff]
                %5275 = vst [vmem:[%s5219 + $0x510] sm:$0xff] %v5274
              $region129: #{depthwise_conv2d_nchw.1} parent=123 // loop_footer
                %s5217 = sadd.s32 1, %s5213
              $region130: #{depthwise_conv2d_nchw.1} parent=123 // loop_footer_branch
                %5212 = sbr.rel target = $region126
              $region131: #{depthwise_conv2d_nchw.1} parent=123 // loop_exit
                _
            $region124: #{depthwise_conv2d_nchw.1} parent=115 // pred_fallthru
              _
          $region116: #{depthwise_conv2d_nchw.1} parent=111 // pred_fallthru
            _
          %5344 = vnop
        $region112: #{depthwise_conv2d_nchw.1} parent=99 // pred_fallthru
          _
      $region100: #{depthwise_conv2d_nchw.1} parent=5 // pred_fallthru
        _
      %p5345 = scmp.le.s32.totalorder 2, %s9
      // Predicated region
      $region147: #{depthwise_conv2d_nchw.1} parent=5 // pred_check
        %p5346 = pneg %p5345
      $region148: #{depthwise_conv2d_nchw.1} parent=5 // pred_check_branch
        %5348 = sbr.rel (%p5346) target = $region150
      $region149: #{depthwise_conv2d_nchw.1} parent=5 // pred_region
        %s5349 = ssub.s32 %s9, 2
        // Predicated region
        $region151: #{depthwise_conv2d_nchw.1} parent=149 // pred_check
          %p5350 = pneg %p132
        $region152: #{depthwise_conv2d_nchw.1} parent=149 // pred_check_branch
          %5352 = sbr.rel (%p5350) target = $region154
        $region153: #{depthwise_conv2d_nchw.1} parent=149 // pred_region
          %s5353 = sand.u32 %s117, 1
          %s5354 = sand.u32 %s117, 1
          %s5355 = smul.addr %s5354, 224
          %s5356 = scalar_lea.vmem [#allocation5], %s5355
        $region154: #{depthwise_conv2d_nchw.1} parent=149 // pred_fallthru
          _
      $region150: #{depthwise_conv2d_nchw.1} parent=5 // pred_fallthru
        _
    $region6: #{depthwise_conv2d_nchw.1} parent=1 // loop_footer
      %s13 = sadd.s32 1, %s9
    $region7: #{depthwise_conv2d_nchw.1} parent=1 // loop_footer_branch
      %8 = sbr.rel target = $region3
    $region8: #{depthwise_conv2d_nchw.1} parent=1 // loop_exit
      _

</llo_original>
